<compile_context>
chip_gen: v7x
topology: tpu7x:2x2x1
jax: 0.10.0
libtpu: 0.0.40
codegen_flags: <defaults>
</compile_context>

<pallas_src>
import jax
import jax.numpy as jnp
from jax.experimental import pallas as pl
from jax.experimental.pallas import tpu as pltpu


# ----------------------------------------------------------------------------
# Fused RNANet kernel factory.
# Inputs : lengths (Bp,1) i32, 1/T_eff (1,1) f32, x_flat (T*Bp, D) f32,
#          [W_ih^T (Fin,4H), W_hh^T (H,4H), b (1,4H)] per layer/direction,
#          fc_w (n_dirs*H, O), fc_b (1, O)
# Output : (Bp, O) f32
# Scratch: seq (T*Bp, n_dirs*H)   -- layer outputs / next-layer inputs (VMEM)
#          xp  (T*Bp, 4H) per dir -- hoisted input projections (VMEM)
# ----------------------------------------------------------------------------
def _make_rnanet_kernel(T, Bp, num_layers, bidirectional, hidden_dim):
    n_dirs = 2 if bidirectional else 1
    H = hidden_dim
    n_w = num_layers * n_dirs * 3

    def kernel(len_ref, invt_ref, x_ref, *rest):
        w_refs = rest[:n_w]
        fc_w_ref, fc_b_ref, out_ref, seq_ref = rest[n_w:n_w + 4]
        xp_refs = rest[n_w + 4:]

        lengths = len_ref[...]                       # (Bp, 1) int32

        w_i = 0
        for layer_idx in range(num_layers):
            # ---- hoisted input projection: one MXU pass per direction ----
            # (for layer>0 the previous layer's output in seq_ref is fully
            #  consumed here, so it is safe to overwrite below)
            src = x_ref[...] if layer_idx == 0 else seq_ref[...]   # (T*Bp, Fin)
            whh_vals = []
            for d in range(n_dirs):
                wih = w_refs[w_i][...]               # (Fin, 4H)
                whh_vals.append(w_refs[w_i + 1][...])
                b = w_refs[w_i + 2][...]             # (1, 4H)
                w_i += 3
                xp_refs[d][...] = (
                    jnp.dot(src, wih, preferred_element_type=jnp.float32) + b)

            # ---- serial recurrence over time (fully unrolled; T static) ----
            zeros = jnp.zeros((Bp, H), jnp.float32)
            h = [zeros for _ in range(n_dirs)]
            c = [zeros for _ in range(n_dirs)]
            for s in range(T):
                for d in range(n_dirs):
                    # backward direction walks time in reverse inside the kernel
                    t = s if d == 0 else T - 1 - s
                    m = (lengths > t).astype(jnp.float32)          # (Bp, 1)
                    xp_t = xp_refs[d][t * Bp:(t + 1) * Bp, :]      # (Bp, 4H)
                    gates = xp_t + jnp.dot(h[d], whh_vals[d],
                                           preferred_element_type=jnp.float32)
                    # PyTorch gate order: i, f, g, o
                    i_g = jax.nn.sigmoid(gates[:, 0 * H:1 * H])
                    f_g = jax.nn.sigmoid(gates[:, 1 * H:2 * H])
                    g_g = jnp.tanh(gates[:, 2 * H:3 * H])
                    o_g = jax.nn.sigmoid(gates[:, 3 * H:4 * H])
                    c_new = f_g * c[d] + i_g * g_g
                    h_new = o_g * jnp.tanh(c_new)
                    # mask-gated state: frozen (fwd) / still zero (bwd) past len
                    c[d] = m * c_new + (1.0 - m) * c[d]
                    h[d] = m * h_new + (1.0 - m) * h[d]
                    # write at the ORIGINAL time index; padded positions stay 0
                    seq_ref[t * Bp:(t + 1) * Bp, d * H:(d + 1) * H] = h[d] * m

        # ---- head: mean over time, Linear, Sigmoid (all in VMEM) ----
        feat_sum = jnp.zeros((Bp, n_dirs * H), jnp.float32)
        for t in range(T):
            feat_sum = feat_sum + seq_ref[t * Bp:(t + 1) * Bp, :]
        feat = feat_sum * invt_ref[...]              # mean over packed max length
        logits = jnp.dot(feat, fc_w_ref[...],
                         preferred_element_type=jnp.float32) + fc_b_ref[...]
        out_ref[...] = jax.nn.sigmoid(logits)

    return kernel


# ----------------------------------------------------------------------------
# Wrapper: single pallas_call for the whole forward pass.
# ----------------------------------------------------------------------------
def rnanet_forward_pallas(params, x, x_lengths, y):
    """x: (B, T, input_dim) batch-first (PyTorch convention); returns (out, y)."""
    B, T, D = x.shape
    layers = params["lstm"]
    num_layers = len(layers)
    bidirectional = "bwd" in layers[0]
    n_dirs = 2 if bidirectional else 1
    H = layers[0]["fwd"][1].shape[0]
    O = params["fc_w"].shape[1]

    Bp = ((B + 7) // 8) * 8                          # pad batch to 8-sublane rows
    x_pad = jnp.pad(x.astype(jnp.float32), ((0, Bp - B), (0, 0), (0, 0)))
    # single layout change: (B,T,D) -> time-major, flattened (T*Bp, D)
    x_flat = jnp.transpose(x_pad, (1, 0, 2)).reshape(T * Bp, D)
    len_pad = jnp.pad(x_lengths.astype(jnp.int32), (0, Bp - B)).reshape(Bp, 1)
    inv_t = (1.0 / jnp.max(x_lengths).astype(jnp.float32)).reshape(1, 1)

    inputs = [len_pad, inv_t, x_flat]
    for layer in layers:
        for d in (("fwd", "bwd") if bidirectional else ("fwd",)):
            inputs.extend(layer[d])                  # wih^T, whh^T, bias
    inputs.extend([params["fc_w"], params["fc_b"]])

    kernel = _make_rnanet_kernel(T, Bp, num_layers, bidirectional, H)
    out = pl.pallas_call(
        kernel,
        out_shape=jax.ShapeDtypeStruct((Bp, O), jnp.float32),
        scratch_shapes=(
            [pltpu.VMEM((T * Bp, n_dirs * H), jnp.float32)]        # seq buffer
            + [pltpu.VMEM((T * Bp, 4 * H), jnp.float32)] * n_dirs  # x-projections
        ),
    )(*inputs)
    return out[:B], y


# ----------------------------------------------------------------------------
# Pure-JAX reference (numerical sanity check only).
# ----------------------------------------------------------------------------
def rnanet_forward_ref(params, x, x_lengths, y):
    B, T, _ = x.shape
    layers = params["lstm"]
    bidirectional = "bwd" in layers[0]
    H = layers[0]["fwd"][1].shape[0]
    x = x.astype(jnp.float32)

    def run_dir(inp_btf, wih, whh, b, reverse):
        h = jnp.zeros((B, H), jnp.float32)
        c = jnp.zeros((B, H), jnp.float32)
        outs = [None] * T
        order = range(T - 1, -1, -1) if reverse else range(T)
        for t in order:
            m = (x_lengths > t).astype(jnp.float32)[:, None]
            gates = inp_btf[:, t, :] @ wih + h @ whh + b
            i = jax.nn.sigmoid(gates[:, :H])
            f = jax.nn.sigmoid(gates[:, H:2 * H])
            g = jnp.tanh(gates[:, 2 * H:3 * H])
            o = jax.nn.sigmoid(gates[:, 3 * H:])
            c_new = f * c + i * g
            h_new = o * jnp.tanh(c_new)
            c = m * c_new + (1.0 - m) * c
            h = m * h_new + (1.0 - m) * h
            outs[t] = h * m
        return jnp.stack(outs, axis=1)               # (B, T, H)

    inp = x
    for layer in layers:
        parts = [run_dir(inp, *layer["fwd"], reverse=False)]
        if bidirectional:
            parts.append(run_dir(inp, *layer["bwd"], reverse=True))
        inp = jnp.concatenate(parts, axis=-1)
    feat = jnp.sum(inp, axis=1) / jnp.max(x_lengths).astype(jnp.float32)
    out = jax.nn.sigmoid(feat @ params["fc_w"] + params["fc_b"])
    return out, y


# ----------------------------------------------------------------------------
# Deterministic parameter init (shapes follow nn.LSTM / nn.Linear).
# ----------------------------------------------------------------------------
def init_params(key, input_dim, hidden_dim, output_dim, num_layers, biFlag):
    bi = 2 if biFlag else 1
    scale = 1.0 / jnp.sqrt(jnp.float32(hidden_dim))
    keys = iter(jax.random.split(key, num_layers * bi * 4 + 2))

    def u(shape):
        return jax.random.uniform(next(keys), shape, jnp.float32, -scale, scale)

    layers = []
    for l in range(num_layers):
        in_dim = input_dim if l == 0 else hidden_dim * bi
        layer = {}
        for d in (["fwd", "bwd"] if biFlag else ["fwd"]):
            wih_t = u((in_dim, 4 * hidden_dim))       # W_ih^T
            whh_t = u((hidden_dim, 4 * hidden_dim))   # W_hh^T
            bias = u((1, 4 * hidden_dim)) + u((1, 4 * hidden_dim))  # b_ih + b_hh
            layer[d] = (wih_t, whh_t, bias)
        layers.append(layer)

    fc_w = u((hidden_dim * bi, output_dim))
    fc_b = u((1, output_dim))
    return {"lstm": layers, "fc_w": fc_w, "fc_b": fc_b}


if __name__ == "__main__":
    input_dim, hidden_dim, output_dim, num_layers, biFlag = 8, 32, 4, 2, True
    B, T = 4, 8

    key = jax.random.PRNGKey(0)
    k_param, k_x, k_y = jax.random.split(key, 3)

    params = init_params(k_param, input_dim, hidden_dim, output_dim,
                         num_layers, biFlag)

    x = jax.random.normal(k_x, (B, T, input_dim), jnp.float32)
    # pack_padded_sequence expects descending lengths; max length == T
    x_lengths = jnp.array([8, 7, 5, 3], jnp.int32)
    y = jax.random.randint(k_y, (B,), 0, output_dim, jnp.int32)

    fwd = jax.jit(rnanet_forward_pallas)
    out, y_out = fwd(params, x, x_lengths, y)
    out = jax.block_until_ready(out)

    # sanity check against a pure-JAX reference (generous tolerance for MXU f32)
    out_ref, _ = rnanet_forward_ref(params, x, x_lengths, y)
    assert out.shape == (B, output_dim)
    assert jnp.allclose(out, out_ref, atol=2e-2), "mismatch vs reference"

    print("KERNEL_OK")
</pallas_src>

<mosaic_0001>
module attributes {stable_mosaic.version = 11 : i64} {
  func.func @kernel(%arg0: memref<8x1xi32, #tpu.memory_space<vmem>>, %arg1: memref<1x1xf32, #tpu.memory_space<vmem>>, %arg2: memref<64x8xf32, #tpu.memory_space<vmem>>, %arg3: memref<8x128xf32, #tpu.memory_space<vmem>>, %arg4: memref<32x128xf32, #tpu.memory_space<vmem>>, %arg5: memref<1x128xf32, #tpu.memory_space<vmem>>, %arg6: memref<8x128xf32, #tpu.memory_space<vmem>>, %arg7: memref<32x128xf32, #tpu.memory_space<vmem>>, %arg8: memref<1x128xf32, #tpu.memory_space<vmem>>, %arg9: memref<64x128xf32, #tpu.memory_space<vmem>>, %arg10: memref<32x128xf32, #tpu.memory_space<vmem>>, %arg11: memref<1x128xf32, #tpu.memory_space<vmem>>, %arg12: memref<64x128xf32, #tpu.memory_space<vmem>>, %arg13: memref<32x128xf32, #tpu.memory_space<vmem>>, %arg14: memref<1x128xf32, #tpu.memory_space<vmem>>, %arg15: memref<64x4xf32, #tpu.memory_space<vmem>>, %arg16: memref<1x4xf32, #tpu.memory_space<vmem>>, %arg17: memref<8x4xf32, #tpu.memory_space<vmem>>, %arg18: memref<64x64xf32, #tpu.memory_space<vmem>>, %arg19: memref<64x128xf32, #tpu.memory_space<vmem>>, %arg20: memref<64x128xf32, #tpu.memory_space<vmem>>) attributes {dimension_semantics = [], scalar_prefetch = 0 : i64, scratch_operands = 3 : i64, tpu.core_type = #tpu.core_type<tc>} {
    %c0 = arith.constant 0 : index
    %c0_0 = arith.constant 0 : index
    %0 = vector.load %arg0[%c0, %c0_0] : memref<8x1xi32, #tpu.memory_space<vmem>>, vector<8x1xi32>
    %c0_1 = arith.constant 0 : index
    %c0_2 = arith.constant 0 : index
    %1 = vector.load %arg2[%c0_1, %c0_2] : memref<64x8xf32, #tpu.memory_space<vmem>>, vector<64x8xf32>
    %c0_3 = arith.constant 0 : index
    %c0_4 = arith.constant 0 : index
    %2 = vector.load %arg3[%c0_3, %c0_4] : memref<8x128xf32, #tpu.memory_space<vmem>>, vector<8x128xf32>
    %c0_5 = arith.constant 0 : index
    %c0_6 = arith.constant 0 : index
    %3 = vector.load %arg4[%c0_5, %c0_6] : memref<32x128xf32, #tpu.memory_space<vmem>>, vector<32x128xf32>
    %c0_7 = arith.constant 0 : index
    %c0_8 = arith.constant 0 : index
    %4 = vector.load %arg5[%c0_7, %c0_8] : memref<1x128xf32, #tpu.memory_space<vmem>>, vector<1x128xf32>
    %cst = arith.constant dense<0.000000e+00> : vector<64x128xf32>
    %5 = tpu.matmul %1, %2, %cst {dimension_numbers = #tpu.dot_dimension_numbers<[1], [0], [0], [1], [0, 0, 1, 1], [], []>} : vector<64x8xf32>, vector<8x128xf32>, vector<64x128xf32> -> vector<64x128xf32>
    %6 = vector.broadcast %4 : vector<1x128xf32> to vector<64x128xf32>
    %7 = arith.addf %5, %6 : vector<64x128xf32>
    %c0_9 = arith.constant 0 : index
    %c0_10 = arith.constant 0 : index
    %8 = vector.load %arg19[%c0_9, %c0_10] : memref<64x128xf32, #tpu.memory_space<vmem>>, vector<64x128xf32>
    tpu.vector_store %arg19[%c0_9, %c0_10], %7 {strides = array<i32>} : memref<64x128xf32, #tpu.memory_space<vmem>>, vector<64x128xf32>,
    %c0_11 = arith.constant 0 : index
    %c0_12 = arith.constant 0 : index
    %9 = vector.load %arg6[%c0_11, %c0_12] : memref<8x128xf32, #tpu.memory_space<vmem>>, vector<8x128xf32>
    %c0_13 = arith.constant 0 : index
    %c0_14 = arith.constant 0 : index
    %10 = vector.load %arg7[%c0_13, %c0_14] : memref<32x128xf32, #tpu.memory_space<vmem>>, vector<32x128xf32>
    %c0_15 = arith.constant 0 : index
    %c0_16 = arith.constant 0 : index
    %11 = vector.load %arg8[%c0_15, %c0_16] : memref<1x128xf32, #tpu.memory_space<vmem>>, vector<1x128xf32>
    %cst_17 = arith.constant dense<0.000000e+00> : vector<64x128xf32>
    %12 = tpu.matmul %1, %9, %cst_17 {dimension_numbers = #tpu.dot_dimension_numbers<[1], [0], [0], [1], [0, 0, 1, 1], [], []>} : vector<64x8xf32>, vector<8x128xf32>, vector<64x128xf32> -> vector<64x128xf32>
    %13 = vector.broadcast %11 : vector<1x128xf32> to vector<64x128xf32>
    %14 = arith.addf %12, %13 : vector<64x128xf32>
    %c0_18 = arith.constant 0 : index
    %c0_19 = arith.constant 0 : index
    %15 = vector.load %arg20[%c0_18, %c0_19] : memref<64x128xf32, #tpu.memory_space<vmem>>, vector<64x128xf32>
    tpu.vector_store %arg20[%c0_18, %c0_19], %14 {strides = array<i32>} : memref<64x128xf32, #tpu.memory_space<vmem>>, vector<64x128xf32>,
    %cst_20 = arith.constant 0.000000e+00 : f32
    %16 = vector.broadcast %cst_20 : f32 to vector<8x32xf32>
    %c0_i32 = arith.constant 0 : i32
    %17 = vector.broadcast %c0_i32 : i32 to vector<8x1xi32>
    %18 = arith.cmpi sgt, %0, %17 : vector<8x1xi32>
    %19 = arith.extui %18 : vector<8x1xi1> to vector<8x1xi32>
    %20 = arith.sitofp %19 : vector<8x1xi32> to vector<8x1xf32>
    %c0_21 = arith.constant 0 : index
    %c0_22 = arith.constant 0 : index
    %21 = vector.load %arg19[%c0_21, %c0_22] : memref<64x128xf32, #tpu.memory_space<vmem>>, vector<8x128xf32>
    %cst_23 = arith.constant dense<0.000000e+00> : vector<8x128xf32>
    %22 = tpu.matmul %16, %3, %cst_23 {dimension_numbers = #tpu.dot_dimension_numbers<[1], [0], [0], [1], [0, 0, 1, 1], [], []>} : vector<8x32xf32>, vector<32x128xf32>, vector<8x128xf32> -> vector<8x128xf32>
    %23 = arith.addf %21, %22 : vector<8x128xf32>
    %24 = vector.extract_strided_slice %23 {offsets = [0, 0], sizes = [8, 32], strides = [1, 1]} : vector<8x128xf32> to vector<8x32xf32>
    %25 = arith.negf %24 : vector<8x32xf32>
    %26 = math.exp %25 : vector<8x32xf32>
    %cst_24 = arith.constant 1.000000e+00 : f32
    %27 = vector.broadcast %cst_24 : f32 to vector<8x32xf32>
    %28 = arith.addf %27, %26 : vector<8x32xf32>
    %29 = arith.divf %27, %28 : vector<8x32xf32>
    %30 = vector.extract_strided_slice %23 {offsets = [0, 32], sizes = [8, 32], strides = [1, 1]} : vector<8x128xf32> to vector<8x32xf32>
    %31 = arith.negf %30 : vector<8x32xf32>
    %32 = math.exp %31 : vector<8x32xf32>
    %cst_25 = arith.constant 1.000000e+00 : f32
    %33 = vector.broadcast %cst_25 : f32 to vector<8x32xf32>
    %34 = arith.addf %33, %32 : vector<8x32xf32>
    %35 = arith.divf %33, %34 : vector<8x32xf32>
    %36 = vector.extract_strided_slice %23 {offsets = [0, 64], sizes = [8, 32], strides = [1, 1]} : vector<8x128xf32> to vector<8x32xf32>
    %37 = math.tanh %36 : vector<8x32xf32>
    %38 = vector.extract_strided_slice %23 {offsets = [0, 96], sizes = [8, 32], strides = [1, 1]} : vector<8x128xf32> to vector<8x32xf32>
    %39 = arith.negf %38 : vector<8x32xf32>
    %40 = math.exp %39 : vector<8x32xf32>
    %cst_26 = arith.constant 1.000000e+00 : f32
    %41 = vector.broadcast %cst_26 : f32 to vector<8x32xf32>
    %42 = arith.addf %41, %40 : vector<8x32xf32>
    %43 = arith.divf %41, %42 : vector<8x32xf32>
    %44 = arith.mulf %35, %16 : vector<8x32xf32>
    %45 = arith.mulf %29, %37 : vector<8x32xf32>
    %46 = arith.addf %44, %45 : vector<8x32xf32>
    %47 = math.tanh %46 : vector<8x32xf32>
    %48 = arith.mulf %43, %47 : vector<8x32xf32>
    %49 = vector.broadcast %20 : vector<8x1xf32> to vector<8x32xf32>
    %50 = arith.mulf %49, %46 : vector<8x32xf32>
    %cst_27 = arith.constant 1.000000e+00 : f32
    %51 = vector.broadcast %cst_27 : f32 to vector<8x1xf32>
    %52 = arith.subf %51, %20 : vector<8x1xf32>
    %53 = vector.broadcast %52 : vector<8x1xf32> to vector<8x32xf32>
    %54 = arith.mulf %53, %16 : vector<8x32xf32>
    %55 = arith.addf %50, %54 : vector<8x32xf32>
    %56 = vector.broadcast %20 : vector<8x1xf32> to vector<8x32xf32>
    %57 = arith.mulf %56, %48 : vector<8x32xf32>
    %cst_28 = arith.constant 1.000000e+00 : f32
    %58 = vector.broadcast %cst_28 : f32 to vector<8x1xf32>
    %59 = arith.subf %58, %20 : vector<8x1xf32>
    %60 = vector.broadcast %59 : vector<8x1xf32> to vector<8x32xf32>
    %61 = arith.mulf %60, %16 : vector<8x32xf32>
    %62 = arith.addf %57, %61 : vector<8x32xf32>
    %63 = vector.broadcast %20 : vector<8x1xf32> to vector<8x32xf32>
    %64 = arith.mulf %62, %63 : vector<8x32xf32>
    %c0_29 = arith.constant 0 : index
    %c0_30 = arith.constant 0 : index
    %65 = vector.load %arg18[%c0_29, %c0_30] : memref<64x64xf32, #tpu.memory_space<vmem>>, vector<8x32xf32>
    tpu.vector_store %arg18[%c0_29, %c0_30], %64 {strides = array<i32>} : memref<64x64xf32, #tpu.memory_space<vmem>>, vector<8x32xf32>,
    %c7_i32 = arith.constant 7 : i32
    %66 = vector.broadcast %c7_i32 : i32 to vector<8x1xi32>
    %67 = arith.cmpi sgt, %0, %66 : vector<8x1xi32>
    %68 = arith.extui %67 : vector<8x1xi1> to vector<8x1xi32>
    %69 = arith.sitofp %68 : vector<8x1xi32> to vector<8x1xf32>
    %c56 = arith.constant 56 : index
    %c0_31 = arith.constant 0 : index
    %70 = vector.load %arg20[%c56, %c0_31] : memref<64x128xf32, #tpu.memory_space<vmem>>, vector<8x128xf32>
    %cst_32 = arith.constant dense<0.000000e+00> : vector<8x128xf32>
    %71 = tpu.matmul %16, %10, %cst_32 {dimension_numbers = #tpu.dot_dimension_numbers<[1], [0], [0], [1], [0, 0, 1, 1], [], []>} : vector<8x32xf32>, vector<32x128xf32>, vector<8x128xf32> -> vector<8x128xf32>
    %72 = arith.addf %70, %71 : vector<8x128xf32>
    %73 = vector.extract_strided_slice %72 {offsets = [0, 0], sizes = [8, 32], strides = [1, 1]} : vector<8x128xf32> to vector<8x32xf32>
    %74 = arith.negf %73 : vector<8x32xf32>
    %75 = math.exp %74 : vector<8x32xf32>
    %cst_33 = arith.constant 1.000000e+00 : f32
    %76 = vector.broadcast %cst_33 : f32 to vector<8x32xf32>
    %77 = arith.addf %76, %75 : vector<8x32xf32>
    %78 = arith.divf %76, %77 : vector<8x32xf32>
    %79 = vector.extract_strided_slice %72 {offsets = [0, 32], sizes = [8, 32], strides = [1, 1]} : vector<8x128xf32> to vector<8x32xf32>
    %80 = arith.negf %79 : vector<8x32xf32>
    %81 = math.exp %80 : vector<8x32xf32>
    %cst_34 = arith.constant 1.000000e+00 : f32
    %82 = vector.broadcast %cst_34 : f32 to vector<8x32xf32>
    %83 = arith.addf %82, %81 : vector<8x32xf32>
    %84 = arith.divf %82, %83 : vector<8x32xf32>
    %85 = vector.extract_strided_slice %72 {offsets = [0, 64], sizes = [8, 32], strides = [1, 1]} : vector<8x128xf32> to vector<8x32xf32>
    %86 = math.tanh %85 : vector<8x32xf32>
    %87 = vector.extract_strided_slice %72 {offsets = [0, 96], sizes = [8, 32], strides = [1, 1]} : vector<8x128xf32> to vector<8x32xf32>
    %88 = arith.negf %87 : vector<8x32xf32>
    %89 = math.exp %88 : vector<8x32xf32>
    %cst_35 = arith.constant 1.000000e+00 : f32
    %90 = vector.broadcast %cst_35 : f32 to vector<8x32xf32>
    %91 = arith.addf %90, %89 : vector<8x32xf32>
    %92 = arith.divf %90, %91 : vector<8x32xf32>
    %93 = arith.mulf %84, %16 : vector<8x32xf32>
    %94 = arith.mulf %78, %86 : vector<8x32xf32>
    %95 = arith.addf %93, %94 : vector<8x32xf32>
    %96 = math.tanh %95 : vector<8x32xf32>
    %97 = arith.mulf %92, %96 : vector<8x32xf32>
    %98 = vector.broadcast %69 : vector<8x1xf32> to vector<8x32xf32>
    %99 = arith.mulf %98, %95 : vector<8x32xf32>
    %cst_36 = arith.constant 1.000000e+00 : f32
    %100 = vector.broadcast %cst_36 : f32 to vector<8x1xf32>
    %101 = arith.subf %100, %69 : vector<8x1xf32>
    %102 = vector.broadcast %101 : vector<8x1xf32> to vector<8x32xf32>
    %103 = arith.mulf %102, %16 : vector<8x32xf32>
    %104 = arith.addf %99, %103 : vector<8x32xf32>
    %105 = vector.broadcast %69 : vector<8x1xf32> to vector<8x32xf32>
    %106 = arith.mulf %105, %97 : vector<8x32xf32>
    %cst_37 = arith.constant 1.000000e+00 : f32
    %107 = vector.broadcast %cst_37 : f32 to vector<8x1xf32>
    %108 = arith.subf %107, %69 : vector<8x1xf32>
    %109 = vector.broadcast %108 : vector<8x1xf32> to vector<8x32xf32>
    %110 = arith.mulf %109, %16 : vector<8x32xf32>
    %111 = arith.addf %106, %110 : vector<8x32xf32>
    %112 = vector.broadcast %69 : vector<8x1xf32> to vector<8x32xf32>
    %113 = arith.mulf %111, %112 : vector<8x32xf32>
    %c56_38 = arith.constant 56 : index
    %c32 = arith.constant 32 : index
    %114 = vector.load %arg18[%c56_38, %c32] : memref<64x64xf32, #tpu.memory_space<vmem>>, vector<8x32xf32>
    tpu.vector_store %arg18[%c56_38, %c32], %113 {strides = array<i32>} : memref<64x64xf32, #tpu.memory_space<vmem>>, vector<8x32xf32>,
    %c1_i32 = arith.constant 1 : i32
    %115 = vector.broadcast %c1_i32 : i32 to vector<8x1xi32>
    %116 = arith.cmpi sgt, %0, %115 : vector<8x1xi32>
    %117 = arith.extui %116 : vector<8x1xi1> to vector<8x1xi32>
    %118 = arith.sitofp %117 : vector<8x1xi32> to vector<8x1xf32>
    %c8 = arith.constant 8 : index
    %c0_39 = arith.constant 0 : index
    %119 = vector.load %arg19[%c8, %c0_39] : memref<64x128xf32, #tpu.memory_space<vmem>>, vector<8x128xf32>
    %cst_40 = arith.constant dense<0.000000e+00> : vector<8x128xf32>
    %120 = tpu.matmul %62, %3, %cst_40 {dimension_numbers = #tpu.dot_dimension_numbers<[1], [0], [0], [1], [0, 0, 1, 1], [], []>} : vector<8x32xf32>, vector<32x128xf32>, vector<8x128xf32> -> vector<8x128xf32>
    %121 = arith.addf %119, %120 : vector<8x128xf32>
    %122 = vector.extract_strided_slice %121 {offsets = [0, 0], sizes = [8, 32], strides = [1, 1]} : vector<8x128xf32> to vector<8x32xf32>
    %123 = arith.negf %122 : vector<8x32xf32>
    %124 = math.exp %123 : vector<8x32xf32>
    %cst_41 = arith.constant 1.000000e+00 : f32
    %125 = vector.broadcast %cst_41 : f32 to vector<8x32xf32>
    %126 = arith.addf %125, %124 : vector<8x32xf32>
    %127 = arith.divf %125, %126 : vector<8x32xf32>
    %128 = vector.extract_strided_slice %121 {offsets = [0, 32], sizes = [8, 32], strides = [1, 1]} : vector<8x128xf32> to vector<8x32xf32>
    %129 = arith.negf %128 : vector<8x32xf32>
    %130 = math.exp %129 : vector<8x32xf32>
    %cst_42 = arith.constant 1.000000e+00 : f32
    %131 = vector.broadcast %cst_42 : f32 to vector<8x32xf32>
    %132 = arith.addf %131, %130 : vector<8x32xf32>
    %133 = arith.divf %131, %132 : vector<8x32xf32>
    %134 = vector.extract_strided_slice %121 {offsets = [0, 64], sizes = [8, 32], strides = [1, 1]} : vector<8x128xf32> to vector<8x32xf32>
    %135 = math.tanh %134 : vector<8x32xf32>
    %136 = vector.extract_strided_slice %121 {offsets = [0, 96], sizes = [8, 32], strides = [1, 1]} : vector<8x128xf32> to vector<8x32xf32>
    %137 = arith.negf %136 : vector<8x32xf32>
    %138 = math.exp %137 : vector<8x32xf32>
    %cst_43 = arith.constant 1.000000e+00 : f32
    %139 = vector.broadcast %cst_43 : f32 to vector<8x32xf32>
    %140 = arith.addf %139, %138 : vector<8x32xf32>
    %141 = arith.divf %139, %140 : vector<8x32xf32>
    %142 = arith.mulf %133, %55 : vector<8x32xf32>
    %143 = arith.mulf %127, %135 : vector<8x32xf32>
    %144 = arith.addf %142, %143 : vector<8x32xf32>
    %145 = math.tanh %144 : vector<8x32xf32>
    %146 = arith.mulf %141, %145 : vector<8x32xf32>
    %147 = vector.broadcast %118 : vector<8x1xf32> to vector<8x32xf32>
    %148 = arith.mulf %147, %144 : vector<8x32xf32>
    %cst_44 = arith.constant 1.000000e+00 : f32
    %149 = vector.broadcast %cst_44 : f32 to vector<8x1xf32>
    %150 = arith.subf %149, %118 : vector<8x1xf32>
    %151 = vector.broadcast %150 : vector<8x1xf32> to vector<8x32xf32>
    %152 = arith.mulf %151, %55 : vector<8x32xf32>
    %153 = arith.addf %148, %152 : vector<8x32xf32>
    %154 = vector.broadcast %118 : vector<8x1xf32> to vector<8x32xf32>
    %155 = arith.mulf %154, %146 : vector<8x32xf32>
    %cst_45 = arith.constant 1.000000e+00 : f32
    %156 = vector.broadcast %cst_45 : f32 to vector<8x1xf32>
    %157 = arith.subf %156, %118 : vector<8x1xf32>
    %158 = vector.broadcast %157 : vector<8x1xf32> to vector<8x32xf32>
    %159 = arith.mulf %158, %62 : vector<8x32xf32>
    %160 = arith.addf %155, %159 : vector<8x32xf32>
    %161 = vector.broadcast %118 : vector<8x1xf32> to vector<8x32xf32>
    %162 = arith.mulf %160, %161 : vector<8x32xf32>
    %c8_46 = arith.constant 8 : index
    %c0_47 = arith.constant 0 : index
    %163 = vector.load %arg18[%c8_46, %c0_47] : memref<64x64xf32, #tpu.memory_space<vmem>>, vector<8x32xf32>
    tpu.vector_store %arg18[%c8_46, %c0_47], %162 {strides = array<i32>} : memref<64x64xf32, #tpu.memory_space<vmem>>, vector<8x32xf32>,
    %c6_i32 = arith.constant 6 : i32
    %164 = vector.broadcast %c6_i32 : i32 to vector<8x1xi32>
    %165 = arith.cmpi sgt, %0, %164 : vector<8x1xi32>
    %166 = arith.extui %165 : vector<8x1xi1> to vector<8x1xi32>
    %167 = arith.sitofp %166 : vector<8x1xi32> to vector<8x1xf32>
    %c48 = arith.constant 48 : index
    %c0_48 = arith.constant 0 : index
    %168 = vector.load %arg20[%c48, %c0_48] : memref<64x128xf32, #tpu.memory_space<vmem>>, vector<8x128xf32>
    %cst_49 = arith.constant dense<0.000000e+00> : vector<8x128xf32>
    %169 = tpu.matmul %111, %10, %cst_49 {dimension_numbers = #tpu.dot_dimension_numbers<[1], [0], [0], [1], [0, 0, 1, 1], [], []>} : vector<8x32xf32>, vector<32x128xf32>, vector<8x128xf32> -> vector<8x128xf32>
    %170 = arith.addf %168, %169 : vector<8x128xf32>
    %171 = vector.extract_strided_slice %170 {offsets = [0, 0], sizes = [8, 32], strides = [1, 1]} : vector<8x128xf32> to vector<8x32xf32>
    %172 = arith.negf %171 : vector<8x32xf32>
    %173 = math.exp %172 : vector<8x32xf32>
    %cst_50 = arith.constant 1.000000e+00 : f32
    %174 = vector.broadcast %cst_50 : f32 to vector<8x32xf32>
    %175 = arith.addf %174, %173 : vector<8x32xf32>
    %176 = arith.divf %174, %175 : vector<8x32xf32>
    %177 = vector.extract_strided_slice %170 {offsets = [0, 32], sizes = [8, 32], strides = [1, 1]} : vector<8x128xf32> to vector<8x32xf32>
    %178 = arith.negf %177 : vector<8x32xf32>
    %179 = math.exp %178 : vector<8x32xf32>
    %cst_51 = arith.constant 1.000000e+00 : f32
    %180 = vector.broadcast %cst_51 : f32 to vector<8x32xf32>
    %181 = arith.addf %180, %179 : vector<8x32xf32>
    %182 = arith.divf %180, %181 : vector<8x32xf32>
    %183 = vector.extract_strided_slice %170 {offsets = [0, 64], sizes = [8, 32], strides = [1, 1]} : vector<8x128xf32> to vector<8x32xf32>
    %184 = math.tanh %183 : vector<8x32xf32>
    %185 = vector.extract_strided_slice %170 {offsets = [0, 96], sizes = [8, 32], strides = [1, 1]} : vector<8x128xf32> to vector<8x32xf32>
    %186 = arith.negf %185 : vector<8x32xf32>
    %187 = math.exp %186 : vector<8x32xf32>
    %cst_52 = arith.constant 1.000000e+00 : f32
    %188 = vector.broadcast %cst_52 : f32 to vector<8x32xf32>
    %189 = arith.addf %188, %187 : vector<8x32xf32>
    %190 = arith.divf %188, %189 : vector<8x32xf32>
    %191 = arith.mulf %182, %104 : vector<8x32xf32>
    %192 = arith.mulf %176, %184 : vector<8x32xf32>
    %193 = arith.addf %191, %192 : vector<8x32xf32>
    %194 = math.tanh %193 : vector<8x32xf32>
    %195 = arith.mulf %190, %194 : vector<8x32xf32>
    %196 = vector.broadcast %167 : vector<8x1xf32> to vector<8x32xf32>
    %197 = arith.mulf %196, %193 : vector<8x32xf32>
    %cst_53 = arith.constant 1.000000e+00 : f32
    %198 = vector.broadcast %cst_53 : f32 to vector<8x1xf32>
    %199 = arith.subf %198, %167 : vector<8x1xf32>
    %200 = vector.broadcast %199 : vector<8x1xf32> to vector<8x32xf32>
    %201 = arith.mulf %200, %104 : vector<8x32xf32>
    %202 = arith.addf %197, %201 : vector<8x32xf32>
    %203 = vector.broadcast %167 : vector<8x1xf32> to vector<8x32xf32>
    %204 = arith.mulf %203, %195 : vector<8x32xf32>
    %cst_54 = arith.constant 1.000000e+00 : f32
    %205 = vector.broadcast %cst_54 : f32 to vector<8x1xf32>
    %206 = arith.subf %205, %167 : vector<8x1xf32>
    %207 = vector.broadcast %206 : vector<8x1xf32> to vector<8x32xf32>
    %208 = arith.mulf %207, %111 : vector<8x32xf32>
    %209 = arith.addf %204, %208 : vector<8x32xf32>
    %210 = vector.broadcast %167 : vector<8x1xf32> to vector<8x32xf32>
    %211 = arith.mulf %209, %210 : vector<8x32xf32>
    %c48_55 = arith.constant 48 : index
    %c32_56 = arith.constant 32 : index
    %212 = vector.load %arg18[%c48_55, %c32_56] : memref<64x64xf32, #tpu.memory_space<vmem>>, vector<8x32xf32>
    tpu.vector_store %arg18[%c48_55, %c32_56], %211 {strides = array<i32>} : memref<64x64xf32, #tpu.memory_space<vmem>>, vector<8x32xf32>,
    %c2_i32 = arith.constant 2 : i32
    %213 = vector.broadcast %c2_i32 : i32 to vector<8x1xi32>
    %214 = arith.cmpi sgt, %0, %213 : vector<8x1xi32>
    %215 = arith.extui %214 : vector<8x1xi1> to vector<8x1xi32>
    %216 = arith.sitofp %215 : vector<8x1xi32> to vector<8x1xf32>
    %c16 = arith.constant 16 : index
    %c0_57 = arith.constant 0 : index
    %217 = vector.load %arg19[%c16, %c0_57] : memref<64x128xf32, #tpu.memory_space<vmem>>, vector<8x128xf32>
    %cst_58 = arith.constant dense<0.000000e+00> : vector<8x128xf32>
    %218 = tpu.matmul %160, %3, %cst_58 {dimension_numbers = #tpu.dot_dimension_numbers<[1], [0], [0], [1], [0, 0, 1, 1], [], []>} : vector<8x32xf32>, vector<32x128xf32>, vector<8x128xf32> -> vector<8x128xf32>
    %219 = arith.addf %217, %218 : vector<8x128xf32>
    %220 = vector.extract_strided_slice %219 {offsets = [0, 0], sizes = [8, 32], strides = [1, 1]} : vector<8x128xf32> to vector<8x32xf32>
    %221 = arith.negf %220 : vector<8x32xf32>
    %222 = math.exp %221 : vector<8x32xf32>
    %cst_59 = arith.constant 1.000000e+00 : f32
    %223 = vector.broadcast %cst_59 : f32 to vector<8x32xf32>
    %224 = arith.addf %223, %222 : vector<8x32xf32>
    %225 = arith.divf %223, %224 : vector<8x32xf32>
    %226 = vector.extract_strided_slice %219 {offsets = [0, 32], sizes = [8, 32], strides = [1, 1]} : vector<8x128xf32> to vector<8x32xf32>
    %227 = arith.negf %226 : vector<8x32xf32>
    %228 = math.exp %227 : vector<8x32xf32>
    %cst_60 = arith.constant 1.000000e+00 : f32
    %229 = vector.broadcast %cst_60 : f32 to vector<8x32xf32>
    %230 = arith.addf %229, %228 : vector<8x32xf32>
    %231 = arith.divf %229, %230 : vector<8x32xf32>
    %232 = vector.extract_strided_slice %219 {offsets = [0, 64], sizes = [8, 32], strides = [1, 1]} : vector<8x128xf32> to vector<8x32xf32>
    %233 = math.tanh %232 : vector<8x32xf32>
    %234 = vector.extract_strided_slice %219 {offsets = [0, 96], sizes = [8, 32], strides = [1, 1]} : vector<8x128xf32> to vector<8x32xf32>
    %235 = arith.negf %234 : vector<8x32xf32>
    %236 = math.exp %235 : vector<8x32xf32>
    %cst_61 = arith.constant 1.000000e+00 : f32
    %237 = vector.broadcast %cst_61 : f32 to vector<8x32xf32>
    %238 = arith.addf %237, %236 : vector<8x32xf32>
    %239 = arith.divf %237, %238 : vector<8x32xf32>
    %240 = arith.mulf %231, %153 : vector<8x32xf32>
    %241 = arith.mulf %225, %233 : vector<8x32xf32>
    %242 = arith.addf %240, %241 : vector<8x32xf32>
    %243 = math.tanh %242 : vector<8x32xf32>
    %244 = arith.mulf %239, %243 : vector<8x32xf32>
    %245 = vector.broadcast %216 : vector<8x1xf32> to vector<8x32xf32>
    %246 = arith.mulf %245, %242 : vector<8x32xf32>
    %cst_62 = arith.constant 1.000000e+00 : f32
    %247 = vector.broadcast %cst_62 : f32 to vector<8x1xf32>
    %248 = arith.subf %247, %216 : vector<8x1xf32>
    %249 = vector.broadcast %248 : vector<8x1xf32> to vector<8x32xf32>
    %250 = arith.mulf %249, %153 : vector<8x32xf32>
    %251 = arith.addf %246, %250 : vector<8x32xf32>
    %252 = vector.broadcast %216 : vector<8x1xf32> to vector<8x32xf32>
    %253 = arith.mulf %252, %244 : vector<8x32xf32>
    %cst_63 = arith.constant 1.000000e+00 : f32
    %254 = vector.broadcast %cst_63 : f32 to vector<8x1xf32>
    %255 = arith.subf %254, %216 : vector<8x1xf32>
    %256 = vector.broadcast %255 : vector<8x1xf32> to vector<8x32xf32>
    %257 = arith.mulf %256, %160 : vector<8x32xf32>
    %258 = arith.addf %253, %257 : vector<8x32xf32>
    %259 = vector.broadcast %216 : vector<8x1xf32> to vector<8x32xf32>
    %260 = arith.mulf %258, %259 : vector<8x32xf32>
    %c16_64 = arith.constant 16 : index
    %c0_65 = arith.constant 0 : index
    %261 = vector.load %arg18[%c16_64, %c0_65] : memref<64x64xf32, #tpu.memory_space<vmem>>, vector<8x32xf32>
    tpu.vector_store %arg18[%c16_64, %c0_65], %260 {strides = array<i32>} : memref<64x64xf32, #tpu.memory_space<vmem>>, vector<8x32xf32>,
    %c5_i32 = arith.constant 5 : i32
    %262 = vector.broadcast %c5_i32 : i32 to vector<8x1xi32>
    %263 = arith.cmpi sgt, %0, %262 : vector<8x1xi32>
    %264 = arith.extui %263 : vector<8x1xi1> to vector<8x1xi32>
    %265 = arith.sitofp %264 : vector<8x1xi32> to vector<8x1xf32>
    %c40 = arith.constant 40 : index
    %c0_66 = arith.constant 0 : index
    %266 = vector.load %arg20[%c40, %c0_66] : memref<64x128xf32, #tpu.memory_space<vmem>>, vector<8x128xf32>
    %cst_67 = arith.constant dense<0.000000e+00> : vector<8x128xf32>
    %267 = tpu.matmul %209, %10, %cst_67 {dimension_numbers = #tpu.dot_dimension_numbers<[1], [0], [0], [1], [0, 0, 1, 1], [], []>} : vector<8x32xf32>, vector<32x128xf32>, vector<8x128xf32> -> vector<8x128xf32>
    %268 = arith.addf %266, %267 : vector<8x128xf32>
    %269 = vector.extract_strided_slice %268 {offsets = [0, 0], sizes = [8, 32], strides = [1, 1]} : vector<8x128xf32> to vector<8x32xf32>
    %270 = arith.negf %269 : vector<8x32xf32>
    %271 = math.exp %270 : vector<8x32xf32>
    %cst_68 = arith.constant 1.000000e+00 : f32
    %272 = vector.broadcast %cst_68 : f32 to vector<8x32xf32>
    %273 = arith.addf %272, %271 : vector<8x32xf32>
    %274 = arith.divf %272, %273 : vector<8x32xf32>
    %275 = vector.extract_strided_slice %268 {offsets = [0, 32], sizes = [8, 32], strides = [1, 1]} : vector<8x128xf32> to vector<8x32xf32>
    %276 = arith.negf %275 : vector<8x32xf32>
    %277 = math.exp %276 : vector<8x32xf32>
    %cst_69 = arith.constant 1.000000e+00 : f32
    %278 = vector.broadcast %cst_69 : f32 to vector<8x32xf32>
    %279 = arith.addf %278, %277 : vector<8x32xf32>
    %280 = arith.divf %278, %279 : vector<8x32xf32>
    %281 = vector.extract_strided_slice %268 {offsets = [0, 64], sizes = [8, 32], strides = [1, 1]} : vector<8x128xf32> to vector<8x32xf32>
    %282 = math.tanh %281 : vector<8x32xf32>
    %283 = vector.extract_strided_slice %268 {offsets = [0, 96], sizes = [8, 32], strides = [1, 1]} : vector<8x128xf32> to vector<8x32xf32>
    %284 = arith.negf %283 : vector<8x32xf32>
    %285 = math.exp %284 : vector<8x32xf32>
    %cst_70 = arith.constant 1.000000e+00 : f32
    %286 = vector.broadcast %cst_70 : f32 to vector<8x32xf32>
    %287 = arith.addf %286, %285 : vector<8x32xf32>
    %288 = arith.divf %286, %287 : vector<8x32xf32>
    %289 = arith.mulf %280, %202 : vector<8x32xf32>
    %290 = arith.mulf %274, %282 : vector<8x32xf32>
    %291 = arith.addf %289, %290 : vector<8x32xf32>
    %292 = math.tanh %291 : vector<8x32xf32>
    %293 = arith.mulf %288, %292 : vector<8x32xf32>
    %294 = vector.broadcast %265 : vector<8x1xf32> to vector<8x32xf32>
    %295 = arith.mulf %294, %291 : vector<8x32xf32>
    %cst_71 = arith.constant 1.000000e+00 : f32
    %296 = vector.broadcast %cst_71 : f32 to vector<8x1xf32>
    %297 = arith.subf %296, %265 : vector<8x1xf32>
    %298 = vector.broadcast %297 : vector<8x1xf32> to vector<8x32xf32>
    %299 = arith.mulf %298, %202 : vector<8x32xf32>
    %300 = arith.addf %295, %299 : vector<8x32xf32>
    %301 = vector.broadcast %265 : vector<8x1xf32> to vector<8x32xf32>
    %302 = arith.mulf %301, %293 : vector<8x32xf32>
    %cst_72 = arith.constant 1.000000e+00 : f32
    %303 = vector.broadcast %cst_72 : f32 to vector<8x1xf32>
    %304 = arith.subf %303, %265 : vector<8x1xf32>
    %305 = vector.broadcast %304 : vector<8x1xf32> to vector<8x32xf32>
    %306 = arith.mulf %305, %209 : vector<8x32xf32>
    %307 = arith.addf %302, %306 : vector<8x32xf32>
    %308 = vector.broadcast %265 : vector<8x1xf32> to vector<8x32xf32>
    %309 = arith.mulf %307, %308 : vector<8x32xf32>
    %c40_73 = arith.constant 40 : index
    %c32_74 = arith.constant 32 : index
    %310 = vector.load %arg18[%c40_73, %c32_74] : memref<64x64xf32, #tpu.memory_space<vmem>>, vector<8x32xf32>
    tpu.vector_store %arg18[%c40_73, %c32_74], %309 {strides = array<i32>} : memref<64x64xf32, #tpu.memory_space<vmem>>, vector<8x32xf32>,
    %c3_i32 = arith.constant 3 : i32
    %311 = vector.broadcast %c3_i32 : i32 to vector<8x1xi32>
    %312 = arith.cmpi sgt, %0, %311 : vector<8x1xi32>
    %313 = arith.extui %312 : vector<8x1xi1> to vector<8x1xi32>
    %314 = arith.sitofp %313 : vector<8x1xi32> to vector<8x1xf32>
    %c24 = arith.constant 24 : index
    %c0_75 = arith.constant 0 : index
    %315 = vector.load %arg19[%c24, %c0_75] : memref<64x128xf32, #tpu.memory_space<vmem>>, vector<8x128xf32>
    %cst_76 = arith.constant dense<0.000000e+00> : vector<8x128xf32>
    %316 = tpu.matmul %258, %3, %cst_76 {dimension_numbers = #tpu.dot_dimension_numbers<[1], [0], [0], [1], [0, 0, 1, 1], [], []>} : vector<8x32xf32>, vector<32x128xf32>, vector<8x128xf32> -> vector<8x128xf32>
    %317 = arith.addf %315, %316 : vector<8x128xf32>
    %318 = vector.extract_strided_slice %317 {offsets = [0, 0], sizes = [8, 32], strides = [1, 1]} : vector<8x128xf32> to vector<8x32xf32>
    %319 = arith.negf %318 : vector<8x32xf32>
    %320 = math.exp %319 : vector<8x32xf32>
    %cst_77 = arith.constant 1.000000e+00 : f32
    %321 = vector.broadcast %cst_77 : f32 to vector<8x32xf32>
    %322 = arith.addf %321, %320 : vector<8x32xf32>
    %323 = arith.divf %321, %322 : vector<8x32xf32>
    %324 = vector.extract_strided_slice %317 {offsets = [0, 32], sizes = [8, 32], strides = [1, 1]} : vector<8x128xf32> to vector<8x32xf32>
    %325 = arith.negf %324 : vector<8x32xf32>
    %326 = math.exp %325 : vector<8x32xf32>
    %cst_78 = arith.constant 1.000000e+00 : f32
    %327 = vector.broadcast %cst_78 : f32 to vector<8x32xf32>
    %328 = arith.addf %327, %326 : vector<8x32xf32>
    %329 = arith.divf %327, %328 : vector<8x32xf32>
    %330 = vector.extract_strided_slice %317 {offsets = [0, 64], sizes = [8, 32], strides = [1, 1]} : vector<8x128xf32> to vector<8x32xf32>
    %331 = math.tanh %330 : vector<8x32xf32>
    %332 = vector.extract_strided_slice %317 {offsets = [0, 96], sizes = [8, 32], strides = [1, 1]} : vector<8x128xf32> to vector<8x32xf32>
    %333 = arith.negf %332 : vector<8x32xf32>
    %334 = math.exp %333 : vector<8x32xf32>
    %cst_79 = arith.constant 1.000000e+00 : f32
    %335 = vector.broadcast %cst_79 : f32 to vector<8x32xf32>
    %336 = arith.addf %335, %334 : vector<8x32xf32>
    %337 = arith.divf %335, %336 : vector<8x32xf32>
    %338 = arith.mulf %329, %251 : vector<8x32xf32>
    %339 = arith.mulf %323, %331 : vector<8x32xf32>
    %340 = arith.addf %338, %339 : vector<8x32xf32>
    %341 = math.tanh %340 : vector<8x32xf32>
    %342 = arith.mulf %337, %341 : vector<8x32xf32>
    %343 = vector.broadcast %314 : vector<8x1xf32> to vector<8x32xf32>
    %344 = arith.mulf %343, %340 : vector<8x32xf32>
    %cst_80 = arith.constant 1.000000e+00 : f32
    %345 = vector.broadcast %cst_80 : f32 to vector<8x1xf32>
    %346 = arith.subf %345, %314 : vector<8x1xf32>
    %347 = vector.broadcast %346 : vector<8x1xf32> to vector<8x32xf32>
    %348 = arith.mulf %347, %251 : vector<8x32xf32>
    %349 = arith.addf %344, %348 : vector<8x32xf32>
    %350 = vector.broadcast %314 : vector<8x1xf32> to vector<8x32xf32>
    %351 = arith.mulf %350, %342 : vector<8x32xf32>
    %cst_81 = arith.constant 1.000000e+00 : f32
    %352 = vector.broadcast %cst_81 : f32 to vector<8x1xf32>
    %353 = arith.subf %352, %314 : vector<8x1xf32>
    %354 = vector.broadcast %353 : vector<8x1xf32> to vector<8x32xf32>
    %355 = arith.mulf %354, %258 : vector<8x32xf32>
    %356 = arith.addf %351, %355 : vector<8x32xf32>
    %357 = vector.broadcast %314 : vector<8x1xf32> to vector<8x32xf32>
    %358 = arith.mulf %356, %357 : vector<8x32xf32>
    %c24_82 = arith.constant 24 : index
    %c0_83 = arith.constant 0 : index
    %359 = vector.load %arg18[%c24_82, %c0_83] : memref<64x64xf32, #tpu.memory_space<vmem>>, vector<8x32xf32>
    tpu.vector_store %arg18[%c24_82, %c0_83], %358 {strides = array<i32>} : memref<64x64xf32, #tpu.memory_space<vmem>>, vector<8x32xf32>,
    %c4_i32 = arith.constant 4 : i32
    %360 = vector.broadcast %c4_i32 : i32 to vector<8x1xi32>
    %361 = arith.cmpi sgt, %0, %360 : vector<8x1xi32>
    %362 = arith.extui %361 : vector<8x1xi1> to vector<8x1xi32>
    %363 = arith.sitofp %362 : vector<8x1xi32> to vector<8x1xf32>
    %c32_84 = arith.constant 32 : index
    %c0_85 = arith.constant 0 : index
    %364 = vector.load %arg20[%c32_84, %c0_85] : memref<64x128xf32, #tpu.memory_space<vmem>>, vector<8x128xf32>
    %cst_86 = arith.constant dense<0.000000e+00> : vector<8x128xf32>
    %365 = tpu.matmul %307, %10, %cst_86 {dimension_numbers = #tpu.dot_dimension_numbers<[1], [0], [0], [1], [0, 0, 1, 1], [], []>} : vector<8x32xf32>, vector<32x128xf32>, vector<8x128xf32> -> vector<8x128xf32>
    %366 = arith.addf %364, %365 : vector<8x128xf32>
    %367 = vector.extract_strided_slice %366 {offsets = [0, 0], sizes = [8, 32], strides = [1, 1]} : vector<8x128xf32> to vector<8x32xf32>
    %368 = arith.negf %367 : vector<8x32xf32>
    %369 = math.exp %368 : vector<8x32xf32>
    %cst_87 = arith.constant 1.000000e+00 : f32
    %370 = vector.broadcast %cst_87 : f32 to vector<8x32xf32>
    %371 = arith.addf %370, %369 : vector<8x32xf32>
    %372 = arith.divf %370, %371 : vector<8x32xf32>
    %373 = vector.extract_strided_slice %366 {offsets = [0, 32], sizes = [8, 32], strides = [1, 1]} : vector<8x128xf32> to vector<8x32xf32>
    %374 = arith.negf %373 : vector<8x32xf32>
    %375 = math.exp %374 : vector<8x32xf32>
    %cst_88 = arith.constant 1.000000e+00 : f32
    %376 = vector.broadcast %cst_88 : f32 to vector<8x32xf32>
    %377 = arith.addf %376, %375 : vector<8x32xf32>
    %378 = arith.divf %376, %377 : vector<8x32xf32>
    %379 = vector.extract_strided_slice %366 {offsets = [0, 64], sizes = [8, 32], strides = [1, 1]} : vector<8x128xf32> to vector<8x32xf32>
    %380 = math.tanh %379 : vector<8x32xf32>
    %381 = vector.extract_strided_slice %366 {offsets = [0, 96], sizes = [8, 32], strides = [1, 1]} : vector<8x128xf32> to vector<8x32xf32>
    %382 = arith.negf %381 : vector<8x32xf32>
    %383 = math.exp %382 : vector<8x32xf32>
    %cst_89 = arith.constant 1.000000e+00 : f32
    %384 = vector.broadcast %cst_89 : f32 to vector<8x32xf32>
    %385 = arith.addf %384, %383 : vector<8x32xf32>
    %386 = arith.divf %384, %385 : vector<8x32xf32>
    %387 = arith.mulf %378, %300 : vector<8x32xf32>
    %388 = arith.mulf %372, %380 : vector<8x32xf32>
    %389 = arith.addf %387, %388 : vector<8x32xf32>
    %390 = math.tanh %389 : vector<8x32xf32>
    %391 = arith.mulf %386, %390 : vector<8x32xf32>
    %392 = vector.broadcast %363 : vector<8x1xf32> to vector<8x32xf32>
    %393 = arith.mulf %392, %389 : vector<8x32xf32>
    %cst_90 = arith.constant 1.000000e+00 : f32
    %394 = vector.broadcast %cst_90 : f32 to vector<8x1xf32>
    %395 = arith.subf %394, %363 : vector<8x1xf32>
    %396 = vector.broadcast %395 : vector<8x1xf32> to vector<8x32xf32>
    %397 = arith.mulf %396, %300 : vector<8x32xf32>
    %398 = arith.addf %393, %397 : vector<8x32xf32>
    %399 = vector.broadcast %363 : vector<8x1xf32> to vector<8x32xf32>
    %400 = arith.mulf %399, %391 : vector<8x32xf32>
    %cst_91 = arith.constant 1.000000e+00 : f32
    %401 = vector.broadcast %cst_91 : f32 to vector<8x1xf32>
    %402 = arith.subf %401, %363 : vector<8x1xf32>
    %403 = vector.broadcast %402 : vector<8x1xf32> to vector<8x32xf32>
    %404 = arith.mulf %403, %307 : vector<8x32xf32>
    %405 = arith.addf %400, %404 : vector<8x32xf32>
    %406 = vector.broadcast %363 : vector<8x1xf32> to vector<8x32xf32>
    %407 = arith.mulf %405, %406 : vector<8x32xf32>
    %c32_92 = arith.constant 32 : index
    %c32_93 = arith.constant 32 : index
    %408 = vector.load %arg18[%c32_92, %c32_93] : memref<64x64xf32, #tpu.memory_space<vmem>>, vector<8x32xf32>
    tpu.vector_store %arg18[%c32_92, %c32_93], %407 {strides = array<i32>} : memref<64x64xf32, #tpu.memory_space<vmem>>, vector<8x32xf32>,
    %c4_i32_94 = arith.constant 4 : i32
    %409 = vector.broadcast %c4_i32_94 : i32 to vector<8x1xi32>
    %410 = arith.cmpi sgt, %0, %409 : vector<8x1xi32>
    %411 = arith.extui %410 : vector<8x1xi1> to vector<8x1xi32>
    %412 = arith.sitofp %411 : vector<8x1xi32> to vector<8x1xf32>
    %c32_95 = arith.constant 32 : index
    %c0_96 = arith.constant 0 : index
    %413 = vector.load %arg19[%c32_95, %c0_96] : memref<64x128xf32, #tpu.memory_space<vmem>>, vector<8x128xf32>
    %cst_97 = arith.constant dense<0.000000e+00> : vector<8x128xf32>
    %414 = tpu.matmul %356, %3, %cst_97 {dimension_numbers = #tpu.dot_dimension_numbers<[1], [0], [0], [1], [0, 0, 1, 1], [], []>} : vector<8x32xf32>, vector<32x128xf32>, vector<8x128xf32> -> vector<8x128xf32>
    %415 = arith.addf %413, %414 : vector<8x128xf32>
    %416 = vector.extract_strided_slice %415 {offsets = [0, 0], sizes = [8, 32], strides = [1, 1]} : vector<8x128xf32> to vector<8x32xf32>
    %417 = arith.negf %416 : vector<8x32xf32>
    %418 = math.exp %417 : vector<8x32xf32>
    %cst_98 = arith.constant 1.000000e+00 : f32
    %419 = vector.broadcast %cst_98 : f32 to vector<8x32xf32>
    %420 = arith.addf %419, %418 : vector<8x32xf32>
    %421 = arith.divf %419, %420 : vector<8x32xf32>
    %422 = vector.extract_strided_slice %415 {offsets = [0, 32], sizes = [8, 32], strides = [1, 1]} : vector<8x128xf32> to vector<8x32xf32>
    %423 = arith.negf %422 : vector<8x32xf32>
    %424 = math.exp %423 : vector<8x32xf32>
    %cst_99 = arith.constant 1.000000e+00 : f32
    %425 = vector.broadcast %cst_99 : f32 to vector<8x32xf32>
    %426 = arith.addf %425, %424 : vector<8x32xf32>
    %427 = arith.divf %425, %426 : vector<8x32xf32>
    %428 = vector.extract_strided_slice %415 {offsets = [0, 64], sizes = [8, 32], strides = [1, 1]} : vector<8x128xf32> to vector<8x32xf32>
    %429 = math.tanh %428 : vector<8x32xf32>
    %430 = vector.extract_strided_slice %415 {offsets = [0, 96], sizes = [8, 32], strides = [1, 1]} : vector<8x128xf32> to vector<8x32xf32>
    %431 = arith.negf %430 : vector<8x32xf32>
    %432 = math.exp %431 : vector<8x32xf32>
    %cst_100 = arith.constant 1.000000e+00 : f32
    %433 = vector.broadcast %cst_100 : f32 to vector<8x32xf32>
    %434 = arith.addf %433, %432 : vector<8x32xf32>
    %435 = arith.divf %433, %434 : vector<8x32xf32>
    %436 = arith.mulf %427, %349 : vector<8x32xf32>
    %437 = arith.mulf %421, %429 : vector<8x32xf32>
    %438 = arith.addf %436, %437 : vector<8x32xf32>
    %439 = math.tanh %438 : vector<8x32xf32>
    %440 = arith.mulf %435, %439 : vector<8x32xf32>
    %441 = vector.broadcast %412 : vector<8x1xf32> to vector<8x32xf32>
    %442 = arith.mulf %441, %438 : vector<8x32xf32>
    %cst_101 = arith.constant 1.000000e+00 : f32
    %443 = vector.broadcast %cst_101 : f32 to vector<8x1xf32>
    %444 = arith.subf %443, %412 : vector<8x1xf32>
    %445 = vector.broadcast %444 : vector<8x1xf32> to vector<8x32xf32>
    %446 = arith.mulf %445, %349 : vector<8x32xf32>
    %447 = arith.addf %442, %446 : vector<8x32xf32>
    %448 = vector.broadcast %412 : vector<8x1xf32> to vector<8x32xf32>
    %449 = arith.mulf %448, %440 : vector<8x32xf32>
    %cst_102 = arith.constant 1.000000e+00 : f32
    %450 = vector.broadcast %cst_102 : f32 to vector<8x1xf32>
    %451 = arith.subf %450, %412 : vector<8x1xf32>
    %452 = vector.broadcast %451 : vector<8x1xf32> to vector<8x32xf32>
    %453 = arith.mulf %452, %356 : vector<8x32xf32>
    %454 = arith.addf %449, %453 : vector<8x32xf32>
    %455 = vector.broadcast %412 : vector<8x1xf32> to vector<8x32xf32>
    %456 = arith.mulf %454, %455 : vector<8x32xf32>
    %c32_103 = arith.constant 32 : index
    %c0_104 = arith.constant 0 : index
    %457 = vector.load %arg18[%c32_103, %c0_104] : memref<64x64xf32, #tpu.memory_space<vmem>>, vector<8x32xf32>
    tpu.vector_store %arg18[%c32_103, %c0_104], %456 {strides = array<i32>} : memref<64x64xf32, #tpu.memory_space<vmem>>, vector<8x32xf32>,
    %c3_i32_105 = arith.constant 3 : i32
    %458 = vector.broadcast %c3_i32_105 : i32 to vector<8x1xi32>
    %459 = arith.cmpi sgt, %0, %458 : vector<8x1xi32>
    %460 = arith.extui %459 : vector<8x1xi1> to vector<8x1xi32>
    %461 = arith.sitofp %460 : vector<8x1xi32> to vector<8x1xf32>
    %c24_106 = arith.constant 24 : index
    %c0_107 = arith.constant 0 : index
    %462 = vector.load %arg20[%c24_106, %c0_107] : memref<64x128xf32, #tpu.memory_space<vmem>>, vector<8x128xf32>
    %cst_108 = arith.constant dense<0.000000e+00> : vector<8x128xf32>
    %463 = tpu.matmul %405, %10, %cst_108 {dimension_numbers = #tpu.dot_dimension_numbers<[1], [0], [0], [1], [0, 0, 1, 1], [], []>} : vector<8x32xf32>, vector<32x128xf32>, vector<8x128xf32> -> vector<8x128xf32>
    %464 = arith.addf %462, %463 : vector<8x128xf32>
    %465 = vector.extract_strided_slice %464 {offsets = [0, 0], sizes = [8, 32], strides = [1, 1]} : vector<8x128xf32> to vector<8x32xf32>
    %466 = arith.negf %465 : vector<8x32xf32>
    %467 = math.exp %466 : vector<8x32xf32>
    %cst_109 = arith.constant 1.000000e+00 : f32
    %468 = vector.broadcast %cst_109 : f32 to vector<8x32xf32>
    %469 = arith.addf %468, %467 : vector<8x32xf32>
    %470 = arith.divf %468, %469 : vector<8x32xf32>
    %471 = vector.extract_strided_slice %464 {offsets = [0, 32], sizes = [8, 32], strides = [1, 1]} : vector<8x128xf32> to vector<8x32xf32>
    %472 = arith.negf %471 : vector<8x32xf32>
    %473 = math.exp %472 : vector<8x32xf32>
    %cst_110 = arith.constant 1.000000e+00 : f32
    %474 = vector.broadcast %cst_110 : f32 to vector<8x32xf32>
    %475 = arith.addf %474, %473 : vector<8x32xf32>
    %476 = arith.divf %474, %475 : vector<8x32xf32>
    %477 = vector.extract_strided_slice %464 {offsets = [0, 64], sizes = [8, 32], strides = [1, 1]} : vector<8x128xf32> to vector<8x32xf32>
    %478 = math.tanh %477 : vector<8x32xf32>
    %479 = vector.extract_strided_slice %464 {offsets = [0, 96], sizes = [8, 32], strides = [1, 1]} : vector<8x128xf32> to vector<8x32xf32>
    %480 = arith.negf %479 : vector<8x32xf32>
    %481 = math.exp %480 : vector<8x32xf32>
    %cst_111 = arith.constant 1.000000e+00 : f32
    %482 = vector.broadcast %cst_111 : f32 to vector<8x32xf32>
    %483 = arith.addf %482, %481 : vector<8x32xf32>
    %484 = arith.divf %482, %483 : vector<8x32xf32>
    %485 = arith.mulf %476, %398 : vector<8x32xf32>
    %486 = arith.mulf %470, %478 : vector<8x32xf32>
    %487 = arith.addf %485, %486 : vector<8x32xf32>
    %488 = math.tanh %487 : vector<8x32xf32>
    %489 = arith.mulf %484, %488 : vector<8x32xf32>
    %490 = vector.broadcast %461 : vector<8x1xf32> to vector<8x32xf32>
    %491 = arith.mulf %490, %487 : vector<8x32xf32>
    %cst_112 = arith.constant 1.000000e+00 : f32
    %492 = vector.broadcast %cst_112 : f32 to vector<8x1xf32>
    %493 = arith.subf %492, %461 : vector<8x1xf32>
    %494 = vector.broadcast %493 : vector<8x1xf32> to vector<8x32xf32>
    %495 = arith.mulf %494, %398 : vector<8x32xf32>
    %496 = arith.addf %491, %495 : vector<8x32xf32>
    %497 = vector.broadcast %461 : vector<8x1xf32> to vector<8x32xf32>
    %498 = arith.mulf %497, %489 : vector<8x32xf32>
    %cst_113 = arith.constant 1.000000e+00 : f32
    %499 = vector.broadcast %cst_113 : f32 to vector<8x1xf32>
    %500 = arith.subf %499, %461 : vector<8x1xf32>
    %501 = vector.broadcast %500 : vector<8x1xf32> to vector<8x32xf32>
    %502 = arith.mulf %501, %405 : vector<8x32xf32>
    %503 = arith.addf %498, %502 : vector<8x32xf32>
    %504 = vector.broadcast %461 : vector<8x1xf32> to vector<8x32xf32>
    %505 = arith.mulf %503, %504 : vector<8x32xf32>
    %c24_114 = arith.constant 24 : index
    %c32_115 = arith.constant 32 : index
    %506 = vector.load %arg18[%c24_114, %c32_115] : memref<64x64xf32, #tpu.memory_space<vmem>>, vector<8x32xf32>
    tpu.vector_store %arg18[%c24_114, %c32_115], %505 {strides = array<i32>} : memref<64x64xf32, #tpu.memory_space<vmem>>, vector<8x32xf32>,
    %c5_i32_116 = arith.constant 5 : i32
    %507 = vector.broadcast %c5_i32_116 : i32 to vector<8x1xi32>
    %508 = arith.cmpi sgt, %0, %507 : vector<8x1xi32>
    %509 = arith.extui %508 : vector<8x1xi1> to vector<8x1xi32>
    %510 = arith.sitofp %509 : vector<8x1xi32> to vector<8x1xf32>
    %c40_117 = arith.constant 40 : index
    %c0_118 = arith.constant 0 : index
    %511 = vector.load %arg19[%c40_117, %c0_118] : memref<64x128xf32, #tpu.memory_space<vmem>>, vector<8x128xf32>
    %cst_119 = arith.constant dense<0.000000e+00> : vector<8x128xf32>
    %512 = tpu.matmul %454, %3, %cst_119 {dimension_numbers = #tpu.dot_dimension_numbers<[1], [0], [0], [1], [0, 0, 1, 1], [], []>} : vector<8x32xf32>, vector<32x128xf32>, vector<8x128xf32> -> vector<8x128xf32>
    %513 = arith.addf %511, %512 : vector<8x128xf32>
    %514 = vector.extract_strided_slice %513 {offsets = [0, 0], sizes = [8, 32], strides = [1, 1]} : vector<8x128xf32> to vector<8x32xf32>
    %515 = arith.negf %514 : vector<8x32xf32>
    %516 = math.exp %515 : vector<8x32xf32>
    %cst_120 = arith.constant 1.000000e+00 : f32
    %517 = vector.broadcast %cst_120 : f32 to vector<8x32xf32>
    %518 = arith.addf %517, %516 : vector<8x32xf32>
    %519 = arith.divf %517, %518 : vector<8x32xf32>
    %520 = vector.extract_strided_slice %513 {offsets = [0, 32], sizes = [8, 32], strides = [1, 1]} : vector<8x128xf32> to vector<8x32xf32>
    %521 = arith.negf %520 : vector<8x32xf32>
    %522 = math.exp %521 : vector<8x32xf32>
    %cst_121 = arith.constant 1.000000e+00 : f32
    %523 = vector.broadcast %cst_121 : f32 to vector<8x32xf32>
    %524 = arith.addf %523, %522 : vector<8x32xf32>
    %525 = arith.divf %523, %524 : vector<8x32xf32>
    %526 = vector.extract_strided_slice %513 {offsets = [0, 64], sizes = [8, 32], strides = [1, 1]} : vector<8x128xf32> to vector<8x32xf32>
    %527 = math.tanh %526 : vector<8x32xf32>
    %528 = vector.extract_strided_slice %513 {offsets = [0, 96], sizes = [8, 32], strides = [1, 1]} : vector<8x128xf32> to vector<8x32xf32>
    %529 = arith.negf %528 : vector<8x32xf32>
    %530 = math.exp %529 : vector<8x32xf32>
    %cst_122 = arith.constant 1.000000e+00 : f32
    %531 = vector.broadcast %cst_122 : f32 to vector<8x32xf32>
    %532 = arith.addf %531, %530 : vector<8x32xf32>
    %533 = arith.divf %531, %532 : vector<8x32xf32>
    %534 = arith.mulf %525, %447 : vector<8x32xf32>
    %535 = arith.mulf %519, %527 : vector<8x32xf32>
    %536 = arith.addf %534, %535 : vector<8x32xf32>
    %537 = math.tanh %536 : vector<8x32xf32>
    %538 = arith.mulf %533, %537 : vector<8x32xf32>
    %539 = vector.broadcast %510 : vector<8x1xf32> to vector<8x32xf32>
    %540 = arith.mulf %539, %536 : vector<8x32xf32>
    %cst_123 = arith.constant 1.000000e+00 : f32
    %541 = vector.broadcast %cst_123 : f32 to vector<8x1xf32>
    %542 = arith.subf %541, %510 : vector<8x1xf32>
    %543 = vector.broadcast %542 : vector<8x1xf32> to vector<8x32xf32>
    %544 = arith.mulf %543, %447 : vector<8x32xf32>
    %545 = arith.addf %540, %544 : vector<8x32xf32>
    %546 = vector.broadcast %510 : vector<8x1xf32> to vector<8x32xf32>
    %547 = arith.mulf %546, %538 : vector<8x32xf32>
    %cst_124 = arith.constant 1.000000e+00 : f32
    %548 = vector.broadcast %cst_124 : f32 to vector<8x1xf32>
    %549 = arith.subf %548, %510 : vector<8x1xf32>
    %550 = vector.broadcast %549 : vector<8x1xf32> to vector<8x32xf32>
    %551 = arith.mulf %550, %454 : vector<8x32xf32>
    %552 = arith.addf %547, %551 : vector<8x32xf32>
    %553 = vector.broadcast %510 : vector<8x1xf32> to vector<8x32xf32>
    %554 = arith.mulf %552, %553 : vector<8x32xf32>
    %c40_125 = arith.constant 40 : index
    %c0_126 = arith.constant 0 : index
    %555 = vector.load %arg18[%c40_125, %c0_126] : memref<64x64xf32, #tpu.memory_space<vmem>>, vector<8x32xf32>
    tpu.vector_store %arg18[%c40_125, %c0_126], %554 {strides = array<i32>} : memref<64x64xf32, #tpu.memory_space<vmem>>, vector<8x32xf32>,
    %c2_i32_127 = arith.constant 2 : i32
    %556 = vector.broadcast %c2_i32_127 : i32 to vector<8x1xi32>
    %557 = arith.cmpi sgt, %0, %556 : vector<8x1xi32>
    %558 = arith.extui %557 : vector<8x1xi1> to vector<8x1xi32>
    %559 = arith.sitofp %558 : vector<8x1xi32> to vector<8x1xf32>
    %c16_128 = arith.constant 16 : index
    %c0_129 = arith.constant 0 : index
    %560 = vector.load %arg20[%c16_128, %c0_129] : memref<64x128xf32, #tpu.memory_space<vmem>>, vector<8x128xf32>
    %cst_130 = arith.constant dense<0.000000e+00> : vector<8x128xf32>
    %561 = tpu.matmul %503, %10, %cst_130 {dimension_numbers = #tpu.dot_dimension_numbers<[1], [0], [0], [1], [0, 0, 1, 1], [], []>} : vector<8x32xf32>, vector<32x128xf32>, vector<8x128xf32> -> vector<8x128xf32>
    %562 = arith.addf %560, %561 : vector<8x128xf32>
    %563 = vector.extract_strided_slice %562 {offsets = [0, 0], sizes = [8, 32], strides = [1, 1]} : vector<8x128xf32> to vector<8x32xf32>
    %564 = arith.negf %563 : vector<8x32xf32>
    %565 = math.exp %564 : vector<8x32xf32>
    %cst_131 = arith.constant 1.000000e+00 : f32
    %566 = vector.broadcast %cst_131 : f32 to vector<8x32xf32>
    %567 = arith.addf %566, %565 : vector<8x32xf32>
    %568 = arith.divf %566, %567 : vector<8x32xf32>
    %569 = vector.extract_strided_slice %562 {offsets = [0, 32], sizes = [8, 32], strides = [1, 1]} : vector<8x128xf32> to vector<8x32xf32>
    %570 = arith.negf %569 : vector<8x32xf32>
    %571 = math.exp %570 : vector<8x32xf32>
    %cst_132 = arith.constant 1.000000e+00 : f32
    %572 = vector.broadcast %cst_132 : f32 to vector<8x32xf32>
    %573 = arith.addf %572, %571 : vector<8x32xf32>
    %574 = arith.divf %572, %573 : vector<8x32xf32>
    %575 = vector.extract_strided_slice %562 {offsets = [0, 64], sizes = [8, 32], strides = [1, 1]} : vector<8x128xf32> to vector<8x32xf32>
    %576 = math.tanh %575 : vector<8x32xf32>
    %577 = vector.extract_strided_slice %562 {offsets = [0, 96], sizes = [8, 32], strides = [1, 1]} : vector<8x128xf32> to vector<8x32xf32>
    %578 = arith.negf %577 : vector<8x32xf32>
    %579 = math.exp %578 : vector<8x32xf32>
    %cst_133 = arith.constant 1.000000e+00 : f32
    %580 = vector.broadcast %cst_133 : f32 to vector<8x32xf32>
    %581 = arith.addf %580, %579 : vector<8x32xf32>
    %582 = arith.divf %580, %581 : vector<8x32xf32>
    %583 = arith.mulf %574, %496 : vector<8x32xf32>
    %584 = arith.mulf %568, %576 : vector<8x32xf32>
    %585 = arith.addf %583, %584 : vector<8x32xf32>
    %586 = math.tanh %585 : vector<8x32xf32>
    %587 = arith.mulf %582, %586 : vector<8x32xf32>
    %588 = vector.broadcast %559 : vector<8x1xf32> to vector<8x32xf32>
    %589 = arith.mulf %588, %585 : vector<8x32xf32>
    %cst_134 = arith.constant 1.000000e+00 : f32
    %590 = vector.broadcast %cst_134 : f32 to vector<8x1xf32>
    %591 = arith.subf %590, %559 : vector<8x1xf32>
    %592 = vector.broadcast %591 : vector<8x1xf32> to vector<8x32xf32>
    %593 = arith.mulf %592, %496 : vector<8x32xf32>
    %594 = arith.addf %589, %593 : vector<8x32xf32>
    %595 = vector.broadcast %559 : vector<8x1xf32> to vector<8x32xf32>
    %596 = arith.mulf %595, %587 : vector<8x32xf32>
    %cst_135 = arith.constant 1.000000e+00 : f32
    %597 = vector.broadcast %cst_135 : f32 to vector<8x1xf32>
    %598 = arith.subf %597, %559 : vector<8x1xf32>
    %599 = vector.broadcast %598 : vector<8x1xf32> to vector<8x32xf32>
    %600 = arith.mulf %599, %503 : vector<8x32xf32>
    %601 = arith.addf %596, %600 : vector<8x32xf32>
    %602 = vector.broadcast %559 : vector<8x1xf32> to vector<8x32xf32>
    %603 = arith.mulf %601, %602 : vector<8x32xf32>
    %c16_136 = arith.constant 16 : index
    %c32_137 = arith.constant 32 : index
    %604 = vector.load %arg18[%c16_136, %c32_137] : memref<64x64xf32, #tpu.memory_space<vmem>>, vector<8x32xf32>
    tpu.vector_store %arg18[%c16_136, %c32_137], %603 {strides = array<i32>} : memref<64x64xf32, #tpu.memory_space<vmem>>, vector<8x32xf32>,
    %c6_i32_138 = arith.constant 6 : i32
    %605 = vector.broadcast %c6_i32_138 : i32 to vector<8x1xi32>
    %606 = arith.cmpi sgt, %0, %605 : vector<8x1xi32>
    %607 = arith.extui %606 : vector<8x1xi1> to vector<8x1xi32>
    %608 = arith.sitofp %607 : vector<8x1xi32> to vector<8x1xf32>
    %c48_139 = arith.constant 48 : index
    %c0_140 = arith.constant 0 : index
    %609 = vector.load %arg19[%c48_139, %c0_140] : memref<64x128xf32, #tpu.memory_space<vmem>>, vector<8x128xf32>
    %cst_141 = arith.constant dense<0.000000e+00> : vector<8x128xf32>
    %610 = tpu.matmul %552, %3, %cst_141 {dimension_numbers = #tpu.dot_dimension_numbers<[1], [0], [0], [1], [0, 0, 1, 1], [], []>} : vector<8x32xf32>, vector<32x128xf32>, vector<8x128xf32> -> vector<8x128xf32>
    %611 = arith.addf %609, %610 : vector<8x128xf32>
    %612 = vector.extract_strided_slice %611 {offsets = [0, 0], sizes = [8, 32], strides = [1, 1]} : vector<8x128xf32> to vector<8x32xf32>
    %613 = arith.negf %612 : vector<8x32xf32>
    %614 = math.exp %613 : vector<8x32xf32>
    %cst_142 = arith.constant 1.000000e+00 : f32
    %615 = vector.broadcast %cst_142 : f32 to vector<8x32xf32>
    %616 = arith.addf %615, %614 : vector<8x32xf32>
    %617 = arith.divf %615, %616 : vector<8x32xf32>
    %618 = vector.extract_strided_slice %611 {offsets = [0, 32], sizes = [8, 32], strides = [1, 1]} : vector<8x128xf32> to vector<8x32xf32>
    %619 = arith.negf %618 : vector<8x32xf32>
    %620 = math.exp %619 : vector<8x32xf32>
    %cst_143 = arith.constant 1.000000e+00 : f32
    %621 = vector.broadcast %cst_143 : f32 to vector<8x32xf32>
    %622 = arith.addf %621, %620 : vector<8x32xf32>
    %623 = arith.divf %621, %622 : vector<8x32xf32>
    %624 = vector.extract_strided_slice %611 {offsets = [0, 64], sizes = [8, 32], strides = [1, 1]} : vector<8x128xf32> to vector<8x32xf32>
    %625 = math.tanh %624 : vector<8x32xf32>
    %626 = vector.extract_strided_slice %611 {offsets = [0, 96], sizes = [8, 32], strides = [1, 1]} : vector<8x128xf32> to vector<8x32xf32>
    %627 = arith.negf %626 : vector<8x32xf32>
    %628 = math.exp %627 : vector<8x32xf32>
    %cst_144 = arith.constant 1.000000e+00 : f32
    %629 = vector.broadcast %cst_144 : f32 to vector<8x32xf32>
    %630 = arith.addf %629, %628 : vector<8x32xf32>
    %631 = arith.divf %629, %630 : vector<8x32xf32>
    %632 = arith.mulf %623, %545 : vector<8x32xf32>
    %633 = arith.mulf %617, %625 : vector<8x32xf32>
    %634 = arith.addf %632, %633 : vector<8x32xf32>
    %635 = math.tanh %634 : vector<8x32xf32>
    %636 = arith.mulf %631, %635 : vector<8x32xf32>
    %637 = vector.broadcast %608 : vector<8x1xf32> to vector<8x32xf32>
    %638 = arith.mulf %637, %634 : vector<8x32xf32>
    %cst_145 = arith.constant 1.000000e+00 : f32
    %639 = vector.broadcast %cst_145 : f32 to vector<8x1xf32>
    %640 = arith.subf %639, %608 : vector<8x1xf32>
    %641 = vector.broadcast %640 : vector<8x1xf32> to vector<8x32xf32>
    %642 = arith.mulf %641, %545 : vector<8x32xf32>
    %643 = arith.addf %638, %642 : vector<8x32xf32>
    %644 = vector.broadcast %608 : vector<8x1xf32> to vector<8x32xf32>
    %645 = arith.mulf %644, %636 : vector<8x32xf32>
    %cst_146 = arith.constant 1.000000e+00 : f32
    %646 = vector.broadcast %cst_146 : f32 to vector<8x1xf32>
    %647 = arith.subf %646, %608 : vector<8x1xf32>
    %648 = vector.broadcast %647 : vector<8x1xf32> to vector<8x32xf32>
    %649 = arith.mulf %648, %552 : vector<8x32xf32>
    %650 = arith.addf %645, %649 : vector<8x32xf32>
    %651 = vector.broadcast %608 : vector<8x1xf32> to vector<8x32xf32>
    %652 = arith.mulf %650, %651 : vector<8x32xf32>
    %c48_147 = arith.constant 48 : index
    %c0_148 = arith.constant 0 : index
    %653 = vector.load %arg18[%c48_147, %c0_148] : memref<64x64xf32, #tpu.memory_space<vmem>>, vector<8x32xf32>
    tpu.vector_store %arg18[%c48_147, %c0_148], %652 {strides = array<i32>} : memref<64x64xf32, #tpu.memory_space<vmem>>, vector<8x32xf32>,
    %c1_i32_149 = arith.constant 1 : i32
    %654 = vector.broadcast %c1_i32_149 : i32 to vector<8x1xi32>
    %655 = arith.cmpi sgt, %0, %654 : vector<8x1xi32>
    %656 = arith.extui %655 : vector<8x1xi1> to vector<8x1xi32>
    %657 = arith.sitofp %656 : vector<8x1xi32> to vector<8x1xf32>
    %c8_150 = arith.constant 8 : index
    %c0_151 = arith.constant 0 : index
    %658 = vector.load %arg20[%c8_150, %c0_151] : memref<64x128xf32, #tpu.memory_space<vmem>>, vector<8x128xf32>
    %cst_152 = arith.constant dense<0.000000e+00> : vector<8x128xf32>
    %659 = tpu.matmul %601, %10, %cst_152 {dimension_numbers = #tpu.dot_dimension_numbers<[1], [0], [0], [1], [0, 0, 1, 1], [], []>} : vector<8x32xf32>, vector<32x128xf32>, vector<8x128xf32> -> vector<8x128xf32>
    %660 = arith.addf %658, %659 : vector<8x128xf32>
    %661 = vector.extract_strided_slice %660 {offsets = [0, 0], sizes = [8, 32], strides = [1, 1]} : vector<8x128xf32> to vector<8x32xf32>
    %662 = arith.negf %661 : vector<8x32xf32>
    %663 = math.exp %662 : vector<8x32xf32>
    %cst_153 = arith.constant 1.000000e+00 : f32
    %664 = vector.broadcast %cst_153 : f32 to vector<8x32xf32>
    %665 = arith.addf %664, %663 : vector<8x32xf32>
    %666 = arith.divf %664, %665 : vector<8x32xf32>
    %667 = vector.extract_strided_slice %660 {offsets = [0, 32], sizes = [8, 32], strides = [1, 1]} : vector<8x128xf32> to vector<8x32xf32>
    %668 = arith.negf %667 : vector<8x32xf32>
    %669 = math.exp %668 : vector<8x32xf32>
    %cst_154 = arith.constant 1.000000e+00 : f32
    %670 = vector.broadcast %cst_154 : f32 to vector<8x32xf32>
    %671 = arith.addf %670, %669 : vector<8x32xf32>
    %672 = arith.divf %670, %671 : vector<8x32xf32>
    %673 = vector.extract_strided_slice %660 {offsets = [0, 64], sizes = [8, 32], strides = [1, 1]} : vector<8x128xf32> to vector<8x32xf32>
    %674 = math.tanh %673 : vector<8x32xf32>
    %675 = vector.extract_strided_slice %660 {offsets = [0, 96], sizes = [8, 32], strides = [1, 1]} : vector<8x128xf32> to vector<8x32xf32>
    %676 = arith.negf %675 : vector<8x32xf32>
    %677 = math.exp %676 : vector<8x32xf32>
    %cst_155 = arith.constant 1.000000e+00 : f32
    %678 = vector.broadcast %cst_155 : f32 to vector<8x32xf32>
    %679 = arith.addf %678, %677 : vector<8x32xf32>
    %680 = arith.divf %678, %679 : vector<8x32xf32>
    %681 = arith.mulf %672, %594 : vector<8x32xf32>
    %682 = arith.mulf %666, %674 : vector<8x32xf32>
    %683 = arith.addf %681, %682 : vector<8x32xf32>
    %684 = math.tanh %683 : vector<8x32xf32>
    %685 = arith.mulf %680, %684 : vector<8x32xf32>
    %686 = vector.broadcast %657 : vector<8x1xf32> to vector<8x32xf32>
    %687 = arith.mulf %686, %683 : vector<8x32xf32>
    %cst_156 = arith.constant 1.000000e+00 : f32
    %688 = vector.broadcast %cst_156 : f32 to vector<8x1xf32>
    %689 = arith.subf %688, %657 : vector<8x1xf32>
    %690 = vector.broadcast %689 : vector<8x1xf32> to vector<8x32xf32>
    %691 = arith.mulf %690, %594 : vector<8x32xf32>
    %692 = arith.addf %687, %691 : vector<8x32xf32>
    %693 = vector.broadcast %657 : vector<8x1xf32> to vector<8x32xf32>
    %694 = arith.mulf %693, %685 : vector<8x32xf32>
    %cst_157 = arith.constant 1.000000e+00 : f32
    %695 = vector.broadcast %cst_157 : f32 to vector<8x1xf32>
    %696 = arith.subf %695, %657 : vector<8x1xf32>
    %697 = vector.broadcast %696 : vector<8x1xf32> to vector<8x32xf32>
    %698 = arith.mulf %697, %601 : vector<8x32xf32>
    %699 = arith.addf %694, %698 : vector<8x32xf32>
    %700 = vector.broadcast %657 : vector<8x1xf32> to vector<8x32xf32>
    %701 = arith.mulf %699, %700 : vector<8x32xf32>
    %c8_158 = arith.constant 8 : index
    %c32_159 = arith.constant 32 : index
    %702 = vector.load %arg18[%c8_158, %c32_159] : memref<64x64xf32, #tpu.memory_space<vmem>>, vector<8x32xf32>
    tpu.vector_store %arg18[%c8_158, %c32_159], %701 {strides = array<i32>} : memref<64x64xf32, #tpu.memory_space<vmem>>, vector<8x32xf32>,
    %c7_i32_160 = arith.constant 7 : i32
    %703 = vector.broadcast %c7_i32_160 : i32 to vector<8x1xi32>
    %704 = arith.cmpi sgt, %0, %703 : vector<8x1xi32>
    %705 = arith.extui %704 : vector<8x1xi1> to vector<8x1xi32>
    %706 = arith.sitofp %705 : vector<8x1xi32> to vector<8x1xf32>
    %c56_161 = arith.constant 56 : index
    %c0_162 = arith.constant 0 : index
    %707 = vector.load %arg19[%c56_161, %c0_162] : memref<64x128xf32, #tpu.memory_space<vmem>>, vector<8x128xf32>
    %cst_163 = arith.constant dense<0.000000e+00> : vector<8x128xf32>
    %708 = tpu.matmul %650, %3, %cst_163 {dimension_numbers = #tpu.dot_dimension_numbers<[1], [0], [0], [1], [0, 0, 1, 1], [], []>} : vector<8x32xf32>, vector<32x128xf32>, vector<8x128xf32> -> vector<8x128xf32>
    %709 = arith.addf %707, %708 : vector<8x128xf32>
    %710 = vector.extract_strided_slice %709 {offsets = [0, 0], sizes = [8, 32], strides = [1, 1]} : vector<8x128xf32> to vector<8x32xf32>
    %711 = arith.negf %710 : vector<8x32xf32>
    %712 = math.exp %711 : vector<8x32xf32>
    %cst_164 = arith.constant 1.000000e+00 : f32
    %713 = vector.broadcast %cst_164 : f32 to vector<8x32xf32>
    %714 = arith.addf %713, %712 : vector<8x32xf32>
    %715 = arith.divf %713, %714 : vector<8x32xf32>
    %716 = vector.extract_strided_slice %709 {offsets = [0, 32], sizes = [8, 32], strides = [1, 1]} : vector<8x128xf32> to vector<8x32xf32>
    %717 = arith.negf %716 : vector<8x32xf32>
    %718 = math.exp %717 : vector<8x32xf32>
    %cst_165 = arith.constant 1.000000e+00 : f32
    %719 = vector.broadcast %cst_165 : f32 to vector<8x32xf32>
    %720 = arith.addf %719, %718 : vector<8x32xf32>
    %721 = arith.divf %719, %720 : vector<8x32xf32>
    %722 = vector.extract_strided_slice %709 {offsets = [0, 64], sizes = [8, 32], strides = [1, 1]} : vector<8x128xf32> to vector<8x32xf32>
    %723 = math.tanh %722 : vector<8x32xf32>
    %724 = vector.extract_strided_slice %709 {offsets = [0, 96], sizes = [8, 32], strides = [1, 1]} : vector<8x128xf32> to vector<8x32xf32>
    %725 = arith.negf %724 : vector<8x32xf32>
    %726 = math.exp %725 : vector<8x32xf32>
    %cst_166 = arith.constant 1.000000e+00 : f32
    %727 = vector.broadcast %cst_166 : f32 to vector<8x32xf32>
    %728 = arith.addf %727, %726 : vector<8x32xf32>
    %729 = arith.divf %727, %728 : vector<8x32xf32>
    %730 = arith.mulf %721, %643 : vector<8x32xf32>
    %731 = arith.mulf %715, %723 : vector<8x32xf32>
    %732 = arith.addf %730, %731 : vector<8x32xf32>
    %733 = math.tanh %732 : vector<8x32xf32>
    %734 = arith.mulf %729, %733 : vector<8x32xf32>
    %735 = vector.broadcast %706 : vector<8x1xf32> to vector<8x32xf32>
    %736 = arith.mulf %735, %734 : vector<8x32xf32>
    %cst_167 = arith.constant 1.000000e+00 : f32
    %737 = vector.broadcast %cst_167 : f32 to vector<8x1xf32>
    %738 = arith.subf %737, %706 : vector<8x1xf32>
    %739 = vector.broadcast %738 : vector<8x1xf32> to vector<8x32xf32>
    %740 = arith.mulf %739, %650 : vector<8x32xf32>
    %741 = arith.addf %736, %740 : vector<8x32xf32>
    %742 = vector.broadcast %706 : vector<8x1xf32> to vector<8x32xf32>
    %743 = arith.mulf %741, %742 : vector<8x32xf32>
    %c56_168 = arith.constant 56 : index
    %c0_169 = arith.constant 0 : index
    %744 = vector.load %arg18[%c56_168, %c0_169] : memref<64x64xf32, #tpu.memory_space<vmem>>, vector<8x32xf32>
    tpu.vector_store %arg18[%c56_168, %c0_169], %743 {strides = array<i32>} : memref<64x64xf32, #tpu.memory_space<vmem>>, vector<8x32xf32>,
    %c0_i32_170 = arith.constant 0 : i32
    %745 = vector.broadcast %c0_i32_170 : i32 to vector<8x1xi32>
    %746 = arith.cmpi sgt, %0, %745 : vector<8x1xi32>
    %747 = arith.extui %746 : vector<8x1xi1> to vector<8x1xi32>
    %748 = arith.sitofp %747 : vector<8x1xi32> to vector<8x1xf32>
    %c0_171 = arith.constant 0 : index
    %c0_172 = arith.constant 0 : index
    %749 = vector.load %arg20[%c0_171, %c0_172] : memref<64x128xf32, #tpu.memory_space<vmem>>, vector<8x128xf32>
    %cst_173 = arith.constant dense<0.000000e+00> : vector<8x128xf32>
    %750 = tpu.matmul %699, %10, %cst_173 {dimension_numbers = #tpu.dot_dimension_numbers<[1], [0], [0], [1], [0, 0, 1, 1], [], []>} : vector<8x32xf32>, vector<32x128xf32>, vector<8x128xf32> -> vector<8x128xf32>
    %751 = arith.addf %749, %750 : vector<8x128xf32>
    %752 = vector.extract_strided_slice %751 {offsets = [0, 0], sizes = [8, 32], strides = [1, 1]} : vector<8x128xf32> to vector<8x32xf32>
    %753 = arith.negf %752 : vector<8x32xf32>
    %754 = math.exp %753 : vector<8x32xf32>
    %cst_174 = arith.constant 1.000000e+00 : f32
    %755 = vector.broadcast %cst_174 : f32 to vector<8x32xf32>
    %756 = arith.addf %755, %754 : vector<8x32xf32>
    %757 = arith.divf %755, %756 : vector<8x32xf32>
    %758 = vector.extract_strided_slice %751 {offsets = [0, 32], sizes = [8, 32], strides = [1, 1]} : vector<8x128xf32> to vector<8x32xf32>
    %759 = arith.negf %758 : vector<8x32xf32>
    %760 = math.exp %759 : vector<8x32xf32>
    %cst_175 = arith.constant 1.000000e+00 : f32
    %761 = vector.broadcast %cst_175 : f32 to vector<8x32xf32>
    %762 = arith.addf %761, %760 : vector<8x32xf32>
    %763 = arith.divf %761, %762 : vector<8x32xf32>
    %764 = vector.extract_strided_slice %751 {offsets = [0, 64], sizes = [8, 32], strides = [1, 1]} : vector<8x128xf32> to vector<8x32xf32>
    %765 = math.tanh %764 : vector<8x32xf32>
    %766 = vector.extract_strided_slice %751 {offsets = [0, 96], sizes = [8, 32], strides = [1, 1]} : vector<8x128xf32> to vector<8x32xf32>
    %767 = arith.negf %766 : vector<8x32xf32>
    %768 = math.exp %767 : vector<8x32xf32>
    %cst_176 = arith.constant 1.000000e+00 : f32
    %769 = vector.broadcast %cst_176 : f32 to vector<8x32xf32>
    %770 = arith.addf %769, %768 : vector<8x32xf32>
    %771 = arith.divf %769, %770 : vector<8x32xf32>
    %772 = arith.mulf %763, %692 : vector<8x32xf32>
    %773 = arith.mulf %757, %765 : vector<8x32xf32>
    %774 = arith.addf %772, %773 : vector<8x32xf32>
    %775 = math.tanh %774 : vector<8x32xf32>
    %776 = arith.mulf %771, %775 : vector<8x32xf32>
    %777 = vector.broadcast %748 : vector<8x1xf32> to vector<8x32xf32>
    %778 = arith.mulf %777, %776 : vector<8x32xf32>
    %cst_177 = arith.constant 1.000000e+00 : f32
    %779 = vector.broadcast %cst_177 : f32 to vector<8x1xf32>
    %780 = arith.subf %779, %748 : vector<8x1xf32>
    %781 = vector.broadcast %780 : vector<8x1xf32> to vector<8x32xf32>
    %782 = arith.mulf %781, %699 : vector<8x32xf32>
    %783 = arith.addf %778, %782 : vector<8x32xf32>
    %784 = vector.broadcast %748 : vector<8x1xf32> to vector<8x32xf32>
    %785 = arith.mulf %783, %784 : vector<8x32xf32>
    %c0_178 = arith.constant 0 : index
    %c32_179 = arith.constant 32 : index
    %786 = vector.load %arg18[%c0_178, %c32_179] : memref<64x64xf32, #tpu.memory_space<vmem>>, vector<8x32xf32>
    tpu.vector_store %arg18[%c0_178, %c32_179], %785 {strides = array<i32>} : memref<64x64xf32, #tpu.memory_space<vmem>>, vector<8x32xf32>,
    %c0_180 = arith.constant 0 : index
    %c0_181 = arith.constant 0 : index
    %787 = vector.load %arg18[%c0_180, %c0_181] : memref<64x64xf32, #tpu.memory_space<vmem>>, vector<64x64xf32>
    %c0_182 = arith.constant 0 : index
    %c0_183 = arith.constant 0 : index
    %788 = vector.load %arg9[%c0_182, %c0_183] : memref<64x128xf32, #tpu.memory_space<vmem>>, vector<64x128xf32>
    %c0_184 = arith.constant 0 : index
    %c0_185 = arith.constant 0 : index
    %789 = vector.load %arg10[%c0_184, %c0_185] : memref<32x128xf32, #tpu.memory_space<vmem>>, vector<32x128xf32>
    %c0_186 = arith.constant 0 : index
    %c0_187 = arith.constant 0 : index
    %790 = vector.load %arg11[%c0_186, %c0_187] : memref<1x128xf32, #tpu.memory_space<vmem>>, vector<1x128xf32>
    %cst_188 = arith.constant dense<0.000000e+00> : vector<64x128xf32>
    %791 = tpu.matmul %787, %788, %cst_188 {dimension_numbers = #tpu.dot_dimension_numbers<[1], [0], [0], [1], [0, 0, 1, 1], [], []>} : vector<64x64xf32>, vector<64x128xf32>, vector<64x128xf32> -> vector<64x128xf32>
    %792 = vector.broadcast %790 : vector<1x128xf32> to vector<64x128xf32>
    %793 = arith.addf %791, %792 : vector<64x128xf32>
    %c0_189 = arith.constant 0 : index
    %c0_190 = arith.constant 0 : index
    %794 = vector.load %arg19[%c0_189, %c0_190] : memref<64x128xf32, #tpu.memory_space<vmem>>, vector<64x128xf32>
    tpu.vector_store %arg19[%c0_189, %c0_190], %793 {strides = array<i32>} : memref<64x128xf32, #tpu.memory_space<vmem>>, vector<64x128xf32>,
    %c0_191 = arith.constant 0 : index
    %c0_192 = arith.constant 0 : index
    %795 = vector.load %arg12[%c0_191, %c0_192] : memref<64x128xf32, #tpu.memory_space<vmem>>, vector<64x128xf32>
    %c0_193 = arith.constant 0 : index
    %c0_194 = arith.constant 0 : index
    %796 = vector.load %arg13[%c0_193, %c0_194] : memref<32x128xf32, #tpu.memory_space<vmem>>, vector<32x128xf32>
    %c0_195 = arith.constant 0 : index
    %c0_196 = arith.constant 0 : index
    %797 = vector.load %arg14[%c0_195, %c0_196] : memref<1x128xf32, #tpu.memory_space<vmem>>, vector<1x128xf32>
    %cst_197 = arith.constant dense<0.000000e+00> : vector<64x128xf32>
    %798 = tpu.matmul %787, %795, %cst_197 {dimension_numbers = #tpu.dot_dimension_numbers<[1], [0], [0], [1], [0, 0, 1, 1], [], []>} : vector<64x64xf32>, vector<64x128xf32>, vector<64x128xf32> -> vector<64x128xf32>
    %799 = vector.broadcast %797 : vector<1x128xf32> to vector<64x128xf32>
    %800 = arith.addf %798, %799 : vector<64x128xf32>
    %c0_198 = arith.constant 0 : index
    %c0_199 = arith.constant 0 : index
    %801 = vector.load %arg20[%c0_198, %c0_199] : memref<64x128xf32, #tpu.memory_space<vmem>>, vector<64x128xf32>
    tpu.vector_store %arg20[%c0_198, %c0_199], %800 {strides = array<i32>} : memref<64x128xf32, #tpu.memory_space<vmem>>, vector<64x128xf32>,
    %cst_200 = arith.constant 0.000000e+00 : f32
    %802 = vector.broadcast %cst_200 : f32 to vector<8x32xf32>
    %c0_i32_201 = arith.constant 0 : i32
    %803 = vector.broadcast %c0_i32_201 : i32 to vector<8x1xi32>
    %804 = arith.cmpi sgt, %0, %803 : vector<8x1xi32>
    %805 = arith.extui %804 : vector<8x1xi1> to vector<8x1xi32>
    %806 = arith.sitofp %805 : vector<8x1xi32> to vector<8x1xf32>
    %c0_202 = arith.constant 0 : index
    %c0_203 = arith.constant 0 : index
    %807 = vector.load %arg19[%c0_202, %c0_203] : memref<64x128xf32, #tpu.memory_space<vmem>>, vector<8x128xf32>
    %cst_204 = arith.constant dense<0.000000e+00> : vector<8x128xf32>
    %808 = tpu.matmul %802, %789, %cst_204 {dimension_numbers = #tpu.dot_dimension_numbers<[1], [0], [0], [1], [0, 0, 1, 1], [], []>} : vector<8x32xf32>, vector<32x128xf32>, vector<8x128xf32> -> vector<8x128xf32>
    %809 = arith.addf %807, %808 : vector<8x128xf32>
    %810 = vector.extract_strided_slice %809 {offsets = [0, 0], sizes = [8, 32], strides = [1, 1]} : vector<8x128xf32> to vector<8x32xf32>
    %811 = arith.negf %810 : vector<8x32xf32>
    %812 = math.exp %811 : vector<8x32xf32>
    %cst_205 = arith.constant 1.000000e+00 : f32
    %813 = vector.broadcast %cst_205 : f32 to vector<8x32xf32>
    %814 = arith.addf %813, %812 : vector<8x32xf32>
    %815 = arith.divf %813, %814 : vector<8x32xf32>
    %816 = vector.extract_strided_slice %809 {offsets = [0, 32], sizes = [8, 32], strides = [1, 1]} : vector<8x128xf32> to vector<8x32xf32>
    %817 = arith.negf %816 : vector<8x32xf32>
    %818 = math.exp %817 : vector<8x32xf32>
    %cst_206 = arith.constant 1.000000e+00 : f32
    %819 = vector.broadcast %cst_206 : f32 to vector<8x32xf32>
    %820 = arith.addf %819, %818 : vector<8x32xf32>
    %821 = arith.divf %819, %820 : vector<8x32xf32>
    %822 = vector.extract_strided_slice %809 {offsets = [0, 64], sizes = [8, 32], strides = [1, 1]} : vector<8x128xf32> to vector<8x32xf32>
    %823 = math.tanh %822 : vector<8x32xf32>
    %824 = vector.extract_strided_slice %809 {offsets = [0, 96], sizes = [8, 32], strides = [1, 1]} : vector<8x128xf32> to vector<8x32xf32>
    %825 = arith.negf %824 : vector<8x32xf32>
    %826 = math.exp %825 : vector<8x32xf32>
    %cst_207 = arith.constant 1.000000e+00 : f32
    %827 = vector.broadcast %cst_207 : f32 to vector<8x32xf32>
    %828 = arith.addf %827, %826 : vector<8x32xf32>
    %829 = arith.divf %827, %828 : vector<8x32xf32>
    %830 = arith.mulf %821, %802 : vector<8x32xf32>
    %831 = arith.mulf %815, %823 : vector<8x32xf32>
    %832 = arith.addf %830, %831 : vector<8x32xf32>
    %833 = math.tanh %832 : vector<8x32xf32>
    %834 = arith.mulf %829, %833 : vector<8x32xf32>
    %835 = vector.broadcast %806 : vector<8x1xf32> to vector<8x32xf32>
    %836 = arith.mulf %835, %832 : vector<8x32xf32>
    %cst_208 = arith.constant 1.000000e+00 : f32
    %837 = vector.broadcast %cst_208 : f32 to vector<8x1xf32>
    %838 = arith.subf %837, %806 : vector<8x1xf32>
    %839 = vector.broadcast %838 : vector<8x1xf32> to vector<8x32xf32>
    %840 = arith.mulf %839, %802 : vector<8x32xf32>
    %841 = arith.addf %836, %840 : vector<8x32xf32>
    %842 = vector.broadcast %806 : vector<8x1xf32> to vector<8x32xf32>
    %843 = arith.mulf %842, %834 : vector<8x32xf32>
    %cst_209 = arith.constant 1.000000e+00 : f32
    %844 = vector.broadcast %cst_209 : f32 to vector<8x1xf32>
    %845 = arith.subf %844, %806 : vector<8x1xf32>
    %846 = vector.broadcast %845 : vector<8x1xf32> to vector<8x32xf32>
    %847 = arith.mulf %846, %802 : vector<8x32xf32>
    %848 = arith.addf %843, %847 : vector<8x32xf32>
    %849 = vector.broadcast %806 : vector<8x1xf32> to vector<8x32xf32>
    %850 = arith.mulf %848, %849 : vector<8x32xf32>
    %c0_210 = arith.constant 0 : index
    %c0_211 = arith.constant 0 : index
    %851 = vector.load %arg18[%c0_210, %c0_211] : memref<64x64xf32, #tpu.memory_space<vmem>>, vector<8x32xf32>
    tpu.vector_store %arg18[%c0_210, %c0_211], %850 {strides = array<i32>} : memref<64x64xf32, #tpu.memory_space<vmem>>, vector<8x32xf32>,
    %c7_i32_212 = arith.constant 7 : i32
    %852 = vector.broadcast %c7_i32_212 : i32 to vector<8x1xi32>
    %853 = arith.cmpi sgt, %0, %852 : vector<8x1xi32>
    %854 = arith.extui %853 : vector<8x1xi1> to vector<8x1xi32>
    %855 = arith.sitofp %854 : vector<8x1xi32> to vector<8x1xf32>
    %c56_213 = arith.constant 56 : index
    %c0_214 = arith.constant 0 : index
    %856 = vector.load %arg20[%c56_213, %c0_214] : memref<64x128xf32, #tpu.memory_space<vmem>>, vector<8x128xf32>
    %cst_215 = arith.constant dense<0.000000e+00> : vector<8x128xf32>
    %857 = tpu.matmul %802, %796, %cst_215 {dimension_numbers = #tpu.dot_dimension_numbers<[1], [0], [0], [1], [0, 0, 1, 1], [], []>} : vector<8x32xf32>, vector<32x128xf32>, vector<8x128xf32> -> vector<8x128xf32>
    %858 = arith.addf %856, %857 : vector<8x128xf32>
    %859 = vector.extract_strided_slice %858 {offsets = [0, 0], sizes = [8, 32], strides = [1, 1]} : vector<8x128xf32> to vector<8x32xf32>
    %860 = arith.negf %859 : vector<8x32xf32>
    %861 = math.exp %860 : vector<8x32xf32>
    %cst_216 = arith.constant 1.000000e+00 : f32
    %862 = vector.broadcast %cst_216 : f32 to vector<8x32xf32>
    %863 = arith.addf %862, %861 : vector<8x32xf32>
    %864 = arith.divf %862, %863 : vector<8x32xf32>
    %865 = vector.extract_strided_slice %858 {offsets = [0, 32], sizes = [8, 32], strides = [1, 1]} : vector<8x128xf32> to vector<8x32xf32>
    %866 = arith.negf %865 : vector<8x32xf32>
    %867 = math.exp %866 : vector<8x32xf32>
    %cst_217 = arith.constant 1.000000e+00 : f32
    %868 = vector.broadcast %cst_217 : f32 to vector<8x32xf32>
    %869 = arith.addf %868, %867 : vector<8x32xf32>
    %870 = arith.divf %868, %869 : vector<8x32xf32>
    %871 = vector.extract_strided_slice %858 {offsets = [0, 64], sizes = [8, 32], strides = [1, 1]} : vector<8x128xf32> to vector<8x32xf32>
    %872 = math.tanh %871 : vector<8x32xf32>
    %873 = vector.extract_strided_slice %858 {offsets = [0, 96], sizes = [8, 32], strides = [1, 1]} : vector<8x128xf32> to vector<8x32xf32>
    %874 = arith.negf %873 : vector<8x32xf32>
    %875 = math.exp %874 : vector<8x32xf32>
    %cst_218 = arith.constant 1.000000e+00 : f32
    %876 = vector.broadcast %cst_218 : f32 to vector<8x32xf32>
    %877 = arith.addf %876, %875 : vector<8x32xf32>
    %878 = arith.divf %876, %877 : vector<8x32xf32>
    %879 = arith.mulf %870, %802 : vector<8x32xf32>
    %880 = arith.mulf %864, %872 : vector<8x32xf32>
    %881 = arith.addf %879, %880 : vector<8x32xf32>
    %882 = math.tanh %881 : vector<8x32xf32>
    %883 = arith.mulf %878, %882 : vector<8x32xf32>
    %884 = vector.broadcast %855 : vector<8x1xf32> to vector<8x32xf32>
    %885 = arith.mulf %884, %881 : vector<8x32xf32>
    %cst_219 = arith.constant 1.000000e+00 : f32
    %886 = vector.broadcast %cst_219 : f32 to vector<8x1xf32>
    %887 = arith.subf %886, %855 : vector<8x1xf32>
    %888 = vector.broadcast %887 : vector<8x1xf32> to vector<8x32xf32>
    %889 = arith.mulf %888, %802 : vector<8x32xf32>
    %890 = arith.addf %885, %889 : vector<8x32xf32>
    %891 = vector.broadcast %855 : vector<8x1xf32> to vector<8x32xf32>
    %892 = arith.mulf %891, %883 : vector<8x32xf32>
    %cst_220 = arith.constant 1.000000e+00 : f32
    %893 = vector.broadcast %cst_220 : f32 to vector<8x1xf32>
    %894 = arith.subf %893, %855 : vector<8x1xf32>
    %895 = vector.broadcast %894 : vector<8x1xf32> to vector<8x32xf32>
    %896 = arith.mulf %895, %802 : vector<8x32xf32>
    %897 = arith.addf %892, %896 : vector<8x32xf32>
    %898 = vector.broadcast %855 : vector<8x1xf32> to vector<8x32xf32>
    %899 = arith.mulf %897, %898 : vector<8x32xf32>
    %c56_221 = arith.constant 56 : index
    %c32_222 = arith.constant 32 : index
    %900 = vector.load %arg18[%c56_221, %c32_222] : memref<64x64xf32, #tpu.memory_space<vmem>>, vector<8x32xf32>
    tpu.vector_store %arg18[%c56_221, %c32_222], %899 {strides = array<i32>} : memref<64x64xf32, #tpu.memory_space<vmem>>, vector<8x32xf32>,
    %c1_i32_223 = arith.constant 1 : i32
    %901 = vector.broadcast %c1_i32_223 : i32 to vector<8x1xi32>
    %902 = arith.cmpi sgt, %0, %901 : vector<8x1xi32>
    %903 = arith.extui %902 : vector<8x1xi1> to vector<8x1xi32>
    %904 = arith.sitofp %903 : vector<8x1xi32> to vector<8x1xf32>
    %c8_224 = arith.constant 8 : index
    %c0_225 = arith.constant 0 : index
    %905 = vector.load %arg19[%c8_224, %c0_225] : memref<64x128xf32, #tpu.memory_space<vmem>>, vector<8x128xf32>
    %cst_226 = arith.constant dense<0.000000e+00> : vector<8x128xf32>
    %906 = tpu.matmul %848, %789, %cst_226 {dimension_numbers = #tpu.dot_dimension_numbers<[1], [0], [0], [1], [0, 0, 1, 1], [], []>} : vector<8x32xf32>, vector<32x128xf32>, vector<8x128xf32> -> vector<8x128xf32>
    %907 = arith.addf %905, %906 : vector<8x128xf32>
    %908 = vector.extract_strided_slice %907 {offsets = [0, 0], sizes = [8, 32], strides = [1, 1]} : vector<8x128xf32> to vector<8x32xf32>
    %909 = arith.negf %908 : vector<8x32xf32>
    %910 = math.exp %909 : vector<8x32xf32>
    %cst_227 = arith.constant 1.000000e+00 : f32
    %911 = vector.broadcast %cst_227 : f32 to vector<8x32xf32>
    %912 = arith.addf %911, %910 : vector<8x32xf32>
    %913 = arith.divf %911, %912 : vector<8x32xf32>
    %914 = vector.extract_strided_slice %907 {offsets = [0, 32], sizes = [8, 32], strides = [1, 1]} : vector<8x128xf32> to vector<8x32xf32>
    %915 = arith.negf %914 : vector<8x32xf32>
    %916 = math.exp %915 : vector<8x32xf32>
    %cst_228 = arith.constant 1.000000e+00 : f32
    %917 = vector.broadcast %cst_228 : f32 to vector<8x32xf32>
    %918 = arith.addf %917, %916 : vector<8x32xf32>
    %919 = arith.divf %917, %918 : vector<8x32xf32>
    %920 = vector.extract_strided_slice %907 {offsets = [0, 64], sizes = [8, 32], strides = [1, 1]} : vector<8x128xf32> to vector<8x32xf32>
    %921 = math.tanh %920 : vector<8x32xf32>
    %922 = vector.extract_strided_slice %907 {offsets = [0, 96], sizes = [8, 32], strides = [1, 1]} : vector<8x128xf32> to vector<8x32xf32>
    %923 = arith.negf %922 : vector<8x32xf32>
    %924 = math.exp %923 : vector<8x32xf32>
    %cst_229 = arith.constant 1.000000e+00 : f32
    %925 = vector.broadcast %cst_229 : f32 to vector<8x32xf32>
    %926 = arith.addf %925, %924 : vector<8x32xf32>
    %927 = arith.divf %925, %926 : vector<8x32xf32>
    %928 = arith.mulf %919, %841 : vector<8x32xf32>
    %929 = arith.mulf %913, %921 : vector<8x32xf32>
    %930 = arith.addf %928, %929 : vector<8x32xf32>
    %931 = math.tanh %930 : vector<8x32xf32>
    %932 = arith.mulf %927, %931 : vector<8x32xf32>
    %933 = vector.broadcast %904 : vector<8x1xf32> to vector<8x32xf32>
    %934 = arith.mulf %933, %930 : vector<8x32xf32>
    %cst_230 = arith.constant 1.000000e+00 : f32
    %935 = vector.broadcast %cst_230 : f32 to vector<8x1xf32>
    %936 = arith.subf %935, %904 : vector<8x1xf32>
    %937 = vector.broadcast %936 : vector<8x1xf32> to vector<8x32xf32>
    %938 = arith.mulf %937, %841 : vector<8x32xf32>
    %939 = arith.addf %934, %938 : vector<8x32xf32>
    %940 = vector.broadcast %904 : vector<8x1xf32> to vector<8x32xf32>
    %941 = arith.mulf %940, %932 : vector<8x32xf32>
    %cst_231 = arith.constant 1.000000e+00 : f32
    %942 = vector.broadcast %cst_231 : f32 to vector<8x1xf32>
    %943 = arith.subf %942, %904 : vector<8x1xf32>
    %944 = vector.broadcast %943 : vector<8x1xf32> to vector<8x32xf32>
    %945 = arith.mulf %944, %848 : vector<8x32xf32>
    %946 = arith.addf %941, %945 : vector<8x32xf32>
    %947 = vector.broadcast %904 : vector<8x1xf32> to vector<8x32xf32>
    %948 = arith.mulf %946, %947 : vector<8x32xf32>
    %c8_232 = arith.constant 8 : index
    %c0_233 = arith.constant 0 : index
    %949 = vector.load %arg18[%c8_232, %c0_233] : memref<64x64xf32, #tpu.memory_space<vmem>>, vector<8x32xf32>
    tpu.vector_store %arg18[%c8_232, %c0_233], %948 {strides = array<i32>} : memref<64x64xf32, #tpu.memory_space<vmem>>, vector<8x32xf32>,
    %c6_i32_234 = arith.constant 6 : i32
    %950 = vector.broadcast %c6_i32_234 : i32 to vector<8x1xi32>
    %951 = arith.cmpi sgt, %0, %950 : vector<8x1xi32>
    %952 = arith.extui %951 : vector<8x1xi1> to vector<8x1xi32>
    %953 = arith.sitofp %952 : vector<8x1xi32> to vector<8x1xf32>
    %c48_235 = arith.constant 48 : index
    %c0_236 = arith.constant 0 : index
    %954 = vector.load %arg20[%c48_235, %c0_236] : memref<64x128xf32, #tpu.memory_space<vmem>>, vector<8x128xf32>
    %cst_237 = arith.constant dense<0.000000e+00> : vector<8x128xf32>
    %955 = tpu.matmul %897, %796, %cst_237 {dimension_numbers = #tpu.dot_dimension_numbers<[1], [0], [0], [1], [0, 0, 1, 1], [], []>} : vector<8x32xf32>, vector<32x128xf32>, vector<8x128xf32> -> vector<8x128xf32>
    %956 = arith.addf %954, %955 : vector<8x128xf32>
    %957 = vector.extract_strided_slice %956 {offsets = [0, 0], sizes = [8, 32], strides = [1, 1]} : vector<8x128xf32> to vector<8x32xf32>
    %958 = arith.negf %957 : vector<8x32xf32>
    %959 = math.exp %958 : vector<8x32xf32>
    %cst_238 = arith.constant 1.000000e+00 : f32
    %960 = vector.broadcast %cst_238 : f32 to vector<8x32xf32>
    %961 = arith.addf %960, %959 : vector<8x32xf32>
    %962 = arith.divf %960, %961 : vector<8x32xf32>
    %963 = vector.extract_strided_slice %956 {offsets = [0, 32], sizes = [8, 32], strides = [1, 1]} : vector<8x128xf32> to vector<8x32xf32>
    %964 = arith.negf %963 : vector<8x32xf32>
    %965 = math.exp %964 : vector<8x32xf32>
    %cst_239 = arith.constant 1.000000e+00 : f32
    %966 = vector.broadcast %cst_239 : f32 to vector<8x32xf32>
    %967 = arith.addf %966, %965 : vector<8x32xf32>
    %968 = arith.divf %966, %967 : vector<8x32xf32>
    %969 = vector.extract_strided_slice %956 {offsets = [0, 64], sizes = [8, 32], strides = [1, 1]} : vector<8x128xf32> to vector<8x32xf32>
    %970 = math.tanh %969 : vector<8x32xf32>
    %971 = vector.extract_strided_slice %956 {offsets = [0, 96], sizes = [8, 32], strides = [1, 1]} : vector<8x128xf32> to vector<8x32xf32>
    %972 = arith.negf %971 : vector<8x32xf32>
    %973 = math.exp %972 : vector<8x32xf32>
    %cst_240 = arith.constant 1.000000e+00 : f32
    %974 = vector.broadcast %cst_240 : f32 to vector<8x32xf32>
    %975 = arith.addf %974, %973 : vector<8x32xf32>
    %976 = arith.divf %974, %975 : vector<8x32xf32>
    %977 = arith.mulf %968, %890 : vector<8x32xf32>
    %978 = arith.mulf %962, %970 : vector<8x32xf32>
    %979 = arith.addf %977, %978 : vector<8x32xf32>
    %980 = math.tanh %979 : vector<8x32xf32>
    %981 = arith.mulf %976, %980 : vector<8x32xf32>
    %982 = vector.broadcast %953 : vector<8x1xf32> to vector<8x32xf32>
    %983 = arith.mulf %982, %979 : vector<8x32xf32>
    %cst_241 = arith.constant 1.000000e+00 : f32
    %984 = vector.broadcast %cst_241 : f32 to vector<8x1xf32>
    %985 = arith.subf %984, %953 : vector<8x1xf32>
    %986 = vector.broadcast %985 : vector<8x1xf32> to vector<8x32xf32>
    %987 = arith.mulf %986, %890 : vector<8x32xf32>
    %988 = arith.addf %983, %987 : vector<8x32xf32>
    %989 = vector.broadcast %953 : vector<8x1xf32> to vector<8x32xf32>
    %990 = arith.mulf %989, %981 : vector<8x32xf32>
    %cst_242 = arith.constant 1.000000e+00 : f32
    %991 = vector.broadcast %cst_242 : f32 to vector<8x1xf32>
    %992 = arith.subf %991, %953 : vector<8x1xf32>
    %993 = vector.broadcast %992 : vector<8x1xf32> to vector<8x32xf32>
    %994 = arith.mulf %993, %897 : vector<8x32xf32>
    %995 = arith.addf %990, %994 : vector<8x32xf32>
    %996 = vector.broadcast %953 : vector<8x1xf32> to vector<8x32xf32>
    %997 = arith.mulf %995, %996 : vector<8x32xf32>
    %c48_243 = arith.constant 48 : index
    %c32_244 = arith.constant 32 : index
    %998 = vector.load %arg18[%c48_243, %c32_244] : memref<64x64xf32, #tpu.memory_space<vmem>>, vector<8x32xf32>
    tpu.vector_store %arg18[%c48_243, %c32_244], %997 {strides = array<i32>} : memref<64x64xf32, #tpu.memory_space<vmem>>, vector<8x32xf32>,
    %c2_i32_245 = arith.constant 2 : i32
    %999 = vector.broadcast %c2_i32_245 : i32 to vector<8x1xi32>
    %1000 = arith.cmpi sgt, %0, %999 : vector<8x1xi32>
    %1001 = arith.extui %1000 : vector<8x1xi1> to vector<8x1xi32>
    %1002 = arith.sitofp %1001 : vector<8x1xi32> to vector<8x1xf32>
    %c16_246 = arith.constant 16 : index
    %c0_247 = arith.constant 0 : index
    %1003 = vector.load %arg19[%c16_246, %c0_247] : memref<64x128xf32, #tpu.memory_space<vmem>>, vector<8x128xf32>
    %cst_248 = arith.constant dense<0.000000e+00> : vector<8x128xf32>
    %1004 = tpu.matmul %946, %789, %cst_248 {dimension_numbers = #tpu.dot_dimension_numbers<[1], [0], [0], [1], [0, 0, 1, 1], [], []>} : vector<8x32xf32>, vector<32x128xf32>, vector<8x128xf32> -> vector<8x128xf32>
    %1005 = arith.addf %1003, %1004 : vector<8x128xf32>
    %1006 = vector.extract_strided_slice %1005 {offsets = [0, 0], sizes = [8, 32], strides = [1, 1]} : vector<8x128xf32> to vector<8x32xf32>
    %1007 = arith.negf %1006 : vector<8x32xf32>
    %1008 = math.exp %1007 : vector<8x32xf32>
    %cst_249 = arith.constant 1.000000e+00 : f32
    %1009 = vector.broadcast %cst_249 : f32 to vector<8x32xf32>
    %1010 = arith.addf %1009, %1008 : vector<8x32xf32>
    %1011 = arith.divf %1009, %1010 : vector<8x32xf32>
    %1012 = vector.extract_strided_slice %1005 {offsets = [0, 32], sizes = [8, 32], strides = [1, 1]} : vector<8x128xf32> to vector<8x32xf32>
    %1013 = arith.negf %1012 : vector<8x32xf32>
    %1014 = math.exp %1013 : vector<8x32xf32>
    %cst_250 = arith.constant 1.000000e+00 : f32
    %1015 = vector.broadcast %cst_250 : f32 to vector<8x32xf32>
    %1016 = arith.addf %1015, %1014 : vector<8x32xf32>
    %1017 = arith.divf %1015, %1016 : vector<8x32xf32>
    %1018 = vector.extract_strided_slice %1005 {offsets = [0, 64], sizes = [8, 32], strides = [1, 1]} : vector<8x128xf32> to vector<8x32xf32>
    %1019 = math.tanh %1018 : vector<8x32xf32>
    %1020 = vector.extract_strided_slice %1005 {offsets = [0, 96], sizes = [8, 32], strides = [1, 1]} : vector<8x128xf32> to vector<8x32xf32>
    %1021 = arith.negf %1020 : vector<8x32xf32>
    %1022 = math.exp %1021 : vector<8x32xf32>
    %cst_251 = arith.constant 1.000000e+00 : f32
    %1023 = vector.broadcast %cst_251 : f32 to vector<8x32xf32>
    %1024 = arith.addf %1023, %1022 : vector<8x32xf32>
    %1025 = arith.divf %1023, %1024 : vector<8x32xf32>
    %1026 = arith.mulf %1017, %939 : vector<8x32xf32>
    %1027 = arith.mulf %1011, %1019 : vector<8x32xf32>
    %1028 = arith.addf %1026, %1027 : vector<8x32xf32>
    %1029 = math.tanh %1028 : vector<8x32xf32>
    %1030 = arith.mulf %1025, %1029 : vector<8x32xf32>
    %1031 = vector.broadcast %1002 : vector<8x1xf32> to vector<8x32xf32>
    %1032 = arith.mulf %1031, %1028 : vector<8x32xf32>
    %cst_252 = arith.constant 1.000000e+00 : f32
    %1033 = vector.broadcast %cst_252 : f32 to vector<8x1xf32>
    %1034 = arith.subf %1033, %1002 : vector<8x1xf32>
    %1035 = vector.broadcast %1034 : vector<8x1xf32> to vector<8x32xf32>
    %1036 = arith.mulf %1035, %939 : vector<8x32xf32>
    %1037 = arith.addf %1032, %1036 : vector<8x32xf32>
    %1038 = vector.broadcast %1002 : vector<8x1xf32> to vector<8x32xf32>
    %1039 = arith.mulf %1038, %1030 : vector<8x32xf32>
    %cst_253 = arith.constant 1.000000e+00 : f32
    %1040 = vector.broadcast %cst_253 : f32 to vector<8x1xf32>
    %1041 = arith.subf %1040, %1002 : vector<8x1xf32>
    %1042 = vector.broadcast %1041 : vector<8x1xf32> to vector<8x32xf32>
    %1043 = arith.mulf %1042, %946 : vector<8x32xf32>
    %1044 = arith.addf %1039, %1043 : vector<8x32xf32>
    %1045 = vector.broadcast %1002 : vector<8x1xf32> to vector<8x32xf32>
    %1046 = arith.mulf %1044, %1045 : vector<8x32xf32>
    %c16_254 = arith.constant 16 : index
    %c0_255 = arith.constant 0 : index
    %1047 = vector.load %arg18[%c16_254, %c0_255] : memref<64x64xf32, #tpu.memory_space<vmem>>, vector<8x32xf32>
    tpu.vector_store %arg18[%c16_254, %c0_255], %1046 {strides = array<i32>} : memref<64x64xf32, #tpu.memory_space<vmem>>, vector<8x32xf32>,
    %c5_i32_256 = arith.constant 5 : i32
    %1048 = vector.broadcast %c5_i32_256 : i32 to vector<8x1xi32>
    %1049 = arith.cmpi sgt, %0, %1048 : vector<8x1xi32>
    %1050 = arith.extui %1049 : vector<8x1xi1> to vector<8x1xi32>
    %1051 = arith.sitofp %1050 : vector<8x1xi32> to vector<8x1xf32>
    %c40_257 = arith.constant 40 : index
    %c0_258 = arith.constant 0 : index
    %1052 = vector.load %arg20[%c40_257, %c0_258] : memref<64x128xf32, #tpu.memory_space<vmem>>, vector<8x128xf32>
    %cst_259 = arith.constant dense<0.000000e+00> : vector<8x128xf32>
    %1053 = tpu.matmul %995, %796, %cst_259 {dimension_numbers = #tpu.dot_dimension_numbers<[1], [0], [0], [1], [0, 0, 1, 1], [], []>} : vector<8x32xf32>, vector<32x128xf32>, vector<8x128xf32> -> vector<8x128xf32>
    %1054 = arith.addf %1052, %1053 : vector<8x128xf32>
    %1055 = vector.extract_strided_slice %1054 {offsets = [0, 0], sizes = [8, 32], strides = [1, 1]} : vector<8x128xf32> to vector<8x32xf32>
    %1056 = arith.negf %1055 : vector<8x32xf32>
    %1057 = math.exp %1056 : vector<8x32xf32>
    %cst_260 = arith.constant 1.000000e+00 : f32
    %1058 = vector.broadcast %cst_260 : f32 to vector<8x32xf32>
    %1059 = arith.addf %1058, %1057 : vector<8x32xf32>
    %1060 = arith.divf %1058, %1059 : vector<8x32xf32>
    %1061 = vector.extract_strided_slice %1054 {offsets = [0, 32], sizes = [8, 32], strides = [1, 1]} : vector<8x128xf32> to vector<8x32xf32>
    %1062 = arith.negf %1061 : vector<8x32xf32>
    %1063 = math.exp %1062 : vector<8x32xf32>
    %cst_261 = arith.constant 1.000000e+00 : f32
    %1064 = vector.broadcast %cst_261 : f32 to vector<8x32xf32>
    %1065 = arith.addf %1064, %1063 : vector<8x32xf32>
    %1066 = arith.divf %1064, %1065 : vector<8x32xf32>
    %1067 = vector.extract_strided_slice %1054 {offsets = [0, 64], sizes = [8, 32], strides = [1, 1]} : vector<8x128xf32> to vector<8x32xf32>
    %1068 = math.tanh %1067 : vector<8x32xf32>
    %1069 = vector.extract_strided_slice %1054 {offsets = [0, 96], sizes = [8, 32], strides = [1, 1]} : vector<8x128xf32> to vector<8x32xf32>
    %1070 = arith.negf %1069 : vector<8x32xf32>
    %1071 = math.exp %1070 : vector<8x32xf32>
    %cst_262 = arith.constant 1.000000e+00 : f32
    %1072 = vector.broadcast %cst_262 : f32 to vector<8x32xf32>
    %1073 = arith.addf %1072, %1071 : vector<8x32xf32>
    %1074 = arith.divf %1072, %1073 : vector<8x32xf32>
    %1075 = arith.mulf %1066, %988 : vector<8x32xf32>
    %1076 = arith.mulf %1060, %1068 : vector<8x32xf32>
    %1077 = arith.addf %1075, %1076 : vector<8x32xf32>
    %1078 = math.tanh %1077 : vector<8x32xf32>
    %1079 = arith.mulf %1074, %1078 : vector<8x32xf32>
    %1080 = vector.broadcast %1051 : vector<8x1xf32> to vector<8x32xf32>
    %1081 = arith.mulf %1080, %1077 : vector<8x32xf32>
    %cst_263 = arith.constant 1.000000e+00 : f32
    %1082 = vector.broadcast %cst_263 : f32 to vector<8x1xf32>
    %1083 = arith.subf %1082, %1051 : vector<8x1xf32>
    %1084 = vector.broadcast %1083 : vector<8x1xf32> to vector<8x32xf32>
    %1085 = arith.mulf %1084, %988 : vector<8x32xf32>
    %1086 = arith.addf %1081, %1085 : vector<8x32xf32>
    %1087 = vector.broadcast %1051 : vector<8x1xf32> to vector<8x32xf32>
    %1088 = arith.mulf %1087, %1079 : vector<8x32xf32>
    %cst_264 = arith.constant 1.000000e+00 : f32
    %1089 = vector.broadcast %cst_264 : f32 to vector<8x1xf32>
    %1090 = arith.subf %1089, %1051 : vector<8x1xf32>
    %1091 = vector.broadcast %1090 : vector<8x1xf32> to vector<8x32xf32>
    %1092 = arith.mulf %1091, %995 : vector<8x32xf32>
    %1093 = arith.addf %1088, %1092 : vector<8x32xf32>
    %1094 = vector.broadcast %1051 : vector<8x1xf32> to vector<8x32xf32>
    %1095 = arith.mulf %1093, %1094 : vector<8x32xf32>
    %c40_265 = arith.constant 40 : index
    %c32_266 = arith.constant 32 : index
    %1096 = vector.load %arg18[%c40_265, %c32_266] : memref<64x64xf32, #tpu.memory_space<vmem>>, vector<8x32xf32>
    tpu.vector_store %arg18[%c40_265, %c32_266], %1095 {strides = array<i32>} : memref<64x64xf32, #tpu.memory_space<vmem>>, vector<8x32xf32>,
    %c3_i32_267 = arith.constant 3 : i32
    %1097 = vector.broadcast %c3_i32_267 : i32 to vector<8x1xi32>
    %1098 = arith.cmpi sgt, %0, %1097 : vector<8x1xi32>
    %1099 = arith.extui %1098 : vector<8x1xi1> to vector<8x1xi32>
    %1100 = arith.sitofp %1099 : vector<8x1xi32> to vector<8x1xf32>
    %c24_268 = arith.constant 24 : index
    %c0_269 = arith.constant 0 : index
    %1101 = vector.load %arg19[%c24_268, %c0_269] : memref<64x128xf32, #tpu.memory_space<vmem>>, vector<8x128xf32>
    %cst_270 = arith.constant dense<0.000000e+00> : vector<8x128xf32>
    %1102 = tpu.matmul %1044, %789, %cst_270 {dimension_numbers = #tpu.dot_dimension_numbers<[1], [0], [0], [1], [0, 0, 1, 1], [], []>} : vector<8x32xf32>, vector<32x128xf32>, vector<8x128xf32> -> vector<8x128xf32>
    %1103 = arith.addf %1101, %1102 : vector<8x128xf32>
    %1104 = vector.extract_strided_slice %1103 {offsets = [0, 0], sizes = [8, 32], strides = [1, 1]} : vector<8x128xf32> to vector<8x32xf32>
    %1105 = arith.negf %1104 : vector<8x32xf32>
    %1106 = math.exp %1105 : vector<8x32xf32>
    %cst_271 = arith.constant 1.000000e+00 : f32
    %1107 = vector.broadcast %cst_271 : f32 to vector<8x32xf32>
    %1108 = arith.addf %1107, %1106 : vector<8x32xf32>
    %1109 = arith.divf %1107, %1108 : vector<8x32xf32>
    %1110 = vector.extract_strided_slice %1103 {offsets = [0, 32], sizes = [8, 32], strides = [1, 1]} : vector<8x128xf32> to vector<8x32xf32>
    %1111 = arith.negf %1110 : vector<8x32xf32>
    %1112 = math.exp %1111 : vector<8x32xf32>
    %cst_272 = arith.constant 1.000000e+00 : f32
    %1113 = vector.broadcast %cst_272 : f32 to vector<8x32xf32>
    %1114 = arith.addf %1113, %1112 : vector<8x32xf32>
    %1115 = arith.divf %1113, %1114 : vector<8x32xf32>
    %1116 = vector.extract_strided_slice %1103 {offsets = [0, 64], sizes = [8, 32], strides = [1, 1]} : vector<8x128xf32> to vector<8x32xf32>
    %1117 = math.tanh %1116 : vector<8x32xf32>
    %1118 = vector.extract_strided_slice %1103 {offsets = [0, 96], sizes = [8, 32], strides = [1, 1]} : vector<8x128xf32> to vector<8x32xf32>
    %1119 = arith.negf %1118 : vector<8x32xf32>
    %1120 = math.exp %1119 : vector<8x32xf32>
    %cst_273 = arith.constant 1.000000e+00 : f32
    %1121 = vector.broadcast %cst_273 : f32 to vector<8x32xf32>
    %1122 = arith.addf %1121, %1120 : vector<8x32xf32>
    %1123 = arith.divf %1121, %1122 : vector<8x32xf32>
    %1124 = arith.mulf %1115, %1037 : vector<8x32xf32>
    %1125 = arith.mulf %1109, %1117 : vector<8x32xf32>
    %1126 = arith.addf %1124, %1125 : vector<8x32xf32>
    %1127 = math.tanh %1126 : vector<8x32xf32>
    %1128 = arith.mulf %1123, %1127 : vector<8x32xf32>
    %1129 = vector.broadcast %1100 : vector<8x1xf32> to vector<8x32xf32>
    %1130 = arith.mulf %1129, %1126 : vector<8x32xf32>
    %cst_274 = arith.constant 1.000000e+00 : f32
    %1131 = vector.broadcast %cst_274 : f32 to vector<8x1xf32>
    %1132 = arith.subf %1131, %1100 : vector<8x1xf32>
    %1133 = vector.broadcast %1132 : vector<8x1xf32> to vector<8x32xf32>
    %1134 = arith.mulf %1133, %1037 : vector<8x32xf32>
    %1135 = arith.addf %1130, %1134 : vector<8x32xf32>
    %1136 = vector.broadcast %1100 : vector<8x1xf32> to vector<8x32xf32>
    %1137 = arith.mulf %1136, %1128 : vector<8x32xf32>
    %cst_275 = arith.constant 1.000000e+00 : f32
    %1138 = vector.broadcast %cst_275 : f32 to vector<8x1xf32>
    %1139 = arith.subf %1138, %1100 : vector<8x1xf32>
    %1140 = vector.broadcast %1139 : vector<8x1xf32> to vector<8x32xf32>
    %1141 = arith.mulf %1140, %1044 : vector<8x32xf32>
    %1142 = arith.addf %1137, %1141 : vector<8x32xf32>
    %1143 = vector.broadcast %1100 : vector<8x1xf32> to vector<8x32xf32>
    %1144 = arith.mulf %1142, %1143 : vector<8x32xf32>
    %c24_276 = arith.constant 24 : index
    %c0_277 = arith.constant 0 : index
    %1145 = vector.load %arg18[%c24_276, %c0_277] : memref<64x64xf32, #tpu.memory_space<vmem>>, vector<8x32xf32>
    tpu.vector_store %arg18[%c24_276, %c0_277], %1144 {strides = array<i32>} : memref<64x64xf32, #tpu.memory_space<vmem>>, vector<8x32xf32>,
    %c4_i32_278 = arith.constant 4 : i32
    %1146 = vector.broadcast %c4_i32_278 : i32 to vector<8x1xi32>
    %1147 = arith.cmpi sgt, %0, %1146 : vector<8x1xi32>
    %1148 = arith.extui %1147 : vector<8x1xi1> to vector<8x1xi32>
    %1149 = arith.sitofp %1148 : vector<8x1xi32> to vector<8x1xf32>
    %c32_279 = arith.constant 32 : index
    %c0_280 = arith.constant 0 : index
    %1150 = vector.load %arg20[%c32_279, %c0_280] : memref<64x128xf32, #tpu.memory_space<vmem>>, vector<8x128xf32>
    %cst_281 = arith.constant dense<0.000000e+00> : vector<8x128xf32>
    %1151 = tpu.matmul %1093, %796, %cst_281 {dimension_numbers = #tpu.dot_dimension_numbers<[1], [0], [0], [1], [0, 0, 1, 1], [], []>} : vector<8x32xf32>, vector<32x128xf32>, vector<8x128xf32> -> vector<8x128xf32>
    %1152 = arith.addf %1150, %1151 : vector<8x128xf32>
    %1153 = vector.extract_strided_slice %1152 {offsets = [0, 0], sizes = [8, 32], strides = [1, 1]} : vector<8x128xf32> to vector<8x32xf32>
    %1154 = arith.negf %1153 : vector<8x32xf32>
    %1155 = math.exp %1154 : vector<8x32xf32>
    %cst_282 = arith.constant 1.000000e+00 : f32
    %1156 = vector.broadcast %cst_282 : f32 to vector<8x32xf32>
    %1157 = arith.addf %1156, %1155 : vector<8x32xf32>
    %1158 = arith.divf %1156, %1157 : vector<8x32xf32>
    %1159 = vector.extract_strided_slice %1152 {offsets = [0, 32], sizes = [8, 32], strides = [1, 1]} : vector<8x128xf32> to vector<8x32xf32>
    %1160 = arith.negf %1159 : vector<8x32xf32>
    %1161 = math.exp %1160 : vector<8x32xf32>
    %cst_283 = arith.constant 1.000000e+00 : f32
    %1162 = vector.broadcast %cst_283 : f32 to vector<8x32xf32>
    %1163 = arith.addf %1162, %1161 : vector<8x32xf32>
    %1164 = arith.divf %1162, %1163 : vector<8x32xf32>
    %1165 = vector.extract_strided_slice %1152 {offsets = [0, 64], sizes = [8, 32], strides = [1, 1]} : vector<8x128xf32> to vector<8x32xf32>
    %1166 = math.tanh %1165 : vector<8x32xf32>
    %1167 = vector.extract_strided_slice %1152 {offsets = [0, 96], sizes = [8, 32], strides = [1, 1]} : vector<8x128xf32> to vector<8x32xf32>
    %1168 = arith.negf %1167 : vector<8x32xf32>
    %1169 = math.exp %1168 : vector<8x32xf32>
    %cst_284 = arith.constant 1.000000e+00 : f32
    %1170 = vector.broadcast %cst_284 : f32 to vector<8x32xf32>
    %1171 = arith.addf %1170, %1169 : vector<8x32xf32>
    %1172 = arith.divf %1170, %1171 : vector<8x32xf32>
    %1173 = arith.mulf %1164, %1086 : vector<8x32xf32>
    %1174 = arith.mulf %1158, %1166 : vector<8x32xf32>
    %1175 = arith.addf %1173, %1174 : vector<8x32xf32>
    %1176 = math.tanh %1175 : vector<8x32xf32>
    %1177 = arith.mulf %1172, %1176 : vector<8x32xf32>
    %1178 = vector.broadcast %1149 : vector<8x1xf32> to vector<8x32xf32>
    %1179 = arith.mulf %1178, %1175 : vector<8x32xf32>
    %cst_285 = arith.constant 1.000000e+00 : f32
    %1180 = vector.broadcast %cst_285 : f32 to vector<8x1xf32>
    %1181 = arith.subf %1180, %1149 : vector<8x1xf32>
    %1182 = vector.broadcast %1181 : vector<8x1xf32> to vector<8x32xf32>
    %1183 = arith.mulf %1182, %1086 : vector<8x32xf32>
    %1184 = arith.addf %1179, %1183 : vector<8x32xf32>
    %1185 = vector.broadcast %1149 : vector<8x1xf32> to vector<8x32xf32>
    %1186 = arith.mulf %1185, %1177 : vector<8x32xf32>
    %cst_286 = arith.constant 1.000000e+00 : f32
    %1187 = vector.broadcast %cst_286 : f32 to vector<8x1xf32>
    %1188 = arith.subf %1187, %1149 : vector<8x1xf32>
    %1189 = vector.broadcast %1188 : vector<8x1xf32> to vector<8x32xf32>
    %1190 = arith.mulf %1189, %1093 : vector<8x32xf32>
    %1191 = arith.addf %1186, %1190 : vector<8x32xf32>
    %1192 = vector.broadcast %1149 : vector<8x1xf32> to vector<8x32xf32>
    %1193 = arith.mulf %1191, %1192 : vector<8x32xf32>
    %c32_287 = arith.constant 32 : index
    %c32_288 = arith.constant 32 : index
    %1194 = vector.load %arg18[%c32_287, %c32_288] : memref<64x64xf32, #tpu.memory_space<vmem>>, vector<8x32xf32>
    tpu.vector_store %arg18[%c32_287, %c32_288], %1193 {strides = array<i32>} : memref<64x64xf32, #tpu.memory_space<vmem>>, vector<8x32xf32>,
    %c4_i32_289 = arith.constant 4 : i32
    %1195 = vector.broadcast %c4_i32_289 : i32 to vector<8x1xi32>
    %1196 = arith.cmpi sgt, %0, %1195 : vector<8x1xi32>
    %1197 = arith.extui %1196 : vector<8x1xi1> to vector<8x1xi32>
    %1198 = arith.sitofp %1197 : vector<8x1xi32> to vector<8x1xf32>
    %c32_290 = arith.constant 32 : index
    %c0_291 = arith.constant 0 : index
    %1199 = vector.load %arg19[%c32_290, %c0_291] : memref<64x128xf32, #tpu.memory_space<vmem>>, vector<8x128xf32>
    %cst_292 = arith.constant dense<0.000000e+00> : vector<8x128xf32>
    %1200 = tpu.matmul %1142, %789, %cst_292 {dimension_numbers = #tpu.dot_dimension_numbers<[1], [0], [0], [1], [0, 0, 1, 1], [], []>} : vector<8x32xf32>, vector<32x128xf32>, vector<8x128xf32> -> vector<8x128xf32>
    %1201 = arith.addf %1199, %1200 : vector<8x128xf32>
    %1202 = vector.extract_strided_slice %1201 {offsets = [0, 0], sizes = [8, 32], strides = [1, 1]} : vector<8x128xf32> to vector<8x32xf32>
    %1203 = arith.negf %1202 : vector<8x32xf32>
    %1204 = math.exp %1203 : vector<8x32xf32>
    %cst_293 = arith.constant 1.000000e+00 : f32
    %1205 = vector.broadcast %cst_293 : f32 to vector<8x32xf32>
    %1206 = arith.addf %1205, %1204 : vector<8x32xf32>
    %1207 = arith.divf %1205, %1206 : vector<8x32xf32>
    %1208 = vector.extract_strided_slice %1201 {offsets = [0, 32], sizes = [8, 32], strides = [1, 1]} : vector<8x128xf32> to vector<8x32xf32>
    %1209 = arith.negf %1208 : vector<8x32xf32>
    %1210 = math.exp %1209 : vector<8x32xf32>
    %cst_294 = arith.constant 1.000000e+00 : f32
    %1211 = vector.broadcast %cst_294 : f32 to vector<8x32xf32>
    %1212 = arith.addf %1211, %1210 : vector<8x32xf32>
    %1213 = arith.divf %1211, %1212 : vector<8x32xf32>
    %1214 = vector.extract_strided_slice %1201 {offsets = [0, 64], sizes = [8, 32], strides = [1, 1]} : vector<8x128xf32> to vector<8x32xf32>
    %1215 = math.tanh %1214 : vector<8x32xf32>
    %1216 = vector.extract_strided_slice %1201 {offsets = [0, 96], sizes = [8, 32], strides = [1, 1]} : vector<8x128xf32> to vector<8x32xf32>
    %1217 = arith.negf %1216 : vector<8x32xf32>
    %1218 = math.exp %1217 : vector<8x32xf32>
    %cst_295 = arith.constant 1.000000e+00 : f32
    %1219 = vector.broadcast %cst_295 : f32 to vector<8x32xf32>
    %1220 = arith.addf %1219, %1218 : vector<8x32xf32>
    %1221 = arith.divf %1219, %1220 : vector<8x32xf32>
    %1222 = arith.mulf %1213, %1135 : vector<8x32xf32>
    %1223 = arith.mulf %1207, %1215 : vector<8x32xf32>
    %1224 = arith.addf %1222, %1223 : vector<8x32xf32>
    %1225 = math.tanh %1224 : vector<8x32xf32>
    %1226 = arith.mulf %1221, %1225 : vector<8x32xf32>
    %1227 = vector.broadcast %1198 : vector<8x1xf32> to vector<8x32xf32>
    %1228 = arith.mulf %1227, %1224 : vector<8x32xf32>
    %cst_296 = arith.constant 1.000000e+00 : f32
    %1229 = vector.broadcast %cst_296 : f32 to vector<8x1xf32>
    %1230 = arith.subf %1229, %1198 : vector<8x1xf32>
    %1231 = vector.broadcast %1230 : vector<8x1xf32> to vector<8x32xf32>
    %1232 = arith.mulf %1231, %1135 : vector<8x32xf32>
    %1233 = arith.addf %1228, %1232 : vector<8x32xf32>
    %1234 = vector.broadcast %1198 : vector<8x1xf32> to vector<8x32xf32>
    %1235 = arith.mulf %1234, %1226 : vector<8x32xf32>
    %cst_297 = arith.constant 1.000000e+00 : f32
    %1236 = vector.broadcast %cst_297 : f32 to vector<8x1xf32>
    %1237 = arith.subf %1236, %1198 : vector<8x1xf32>
    %1238 = vector.broadcast %1237 : vector<8x1xf32> to vector<8x32xf32>
    %1239 = arith.mulf %1238, %1142 : vector<8x32xf32>
    %1240 = arith.addf %1235, %1239 : vector<8x32xf32>
    %1241 = vector.broadcast %1198 : vector<8x1xf32> to vector<8x32xf32>
    %1242 = arith.mulf %1240, %1241 : vector<8x32xf32>
    %c32_298 = arith.constant 32 : index
    %c0_299 = arith.constant 0 : index
    %1243 = vector.load %arg18[%c32_298, %c0_299] : memref<64x64xf32, #tpu.memory_space<vmem>>, vector<8x32xf32>
    tpu.vector_store %arg18[%c32_298, %c0_299], %1242 {strides = array<i32>} : memref<64x64xf32, #tpu.memory_space<vmem>>, vector<8x32xf32>,
    %c3_i32_300 = arith.constant 3 : i32
    %1244 = vector.broadcast %c3_i32_300 : i32 to vector<8x1xi32>
    %1245 = arith.cmpi sgt, %0, %1244 : vector<8x1xi32>
    %1246 = arith.extui %1245 : vector<8x1xi1> to vector<8x1xi32>
    %1247 = arith.sitofp %1246 : vector<8x1xi32> to vector<8x1xf32>
    %c24_301 = arith.constant 24 : index
    %c0_302 = arith.constant 0 : index
    %1248 = vector.load %arg20[%c24_301, %c0_302] : memref<64x128xf32, #tpu.memory_space<vmem>>, vector<8x128xf32>
    %cst_303 = arith.constant dense<0.000000e+00> : vector<8x128xf32>
    %1249 = tpu.matmul %1191, %796, %cst_303 {dimension_numbers = #tpu.dot_dimension_numbers<[1], [0], [0], [1], [0, 0, 1, 1], [], []>} : vector<8x32xf32>, vector<32x128xf32>, vector<8x128xf32> -> vector<8x128xf32>
    %1250 = arith.addf %1248, %1249 : vector<8x128xf32>
    %1251 = vector.extract_strided_slice %1250 {offsets = [0, 0], sizes = [8, 32], strides = [1, 1]} : vector<8x128xf32> to vector<8x32xf32>
    %1252 = arith.negf %1251 : vector<8x32xf32>
    %1253 = math.exp %1252 : vector<8x32xf32>
    %cst_304 = arith.constant 1.000000e+00 : f32
    %1254 = vector.broadcast %cst_304 : f32 to vector<8x32xf32>
    %1255 = arith.addf %1254, %1253 : vector<8x32xf32>
    %1256 = arith.divf %1254, %1255 : vector<8x32xf32>
    %1257 = vector.extract_strided_slice %1250 {offsets = [0, 32], sizes = [8, 32], strides = [1, 1]} : vector<8x128xf32> to vector<8x32xf32>
    %1258 = arith.negf %1257 : vector<8x32xf32>
    %1259 = math.exp %1258 : vector<8x32xf32>
    %cst_305 = arith.constant 1.000000e+00 : f32
    %1260 = vector.broadcast %cst_305 : f32 to vector<8x32xf32>
    %1261 = arith.addf %1260, %1259 : vector<8x32xf32>
    %1262 = arith.divf %1260, %1261 : vector<8x32xf32>
    %1263 = vector.extract_strided_slice %1250 {offsets = [0, 64], sizes = [8, 32], strides = [1, 1]} : vector<8x128xf32> to vector<8x32xf32>
    %1264 = math.tanh %1263 : vector<8x32xf32>
    %1265 = vector.extract_strided_slice %1250 {offsets = [0, 96], sizes = [8, 32], strides = [1, 1]} : vector<8x128xf32> to vector<8x32xf32>
    %1266 = arith.negf %1265 : vector<8x32xf32>
    %1267 = math.exp %1266 : vector<8x32xf32>
    %cst_306 = arith.constant 1.000000e+00 : f32
    %1268 = vector.broadcast %cst_306 : f32 to vector<8x32xf32>
    %1269 = arith.addf %1268, %1267 : vector<8x32xf32>
    %1270 = arith.divf %1268, %1269 : vector<8x32xf32>
    %1271 = arith.mulf %1262, %1184 : vector<8x32xf32>
    %1272 = arith.mulf %1256, %1264 : vector<8x32xf32>
    %1273 = arith.addf %1271, %1272 : vector<8x32xf32>
    %1274 = math.tanh %1273 : vector<8x32xf32>
    %1275 = arith.mulf %1270, %1274 : vector<8x32xf32>
    %1276 = vector.broadcast %1247 : vector<8x1xf32> to vector<8x32xf32>
    %1277 = arith.mulf %1276, %1273 : vector<8x32xf32>
    %cst_307 = arith.constant 1.000000e+00 : f32
    %1278 = vector.broadcast %cst_307 : f32 to vector<8x1xf32>
    %1279 = arith.subf %1278, %1247 : vector<8x1xf32>
    %1280 = vector.broadcast %1279 : vector<8x1xf32> to vector<8x32xf32>
    %1281 = arith.mulf %1280, %1184 : vector<8x32xf32>
    %1282 = arith.addf %1277, %1281 : vector<8x32xf32>
    %1283 = vector.broadcast %1247 : vector<8x1xf32> to vector<8x32xf32>
    %1284 = arith.mulf %1283, %1275 : vector<8x32xf32>
    %cst_308 = arith.constant 1.000000e+00 : f32
    %1285 = vector.broadcast %cst_308 : f32 to vector<8x1xf32>
    %1286 = arith.subf %1285, %1247 : vector<8x1xf32>
    %1287 = vector.broadcast %1286 : vector<8x1xf32> to vector<8x32xf32>
    %1288 = arith.mulf %1287, %1191 : vector<8x32xf32>
    %1289 = arith.addf %1284, %1288 : vector<8x32xf32>
    %1290 = vector.broadcast %1247 : vector<8x1xf32> to vector<8x32xf32>
    %1291 = arith.mulf %1289, %1290 : vector<8x32xf32>
    %c24_309 = arith.constant 24 : index
    %c32_310 = arith.constant 32 : index
    %1292 = vector.load %arg18[%c24_309, %c32_310] : memref<64x64xf32, #tpu.memory_space<vmem>>, vector<8x32xf32>
    tpu.vector_store %arg18[%c24_309, %c32_310], %1291 {strides = array<i32>} : memref<64x64xf32, #tpu.memory_space<vmem>>, vector<8x32xf32>,
    %c5_i32_311 = arith.constant 5 : i32
    %1293 = vector.broadcast %c5_i32_311 : i32 to vector<8x1xi32>
    %1294 = arith.cmpi sgt, %0, %1293 : vector<8x1xi32>
    %1295 = arith.extui %1294 : vector<8x1xi1> to vector<8x1xi32>
    %1296 = arith.sitofp %1295 : vector<8x1xi32> to vector<8x1xf32>
    %c40_312 = arith.constant 40 : index
    %c0_313 = arith.constant 0 : index
    %1297 = vector.load %arg19[%c40_312, %c0_313] : memref<64x128xf32, #tpu.memory_space<vmem>>, vector<8x128xf32>
    %cst_314 = arith.constant dense<0.000000e+00> : vector<8x128xf32>
    %1298 = tpu.matmul %1240, %789, %cst_314 {dimension_numbers = #tpu.dot_dimension_numbers<[1], [0], [0], [1], [0, 0, 1, 1], [], []>} : vector<8x32xf32>, vector<32x128xf32>, vector<8x128xf32> -> vector<8x128xf32>
    %1299 = arith.addf %1297, %1298 : vector<8x128xf32>
    %1300 = vector.extract_strided_slice %1299 {offsets = [0, 0], sizes = [8, 32], strides = [1, 1]} : vector<8x128xf32> to vector<8x32xf32>
    %1301 = arith.negf %1300 : vector<8x32xf32>
    %1302 = math.exp %1301 : vector<8x32xf32>
    %cst_315 = arith.constant 1.000000e+00 : f32
    %1303 = vector.broadcast %cst_315 : f32 to vector<8x32xf32>
    %1304 = arith.addf %1303, %1302 : vector<8x32xf32>
    %1305 = arith.divf %1303, %1304 : vector<8x32xf32>
    %1306 = vector.extract_strided_slice %1299 {offsets = [0, 32], sizes = [8, 32], strides = [1, 1]} : vector<8x128xf32> to vector<8x32xf32>
    %1307 = arith.negf %1306 : vector<8x32xf32>
    %1308 = math.exp %1307 : vector<8x32xf32>
    %cst_316 = arith.constant 1.000000e+00 : f32
    %1309 = vector.broadcast %cst_316 : f32 to vector<8x32xf32>
    %1310 = arith.addf %1309, %1308 : vector<8x32xf32>
    %1311 = arith.divf %1309, %1310 : vector<8x32xf32>
    %1312 = vector.extract_strided_slice %1299 {offsets = [0, 64], sizes = [8, 32], strides = [1, 1]} : vector<8x128xf32> to vector<8x32xf32>
    %1313 = math.tanh %1312 : vector<8x32xf32>
    %1314 = vector.extract_strided_slice %1299 {offsets = [0, 96], sizes = [8, 32], strides = [1, 1]} : vector<8x128xf32> to vector<8x32xf32>
    %1315 = arith.negf %1314 : vector<8x32xf32>
    %1316 = math.exp %1315 : vector<8x32xf32>
    %cst_317 = arith.constant 1.000000e+00 : f32
    %1317 = vector.broadcast %cst_317 : f32 to vector<8x32xf32>
    %1318 = arith.addf %1317, %1316 : vector<8x32xf32>
    %1319 = arith.divf %1317, %1318 : vector<8x32xf32>
    %1320 = arith.mulf %1311, %1233 : vector<8x32xf32>
    %1321 = arith.mulf %1305, %1313 : vector<8x32xf32>
    %1322 = arith.addf %1320, %1321 : vector<8x32xf32>
    %1323 = math.tanh %1322 : vector<8x32xf32>
    %1324 = arith.mulf %1319, %1323 : vector<8x32xf32>
    %1325 = vector.broadcast %1296 : vector<8x1xf32> to vector<8x32xf32>
    %1326 = arith.mulf %1325, %1322 : vector<8x32xf32>
    %cst_318 = arith.constant 1.000000e+00 : f32
    %1327 = vector.broadcast %cst_318 : f32 to vector<8x1xf32>
    %1328 = arith.subf %1327, %1296 : vector<8x1xf32>
    %1329 = vector.broadcast %1328 : vector<8x1xf32> to vector<8x32xf32>
    %1330 = arith.mulf %1329, %1233 : vector<8x32xf32>
    %1331 = arith.addf %1326, %1330 : vector<8x32xf32>
    %1332 = vector.broadcast %1296 : vector<8x1xf32> to vector<8x32xf32>
    %1333 = arith.mulf %1332, %1324 : vector<8x32xf32>
    %cst_319 = arith.constant 1.000000e+00 : f32
    %1334 = vector.broadcast %cst_319 : f32 to vector<8x1xf32>
    %1335 = arith.subf %1334, %1296 : vector<8x1xf32>
    %1336 = vector.broadcast %1335 : vector<8x1xf32> to vector<8x32xf32>
    %1337 = arith.mulf %1336, %1240 : vector<8x32xf32>
    %1338 = arith.addf %1333, %1337 : vector<8x32xf32>
    %1339 = vector.broadcast %1296 : vector<8x1xf32> to vector<8x32xf32>
    %1340 = arith.mulf %1338, %1339 : vector<8x32xf32>
    %c40_320 = arith.constant 40 : index
    %c0_321 = arith.constant 0 : index
    %1341 = vector.load %arg18[%c40_320, %c0_321] : memref<64x64xf32, #tpu.memory_space<vmem>>, vector<8x32xf32>
    tpu.vector_store %arg18[%c40_320, %c0_321], %1340 {strides = array<i32>} : memref<64x64xf32, #tpu.memory_space<vmem>>, vector<8x32xf32>,
    %c2_i32_322 = arith.constant 2 : i32
    %1342 = vector.broadcast %c2_i32_322 : i32 to vector<8x1xi32>
    %1343 = arith.cmpi sgt, %0, %1342 : vector<8x1xi32>
    %1344 = arith.extui %1343 : vector<8x1xi1> to vector<8x1xi32>
    %1345 = arith.sitofp %1344 : vector<8x1xi32> to vector<8x1xf32>
    %c16_323 = arith.constant 16 : index
    %c0_324 = arith.constant 0 : index
    %1346 = vector.load %arg20[%c16_323, %c0_324] : memref<64x128xf32, #tpu.memory_space<vmem>>, vector<8x128xf32>
    %cst_325 = arith.constant dense<0.000000e+00> : vector<8x128xf32>
    %1347 = tpu.matmul %1289, %796, %cst_325 {dimension_numbers = #tpu.dot_dimension_numbers<[1], [0], [0], [1], [0, 0, 1, 1], [], []>} : vector<8x32xf32>, vector<32x128xf32>, vector<8x128xf32> -> vector<8x128xf32>
    %1348 = arith.addf %1346, %1347 : vector<8x128xf32>
    %1349 = vector.extract_strided_slice %1348 {offsets = [0, 0], sizes = [8, 32], strides = [1, 1]} : vector<8x128xf32> to vector<8x32xf32>
    %1350 = arith.negf %1349 : vector<8x32xf32>
    %1351 = math.exp %1350 : vector<8x32xf32>
    %cst_326 = arith.constant 1.000000e+00 : f32
    %1352 = vector.broadcast %cst_326 : f32 to vector<8x32xf32>
    %1353 = arith.addf %1352, %1351 : vector<8x32xf32>
    %1354 = arith.divf %1352, %1353 : vector<8x32xf32>
    %1355 = vector.extract_strided_slice %1348 {offsets = [0, 32], sizes = [8, 32], strides = [1, 1]} : vector<8x128xf32> to vector<8x32xf32>
    %1356 = arith.negf %1355 : vector<8x32xf32>
    %1357 = math.exp %1356 : vector<8x32xf32>
    %cst_327 = arith.constant 1.000000e+00 : f32
    %1358 = vector.broadcast %cst_327 : f32 to vector<8x32xf32>
    %1359 = arith.addf %1358, %1357 : vector<8x32xf32>
    %1360 = arith.divf %1358, %1359 : vector<8x32xf32>
    %1361 = vector.extract_strided_slice %1348 {offsets = [0, 64], sizes = [8, 32], strides = [1, 1]} : vector<8x128xf32> to vector<8x32xf32>
    %1362 = math.tanh %1361 : vector<8x32xf32>
    %1363 = vector.extract_strided_slice %1348 {offsets = [0, 96], sizes = [8, 32], strides = [1, 1]} : vector<8x128xf32> to vector<8x32xf32>
    %1364 = arith.negf %1363 : vector<8x32xf32>
    %1365 = math.exp %1364 : vector<8x32xf32>
    %cst_328 = arith.constant 1.000000e+00 : f32
    %1366 = vector.broadcast %cst_328 : f32 to vector<8x32xf32>
    %1367 = arith.addf %1366, %1365 : vector<8x32xf32>
    %1368 = arith.divf %1366, %1367 : vector<8x32xf32>
    %1369 = arith.mulf %1360, %1282 : vector<8x32xf32>
    %1370 = arith.mulf %1354, %1362 : vector<8x32xf32>
    %1371 = arith.addf %1369, %1370 : vector<8x32xf32>
    %1372 = math.tanh %1371 : vector<8x32xf32>
    %1373 = arith.mulf %1368, %1372 : vector<8x32xf32>
    %1374 = vector.broadcast %1345 : vector<8x1xf32> to vector<8x32xf32>
    %1375 = arith.mulf %1374, %1371 : vector<8x32xf32>
    %cst_329 = arith.constant 1.000000e+00 : f32
    %1376 = vector.broadcast %cst_329 : f32 to vector<8x1xf32>
    %1377 = arith.subf %1376, %1345 : vector<8x1xf32>
    %1378 = vector.broadcast %1377 : vector<8x1xf32> to vector<8x32xf32>
    %1379 = arith.mulf %1378, %1282 : vector<8x32xf32>
    %1380 = arith.addf %1375, %1379 : vector<8x32xf32>
    %1381 = vector.broadcast %1345 : vector<8x1xf32> to vector<8x32xf32>
    %1382 = arith.mulf %1381, %1373 : vector<8x32xf32>
    %cst_330 = arith.constant 1.000000e+00 : f32
    %1383 = vector.broadcast %cst_330 : f32 to vector<8x1xf32>
    %1384 = arith.subf %1383, %1345 : vector<8x1xf32>
    %1385 = vector.broadcast %1384 : vector<8x1xf32> to vector<8x32xf32>
    %1386 = arith.mulf %1385, %1289 : vector<8x32xf32>
    %1387 = arith.addf %1382, %1386 : vector<8x32xf32>
    %1388 = vector.broadcast %1345 : vector<8x1xf32> to vector<8x32xf32>
    %1389 = arith.mulf %1387, %1388 : vector<8x32xf32>
    %c16_331 = arith.constant 16 : index
    %c32_332 = arith.constant 32 : index
    %1390 = vector.load %arg18[%c16_331, %c32_332] : memref<64x64xf32, #tpu.memory_space<vmem>>, vector<8x32xf32>
    tpu.vector_store %arg18[%c16_331, %c32_332], %1389 {strides = array<i32>} : memref<64x64xf32, #tpu.memory_space<vmem>>, vector<8x32xf32>,
    %c6_i32_333 = arith.constant 6 : i32
    %1391 = vector.broadcast %c6_i32_333 : i32 to vector<8x1xi32>
    %1392 = arith.cmpi sgt, %0, %1391 : vector<8x1xi32>
    %1393 = arith.extui %1392 : vector<8x1xi1> to vector<8x1xi32>
    %1394 = arith.sitofp %1393 : vector<8x1xi32> to vector<8x1xf32>
    %c48_334 = arith.constant 48 : index
    %c0_335 = arith.constant 0 : index
    %1395 = vector.load %arg19[%c48_334, %c0_335] : memref<64x128xf32, #tpu.memory_space<vmem>>, vector<8x128xf32>
    %cst_336 = arith.constant dense<0.000000e+00> : vector<8x128xf32>
    %1396 = tpu.matmul %1338, %789, %cst_336 {dimension_numbers = #tpu.dot_dimension_numbers<[1], [0], [0], [1], [0, 0, 1, 1], [], []>} : vector<8x32xf32>, vector<32x128xf32>, vector<8x128xf32> -> vector<8x128xf32>
    %1397 = arith.addf %1395, %1396 : vector<8x128xf32>
    %1398 = vector.extract_strided_slice %1397 {offsets = [0, 0], sizes = [8, 32], strides = [1, 1]} : vector<8x128xf32> to vector<8x32xf32>
    %1399 = arith.negf %1398 : vector<8x32xf32>
    %1400 = math.exp %1399 : vector<8x32xf32>
    %cst_337 = arith.constant 1.000000e+00 : f32
    %1401 = vector.broadcast %cst_337 : f32 to vector<8x32xf32>
    %1402 = arith.addf %1401, %1400 : vector<8x32xf32>
    %1403 = arith.divf %1401, %1402 : vector<8x32xf32>
    %1404 = vector.extract_strided_slice %1397 {offsets = [0, 32], sizes = [8, 32], strides = [1, 1]} : vector<8x128xf32> to vector<8x32xf32>
    %1405 = arith.negf %1404 : vector<8x32xf32>
    %1406 = math.exp %1405 : vector<8x32xf32>
    %cst_338 = arith.constant 1.000000e+00 : f32
    %1407 = vector.broadcast %cst_338 : f32 to vector<8x32xf32>
    %1408 = arith.addf %1407, %1406 : vector<8x32xf32>
    %1409 = arith.divf %1407, %1408 : vector<8x32xf32>
    %1410 = vector.extract_strided_slice %1397 {offsets = [0, 64], sizes = [8, 32], strides = [1, 1]} : vector<8x128xf32> to vector<8x32xf32>
    %1411 = math.tanh %1410 : vector<8x32xf32>
    %1412 = vector.extract_strided_slice %1397 {offsets = [0, 96], sizes = [8, 32], strides = [1, 1]} : vector<8x128xf32> to vector<8x32xf32>
    %1413 = arith.negf %1412 : vector<8x32xf32>
    %1414 = math.exp %1413 : vector<8x32xf32>
    %cst_339 = arith.constant 1.000000e+00 : f32
    %1415 = vector.broadcast %cst_339 : f32 to vector<8x32xf32>
    %1416 = arith.addf %1415, %1414 : vector<8x32xf32>
    %1417 = arith.divf %1415, %1416 : vector<8x32xf32>
    %1418 = arith.mulf %1409, %1331 : vector<8x32xf32>
    %1419 = arith.mulf %1403, %1411 : vector<8x32xf32>
    %1420 = arith.addf %1418, %1419 : vector<8x32xf32>
    %1421 = math.tanh %1420 : vector<8x32xf32>
    %1422 = arith.mulf %1417, %1421 : vector<8x32xf32>
    %1423 = vector.broadcast %1394 : vector<8x1xf32> to vector<8x32xf32>
    %1424 = arith.mulf %1423, %1420 : vector<8x32xf32>
    %cst_340 = arith.constant 1.000000e+00 : f32
    %1425 = vector.broadcast %cst_340 : f32 to vector<8x1xf32>
    %1426 = arith.subf %1425, %1394 : vector<8x1xf32>
    %1427 = vector.broadcast %1426 : vector<8x1xf32> to vector<8x32xf32>
    %1428 = arith.mulf %1427, %1331 : vector<8x32xf32>
    %1429 = arith.addf %1424, %1428 : vector<8x32xf32>
    %1430 = vector.broadcast %1394 : vector<8x1xf32> to vector<8x32xf32>
    %1431 = arith.mulf %1430, %1422 : vector<8x32xf32>
    %cst_341 = arith.constant 1.000000e+00 : f32
    %1432 = vector.broadcast %cst_341 : f32 to vector<8x1xf32>
    %1433 = arith.subf %1432, %1394 : vector<8x1xf32>
    %1434 = vector.broadcast %1433 : vector<8x1xf32> to vector<8x32xf32>
    %1435 = arith.mulf %1434, %1338 : vector<8x32xf32>
    %1436 = arith.addf %1431, %1435 : vector<8x32xf32>
    %1437 = vector.broadcast %1394 : vector<8x1xf32> to vector<8x32xf32>
    %1438 = arith.mulf %1436, %1437 : vector<8x32xf32>
    %c48_342 = arith.constant 48 : index
    %c0_343 = arith.constant 0 : index
    %1439 = vector.load %arg18[%c48_342, %c0_343] : memref<64x64xf32, #tpu.memory_space<vmem>>, vector<8x32xf32>
    tpu.vector_store %arg18[%c48_342, %c0_343], %1438 {strides = array<i32>} : memref<64x64xf32, #tpu.memory_space<vmem>>, vector<8x32xf32>,
    %c1_i32_344 = arith.constant 1 : i32
    %1440 = vector.broadcast %c1_i32_344 : i32 to vector<8x1xi32>
    %1441 = arith.cmpi sgt, %0, %1440 : vector<8x1xi32>
    %1442 = arith.extui %1441 : vector<8x1xi1> to vector<8x1xi32>
    %1443 = arith.sitofp %1442 : vector<8x1xi32> to vector<8x1xf32>
    %c8_345 = arith.constant 8 : index
    %c0_346 = arith.constant 0 : index
    %1444 = vector.load %arg20[%c8_345, %c0_346] : memref<64x128xf32, #tpu.memory_space<vmem>>, vector<8x128xf32>
    %cst_347 = arith.constant dense<0.000000e+00> : vector<8x128xf32>
    %1445 = tpu.matmul %1387, %796, %cst_347 {dimension_numbers = #tpu.dot_dimension_numbers<[1], [0], [0], [1], [0, 0, 1, 1], [], []>} : vector<8x32xf32>, vector<32x128xf32>, vector<8x128xf32> -> vector<8x128xf32>
    %1446 = arith.addf %1444, %1445 : vector<8x128xf32>
    %1447 = vector.extract_strided_slice %1446 {offsets = [0, 0], sizes = [8, 32], strides = [1, 1]} : vector<8x128xf32> to vector<8x32xf32>
    %1448 = arith.negf %1447 : vector<8x32xf32>
    %1449 = math.exp %1448 : vector<8x32xf32>
    %cst_348 = arith.constant 1.000000e+00 : f32
    %1450 = vector.broadcast %cst_348 : f32 to vector<8x32xf32>
    %1451 = arith.addf %1450, %1449 : vector<8x32xf32>
    %1452 = arith.divf %1450, %1451 : vector<8x32xf32>
    %1453 = vector.extract_strided_slice %1446 {offsets = [0, 32], sizes = [8, 32], strides = [1, 1]} : vector<8x128xf32> to vector<8x32xf32>
    %1454 = arith.negf %1453 : vector<8x32xf32>
    %1455 = math.exp %1454 : vector<8x32xf32>
    %cst_349 = arith.constant 1.000000e+00 : f32
    %1456 = vector.broadcast %cst_349 : f32 to vector<8x32xf32>
    %1457 = arith.addf %1456, %1455 : vector<8x32xf32>
    %1458 = arith.divf %1456, %1457 : vector<8x32xf32>
    %1459 = vector.extract_strided_slice %1446 {offsets = [0, 64], sizes = [8, 32], strides = [1, 1]} : vector<8x128xf32> to vector<8x32xf32>
    %1460 = math.tanh %1459 : vector<8x32xf32>
    %1461 = vector.extract_strided_slice %1446 {offsets = [0, 96], sizes = [8, 32], strides = [1, 1]} : vector<8x128xf32> to vector<8x32xf32>
    %1462 = arith.negf %1461 : vector<8x32xf32>
    %1463 = math.exp %1462 : vector<8x32xf32>
    %cst_350 = arith.constant 1.000000e+00 : f32
    %1464 = vector.broadcast %cst_350 : f32 to vector<8x32xf32>
    %1465 = arith.addf %1464, %1463 : vector<8x32xf32>
    %1466 = arith.divf %1464, %1465 : vector<8x32xf32>
    %1467 = arith.mulf %1458, %1380 : vector<8x32xf32>
    %1468 = arith.mulf %1452, %1460 : vector<8x32xf32>
    %1469 = arith.addf %1467, %1468 : vector<8x32xf32>
    %1470 = math.tanh %1469 : vector<8x32xf32>
    %1471 = arith.mulf %1466, %1470 : vector<8x32xf32>
    %1472 = vector.broadcast %1443 : vector<8x1xf32> to vector<8x32xf32>
    %1473 = arith.mulf %1472, %1469 : vector<8x32xf32>
    %cst_351 = arith.constant 1.000000e+00 : f32
    %1474 = vector.broadcast %cst_351 : f32 to vector<8x1xf32>
    %1475 = arith.subf %1474, %1443 : vector<8x1xf32>
    %1476 = vector.broadcast %1475 : vector<8x1xf32> to vector<8x32xf32>
    %1477 = arith.mulf %1476, %1380 : vector<8x32xf32>
    %1478 = arith.addf %1473, %1477 : vector<8x32xf32>
    %1479 = vector.broadcast %1443 : vector<8x1xf32> to vector<8x32xf32>
    %1480 = arith.mulf %1479, %1471 : vector<8x32xf32>
    %cst_352 = arith.constant 1.000000e+00 : f32
    %1481 = vector.broadcast %cst_352 : f32 to vector<8x1xf32>
    %1482 = arith.subf %1481, %1443 : vector<8x1xf32>
    %1483 = vector.broadcast %1482 : vector<8x1xf32> to vector<8x32xf32>
    %1484 = arith.mulf %1483, %1387 : vector<8x32xf32>
    %1485 = arith.addf %1480, %1484 : vector<8x32xf32>
    %1486 = vector.broadcast %1443 : vector<8x1xf32> to vector<8x32xf32>
    %1487 = arith.mulf %1485, %1486 : vector<8x32xf32>
    %c8_353 = arith.constant 8 : index
    %c32_354 = arith.constant 32 : index
    %1488 = vector.load %arg18[%c8_353, %c32_354] : memref<64x64xf32, #tpu.memory_space<vmem>>, vector<8x32xf32>
    tpu.vector_store %arg18[%c8_353, %c32_354], %1487 {strides = array<i32>} : memref<64x64xf32, #tpu.memory_space<vmem>>, vector<8x32xf32>,
    %c7_i32_355 = arith.constant 7 : i32
    %1489 = vector.broadcast %c7_i32_355 : i32 to vector<8x1xi32>
    %1490 = arith.cmpi sgt, %0, %1489 : vector<8x1xi32>
    %1491 = arith.extui %1490 : vector<8x1xi1> to vector<8x1xi32>
    %1492 = arith.sitofp %1491 : vector<8x1xi32> to vector<8x1xf32>
    %c56_356 = arith.constant 56 : index
    %c0_357 = arith.constant 0 : index
    %1493 = vector.load %arg19[%c56_356, %c0_357] : memref<64x128xf32, #tpu.memory_space<vmem>>, vector<8x128xf32>
    %cst_358 = arith.constant dense<0.000000e+00> : vector<8x128xf32>
    %1494 = tpu.matmul %1436, %789, %cst_358 {dimension_numbers = #tpu.dot_dimension_numbers<[1], [0], [0], [1], [0, 0, 1, 1], [], []>} : vector<8x32xf32>, vector<32x128xf32>, vector<8x128xf32> -> vector<8x128xf32>
    %1495 = arith.addf %1493, %1494 : vector<8x128xf32>
    %1496 = vector.extract_strided_slice %1495 {offsets = [0, 0], sizes = [8, 32], strides = [1, 1]} : vector<8x128xf32> to vector<8x32xf32>
    %1497 = arith.negf %1496 : vector<8x32xf32>
    %1498 = math.exp %1497 : vector<8x32xf32>
    %cst_359 = arith.constant 1.000000e+00 : f32
    %1499 = vector.broadcast %cst_359 : f32 to vector<8x32xf32>
    %1500 = arith.addf %1499, %1498 : vector<8x32xf32>
    %1501 = arith.divf %1499, %1500 : vector<8x32xf32>
    %1502 = vector.extract_strided_slice %1495 {offsets = [0, 32], sizes = [8, 32], strides = [1, 1]} : vector<8x128xf32> to vector<8x32xf32>
    %1503 = arith.negf %1502 : vector<8x32xf32>
    %1504 = math.exp %1503 : vector<8x32xf32>
    %cst_360 = arith.constant 1.000000e+00 : f32
    %1505 = vector.broadcast %cst_360 : f32 to vector<8x32xf32>
    %1506 = arith.addf %1505, %1504 : vector<8x32xf32>
    %1507 = arith.divf %1505, %1506 : vector<8x32xf32>
    %1508 = vector.extract_strided_slice %1495 {offsets = [0, 64], sizes = [8, 32], strides = [1, 1]} : vector<8x128xf32> to vector<8x32xf32>
    %1509 = math.tanh %1508 : vector<8x32xf32>
    %1510 = vector.extract_strided_slice %1495 {offsets = [0, 96], sizes = [8, 32], strides = [1, 1]} : vector<8x128xf32> to vector<8x32xf32>
    %1511 = arith.negf %1510 : vector<8x32xf32>
    %1512 = math.exp %1511 : vector<8x32xf32>
    %cst_361 = arith.constant 1.000000e+00 : f32
    %1513 = vector.broadcast %cst_361 : f32 to vector<8x32xf32>
    %1514 = arith.addf %1513, %1512 : vector<8x32xf32>
    %1515 = arith.divf %1513, %1514 : vector<8x32xf32>
    %1516 = arith.mulf %1507, %1429 : vector<8x32xf32>
    %1517 = arith.mulf %1501, %1509 : vector<8x32xf32>
    %1518 = arith.addf %1516, %1517 : vector<8x32xf32>
    %1519 = math.tanh %1518 : vector<8x32xf32>
    %1520 = arith.mulf %1515, %1519 : vector<8x32xf32>
    %1521 = vector.broadcast %1492 : vector<8x1xf32> to vector<8x32xf32>
    %1522 = arith.mulf %1521, %1520 : vector<8x32xf32>
    %cst_362 = arith.constant 1.000000e+00 : f32
    %1523 = vector.broadcast %cst_362 : f32 to vector<8x1xf32>
    %1524 = arith.subf %1523, %1492 : vector<8x1xf32>
    %1525 = vector.broadcast %1524 : vector<8x1xf32> to vector<8x32xf32>
    %1526 = arith.mulf %1525, %1436 : vector<8x32xf32>
    %1527 = arith.addf %1522, %1526 : vector<8x32xf32>
    %1528 = vector.broadcast %1492 : vector<8x1xf32> to vector<8x32xf32>
    %1529 = arith.mulf %1527, %1528 : vector<8x32xf32>
    %c56_363 = arith.constant 56 : index
    %c0_364 = arith.constant 0 : index
    %1530 = vector.load %arg18[%c56_363, %c0_364] : memref<64x64xf32, #tpu.memory_space<vmem>>, vector<8x32xf32>
    tpu.vector_store %arg18[%c56_363, %c0_364], %1529 {strides = array<i32>} : memref<64x64xf32, #tpu.memory_space<vmem>>, vector<8x32xf32>,
    %c0_i32_365 = arith.constant 0 : i32
    %1531 = vector.broadcast %c0_i32_365 : i32 to vector<8x1xi32>
    %1532 = arith.cmpi sgt, %0, %1531 : vector<8x1xi32>
    %1533 = arith.extui %1532 : vector<8x1xi1> to vector<8x1xi32>
    %1534 = arith.sitofp %1533 : vector<8x1xi32> to vector<8x1xf32>
    %c0_366 = arith.constant 0 : index
    %c0_367 = arith.constant 0 : index
    %1535 = vector.load %arg20[%c0_366, %c0_367] : memref<64x128xf32, #tpu.memory_space<vmem>>, vector<8x128xf32>
    %cst_368 = arith.constant dense<0.000000e+00> : vector<8x128xf32>
    %1536 = tpu.matmul %1485, %796, %cst_368 {dimension_numbers = #tpu.dot_dimension_numbers<[1], [0], [0], [1], [0, 0, 1, 1], [], []>} : vector<8x32xf32>, vector<32x128xf32>, vector<8x128xf32> -> vector<8x128xf32>
    %1537 = arith.addf %1535, %1536 : vector<8x128xf32>
    %1538 = vector.extract_strided_slice %1537 {offsets = [0, 0], sizes = [8, 32], strides = [1, 1]} : vector<8x128xf32> to vector<8x32xf32>
    %1539 = arith.negf %1538 : vector<8x32xf32>
    %1540 = math.exp %1539 : vector<8x32xf32>
    %cst_369 = arith.constant 1.000000e+00 : f32
    %1541 = vector.broadcast %cst_369 : f32 to vector<8x32xf32>
    %1542 = arith.addf %1541, %1540 : vector<8x32xf32>
    %1543 = arith.divf %1541, %1542 : vector<8x32xf32>
    %1544 = vector.extract_strided_slice %1537 {offsets = [0, 32], sizes = [8, 32], strides = [1, 1]} : vector<8x128xf32> to vector<8x32xf32>
    %1545 = arith.negf %1544 : vector<8x32xf32>
    %1546 = math.exp %1545 : vector<8x32xf32>
    %cst_370 = arith.constant 1.000000e+00 : f32
    %1547 = vector.broadcast %cst_370 : f32 to vector<8x32xf32>
    %1548 = arith.addf %1547, %1546 : vector<8x32xf32>
    %1549 = arith.divf %1547, %1548 : vector<8x32xf32>
    %1550 = vector.extract_strided_slice %1537 {offsets = [0, 64], sizes = [8, 32], strides = [1, 1]} : vector<8x128xf32> to vector<8x32xf32>
    %1551 = math.tanh %1550 : vector<8x32xf32>
    %1552 = vector.extract_strided_slice %1537 {offsets = [0, 96], sizes = [8, 32], strides = [1, 1]} : vector<8x128xf32> to vector<8x32xf32>
    %1553 = arith.negf %1552 : vector<8x32xf32>
    %1554 = math.exp %1553 : vector<8x32xf32>
    %cst_371 = arith.constant 1.000000e+00 : f32
    %1555 = vector.broadcast %cst_371 : f32 to vector<8x32xf32>
    %1556 = arith.addf %1555, %1554 : vector<8x32xf32>
    %1557 = arith.divf %1555, %1556 : vector<8x32xf32>
    %1558 = arith.mulf %1549, %1478 : vector<8x32xf32>
    %1559 = arith.mulf %1543, %1551 : vector<8x32xf32>
    %1560 = arith.addf %1558, %1559 : vector<8x32xf32>
    %1561 = math.tanh %1560 : vector<8x32xf32>
    %1562 = arith.mulf %1557, %1561 : vector<8x32xf32>
    %1563 = vector.broadcast %1534 : vector<8x1xf32> to vector<8x32xf32>
    %1564 = arith.mulf %1563, %1562 : vector<8x32xf32>
    %cst_372 = arith.constant 1.000000e+00 : f32
    %1565 = vector.broadcast %cst_372 : f32 to vector<8x1xf32>
    %1566 = arith.subf %1565, %1534 : vector<8x1xf32>
    %1567 = vector.broadcast %1566 : vector<8x1xf32> to vector<8x32xf32>
    %1568 = arith.mulf %1567, %1485 : vector<8x32xf32>
    %1569 = arith.addf %1564, %1568 : vector<8x32xf32>
    %1570 = vector.broadcast %1534 : vector<8x1xf32> to vector<8x32xf32>
    %1571 = arith.mulf %1569, %1570 : vector<8x32xf32>
    %c0_373 = arith.constant 0 : index
    %c32_374 = arith.constant 32 : index
    %1572 = vector.load %arg18[%c0_373, %c32_374] : memref<64x64xf32, #tpu.memory_space<vmem>>, vector<8x32xf32>
    tpu.vector_store %arg18[%c0_373, %c32_374], %1571 {strides = array<i32>} : memref<64x64xf32, #tpu.memory_space<vmem>>, vector<8x32xf32>,
    %cst_375 = arith.constant 0.000000e+00 : f32
    %1573 = vector.broadcast %cst_375 : f32 to vector<8x64xf32>
    %c0_376 = arith.constant 0 : index
    %c0_377 = arith.constant 0 : index
    %1574 = vector.load %arg18[%c0_376, %c0_377] : memref<64x64xf32, #tpu.memory_space<vmem>>, vector<8x64xf32>
    %1575 = arith.addf %1573, %1574 : vector<8x64xf32>
    %c8_378 = arith.constant 8 : index
    %c0_379 = arith.constant 0 : index
    %1576 = vector.load %arg18[%c8_378, %c0_379] : memref<64x64xf32, #tpu.memory_space<vmem>>, vector<8x64xf32>
    %1577 = arith.addf %1575, %1576 : vector<8x64xf32>
    %c16_380 = arith.constant 16 : index
    %c0_381 = arith.constant 0 : index
    %1578 = vector.load %arg18[%c16_380, %c0_381] : memref<64x64xf32, #tpu.memory_space<vmem>>, vector<8x64xf32>
    %1579 = arith.addf %1577, %1578 : vector<8x64xf32>
    %c24_382 = arith.constant 24 : index
    %c0_383 = arith.constant 0 : index
    %1580 = vector.load %arg18[%c24_382, %c0_383] : memref<64x64xf32, #tpu.memory_space<vmem>>, vector<8x64xf32>
    %1581 = arith.addf %1579, %1580 : vector<8x64xf32>
    %c32_384 = arith.constant 32 : index
    %c0_385 = arith.constant 0 : index
    %1582 = vector.load %arg18[%c32_384, %c0_385] : memref<64x64xf32, #tpu.memory_space<vmem>>, vector<8x64xf32>
    %1583 = arith.addf %1581, %1582 : vector<8x64xf32>
    %c40_386 = arith.constant 40 : index
    %c0_387 = arith.constant 0 : index
    %1584 = vector.load %arg18[%c40_386, %c0_387] : memref<64x64xf32, #tpu.memory_space<vmem>>, vector<8x64xf32>
    %1585 = arith.addf %1583, %1584 : vector<8x64xf32>
    %c48_388 = arith.constant 48 : index
    %c0_389 = arith.constant 0 : index
    %1586 = vector.load %arg18[%c48_388, %c0_389] : memref<64x64xf32, #tpu.memory_space<vmem>>, vector<8x64xf32>
    %1587 = arith.addf %1585, %1586 : vector<8x64xf32>
    %c56_390 = arith.constant 56 : index
    %c0_391 = arith.constant 0 : index
    %1588 = vector.load %arg18[%c56_390, %c0_391] : memref<64x64xf32, #tpu.memory_space<vmem>>, vector<8x64xf32>
    %1589 = arith.addf %1587, %1588 : vector<8x64xf32>
    %c0_392 = arith.constant 0 : index
    %c0_393 = arith.constant 0 : index
    %1590 = vector.load %arg1[%c0_392, %c0_393] : memref<1x1xf32, #tpu.memory_space<vmem>>, vector<1x1xf32>
    %1591 = vector.broadcast %1590 : vector<1x1xf32> to vector<8x64xf32>
    %1592 = arith.mulf %1589, %1591 : vector<8x64xf32>
    %c0_394 = arith.constant 0 : index
    %c0_395 = arith.constant 0 : index
    %1593 = vector.load %arg15[%c0_394, %c0_395] : memref<64x4xf32, #tpu.memory_space<vmem>>, vector<64x4xf32>
    %cst_396 = arith.constant dense<0.000000e+00> : vector<8x4xf32>
    %1594 = tpu.matmul %1592, %1593, %cst_396 {dimension_numbers = #tpu.dot_dimension_numbers<[1], [0], [0], [1], [0, 0, 1, 1], [], []>} : vector<8x64xf32>, vector<64x4xf32>, vector<8x4xf32> -> vector<8x4xf32>
    %c0_397 = arith.constant 0 : index
    %c0_398 = arith.constant 0 : index
    %1595 = vector.load %arg16[%c0_397, %c0_398] : memref<1x4xf32, #tpu.memory_space<vmem>>, vector<1x4xf32>
    %1596 = vector.broadcast %1595 : vector<1x4xf32> to vector<8x4xf32>
    %1597 = arith.addf %1594, %1596 : vector<8x4xf32>
    %1598 = arith.negf %1597 : vector<8x4xf32>
    %1599 = math.exp %1598 : vector<8x4xf32>
    %cst_399 = arith.constant 1.000000e+00 : f32
    %1600 = vector.broadcast %cst_399 : f32 to vector<8x4xf32>
    %1601 = arith.addf %1600, %1599 : vector<8x4xf32>
    %1602 = arith.divf %1600, %1601 : vector<8x4xf32>
    %c0_400 = arith.constant 0 : index
    %c0_401 = arith.constant 0 : index
    %1603 = vector.load %arg17[%c0_400, %c0_401] : memref<8x4xf32, #tpu.memory_space<vmem>>, vector<8x4xf32>
    tpu.vector_store %arg17[%c0_400, %c0_401], %1602 {strides = array<i32>} : memref<8x4xf32, #tpu.memory_space<vmem>>, vector<8x4xf32>,
    return
  }
}

</mosaic_0001>

<llo_original>
// kernel: rnanet_forward_pallas.1
$region0: #{rnanet_forward_pallas.1}
  #allocation0 [shape = 'u32[]', space=smem, size = 0x4, offset = 0x4, fixed_abs, tag = 'smem constant byte address 0x4 - core index']
  #allocation1 [shape = 'u32[144,128]{1,0:T(1,128)}', space=vmem, size = 0x12000, scoped, tag = 'internal scratch']
  #allocation2 [shape = 'f32[64,64]{1,0:T(8,128)}', space=vmem, size = 0x8000, scoped, tag = 'scratch operand']
  #allocation3 [shape = 'f32[64,128]{1,0:T(8,128)}', space=vmem, size = 0x8000, scoped, tag = 'scratch operand']
  #allocation4 [shape = 'f32[64,128]{1,0:T(8,128)}', space=vmem, size = 0x8000, scoped, tag = 'scratch operand']
  #allocation5 [shape = 'f32[1,1]{1,0:T(1,128)S(1)}', space=vmem, size = 0x200, scoped, tag = 'scoped memory for rnanet_forward_pallas.1']
  %s0 = inlined_call_operand.vmem [shape: s32[8,1], index: 0, kind: input, shape index: {}]
  %s1 = inlined_call_operand.<no memory space> [shape: f32[1,1], index: 1, kind: input, shape index: {}]
  %s2 = inlined_call_operand.vmem [shape: f32[64,8], index: 2, kind: input, shape index: {}]
  %s3 = inlined_call_operand.vmem [shape: f32[8,128], index: 3, kind: input, shape index: {}]
  %s4 = inlined_call_operand.vmem [shape: f32[32,128], index: 4, kind: input, shape index: {}]
  %s5 = inlined_call_operand.vmem [shape: f32[1,128], index: 5, kind: input, shape index: {}]
  %s6 = inlined_call_operand.vmem [shape: f32[8,128], index: 6, kind: input, shape index: {}]
  %s7 = inlined_call_operand.vmem [shape: f32[32,128], index: 7, kind: input, shape index: {}]
  %s8 = inlined_call_operand.vmem [shape: f32[1,128], index: 8, kind: input, shape index: {}]
  %s9 = inlined_call_operand.vmem [shape: f32[64,128], index: 9, kind: input, shape index: {}]
  %s10 = inlined_call_operand.vmem [shape: f32[32,128], index: 10, kind: input, shape index: {}]
  %s11 = inlined_call_operand.vmem [shape: f32[1,128], index: 11, kind: input, shape index: {}]
  %s12 = inlined_call_operand.vmem [shape: f32[64,128], index: 12, kind: input, shape index: {}]
  %s13 = inlined_call_operand.vmem [shape: f32[32,128], index: 13, kind: input, shape index: {}]
  %s14 = inlined_call_operand.vmem [shape: f32[1,128], index: 14, kind: input, shape index: {}]
  %s15 = inlined_call_operand.vmem [shape: f32[64,4], index: 15, kind: input, shape index: {}]
  %s16 = inlined_call_operand.vmem [shape: f32[1,4], index: 16, kind: input, shape index: {}]
  %s17 = inlined_call_operand.vmem [shape: f32[8,4], index: 17, kind: output, shape index: {}]
  %s18 = sld [smem:[#allocation0]]
  $region78: #{rnanet_forward_pallas.1} parent=0
    _
  %s20 = ssub.s32 1, %s18
  %s21 = scalar_select 0, %s20, %s18
  %v22 = vstv %s1
  %23 = vst [vmem:[#allocation5] sm:$0x1] %v22
  // Predicated region
  $region2: #{rnanet_forward_pallas.1} parent=0 // pred_check
    _
  $region3: #{rnanet_forward_pallas.1} parent=0 // pred_check_branch
    %25 = sbr.rel (0) target = $region5
  $region4: #{rnanet_forward_pallas.1} parent=0 // pred_region
    _
  $region5: #{rnanet_forward_pallas.1} parent=0 // pred_fallthru
    _
  // Predicated region
  $region6: #{rnanet_forward_pallas.1} parent=0 // pred_check
    _
  $region7: #{rnanet_forward_pallas.1} parent=0 // pred_check_branch
    %27 = sbr.rel (0) target = $region9
  $region8: #{rnanet_forward_pallas.1} parent=0 // pred_region
    _
  $region9: #{rnanet_forward_pallas.1} parent=0 // pred_fallthru
    _
  // Predicated region
  $region10: #{rnanet_forward_pallas.1} parent=0 // pred_check
    _
  $region11: #{rnanet_forward_pallas.1} parent=0 // pred_check_branch
    %29 = sbr.rel (0) target = $region13
  $region12: #{rnanet_forward_pallas.1} parent=0 // pred_region
    _
  $region13: #{rnanet_forward_pallas.1} parent=0 // pred_fallthru
    _
  // Predicated region
  $region14: #{rnanet_forward_pallas.1} parent=0 // pred_check
    _
  $region15: #{rnanet_forward_pallas.1} parent=0 // pred_check_branch
    %31 = sbr.rel (0) target = $region17
  $region16: #{rnanet_forward_pallas.1} parent=0 // pred_region
    _
  $region17: #{rnanet_forward_pallas.1} parent=0 // pred_fallthru
    _
  // Predicated region
  $region18: #{rnanet_forward_pallas.1} parent=0 // pred_check
    _
  $region19: #{rnanet_forward_pallas.1} parent=0 // pred_check_branch
    %33 = sbr.rel (0) target = $region21
  $region20: #{rnanet_forward_pallas.1} parent=0 // pred_region
    _
  $region21: #{rnanet_forward_pallas.1} parent=0 // pred_fallthru
    _
  // Predicated region
  $region22: #{rnanet_forward_pallas.1} parent=0 // pred_check
    _
  $region23: #{rnanet_forward_pallas.1} parent=0 // pred_check_branch
    %35 = sbr.rel (0) target = $region25
  $region24: #{rnanet_forward_pallas.1} parent=0 // pred_region
    _
  $region25: #{rnanet_forward_pallas.1} parent=0 // pred_fallthru
    _
  // Predicated region
  $region26: #{rnanet_forward_pallas.1} parent=0 // pred_check
    _
  $region27: #{rnanet_forward_pallas.1} parent=0 // pred_check_branch
    %37 = sbr.rel (0) target = $region29
  $region28: #{rnanet_forward_pallas.1} parent=0 // pred_region
    _
  $region29: #{rnanet_forward_pallas.1} parent=0 // pred_fallthru
    _
  // Predicated region
  $region30: #{rnanet_forward_pallas.1} parent=0 // pred_check
    _
  $region31: #{rnanet_forward_pallas.1} parent=0 // pred_check_branch
    %39 = sbr.rel (0) target = $region33
  $region32: #{rnanet_forward_pallas.1} parent=0 // pred_region
    _
  $region33: #{rnanet_forward_pallas.1} parent=0 // pred_fallthru
    _
  // Predicated region
  $region34: #{rnanet_forward_pallas.1} parent=0 // pred_check
    _
  $region35: #{rnanet_forward_pallas.1} parent=0 // pred_check_branch
    %41 = sbr.rel (0) target = $region37
  $region36: #{rnanet_forward_pallas.1} parent=0 // pred_region
    _
  $region37: #{rnanet_forward_pallas.1} parent=0 // pred_fallthru
    _
  // Predicated region
  $region38: #{rnanet_forward_pallas.1} parent=0 // pred_check
    _
  $region39: #{rnanet_forward_pallas.1} parent=0 // pred_check_branch
    %43 = sbr.rel (0) target = $region41
  $region40: #{rnanet_forward_pallas.1} parent=0 // pred_region
    _
  $region41: #{rnanet_forward_pallas.1} parent=0 // pred_fallthru
    _
  // Predicated region
  $region42: #{rnanet_forward_pallas.1} parent=0 // pred_check
    _
  $region43: #{rnanet_forward_pallas.1} parent=0 // pred_check_branch
    %45 = sbr.rel (0) target = $region45
  $region44: #{rnanet_forward_pallas.1} parent=0 // pred_region
    _
  $region45: #{rnanet_forward_pallas.1} parent=0 // pred_fallthru
    _
  // Predicated region
  $region46: #{rnanet_forward_pallas.1} parent=0 // pred_check
    _
  $region47: #{rnanet_forward_pallas.1} parent=0 // pred_check_branch
    %47 = sbr.rel (0) target = $region49
  $region48: #{rnanet_forward_pallas.1} parent=0 // pred_region
    _
  $region49: #{rnanet_forward_pallas.1} parent=0 // pred_fallthru
    _
  // Predicated region
  $region50: #{rnanet_forward_pallas.1} parent=0 // pred_check
    _
  $region51: #{rnanet_forward_pallas.1} parent=0 // pred_check_branch
    %49 = sbr.rel (0) target = $region53
  $region52: #{rnanet_forward_pallas.1} parent=0 // pred_region
    _
  $region53: #{rnanet_forward_pallas.1} parent=0 // pred_fallthru
    _
  // Predicated region
  $region54: #{rnanet_forward_pallas.1} parent=0 // pred_check
    _
  $region55: #{rnanet_forward_pallas.1} parent=0 // pred_check_branch
    %51 = sbr.rel (0) target = $region57
  $region56: #{rnanet_forward_pallas.1} parent=0 // pred_region
    _
  $region57: #{rnanet_forward_pallas.1} parent=0 // pred_fallthru
    _
  // Predicated region
  $region58: #{rnanet_forward_pallas.1} parent=0 // pred_check
    _
  $region59: #{rnanet_forward_pallas.1} parent=0 // pred_check_branch
    %53 = sbr.rel (0) target = $region61
  $region60: #{rnanet_forward_pallas.1} parent=0 // pred_region
    _
  $region61: #{rnanet_forward_pallas.1} parent=0 // pred_fallthru
    _
  // Predicated region
  $region62: #{rnanet_forward_pallas.1} parent=0 // pred_check
    _
  $region63: #{rnanet_forward_pallas.1} parent=0 // pred_check_branch
    %55 = sbr.rel (0) target = $region65
  $region64: #{rnanet_forward_pallas.1} parent=0 // pred_region
    _
  $region65: #{rnanet_forward_pallas.1} parent=0 // pred_fallthru
    _
  // Predicated region
  $region66: #{rnanet_forward_pallas.1} parent=0 // pred_check
    _
  $region67: #{rnanet_forward_pallas.1} parent=0 // pred_check_branch
    %57 = sbr.rel (0) target = $region69
  $region68: #{rnanet_forward_pallas.1} parent=0 // pred_region
    _
  $region69: #{rnanet_forward_pallas.1} parent=0 // pred_fallthru
    _
  %v58 = vld [vmem:[%s0] sm:$0xff]
  %v59 = vld [vmem:[%s2] sm:$0xff]
  %v60 = vld [vmem:[%s2 + $0x8] sm:$0xff]
  %v61 = vld [vmem:[%s2 + $0x10] sm:$0xff]
  %v62 = vld [vmem:[%s2 + $0x18] sm:$0xff]
  %v63 = vld [vmem:[%s2 + $0x20] sm:$0xff]
  %v64 = vld [vmem:[%s2 + $0x28] sm:$0xff]
  %v65 = vld [vmem:[%s2 + $0x30] sm:$0xff]
  %v66 = vld [vmem:[%s2 + $0x38] sm:$0xff]
  %v67 = vld [vmem:[%s3] sm:$0xff]
  %v68 = vld [vmem:[%s4] sm:$0xff]
  %v69 = vld [vmem:[%s4 + $0x8] sm:$0xff]
  %v70 = vld [vmem:[%s4 + $0x10] sm:$0xff]
  %v71 = vld [vmem:[%s4 + $0x18] sm:$0xff]
  %v72 = vld [vmem:[%s5] sm:$0x1]
  %v74 = vlaneseq
  %v75 = vshrl.u32 %v74, 7
  %v76 = vsub.s32 0, %v75
  %v77 = vrot.slane %v72, %v76
  %vm79 = vcmask 64512
  %v81 = vsel %vm79, %v59, 0
  %v84 = vsel %vm79, %v60, 0
  %v87 = vsel %vm79, %v61, 0
  %v90 = vsel %vm79, %v62, 0
  %v93 = vsel %vm79, %v63, 0
  %v96 = vsel %vm79, %v64, 0
  %v99 = vsel %vm79, %v65, 0
  %v102 = vsel %vm79, %v66, 0
  %104 = vmatprep.subr.mxu0 0.0
  %105 = vmatpush1.msra.mxu0 %v67
  %106 = vmatprep.subr.mxu0 0.0
  %107 = vmatpush1.msra.mxu0 0.0
  %108 = vmatprep.subr.mxu0 0.0
  %109 = vmatpush1.msra.mxu0 0.0
  %110 = vmatprep.subr.mxu0 0.0
  %111 = vmatpush1.msra.mxu0 0.0
  %112 = vmatprep.subr.mxu0 0.0
  %113 = vmatpush1.msra.mxu0 0.0
  %114 = vmatprep.subr.mxu0 0.0
  %115 = vmatpush1.msra.mxu0 0.0
  %116 = vmatprep.subr.mxu0 0.0
  %117 = vmatpush1.msra.mxu0 0.0
  %118 = vmatprep.subr.mxu0 0.0
  %119 = vmatpush1.msra.mxu0 0.0
  %120 = vmatprep.subr.mxu0 0.0
  %121 = vmatpush1.msra.mxu0 0.0
  %122 = vmatprep.subr.mxu0 0.0
  %123 = vmatpush1.msra.mxu0 0.0
  %124 = vmatprep.subr.mxu0 0.0
  %125 = vmatpush1.msra.mxu0 0.0
  %126 = vmatprep.subr.mxu0 0.0
  %127 = vmatpush1.msra.mxu0 0.0
  %128 = vmatprep.subr.mxu0 0.0
  %129 = vmatpush1.msra.mxu0 0.0
  %130 = vmatprep.subr.mxu0 0.0
  %131 = vmatpush1.msra.mxu0 0.0
  %132 = vmatprep.subr.mxu0 0.0
  %133 = vmatpush1.msra.mxu0 0.0
  %134 = vmatprep.subr.mxu0 0.0
  %135 = vmatpush1.msra.mxu0 0.0
  %136 = vmatprep.subr.mxu0 0.0
  %137 = vmatpush1.msra.mxu0 0.0
  %138 = vmatprep.subr.mxu0 0.0
  %139 = vmatpush1.msra.mxu0 0.0
  %140 = vmatprep.subr.mxu0 0.0
  %141 = vmatpush1.msra.mxu0 0.0
  %142 = vmatprep.subr.mxu0 0.0
  %143 = vmatpush1.msra.mxu0 0.0
  %144 = vmatprep.subr.mxu0 0.0
  %145 = vmatpush1.msra.mxu0 0.0
  %146 = vmatprep.subr.mxu0 0.0
  %147 = vmatpush1.msra.mxu0 0.0
  %148 = vmatprep.subr.mxu0 0.0
  %149 = vmatpush1.msra.mxu0 0.0
  %150 = vmatprep.subr.mxu0 0.0
  %151 = vmatpush1.msra.mxu0 0.0
  %152 = vmatprep.subr.mxu0 0.0
  %153 = vmatpush1.msra.mxu0 0.0
  %154 = vmatprep.subr.mxu0 0.0
  %155 = vmatpush1.msra.mxu0 0.0
  %156 = vmatprep.subr.mxu0 0.0
  %157 = vmatpush1.msra.mxu0 0.0
  %158 = vmatprep.subr.mxu0 0.0
  %159 = vmatpush1.msra.mxu0 0.0
  %160 = vmatprep.subr.mxu0 0.0
  %161 = vmatpush1.msra.mxu0 0.0
  %162 = vmatprep.subr.mxu0 0.0
  %163 = vmatpush1.msra.mxu0 0.0
  %164 = vmatprep.subr.mxu0 0.0
  %165 = vmatpush1.msra.mxu0 0.0
  %166 = vmatprep.subr.mxu0 0.0
  %167 = vmatpush1.msra.mxu0 0.0
  %168 = vmatprep.mubr.f32.mxu0 0.0
  %169 = vmatmul.mubr.f32.gmra.mrb[0].mxu0 %v81
  %v170 = vpop.f32.mrb[0].mxu0
  %v171 = vadd.f32 %v77, %v170
  %v172 = vpop.f32.mrb[0].mxu0
  %173 = vmatprep.mubr.f32.mxu0 0.0
  %174 = vmatmul.mubr.f32.gmra.mrb[0].mxu0 %v84
  %v175 = vpop.f32.mrb[0].mxu0
  %v176 = vadd.f32 %v77, %v175
  %v177 = vpop.f32.mrb[0].mxu0
  %178 = vmatprep.mubr.f32.mxu0 0.0
  %179 = vmatmul.mubr.f32.gmra.mrb[0].mxu0 %v87
  %v180 = vpop.f32.mrb[0].mxu0
  %v181 = vadd.f32 %v77, %v180
  %v182 = vpop.f32.mrb[0].mxu0
  %183 = vmatprep.mubr.f32.mxu0 0.0
  %184 = vmatmul.mubr.f32.gmra.mrb[0].mxu0 %v90
  %v185 = vpop.f32.mrb[0].mxu0
  %v186 = vadd.f32 %v77, %v185
  %v187 = vpop.f32.mrb[0].mxu0
  %188 = vmatprep.mubr.f32.mxu0 0.0
  %189 = vmatmul.mubr.f32.gmra.mrb[0].mxu0 %v93
  %v190 = vpop.f32.mrb[0].mxu0
  %v191 = vadd.f32 %v77, %v190
  %v192 = vpop.f32.mrb[0].mxu0
  %193 = vmatprep.mubr.f32.mxu0 0.0
  %194 = vmatmul.mubr.f32.gmra.mrb[0].mxu0 %v96
  %v195 = vpop.f32.mrb[0].mxu0
  %v196 = vadd.f32 %v77, %v195
  %v197 = vpop.f32.mrb[0].mxu0
  %198 = vmatprep.mubr.f32.mxu0 0.0
  %199 = vmatmul.mubr.f32.gmra.mrb[0].mxu0 %v99
  %v200 = vpop.f32.mrb[0].mxu0
  %v201 = vadd.f32 %v77, %v200
  %v202 = vpop.f32.mrb[0].mxu0
  %203 = vmatprep.mubr.f32.mxu0 0.0
  %204 = vmatmul.mubr.f32.gmra.mrb[0].mxu0 %v102
  %v205 = vpop.f32.mrb[0].mxu0
  %v206 = vadd.f32 %v77, %v205
  %v207 = vpop.f32.mrb[0].mxu0
  %208 = vdwg.mxu0
  %209 = vst [vmem:[#allocation3] sm:$0xff] %v171
  %210 = vst [vmem:[#allocation3 + $0x8] sm:$0xff] %v176
  %211 = vst [vmem:[#allocation3 + $0x10] sm:$0xff] %v181
  %212 = vst [vmem:[#allocation3 + $0x18] sm:$0xff] %v186
  %213 = vst [vmem:[#allocation3 + $0x20] sm:$0xff] %v191
  %214 = vst [vmem:[#allocation3 + $0x28] sm:$0xff] %v196
  %215 = vst [vmem:[#allocation3 + $0x30] sm:$0xff] %v201
  %216 = vst [vmem:[#allocation3 + $0x38] sm:$0xff] %v206
  %v217 = vld [vmem:[%s6] sm:$0xff]
  %v218 = vld [vmem:[%s7] sm:$0xff]
  %v219 = vld [vmem:[%s7 + $0x8] sm:$0xff]
  %v220 = vld [vmem:[%s7 + $0x10] sm:$0xff]
  %v221 = vld [vmem:[%s7 + $0x18] sm:$0xff]
  %v222 = vld [vmem:[%s8] sm:$0x1]
  %v224 = vlaneseq
  %v225 = vshrl.u32 %v224, 7
  %v226 = vsub.s32 0, %v225
  %v227 = vrot.slane %v222, %v226
  %229 = vmatprep.subr.mxu0 0.0
  %230 = vmatpush1.msra.mxu0 %v217
  %231 = vmatprep.subr.mxu0 0.0
  %232 = vmatpush1.msra.mxu0 0.0
  %233 = vmatprep.subr.mxu0 0.0
  %234 = vmatpush1.msra.mxu0 0.0
  %235 = vmatprep.subr.mxu0 0.0
  %236 = vmatpush1.msra.mxu0 0.0
  %237 = vmatprep.subr.mxu0 0.0
  %238 = vmatpush1.msra.mxu0 0.0
  %239 = vmatprep.subr.mxu0 0.0
  %240 = vmatpush1.msra.mxu0 0.0
  %241 = vmatprep.subr.mxu0 0.0
  %242 = vmatpush1.msra.mxu0 0.0
  %243 = vmatprep.subr.mxu0 0.0
  %244 = vmatpush1.msra.mxu0 0.0
  %245 = vmatprep.subr.mxu0 0.0
  %246 = vmatpush1.msra.mxu0 0.0
  %247 = vmatprep.subr.mxu0 0.0
  %248 = vmatpush1.msra.mxu0 0.0
  %249 = vmatprep.subr.mxu0 0.0
  %250 = vmatpush1.msra.mxu0 0.0
  %251 = vmatprep.subr.mxu0 0.0
  %252 = vmatpush1.msra.mxu0 0.0
  %253 = vmatprep.subr.mxu0 0.0
  %254 = vmatpush1.msra.mxu0 0.0
  %255 = vmatprep.subr.mxu0 0.0
  %256 = vmatpush1.msra.mxu0 0.0
  %257 = vmatprep.subr.mxu0 0.0
  %258 = vmatpush1.msra.mxu0 0.0
  %259 = vmatprep.subr.mxu0 0.0
  %260 = vmatpush1.msra.mxu0 0.0
  %261 = vmatprep.subr.mxu0 0.0
  %262 = vmatpush1.msra.mxu0 0.0
  %263 = vmatprep.subr.mxu0 0.0
  %264 = vmatpush1.msra.mxu0 0.0
  %265 = vmatprep.subr.mxu0 0.0
  %266 = vmatpush1.msra.mxu0 0.0
  %267 = vmatprep.subr.mxu0 0.0
  %268 = vmatpush1.msra.mxu0 0.0
  %269 = vmatprep.subr.mxu0 0.0
  %270 = vmatpush1.msra.mxu0 0.0
  %271 = vmatprep.subr.mxu0 0.0
  %272 = vmatpush1.msra.mxu0 0.0
  %273 = vmatprep.subr.mxu0 0.0
  %274 = vmatpush1.msra.mxu0 0.0
  %275 = vmatprep.subr.mxu0 0.0
  %276 = vmatpush1.msra.mxu0 0.0
  %277 = vmatprep.subr.mxu0 0.0
  %278 = vmatpush1.msra.mxu0 0.0
  %279 = vmatprep.subr.mxu0 0.0
  %280 = vmatpush1.msra.mxu0 0.0
  %281 = vmatprep.subr.mxu0 0.0
  %282 = vmatpush1.msra.mxu0 0.0
  %283 = vmatprep.subr.mxu0 0.0
  %284 = vmatpush1.msra.mxu0 0.0
  %285 = vmatprep.subr.mxu0 0.0
  %286 = vmatpush1.msra.mxu0 0.0
  %287 = vmatprep.subr.mxu0 0.0
  %288 = vmatpush1.msra.mxu0 0.0
  %289 = vmatprep.subr.mxu0 0.0
  %290 = vmatpush1.msra.mxu0 0.0
  %291 = vmatprep.subr.mxu0 0.0
  %292 = vmatpush1.msra.mxu0 0.0
  %293 = vmatprep.mubr.f32.mxu0 0.0
  %294 = vmatmul.mubr.f32.gmra.mrb[0].mxu0 %v81
  %v295 = vpop.f32.mrb[0].mxu0
  %v296 = vadd.f32 %v227, %v295
  %v297 = vpop.f32.mrb[0].mxu0
  %298 = vmatprep.mubr.f32.mxu0 0.0
  %299 = vmatmul.mubr.f32.gmra.mrb[0].mxu0 %v84
  %v300 = vpop.f32.mrb[0].mxu0
  %v301 = vadd.f32 %v227, %v300
  %v302 = vpop.f32.mrb[0].mxu0
  %303 = vmatprep.mubr.f32.mxu0 0.0
  %304 = vmatmul.mubr.f32.gmra.mrb[0].mxu0 %v87
  %v305 = vpop.f32.mrb[0].mxu0
  %v306 = vadd.f32 %v227, %v305
  %v307 = vpop.f32.mrb[0].mxu0
  %308 = vmatprep.mubr.f32.mxu0 0.0
  %309 = vmatmul.mubr.f32.gmra.mrb[0].mxu0 %v90
  %v310 = vpop.f32.mrb[0].mxu0
  %v311 = vadd.f32 %v227, %v310
  %v312 = vpop.f32.mrb[0].mxu0
  %313 = vmatprep.mubr.f32.mxu0 0.0
  %314 = vmatmul.mubr.f32.gmra.mrb[0].mxu0 %v93
  %v315 = vpop.f32.mrb[0].mxu0
  %v316 = vadd.f32 %v227, %v315
  %v317 = vpop.f32.mrb[0].mxu0
  %318 = vmatprep.mubr.f32.mxu0 0.0
  %319 = vmatmul.mubr.f32.gmra.mrb[0].mxu0 %v96
  %v320 = vpop.f32.mrb[0].mxu0
  %v321 = vadd.f32 %v227, %v320
  %v322 = vpop.f32.mrb[0].mxu0
  %323 = vmatprep.mubr.f32.mxu0 0.0
  %324 = vmatmul.mubr.f32.gmra.mrb[0].mxu0 %v99
  %v325 = vpop.f32.mrb[0].mxu0
  %v326 = vadd.f32 %v227, %v325
  %v327 = vpop.f32.mrb[0].mxu0
  %328 = vmatprep.mubr.f32.mxu0 0.0
  %329 = vmatmul.mubr.f32.gmra.mrb[0].mxu0 %v102
  %v330 = vpop.f32.mrb[0].mxu0
  %v331 = vadd.f32 %v227, %v330
  %v332 = vpop.f32.mrb[0].mxu0
  %333 = vdwg.mxu0
  %334 = vst [vmem:[#allocation4] sm:$0xff] %v296
  %335 = vst [vmem:[#allocation4 + $0x8] sm:$0xff] %v301
  %336 = vst [vmem:[#allocation4 + $0x10] sm:$0xff] %v306
  %337 = vst [vmem:[#allocation4 + $0x18] sm:$0xff] %v311
  %338 = vst [vmem:[#allocation4 + $0x20] sm:$0xff] %v316
  %339 = vst [vmem:[#allocation4 + $0x28] sm:$0xff] %v321
  %340 = vst [vmem:[#allocation4 + $0x30] sm:$0xff] %v326
  %341 = vst [vmem:[#allocation4 + $0x38] sm:$0xff] %v331
  %vm342 = vcmp.gt.s32.totalorder %v58, 0
  %v343 = vsel %vm342, 1, 0
  %v344 = vcvt.s32.f32 %v343
  %v345 = vld [vmem:[#allocation3] sm:$0xff]
  %vm346 = vcmask 261120
  %v348 = vsel %vm346, 0.0, 0
  %350 = vmatprep.subr.mxu0 0.0
  %351 = vmatpush1.msra.mxu0 %v68
  %352 = vmatprep.subr.mxu0 0.0
  %353 = vmatpush1.msra.mxu0 %v69
  %354 = vmatprep.subr.mxu0 0.0
  %355 = vmatpush1.msra.mxu0 %v70
  %356 = vmatprep.subr.mxu0 0.0
  %357 = vmatpush1.msra.mxu0 %v71
  %358 = vmatprep.subr.mxu0 0.0
  %359 = vmatpush1.msra.mxu0 0.0
  %360 = vmatprep.subr.mxu0 0.0
  %361 = vmatpush1.msra.mxu0 0.0
  %362 = vmatprep.subr.mxu0 0.0
  %363 = vmatpush1.msra.mxu0 0.0
  %364 = vmatprep.subr.mxu0 0.0
  %365 = vmatpush1.msra.mxu0 0.0
  %366 = vmatprep.subr.mxu0 0.0
  %367 = vmatpush1.msra.mxu0 0.0
  %368 = vmatprep.subr.mxu0 0.0
  %369 = vmatpush1.msra.mxu0 0.0
  %370 = vmatprep.subr.mxu0 0.0
  %371 = vmatpush1.msra.mxu0 0.0
  %372 = vmatprep.subr.mxu0 0.0
  %373 = vmatpush1.msra.mxu0 0.0
  %374 = vmatprep.subr.mxu0 0.0
  %375 = vmatpush1.msra.mxu0 0.0
  %376 = vmatprep.subr.mxu0 0.0
  %377 = vmatpush1.msra.mxu0 0.0
  %378 = vmatprep.subr.mxu0 0.0
  %379 = vmatpush1.msra.mxu0 0.0
  %380 = vmatprep.subr.mxu0 0.0
  %381 = vmatpush1.msra.mxu0 0.0
  %382 = vmatprep.subr.mxu0 0.0
  %383 = vmatpush1.msra.mxu0 0.0
  %384 = vmatprep.subr.mxu0 0.0
  %385 = vmatpush1.msra.mxu0 0.0
  %386 = vmatprep.subr.mxu0 0.0
  %387 = vmatpush1.msra.mxu0 0.0
  %388 = vmatprep.subr.mxu0 0.0
  %389 = vmatpush1.msra.mxu0 0.0
  %390 = vmatprep.subr.mxu0 0.0
  %391 = vmatpush1.msra.mxu0 0.0
  %392 = vmatprep.subr.mxu0 0.0
  %393 = vmatpush1.msra.mxu0 0.0
  %394 = vmatprep.subr.mxu0 0.0
  %395 = vmatpush1.msra.mxu0 0.0
  %396 = vmatprep.subr.mxu0 0.0
  %397 = vmatpush1.msra.mxu0 0.0
  %398 = vmatprep.subr.mxu0 0.0
  %399 = vmatpush1.msra.mxu0 0.0
  %400 = vmatprep.subr.mxu0 0.0
  %401 = vmatpush1.msra.mxu0 0.0
  %402 = vmatprep.subr.mxu0 0.0
  %403 = vmatpush1.msra.mxu0 0.0
  %404 = vmatprep.subr.mxu0 0.0
  %405 = vmatpush1.msra.mxu0 0.0
  %406 = vmatprep.subr.mxu0 0.0
  %407 = vmatpush1.msra.mxu0 0.0
  %408 = vmatprep.subr.mxu0 0.0
  %409 = vmatpush1.msra.mxu0 0.0
  %410 = vmatprep.subr.mxu0 0.0
  %411 = vmatpush1.msra.mxu0 0.0
  %412 = vmatprep.subr.mxu0 0.0
  %413 = vmatpush1.msra.mxu0 0.0
  %414 = vmatprep.mubr.f32.mxu0 0.0
  %415 = vmatmul.mubr.f32.gmra.mrb[0].mxu0 %v348
  %v416 = vpop.f32.mrb[0].mxu0
  %v417 = vadd.f32 0.0, %v416
  %v418 = vpop.f32.mrb[0].mxu0
  %419 = vdwg.mxu0
  %v420 = vadd.f32 %v345, %v417
  %v421 = vxor.u32 %v420, 2147483648
  %v422 = vmul.f32 %v421, 1.442695
  %v423 = vpow.pop %v422
  %v424 = vadd.f32 %v423, 1.0
  %v425 = vrcp.pop %v424
  %v426 = vmul.f32 1.0, %v425
  %v427 = vtanh.pop %v420
  %v428 = vmul.f32 %v426, 0.0
  %430 = vrot.lane.b32.xlu0 %v427, 64
  %v431 = vpop.permute.xlu0 %430
  %v433 = vmul.f32 %v426, %v431
  %435 = vrot.lane.b32.xlu0 %v433, 32
  %v436 = vpop.permute.xlu0 %435
  %v438 = vadd.f32 %v428, %v436
  %v439 = vtanh.pop %v438
  %441 = vrot.lane.b32.xlu0 %v439, 64
  %v442 = vpop.permute.xlu0 %441
  %v444 = vmul.f32 %v426, %v442
  %446 = vset.pattern.permute.xlu0 0
  %447 = vperm.xlu0 %446, %v344
  %v448 = vpop.permute.xlu0 %447
  %v450 = vmul.f32 %v448, %v438
  %v451 = vsub.f32 1.0, %v344
  %453 = vset.pattern.permute.xlu0 0
  %454 = vperm.xlu0 %453, %v451
  %v455 = vpop.permute.xlu0 %454
  %v457 = vmul.f32 %v455, 0.0
  %v458 = vadd.f32 %v450, %v457
  %v459 = vmul.f32 %v448, %v444
  %v460 = vadd.f32 %v459, %v457
  %v461 = vmul.f32 %v460, %v448
  %463 = vrot.lane.b32.xlu0 %v461, 32
  %v464 = vpop.permute.xlu0 %463
  %466 = vst.msk [vmem:[#allocation2] sm:$0xff] %vm346, %v464
  %vm467 = vcmp.gt.s32.totalorder %v58, 7
  %v468 = vsel %vm467, 1, 0
  %v469 = vcvt.s32.f32 %v468
  %v470 = vld [vmem:[#allocation4 + $0x38] sm:$0xff]
  %471 = vmatprep.subr.mxu0 0.0
  %472 = vmatpush1.msra.mxu0 %v218
  %473 = vmatprep.subr.mxu0 0.0
  %474 = vmatpush1.msra.mxu0 %v219
  %475 = vmatprep.subr.mxu0 0.0
  %476 = vmatpush1.msra.mxu0 %v220
  %477 = vmatprep.subr.mxu0 0.0
  %478 = vmatpush1.msra.mxu0 %v221
  %479 = vmatprep.subr.mxu0 0.0
  %480 = vmatpush1.msra.mxu0 0.0
  %481 = vmatprep.subr.mxu0 0.0
  %482 = vmatpush1.msra.mxu0 0.0
  %483 = vmatprep.subr.mxu0 0.0
  %484 = vmatpush1.msra.mxu0 0.0
  %485 = vmatprep.subr.mxu0 0.0
  %486 = vmatpush1.msra.mxu0 0.0
  %487 = vmatprep.subr.mxu0 0.0
  %488 = vmatpush1.msra.mxu0 0.0
  %489 = vmatprep.subr.mxu0 0.0
  %490 = vmatpush1.msra.mxu0 0.0
  %491 = vmatprep.subr.mxu0 0.0
  %492 = vmatpush1.msra.mxu0 0.0
  %493 = vmatprep.subr.mxu0 0.0
  %494 = vmatpush1.msra.mxu0 0.0
  %495 = vmatprep.subr.mxu0 0.0
  %496 = vmatpush1.msra.mxu0 0.0
  %497 = vmatprep.subr.mxu0 0.0
  %498 = vmatpush1.msra.mxu0 0.0
  %499 = vmatprep.subr.mxu0 0.0
  %500 = vmatpush1.msra.mxu0 0.0
  %501 = vmatprep.subr.mxu0 0.0
  %502 = vmatpush1.msra.mxu0 0.0
  %503 = vmatprep.subr.mxu0 0.0
  %504 = vmatpush1.msra.mxu0 0.0
  %505 = vmatprep.subr.mxu0 0.0
  %506 = vmatpush1.msra.mxu0 0.0
  %507 = vmatprep.subr.mxu0 0.0
  %508 = vmatpush1.msra.mxu0 0.0
  %509 = vmatprep.subr.mxu0 0.0
  %510 = vmatpush1.msra.mxu0 0.0
  %511 = vmatprep.subr.mxu0 0.0
  %512 = vmatpush1.msra.mxu0 0.0
  %513 = vmatprep.subr.mxu0 0.0
  %514 = vmatpush1.msra.mxu0 0.0
  %515 = vmatprep.subr.mxu0 0.0
  %516 = vmatpush1.msra.mxu0 0.0
  %517 = vmatprep.subr.mxu0 0.0
  %518 = vmatpush1.msra.mxu0 0.0
  %519 = vmatprep.subr.mxu0 0.0
  %520 = vmatpush1.msra.mxu0 0.0
  %521 = vmatprep.subr.mxu0 0.0
  %522 = vmatpush1.msra.mxu0 0.0
  %523 = vmatprep.subr.mxu0 0.0
  %524 = vmatpush1.msra.mxu0 0.0
  %525 = vmatprep.subr.mxu0 0.0
  %526 = vmatpush1.msra.mxu0 0.0
  %527 = vmatprep.subr.mxu0 0.0
  %528 = vmatpush1.msra.mxu0 0.0
  %529 = vmatprep.subr.mxu0 0.0
  %530 = vmatpush1.msra.mxu0 0.0
  %531 = vmatprep.subr.mxu0 0.0
  %532 = vmatpush1.msra.mxu0 0.0
  %533 = vmatprep.subr.mxu0 0.0
  %534 = vmatpush1.msra.mxu0 0.0
  %535 = vmatprep.mubr.f32.mxu0 0.0
  %536 = vmatmul.mubr.f32.gmra.mrb[0].mxu0 %v348
  %v537 = vpop.f32.mrb[0].mxu0
  %v538 = vadd.f32 0.0, %v537
  %v539 = vpop.f32.mrb[0].mxu0
  %540 = vdwg.mxu0
  %v541 = vadd.f32 %v470, %v538
  %v542 = vxor.u32 %v541, 2147483648
  %v543 = vmul.f32 %v542, 1.442695
  %v544 = vpow.pop %v543
  %v545 = vadd.f32 %v544, 1.0
  %v546 = vrcp.pop %v545
  %v547 = vmul.f32 1.0, %v546
  %v548 = vtanh.pop %v541
  %v549 = vmul.f32 %v547, 0.0
  %551 = vrot.lane.b32.xlu0 %v548, 64
  %v552 = vpop.permute.xlu0 %551
  %v554 = vmul.f32 %v547, %v552
  %556 = vrot.lane.b32.xlu0 %v554, 32
  %v557 = vpop.permute.xlu0 %556
  %v559 = vadd.f32 %v549, %v557
  %v560 = vtanh.pop %v559
  %562 = vrot.lane.b32.xlu0 %v560, 64
  %v563 = vpop.permute.xlu0 %562
  %v565 = vmul.f32 %v547, %v563
  %567 = vset.pattern.permute.xlu0 0
  %568 = vperm.xlu0 %567, %v469
  %v569 = vpop.permute.xlu0 %568
  %v571 = vmul.f32 %v569, %v559
  %v572 = vsub.f32 1.0, %v469
  %574 = vset.pattern.permute.xlu0 0
  %575 = vperm.xlu0 %574, %v572
  %v576 = vpop.permute.xlu0 %575
  %v578 = vmul.f32 %v576, 0.0
  %v579 = vadd.f32 %v571, %v578
  %v580 = vmul.f32 %v569, %v565
  %v581 = vadd.f32 %v580, %v578
  %v582 = vmul.f32 %v581, %v569
  %584 = vrot.lane.b32.xlu0 %v582, 64
  %v585 = vpop.permute.xlu0 %584
  %vm587 = vcmask 523520
  %588 = vst.msk [vmem:[#allocation2 + $0x38] sm:$0xff] %vm587, %v585
  %vm589 = vcmp.gt.s32.totalorder %v58, 1
  %v590 = vsel %vm589, 1, 0
  %v591 = vcvt.s32.f32 %v590
  %v592 = vld [vmem:[#allocation3 + $0x8] sm:$0xff]
  %594 = vrot.lane.b32.xlu0 %v460, 32
  %v595 = vpop.permute.xlu0 %594
  %v596 = vsel %vm346, %v595, 0
  %598 = vmatprep.subr.mxu0 0.0
  %599 = vmatpush1.msra.mxu0 %v68
  %600 = vmatprep.subr.mxu0 0.0
  %601 = vmatpush1.msra.mxu0 %v69
  %602 = vmatprep.subr.mxu0 0.0
  %603 = vmatpush1.msra.mxu0 %v70
  %604 = vmatprep.subr.mxu0 0.0
  %605 = vmatpush1.msra.mxu0 %v71
  %606 = vmatprep.subr.mxu0 0.0
  %607 = vmatpush1.msra.mxu0 0.0
  %608 = vmatprep.subr.mxu0 0.0
  %609 = vmatpush1.msra.mxu0 0.0
  %610 = vmatprep.subr.mxu0 0.0
  %611 = vmatpush1.msra.mxu0 0.0
  %612 = vmatprep.subr.mxu0 0.0
  %613 = vmatpush1.msra.mxu0 0.0
  %614 = vmatprep.subr.mxu0 0.0
  %615 = vmatpush1.msra.mxu0 0.0
  %616 = vmatprep.subr.mxu0 0.0
  %617 = vmatpush1.msra.mxu0 0.0
  %618 = vmatprep.subr.mxu0 0.0
  %619 = vmatpush1.msra.mxu0 0.0
  %620 = vmatprep.subr.mxu0 0.0
  %621 = vmatpush1.msra.mxu0 0.0
  %622 = vmatprep.subr.mxu0 0.0
  %623 = vmatpush1.msra.mxu0 0.0
  %624 = vmatprep.subr.mxu0 0.0
  %625 = vmatpush1.msra.mxu0 0.0
  %626 = vmatprep.subr.mxu0 0.0
  %627 = vmatpush1.msra.mxu0 0.0
  %628 = vmatprep.subr.mxu0 0.0
  %629 = vmatpush1.msra.mxu0 0.0
  %630 = vmatprep.subr.mxu0 0.0
  %631 = vmatpush1.msra.mxu0 0.0
  %632 = vmatprep.subr.mxu0 0.0
  %633 = vmatpush1.msra.mxu0 0.0
  %634 = vmatprep.subr.mxu0 0.0
  %635 = vmatpush1.msra.mxu0 0.0
  %636 = vmatprep.subr.mxu0 0.0
  %637 = vmatpush1.msra.mxu0 0.0
  %638 = vmatprep.subr.mxu0 0.0
  %639 = vmatpush1.msra.mxu0 0.0
  %640 = vmatprep.subr.mxu0 0.0
  %641 = vmatpush1.msra.mxu0 0.0
  %642 = vmatprep.subr.mxu0 0.0
  %643 = vmatpush1.msra.mxu0 0.0
  %644 = vmatprep.subr.mxu0 0.0
  %645 = vmatpush1.msra.mxu0 0.0
  %646 = vmatprep.subr.mxu0 0.0
  %647 = vmatpush1.msra.mxu0 0.0
  %648 = vmatprep.subr.mxu0 0.0
  %649 = vmatpush1.msra.mxu0 0.0
  %650 = vmatprep.subr.mxu0 0.0
  %651 = vmatpush1.msra.mxu0 0.0
  %652 = vmatprep.subr.mxu0 0.0
  %653 = vmatpush1.msra.mxu0 0.0
  %654 = vmatprep.subr.mxu0 0.0
  %655 = vmatpush1.msra.mxu0 0.0
  %656 = vmatprep.subr.mxu0 0.0
  %657 = vmatpush1.msra.mxu0 0.0
  %658 = vmatprep.subr.mxu0 0.0
  %659 = vmatpush1.msra.mxu0 0.0
  %660 = vmatprep.subr.mxu0 0.0
  %661 = vmatpush1.msra.mxu0 0.0
  %662 = vmatprep.mubr.f32.mxu0 0.0
  %663 = vmatmul.mubr.f32.gmra.mrb[0].mxu0 %v596
  %v664 = vpop.f32.mrb[0].mxu0
  %v665 = vadd.f32 0.0, %v664
  %v666 = vpop.f32.mrb[0].mxu0
  %667 = vdwg.mxu0
  %v668 = vadd.f32 %v592, %v665
  %v669 = vxor.u32 %v668, 2147483648
  %v670 = vmul.f32 %v669, 1.442695
  %v671 = vpow.pop %v670
  %v672 = vadd.f32 %v671, 1.0
  %v673 = vrcp.pop %v672
  %v674 = vmul.f32 1.0, %v673
  %v675 = vtanh.pop %v668
  %v676 = vmul.f32 %v674, %v458
  %678 = vrot.lane.b32.xlu0 %v675, 64
  %v679 = vpop.permute.xlu0 %678
  %v681 = vmul.f32 %v674, %v679
  %683 = vrot.lane.b32.xlu0 %v681, 32
  %v684 = vpop.permute.xlu0 %683
  %v686 = vadd.f32 %v676, %v684
  %v687 = vtanh.pop %v686
  %689 = vrot.lane.b32.xlu0 %v687, 64
  %v690 = vpop.permute.xlu0 %689
  %v692 = vmul.f32 %v674, %v690
  %694 = vset.pattern.permute.xlu0 0
  %695 = vperm.xlu0 %694, %v591
  %v696 = vpop.permute.xlu0 %695
  %v698 = vmul.f32 %v696, %v686
  %v699 = vsub.f32 1.0, %v591
  %701 = vset.pattern.permute.xlu0 0
  %702 = vperm.xlu0 %701, %v699
  %v703 = vpop.permute.xlu0 %702
  %v705 = vmul.f32 %v703, %v458
  %v706 = vadd.f32 %v698, %v705
  %v707 = vmul.f32 %v696, %v692
  %v708 = vmul.f32 %v703, %v460
  %v709 = vadd.f32 %v707, %v708
  %v710 = vmul.f32 %v709, %v696
  %712 = vrot.lane.b32.xlu0 %v710, 32
  %v713 = vpop.permute.xlu0 %712
  %715 = vst.msk [vmem:[#allocation2 + $0x8] sm:$0xff] %vm346, %v713
  %vm716 = vcmp.gt.s32.totalorder %v58, 6
  %v717 = vsel %vm716, 1, 0
  %v718 = vcvt.s32.f32 %v717
  %v719 = vld [vmem:[#allocation4 + $0x30] sm:$0xff]
  %721 = vrot.lane.b32.xlu0 %v581, 32
  %v722 = vpop.permute.xlu0 %721
  %v723 = vsel %vm346, %v722, 0
  %725 = vmatprep.subr.mxu0 0.0
  %726 = vmatpush1.msra.mxu0 %v218
  %727 = vmatprep.subr.mxu0 0.0
  %728 = vmatpush1.msra.mxu0 %v219
  %729 = vmatprep.subr.mxu0 0.0
  %730 = vmatpush1.msra.mxu0 %v220
  %731 = vmatprep.subr.mxu0 0.0
  %732 = vmatpush1.msra.mxu0 %v221
  %733 = vmatprep.subr.mxu0 0.0
  %734 = vmatpush1.msra.mxu0 0.0
  %735 = vmatprep.subr.mxu0 0.0
  %736 = vmatpush1.msra.mxu0 0.0
  %737 = vmatprep.subr.mxu0 0.0
  %738 = vmatpush1.msra.mxu0 0.0
  %739 = vmatprep.subr.mxu0 0.0
  %740 = vmatpush1.msra.mxu0 0.0
  %741 = vmatprep.subr.mxu0 0.0
  %742 = vmatpush1.msra.mxu0 0.0
  %743 = vmatprep.subr.mxu0 0.0
  %744 = vmatpush1.msra.mxu0 0.0
  %745 = vmatprep.subr.mxu0 0.0
  %746 = vmatpush1.msra.mxu0 0.0
  %747 = vmatprep.subr.mxu0 0.0
  %748 = vmatpush1.msra.mxu0 0.0
  %749 = vmatprep.subr.mxu0 0.0
  %750 = vmatpush1.msra.mxu0 0.0
  %751 = vmatprep.subr.mxu0 0.0
  %752 = vmatpush1.msra.mxu0 0.0
  %753 = vmatprep.subr.mxu0 0.0
  %754 = vmatpush1.msra.mxu0 0.0
  %755 = vmatprep.subr.mxu0 0.0
  %756 = vmatpush1.msra.mxu0 0.0
  %757 = vmatprep.subr.mxu0 0.0
  %758 = vmatpush1.msra.mxu0 0.0
  %759 = vmatprep.subr.mxu0 0.0
  %760 = vmatpush1.msra.mxu0 0.0
  %761 = vmatprep.subr.mxu0 0.0
  %762 = vmatpush1.msra.mxu0 0.0
  %763 = vmatprep.subr.mxu0 0.0
  %764 = vmatpush1.msra.mxu0 0.0
  %765 = vmatprep.subr.mxu0 0.0
  %766 = vmatpush1.msra.mxu0 0.0
  %767 = vmatprep.subr.mxu0 0.0
  %768 = vmatpush1.msra.mxu0 0.0
  %769 = vmatprep.subr.mxu0 0.0
  %770 = vmatpush1.msra.mxu0 0.0
  %771 = vmatprep.subr.mxu0 0.0
  %772 = vmatpush1.msra.mxu0 0.0
  %773 = vmatprep.subr.mxu0 0.0
  %774 = vmatpush1.msra.mxu0 0.0
  %775 = vmatprep.subr.mxu0 0.0
  %776 = vmatpush1.msra.mxu0 0.0
  %777 = vmatprep.subr.mxu0 0.0
  %778 = vmatpush1.msra.mxu0 0.0
  %779 = vmatprep.subr.mxu0 0.0
  %780 = vmatpush1.msra.mxu0 0.0
  %781 = vmatprep.subr.mxu0 0.0
  %782 = vmatpush1.msra.mxu0 0.0
  %783 = vmatprep.subr.mxu0 0.0
  %784 = vmatpush1.msra.mxu0 0.0
  %785 = vmatprep.subr.mxu0 0.0
  %786 = vmatpush1.msra.mxu0 0.0
  %787 = vmatprep.subr.mxu0 0.0
  %788 = vmatpush1.msra.mxu0 0.0
  %789 = vmatprep.mubr.f32.mxu0 0.0
  %790 = vmatmul.mubr.f32.gmra.mrb[0].mxu0 %v723
  %v791 = vpop.f32.mrb[0].mxu0
  %v792 = vadd.f32 0.0, %v791
  %v793 = vpop.f32.mrb[0].mxu0
  %794 = vdwg.mxu0
  %v795 = vadd.f32 %v719, %v792
  %v796 = vxor.u32 %v795, 2147483648
  %v797 = vmul.f32 %v796, 1.442695
  %v798 = vpow.pop %v797
  %v799 = vadd.f32 %v798, 1.0
  %v800 = vrcp.pop %v799
  %v801 = vmul.f32 1.0, %v800
  %v802 = vtanh.pop %v795
  %v803 = vmul.f32 %v801, %v579
  %805 = vrot.lane.b32.xlu0 %v802, 64
  %v806 = vpop.permute.xlu0 %805
  %v808 = vmul.f32 %v801, %v806
  %810 = vrot.lane.b32.xlu0 %v808, 32
  %v811 = vpop.permute.xlu0 %810
  %v813 = vadd.f32 %v803, %v811
  %v814 = vtanh.pop %v813
  %816 = vrot.lane.b32.xlu0 %v814, 64
  %v817 = vpop.permute.xlu0 %816
  %v819 = vmul.f32 %v801, %v817
  %821 = vset.pattern.permute.xlu0 0
  %822 = vperm.xlu0 %821, %v718
  %v823 = vpop.permute.xlu0 %822
  %v825 = vmul.f32 %v823, %v813
  %v826 = vsub.f32 1.0, %v718
  %828 = vset.pattern.permute.xlu0 0
  %829 = vperm.xlu0 %828, %v826
  %v830 = vpop.permute.xlu0 %829
  %v832 = vmul.f32 %v830, %v579
  %v833 = vadd.f32 %v825, %v832
  %v834 = vmul.f32 %v823, %v819
  %v835 = vmul.f32 %v830, %v581
  %v836 = vadd.f32 %v834, %v835
  %v837 = vmul.f32 %v836, %v823
  %839 = vrot.lane.b32.xlu0 %v837, 64
  %v840 = vpop.permute.xlu0 %839
  %842 = vst.msk [vmem:[#allocation2 + $0x30] sm:$0xff] %vm587, %v840
  %vm843 = vcmp.gt.s32.totalorder %v58, 2
  %v844 = vsel %vm843, 1, 0
  %v845 = vcvt.s32.f32 %v844
  %v846 = vld [vmem:[#allocation3 + $0x10] sm:$0xff]
  %848 = vrot.lane.b32.xlu0 %v709, 32
  %v849 = vpop.permute.xlu0 %848
  %v850 = vsel %vm346, %v849, 0
  %852 = vmatprep.subr.mxu0 0.0
  %853 = vmatpush1.msra.mxu0 %v68
  %854 = vmatprep.subr.mxu0 0.0
  %855 = vmatpush1.msra.mxu0 %v69
  %856 = vmatprep.subr.mxu0 0.0
  %857 = vmatpush1.msra.mxu0 %v70
  %858 = vmatprep.subr.mxu0 0.0
  %859 = vmatpush1.msra.mxu0 %v71
  %860 = vmatprep.subr.mxu0 0.0
  %861 = vmatpush1.msra.mxu0 0.0
  %862 = vmatprep.subr.mxu0 0.0
  %863 = vmatpush1.msra.mxu0 0.0
  %864 = vmatprep.subr.mxu0 0.0
  %865 = vmatpush1.msra.mxu0 0.0
  %866 = vmatprep.subr.mxu0 0.0
  %867 = vmatpush1.msra.mxu0 0.0
  %868 = vmatprep.subr.mxu0 0.0
  %869 = vmatpush1.msra.mxu0 0.0
  %870 = vmatprep.subr.mxu0 0.0
  %871 = vmatpush1.msra.mxu0 0.0
  %872 = vmatprep.subr.mxu0 0.0
  %873 = vmatpush1.msra.mxu0 0.0
  %874 = vmatprep.subr.mxu0 0.0
  %875 = vmatpush1.msra.mxu0 0.0
  %876 = vmatprep.subr.mxu0 0.0
  %877 = vmatpush1.msra.mxu0 0.0
  %878 = vmatprep.subr.mxu0 0.0
  %879 = vmatpush1.msra.mxu0 0.0
  %880 = vmatprep.subr.mxu0 0.0
  %881 = vmatpush1.msra.mxu0 0.0
  %882 = vmatprep.subr.mxu0 0.0
  %883 = vmatpush1.msra.mxu0 0.0
  %884 = vmatprep.subr.mxu0 0.0
  %885 = vmatpush1.msra.mxu0 0.0
  %886 = vmatprep.subr.mxu0 0.0
  %887 = vmatpush1.msra.mxu0 0.0
  %888 = vmatprep.subr.mxu0 0.0
  %889 = vmatpush1.msra.mxu0 0.0
  %890 = vmatprep.subr.mxu0 0.0
  %891 = vmatpush1.msra.mxu0 0.0
  %892 = vmatprep.subr.mxu0 0.0
  %893 = vmatpush1.msra.mxu0 0.0
  %894 = vmatprep.subr.mxu0 0.0
  %895 = vmatpush1.msra.mxu0 0.0
  %896 = vmatprep.subr.mxu0 0.0
  %897 = vmatpush1.msra.mxu0 0.0
  %898 = vmatprep.subr.mxu0 0.0
  %899 = vmatpush1.msra.mxu0 0.0
  %900 = vmatprep.subr.mxu0 0.0
  %901 = vmatpush1.msra.mxu0 0.0
  %902 = vmatprep.subr.mxu0 0.0
  %903 = vmatpush1.msra.mxu0 0.0
  %904 = vmatprep.subr.mxu0 0.0
  %905 = vmatpush1.msra.mxu0 0.0
  %906 = vmatprep.subr.mxu0 0.0
  %907 = vmatpush1.msra.mxu0 0.0
  %908 = vmatprep.subr.mxu0 0.0
  %909 = vmatpush1.msra.mxu0 0.0
  %910 = vmatprep.subr.mxu0 0.0
  %911 = vmatpush1.msra.mxu0 0.0
  %912 = vmatprep.subr.mxu0 0.0
  %913 = vmatpush1.msra.mxu0 0.0
  %914 = vmatprep.subr.mxu0 0.0
  %915 = vmatpush1.msra.mxu0 0.0
  %916 = vmatprep.mubr.f32.mxu0 0.0
  %917 = vmatmul.mubr.f32.gmra.mrb[0].mxu0 %v850
  %v918 = vpop.f32.mrb[0].mxu0
  %v919 = vadd.f32 0.0, %v918
  %v920 = vpop.f32.mrb[0].mxu0
  %921 = vdwg.mxu0
  %v922 = vadd.f32 %v846, %v919
  %v923 = vxor.u32 %v922, 2147483648
  %v924 = vmul.f32 %v923, 1.442695
  %v925 = vpow.pop %v924
  %v926 = vadd.f32 %v925, 1.0
  %v927 = vrcp.pop %v926
  %v928 = vmul.f32 1.0, %v927
  %v929 = vtanh.pop %v922
  %v930 = vmul.f32 %v928, %v706
  %932 = vrot.lane.b32.xlu0 %v929, 64
  %v933 = vpop.permute.xlu0 %932
  %v935 = vmul.f32 %v928, %v933
  %937 = vrot.lane.b32.xlu0 %v935, 32
  %v938 = vpop.permute.xlu0 %937
  %v940 = vadd.f32 %v930, %v938
  %v941 = vtanh.pop %v940
  %943 = vrot.lane.b32.xlu0 %v941, 64
  %v944 = vpop.permute.xlu0 %943
  %v946 = vmul.f32 %v928, %v944
  %948 = vset.pattern.permute.xlu0 0
  %949 = vperm.xlu0 %948, %v845
  %v950 = vpop.permute.xlu0 %949
  %v952 = vmul.f32 %v950, %v940
  %v953 = vsub.f32 1.0, %v845
  %955 = vset.pattern.permute.xlu0 0
  %956 = vperm.xlu0 %955, %v953
  %v957 = vpop.permute.xlu0 %956
  %v959 = vmul.f32 %v957, %v706
  %v960 = vadd.f32 %v952, %v959
  %v961 = vmul.f32 %v950, %v946
  %v962 = vmul.f32 %v957, %v709
  %v963 = vadd.f32 %v961, %v962
  %v964 = vmul.f32 %v963, %v950
  %966 = vrot.lane.b32.xlu0 %v964, 32
  %v967 = vpop.permute.xlu0 %966
  %969 = vst.msk [vmem:[#allocation2 + $0x10] sm:$0xff] %vm346, %v967
  %vm970 = vcmp.gt.s32.totalorder %v58, 5
  %v971 = vsel %vm970, 1, 0
  %v972 = vcvt.s32.f32 %v971
  %v973 = vld [vmem:[#allocation4 + $0x28] sm:$0xff]
  %975 = vrot.lane.b32.xlu0 %v836, 32
  %v976 = vpop.permute.xlu0 %975
  %v977 = vsel %vm346, %v976, 0
  %979 = vmatprep.subr.mxu0 0.0
  %980 = vmatpush1.msra.mxu0 %v218
  %981 = vmatprep.subr.mxu0 0.0
  %982 = vmatpush1.msra.mxu0 %v219
  %983 = vmatprep.subr.mxu0 0.0
  %984 = vmatpush1.msra.mxu0 %v220
  %985 = vmatprep.subr.mxu0 0.0
  %986 = vmatpush1.msra.mxu0 %v221
  %987 = vmatprep.subr.mxu0 0.0
  %988 = vmatpush1.msra.mxu0 0.0
  %989 = vmatprep.subr.mxu0 0.0
  %990 = vmatpush1.msra.mxu0 0.0
  %991 = vmatprep.subr.mxu0 0.0
  %992 = vmatpush1.msra.mxu0 0.0
  %993 = vmatprep.subr.mxu0 0.0
  %994 = vmatpush1.msra.mxu0 0.0
  %995 = vmatprep.subr.mxu0 0.0
  %996 = vmatpush1.msra.mxu0 0.0
  %997 = vmatprep.subr.mxu0 0.0
  %998 = vmatpush1.msra.mxu0 0.0
  %999 = vmatprep.subr.mxu0 0.0
  %1000 = vmatpush1.msra.mxu0 0.0
  %1001 = vmatprep.subr.mxu0 0.0
  %1002 = vmatpush1.msra.mxu0 0.0
  %1003 = vmatprep.subr.mxu0 0.0
  %1004 = vmatpush1.msra.mxu0 0.0
  %1005 = vmatprep.subr.mxu0 0.0
  %1006 = vmatpush1.msra.mxu0 0.0
  %1007 = vmatprep.subr.mxu0 0.0
  %1008 = vmatpush1.msra.mxu0 0.0
  %1009 = vmatprep.subr.mxu0 0.0
  %1010 = vmatpush1.msra.mxu0 0.0
  %1011 = vmatprep.subr.mxu0 0.0
  %1012 = vmatpush1.msra.mxu0 0.0
  %1013 = vmatprep.subr.mxu0 0.0
  %1014 = vmatpush1.msra.mxu0 0.0
  %1015 = vmatprep.subr.mxu0 0.0
  %1016 = vmatpush1.msra.mxu0 0.0
  %1017 = vmatprep.subr.mxu0 0.0
  %1018 = vmatpush1.msra.mxu0 0.0
  %1019 = vmatprep.subr.mxu0 0.0
  %1020 = vmatpush1.msra.mxu0 0.0
  %1021 = vmatprep.subr.mxu0 0.0
  %1022 = vmatpush1.msra.mxu0 0.0
  %1023 = vmatprep.subr.mxu0 0.0
  %1024 = vmatpush1.msra.mxu0 0.0
  %1025 = vmatprep.subr.mxu0 0.0
  %1026 = vmatpush1.msra.mxu0 0.0
  %1027 = vmatprep.subr.mxu0 0.0
  %1028 = vmatpush1.msra.mxu0 0.0
  %1029 = vmatprep.subr.mxu0 0.0
  %1030 = vmatpush1.msra.mxu0 0.0
  %1031 = vmatprep.subr.mxu0 0.0
  %1032 = vmatpush1.msra.mxu0 0.0
  %1033 = vmatprep.subr.mxu0 0.0
  %1034 = vmatpush1.msra.mxu0 0.0
  %1035 = vmatprep.subr.mxu0 0.0
  %1036 = vmatpush1.msra.mxu0 0.0
  %1037 = vmatprep.subr.mxu0 0.0
  %1038 = vmatpush1.msra.mxu0 0.0
  %1039 = vmatprep.subr.mxu0 0.0
  %1040 = vmatpush1.msra.mxu0 0.0
  %1041 = vmatprep.subr.mxu0 0.0
  %1042 = vmatpush1.msra.mxu0 0.0
  %1043 = vmatprep.mubr.f32.mxu0 0.0
  %1044 = vmatmul.mubr.f32.gmra.mrb[0].mxu0 %v977
  %v1045 = vpop.f32.mrb[0].mxu0
  %v1046 = vadd.f32 0.0, %v1045
  %v1047 = vpop.f32.mrb[0].mxu0
  %1048 = vdwg.mxu0
  %v1049 = vadd.f32 %v973, %v1046
  %v1050 = vxor.u32 %v1049, 2147483648
  %v1051 = vmul.f32 %v1050, 1.442695
  %v1052 = vpow.pop %v1051
  %v1053 = vadd.f32 %v1052, 1.0
  %v1054 = vrcp.pop %v1053
  %v1055 = vmul.f32 1.0, %v1054
  %v1056 = vtanh.pop %v1049
  %v1057 = vmul.f32 %v1055, %v833
  %1059 = vrot.lane.b32.xlu0 %v1056, 64
  %v1060 = vpop.permute.xlu0 %1059
  %v1062 = vmul.f32 %v1055, %v1060
  %1064 = vrot.lane.b32.xlu0 %v1062, 32
  %v1065 = vpop.permute.xlu0 %1064
  %v1067 = vadd.f32 %v1057, %v1065
  %v1068 = vtanh.pop %v1067
  %1070 = vrot.lane.b32.xlu0 %v1068, 64
  %v1071 = vpop.permute.xlu0 %1070
  %v1073 = vmul.f32 %v1055, %v1071
  %1075 = vset.pattern.permute.xlu0 0
  %1076 = vperm.xlu0 %1075, %v972
  %v1077 = vpop.permute.xlu0 %1076
  %v1079 = vmul.f32 %v1077, %v1067
  %v1080 = vsub.f32 1.0, %v972
  %1082 = vset.pattern.permute.xlu0 0
  %1083 = vperm.xlu0 %1082, %v1080
  %v1084 = vpop.permute.xlu0 %1083
  %v1086 = vmul.f32 %v1084, %v833
  %v1087 = vadd.f32 %v1079, %v1086
  %v1088 = vmul.f32 %v1077, %v1073
  %v1089 = vmul.f32 %v1084, %v836
  %v1090 = vadd.f32 %v1088, %v1089
  %v1091 = vmul.f32 %v1090, %v1077
  %1093 = vrot.lane.b32.xlu0 %v1091, 64
  %v1094 = vpop.permute.xlu0 %1093
  %1096 = vst.msk [vmem:[#allocation2 + $0x28] sm:$0xff] %vm587, %v1094
  %vm1097 = vcmp.gt.s32.totalorder %v58, 3
  %v1098 = vsel %vm1097, 1, 0
  %v1099 = vcvt.s32.f32 %v1098
  %v1100 = vld [vmem:[#allocation3 + $0x18] sm:$0xff]
  %1102 = vrot.lane.b32.xlu0 %v963, 32
  %v1103 = vpop.permute.xlu0 %1102
  %v1104 = vsel %vm346, %v1103, 0
  %1106 = vmatprep.subr.mxu0 0.0
  %1107 = vmatpush1.msra.mxu0 %v68
  %1108 = vmatprep.subr.mxu0 0.0
  %1109 = vmatpush1.msra.mxu0 %v69
  %1110 = vmatprep.subr.mxu0 0.0
  %1111 = vmatpush1.msra.mxu0 %v70
  %1112 = vmatprep.subr.mxu0 0.0
  %1113 = vmatpush1.msra.mxu0 %v71
  %1114 = vmatprep.subr.mxu0 0.0
  %1115 = vmatpush1.msra.mxu0 0.0
  %1116 = vmatprep.subr.mxu0 0.0
  %1117 = vmatpush1.msra.mxu0 0.0
  %1118 = vmatprep.subr.mxu0 0.0
  %1119 = vmatpush1.msra.mxu0 0.0
  %1120 = vmatprep.subr.mxu0 0.0
  %1121 = vmatpush1.msra.mxu0 0.0
  %1122 = vmatprep.subr.mxu0 0.0
  %1123 = vmatpush1.msra.mxu0 0.0
  %1124 = vmatprep.subr.mxu0 0.0
  %1125 = vmatpush1.msra.mxu0 0.0
  %1126 = vmatprep.subr.mxu0 0.0
  %1127 = vmatpush1.msra.mxu0 0.0
  %1128 = vmatprep.subr.mxu0 0.0
  %1129 = vmatpush1.msra.mxu0 0.0
  %1130 = vmatprep.subr.mxu0 0.0
  %1131 = vmatpush1.msra.mxu0 0.0
  %1132 = vmatprep.subr.mxu0 0.0
  %1133 = vmatpush1.msra.mxu0 0.0
  %1134 = vmatprep.subr.mxu0 0.0
  %1135 = vmatpush1.msra.mxu0 0.0
  %1136 = vmatprep.subr.mxu0 0.0
  %1137 = vmatpush1.msra.mxu0 0.0
  %1138 = vmatprep.subr.mxu0 0.0
  %1139 = vmatpush1.msra.mxu0 0.0
  %1140 = vmatprep.subr.mxu0 0.0
  %1141 = vmatpush1.msra.mxu0 0.0
  %1142 = vmatprep.subr.mxu0 0.0
  %1143 = vmatpush1.msra.mxu0 0.0
  %1144 = vmatprep.subr.mxu0 0.0
  %1145 = vmatpush1.msra.mxu0 0.0
  %1146 = vmatprep.subr.mxu0 0.0
  %1147 = vmatpush1.msra.mxu0 0.0
  %1148 = vmatprep.subr.mxu0 0.0
  %1149 = vmatpush1.msra.mxu0 0.0
  %1150 = vmatprep.subr.mxu0 0.0
  %1151 = vmatpush1.msra.mxu0 0.0
  %1152 = vmatprep.subr.mxu0 0.0
  %1153 = vmatpush1.msra.mxu0 0.0
  %1154 = vmatprep.subr.mxu0 0.0
  %1155 = vmatpush1.msra.mxu0 0.0
  %1156 = vmatprep.subr.mxu0 0.0
  %1157 = vmatpush1.msra.mxu0 0.0
  %1158 = vmatprep.subr.mxu0 0.0
  %1159 = vmatpush1.msra.mxu0 0.0
  %1160 = vmatprep.subr.mxu0 0.0
  %1161 = vmatpush1.msra.mxu0 0.0
  %1162 = vmatprep.subr.mxu0 0.0
  %1163 = vmatpush1.msra.mxu0 0.0
  %1164 = vmatprep.subr.mxu0 0.0
  %1165 = vmatpush1.msra.mxu0 0.0
  %1166 = vmatprep.subr.mxu0 0.0
  %1167 = vmatpush1.msra.mxu0 0.0
  %1168 = vmatprep.subr.mxu0 0.0
  %1169 = vmatpush1.msra.mxu0 0.0
  %1170 = vmatprep.mubr.f32.mxu0 0.0
  %1171 = vmatmul.mubr.f32.gmra.mrb[0].mxu0 %v1104
  %v1172 = vpop.f32.mrb[0].mxu0
  %v1173 = vadd.f32 0.0, %v1172
  %v1174 = vpop.f32.mrb[0].mxu0
  %1175 = vdwg.mxu0
  %v1176 = vadd.f32 %v1100, %v1173
  %v1177 = vxor.u32 %v1176, 2147483648
  %v1178 = vmul.f32 %v1177, 1.442695
  %v1179 = vpow.pop %v1178
  %v1180 = vadd.f32 %v1179, 1.0
  %v1181 = vrcp.pop %v1180
  %v1182 = vmul.f32 1.0, %v1181
  %v1183 = vtanh.pop %v1176
  %v1184 = vmul.f32 %v1182, %v960
  %1186 = vrot.lane.b32.xlu0 %v1183, 64
  %v1187 = vpop.permute.xlu0 %1186
  %v1189 = vmul.f32 %v1182, %v1187
  %1191 = vrot.lane.b32.xlu0 %v1189, 32
  %v1192 = vpop.permute.xlu0 %1191
  %v1194 = vadd.f32 %v1184, %v1192
  %v1195 = vtanh.pop %v1194
  %1197 = vrot.lane.b32.xlu0 %v1195, 64
  %v1198 = vpop.permute.xlu0 %1197
  %v1200 = vmul.f32 %v1182, %v1198
  %1202 = vset.pattern.permute.xlu0 0
  %1203 = vperm.xlu0 %1202, %v1099
  %v1204 = vpop.permute.xlu0 %1203
  %v1206 = vmul.f32 %v1204, %v1194
  %v1207 = vsub.f32 1.0, %v1099
  %1209 = vset.pattern.permute.xlu0 0
  %1210 = vperm.xlu0 %1209, %v1207
  %v1211 = vpop.permute.xlu0 %1210
  %v1213 = vmul.f32 %v1211, %v960
  %v1214 = vadd.f32 %v1206, %v1213
  %v1215 = vmul.f32 %v1204, %v1200
  %v1216 = vmul.f32 %v1211, %v963
  %v1217 = vadd.f32 %v1215, %v1216
  %v1218 = vmul.f32 %v1217, %v1204
  %1220 = vrot.lane.b32.xlu0 %v1218, 32
  %v1221 = vpop.permute.xlu0 %1220
  %1223 = vst.msk [vmem:[#allocation2 + $0x18] sm:$0xff] %vm346, %v1221
  %vm1224 = vcmp.gt.s32.totalorder %v58, 4
  %v1225 = vsel %vm1224, 1, 0
  %v1226 = vcvt.s32.f32 %v1225
  %v1227 = vld [vmem:[#allocation4 + $0x20] sm:$0xff]
  %1229 = vrot.lane.b32.xlu0 %v1090, 32
  %v1230 = vpop.permute.xlu0 %1229
  %v1231 = vsel %vm346, %v1230, 0
  %1233 = vmatprep.subr.mxu0 0.0
  %1234 = vmatpush1.msra.mxu0 %v218
  %1235 = vmatprep.subr.mxu0 0.0
  %1236 = vmatpush1.msra.mxu0 %v219
  %1237 = vmatprep.subr.mxu0 0.0
  %1238 = vmatpush1.msra.mxu0 %v220
  %1239 = vmatprep.subr.mxu0 0.0
  %1240 = vmatpush1.msra.mxu0 %v221
  %1241 = vmatprep.subr.mxu0 0.0
  %1242 = vmatpush1.msra.mxu0 0.0
  %1243 = vmatprep.subr.mxu0 0.0
  %1244 = vmatpush1.msra.mxu0 0.0
  %1245 = vmatprep.subr.mxu0 0.0
  %1246 = vmatpush1.msra.mxu0 0.0
  %1247 = vmatprep.subr.mxu0 0.0
  %1248 = vmatpush1.msra.mxu0 0.0
  %1249 = vmatprep.subr.mxu0 0.0
  %1250 = vmatpush1.msra.mxu0 0.0
  %1251 = vmatprep.subr.mxu0 0.0
  %1252 = vmatpush1.msra.mxu0 0.0
  %1253 = vmatprep.subr.mxu0 0.0
  %1254 = vmatpush1.msra.mxu0 0.0
  %1255 = vmatprep.subr.mxu0 0.0
  %1256 = vmatpush1.msra.mxu0 0.0
  %1257 = vmatprep.subr.mxu0 0.0
  %1258 = vmatpush1.msra.mxu0 0.0
  %1259 = vmatprep.subr.mxu0 0.0
  %1260 = vmatpush1.msra.mxu0 0.0
  %1261 = vmatprep.subr.mxu0 0.0
  %1262 = vmatpush1.msra.mxu0 0.0
  %1263 = vmatprep.subr.mxu0 0.0
  %1264 = vmatpush1.msra.mxu0 0.0
  %1265 = vmatprep.subr.mxu0 0.0
  %1266 = vmatpush1.msra.mxu0 0.0
  %1267 = vmatprep.subr.mxu0 0.0
  %1268 = vmatpush1.msra.mxu0 0.0
  %1269 = vmatprep.subr.mxu0 0.0
  %1270 = vmatpush1.msra.mxu0 0.0
  %1271 = vmatprep.subr.mxu0 0.0
  %1272 = vmatpush1.msra.mxu0 0.0
  %1273 = vmatprep.subr.mxu0 0.0
  %1274 = vmatpush1.msra.mxu0 0.0
  %1275 = vmatprep.subr.mxu0 0.0
  %1276 = vmatpush1.msra.mxu0 0.0
  %1277 = vmatprep.subr.mxu0 0.0
  %1278 = vmatpush1.msra.mxu0 0.0
  %1279 = vmatprep.subr.mxu0 0.0
  %1280 = vmatpush1.msra.mxu0 0.0
  %1281 = vmatprep.subr.mxu0 0.0
  %1282 = vmatpush1.msra.mxu0 0.0
  %1283 = vmatprep.subr.mxu0 0.0
  %1284 = vmatpush1.msra.mxu0 0.0
  %1285 = vmatprep.subr.mxu0 0.0
  %1286 = vmatpush1.msra.mxu0 0.0
  %1287 = vmatprep.subr.mxu0 0.0
  %1288 = vmatpush1.msra.mxu0 0.0
  %1289 = vmatprep.subr.mxu0 0.0
  %1290 = vmatpush1.msra.mxu0 0.0
  %1291 = vmatprep.subr.mxu0 0.0
  %1292 = vmatpush1.msra.mxu0 0.0
  %1293 = vmatprep.subr.mxu0 0.0
  %1294 = vmatpush1.msra.mxu0 0.0
  %1295 = vmatprep.subr.mxu0 0.0
  %1296 = vmatpush1.msra.mxu0 0.0
  %1297 = vmatprep.mubr.f32.mxu0 0.0
  %1298 = vmatmul.mubr.f32.gmra.mrb[0].mxu0 %v1231
  %v1299 = vpop.f32.mrb[0].mxu0
  %v1300 = vadd.f32 0.0, %v1299
  %v1301 = vpop.f32.mrb[0].mxu0
  %1302 = vdwg.mxu0
  %v1303 = vadd.f32 %v1227, %v1300
  %v1304 = vxor.u32 %v1303, 2147483648
  %v1305 = vmul.f32 %v1304, 1.442695
  %v1306 = vpow.pop %v1305
  %v1307 = vadd.f32 %v1306, 1.0
  %v1308 = vrcp.pop %v1307
  %v1309 = vmul.f32 1.0, %v1308
  %v1310 = vtanh.pop %v1303
  %v1311 = vmul.f32 %v1309, %v1087
  %1313 = vrot.lane.b32.xlu0 %v1310, 64
  %v1314 = vpop.permute.xlu0 %1313
  %v1316 = vmul.f32 %v1309, %v1314
  %1318 = vrot.lane.b32.xlu0 %v1316, 32
  %v1319 = vpop.permute.xlu0 %1318
  %v1321 = vadd.f32 %v1311, %v1319
  %v1322 = vtanh.pop %v1321
  %1324 = vrot.lane.b32.xlu0 %v1322, 64
  %v1325 = vpop.permute.xlu0 %1324
  %v1327 = vmul.f32 %v1309, %v1325
  %1329 = vset.pattern.permute.xlu0 0
  %1330 = vperm.xlu0 %1329, %v1226
  %v1331 = vpop.permute.xlu0 %1330
  %v1333 = vmul.f32 %v1331, %v1321
  %v1334 = vsub.f32 1.0, %v1226
  %1336 = vset.pattern.permute.xlu0 0
  %1337 = vperm.xlu0 %1336, %v1334
  %v1338 = vpop.permute.xlu0 %1337
  %v1340 = vmul.f32 %v1338, %v1087
  %v1341 = vadd.f32 %v1333, %v1340
  %v1342 = vmul.f32 %v1331, %v1327
  %v1343 = vmul.f32 %v1338, %v1090
  %v1344 = vadd.f32 %v1342, %v1343
  %v1345 = vmul.f32 %v1344, %v1331
  %1347 = vrot.lane.b32.xlu0 %v1345, 64
  %v1348 = vpop.permute.xlu0 %1347
  %1350 = vst.msk [vmem:[#allocation2 + $0x20] sm:$0xff] %vm587, %v1348
  %v1351 = vld [vmem:[#allocation3 + $0x20] sm:$0xff]
  %1353 = vrot.lane.b32.xlu0 %v1217, 32
  %v1354 = vpop.permute.xlu0 %1353
  %v1355 = vsel %vm346, %v1354, 0
  %1357 = vmatprep.subr.mxu0 0.0
  %1358 = vmatpush1.msra.mxu0 %v68
  %1359 = vmatprep.subr.mxu0 0.0
  %1360 = vmatpush1.msra.mxu0 %v69
  %1361 = vmatprep.subr.mxu0 0.0
  %1362 = vmatpush1.msra.mxu0 %v70
  %1363 = vmatprep.subr.mxu0 0.0
  %1364 = vmatpush1.msra.mxu0 %v71
  %1365 = vmatprep.subr.mxu0 0.0
  %1366 = vmatpush1.msra.mxu0 0.0
  %1367 = vmatprep.subr.mxu0 0.0
  %1368 = vmatpush1.msra.mxu0 0.0
  %1369 = vmatprep.subr.mxu0 0.0
  %1370 = vmatpush1.msra.mxu0 0.0
  %1371 = vmatprep.subr.mxu0 0.0
  %1372 = vmatpush1.msra.mxu0 0.0
  %1373 = vmatprep.subr.mxu0 0.0
  %1374 = vmatpush1.msra.mxu0 0.0
  %1375 = vmatprep.subr.mxu0 0.0
  %1376 = vmatpush1.msra.mxu0 0.0
  %1377 = vmatprep.subr.mxu0 0.0
  %1378 = vmatpush1.msra.mxu0 0.0
  %1379 = vmatprep.subr.mxu0 0.0
  %1380 = vmatpush1.msra.mxu0 0.0
  %1381 = vmatprep.subr.mxu0 0.0
  %1382 = vmatpush1.msra.mxu0 0.0
  %1383 = vmatprep.subr.mxu0 0.0
  %1384 = vmatpush1.msra.mxu0 0.0
  %1385 = vmatprep.subr.mxu0 0.0
  %1386 = vmatpush1.msra.mxu0 0.0
  %1387 = vmatprep.subr.mxu0 0.0
  %1388 = vmatpush1.msra.mxu0 0.0
  %1389 = vmatprep.subr.mxu0 0.0
  %1390 = vmatpush1.msra.mxu0 0.0
  %1391 = vmatprep.subr.mxu0 0.0
  %1392 = vmatpush1.msra.mxu0 0.0
  %1393 = vmatprep.subr.mxu0 0.0
  %1394 = vmatpush1.msra.mxu0 0.0
  %1395 = vmatprep.subr.mxu0 0.0
  %1396 = vmatpush1.msra.mxu0 0.0
  %1397 = vmatprep.subr.mxu0 0.0
  %1398 = vmatpush1.msra.mxu0 0.0
  %1399 = vmatprep.subr.mxu0 0.0
  %1400 = vmatpush1.msra.mxu0 0.0
  %1401 = vmatprep.subr.mxu0 0.0
  %1402 = vmatpush1.msra.mxu0 0.0
  %1403 = vmatprep.subr.mxu0 0.0
  %1404 = vmatpush1.msra.mxu0 0.0
  %1405 = vmatprep.subr.mxu0 0.0
  %1406 = vmatpush1.msra.mxu0 0.0
  %1407 = vmatprep.subr.mxu0 0.0
  %1408 = vmatpush1.msra.mxu0 0.0
  %1409 = vmatprep.subr.mxu0 0.0
  %1410 = vmatpush1.msra.mxu0 0.0
  %1411 = vmatprep.subr.mxu0 0.0
  %1412 = vmatpush1.msra.mxu0 0.0
  %1413 = vmatprep.subr.mxu0 0.0
  %1414 = vmatpush1.msra.mxu0 0.0
  %1415 = vmatprep.subr.mxu0 0.0
  %1416 = vmatpush1.msra.mxu0 0.0
  %1417 = vmatprep.subr.mxu0 0.0
  %1418 = vmatpush1.msra.mxu0 0.0
  %1419 = vmatprep.subr.mxu0 0.0
  %1420 = vmatpush1.msra.mxu0 0.0
  %1421 = vmatprep.mubr.f32.mxu0 0.0
  %1422 = vmatmul.mubr.f32.gmra.mrb[0].mxu0 %v1355
  %v1423 = vpop.f32.mrb[0].mxu0
  %v1424 = vadd.f32 0.0, %v1423
  %v1425 = vpop.f32.mrb[0].mxu0
  %1426 = vdwg.mxu0
  %v1427 = vadd.f32 %v1351, %v1424
  %v1428 = vxor.u32 %v1427, 2147483648
  %v1429 = vmul.f32 %v1428, 1.442695
  %v1430 = vpow.pop %v1429
  %v1431 = vadd.f32 %v1430, 1.0
  %v1432 = vrcp.pop %v1431
  %v1433 = vmul.f32 1.0, %v1432
  %v1434 = vtanh.pop %v1427
  %v1435 = vmul.f32 %v1433, %v1214
  %1437 = vrot.lane.b32.xlu0 %v1434, 64
  %v1438 = vpop.permute.xlu0 %1437
  %v1440 = vmul.f32 %v1433, %v1438
  %1442 = vrot.lane.b32.xlu0 %v1440, 32
  %v1443 = vpop.permute.xlu0 %1442
  %v1445 = vadd.f32 %v1435, %v1443
  %v1446 = vtanh.pop %v1445
  %1448 = vrot.lane.b32.xlu0 %v1446, 64
  %v1449 = vpop.permute.xlu0 %1448
  %v1451 = vmul.f32 %v1433, %v1449
  %v1452 = vmul.f32 %v1331, %v1445
  %v1453 = vmul.f32 %v1338, %v1214
  %v1454 = vadd.f32 %v1452, %v1453
  %v1455 = vmul.f32 %v1331, %v1451
  %v1456 = vmul.f32 %v1338, %v1217
  %v1457 = vadd.f32 %v1455, %v1456
  %v1458 = vmul.f32 %v1457, %v1331
  %1460 = vrot.lane.b32.xlu0 %v1458, 32
  %v1461 = vpop.permute.xlu0 %1460
  %1463 = vst.msk [vmem:[#allocation2 + $0x20] sm:$0xff] %vm346, %v1461
  %v1464 = vld [vmem:[#allocation4 + $0x18] sm:$0xff]
  %1466 = vrot.lane.b32.xlu0 %v1344, 32
  %v1467 = vpop.permute.xlu0 %1466
  %v1468 = vsel %vm346, %v1467, 0
  %1470 = vmatprep.subr.mxu0 0.0
  %1471 = vmatpush1.msra.mxu0 %v218
  %1472 = vmatprep.subr.mxu0 0.0
  %1473 = vmatpush1.msra.mxu0 %v219
  %1474 = vmatprep.subr.mxu0 0.0
  %1475 = vmatpush1.msra.mxu0 %v220
  %1476 = vmatprep.subr.mxu0 0.0
  %1477 = vmatpush1.msra.mxu0 %v221
  %1478 = vmatprep.subr.mxu0 0.0
  %1479 = vmatpush1.msra.mxu0 0.0
  %1480 = vmatprep.subr.mxu0 0.0
  %1481 = vmatpush1.msra.mxu0 0.0
  %1482 = vmatprep.subr.mxu0 0.0
  %1483 = vmatpush1.msra.mxu0 0.0
  %1484 = vmatprep.subr.mxu0 0.0
  %1485 = vmatpush1.msra.mxu0 0.0
  %1486 = vmatprep.subr.mxu0 0.0
  %1487 = vmatpush1.msra.mxu0 0.0
  %1488 = vmatprep.subr.mxu0 0.0
  %1489 = vmatpush1.msra.mxu0 0.0
  %1490 = vmatprep.subr.mxu0 0.0
  %1491 = vmatpush1.msra.mxu0 0.0
  %1492 = vmatprep.subr.mxu0 0.0
  %1493 = vmatpush1.msra.mxu0 0.0
  %1494 = vmatprep.subr.mxu0 0.0
  %1495 = vmatpush1.msra.mxu0 0.0
  %1496 = vmatprep.subr.mxu0 0.0
  %1497 = vmatpush1.msra.mxu0 0.0
  %1498 = vmatprep.subr.mxu0 0.0
  %1499 = vmatpush1.msra.mxu0 0.0
  %1500 = vmatprep.subr.mxu0 0.0
  %1501 = vmatpush1.msra.mxu0 0.0
  %1502 = vmatprep.subr.mxu0 0.0
  %1503 = vmatpush1.msra.mxu0 0.0
  %1504 = vmatprep.subr.mxu0 0.0
  %1505 = vmatpush1.msra.mxu0 0.0
  %1506 = vmatprep.subr.mxu0 0.0
  %1507 = vmatpush1.msra.mxu0 0.0
  %1508 = vmatprep.subr.mxu0 0.0
  %1509 = vmatpush1.msra.mxu0 0.0
  %1510 = vmatprep.subr.mxu0 0.0
  %1511 = vmatpush1.msra.mxu0 0.0
  %1512 = vmatprep.subr.mxu0 0.0
  %1513 = vmatpush1.msra.mxu0 0.0
  %1514 = vmatprep.subr.mxu0 0.0
  %1515 = vmatpush1.msra.mxu0 0.0
  %1516 = vmatprep.subr.mxu0 0.0
  %1517 = vmatpush1.msra.mxu0 0.0
  %1518 = vmatprep.subr.mxu0 0.0
  %1519 = vmatpush1.msra.mxu0 0.0
  %1520 = vmatprep.subr.mxu0 0.0
  %1521 = vmatpush1.msra.mxu0 0.0
  %1522 = vmatprep.subr.mxu0 0.0
  %1523 = vmatpush1.msra.mxu0 0.0
  %1524 = vmatprep.subr.mxu0 0.0
  %1525 = vmatpush1.msra.mxu0 0.0
  %1526 = vmatprep.subr.mxu0 0.0
  %1527 = vmatpush1.msra.mxu0 0.0
  %1528 = vmatprep.subr.mxu0 0.0
  %1529 = vmatpush1.msra.mxu0 0.0
  %1530 = vmatprep.subr.mxu0 0.0
  %1531 = vmatpush1.msra.mxu0 0.0
  %1532 = vmatprep.subr.mxu0 0.0
  %1533 = vmatpush1.msra.mxu0 0.0
  %1534 = vmatprep.mubr.f32.mxu0 0.0
  %1535 = vmatmul.mubr.f32.gmra.mrb[0].mxu0 %v1468
  %v1536 = vpop.f32.mrb[0].mxu0
  %v1537 = vadd.f32 0.0, %v1536
  %v1538 = vpop.f32.mrb[0].mxu0
  %1539 = vdwg.mxu0
  %v1540 = vadd.f32 %v1464, %v1537
  %v1541 = vxor.u32 %v1540, 2147483648
  %v1542 = vmul.f32 %v1541, 1.442695
  %v1543 = vpow.pop %v1542
  %v1544 = vadd.f32 %v1543, 1.0
  %v1545 = vrcp.pop %v1544
  %v1546 = vmul.f32 1.0, %v1545
  %v1547 = vtanh.pop %v1540
  %v1548 = vmul.f32 %v1546, %v1341
  %1550 = vrot.lane.b32.xlu0 %v1547, 64
  %v1551 = vpop.permute.xlu0 %1550
  %v1553 = vmul.f32 %v1546, %v1551
  %1555 = vrot.lane.b32.xlu0 %v1553, 32
  %v1556 = vpop.permute.xlu0 %1555
  %v1558 = vadd.f32 %v1548, %v1556
  %v1559 = vtanh.pop %v1558
  %1561 = vrot.lane.b32.xlu0 %v1559, 64
  %v1562 = vpop.permute.xlu0 %1561
  %v1564 = vmul.f32 %v1546, %v1562
  %v1565 = vmul.f32 %v1204, %v1558
  %v1566 = vmul.f32 %v1211, %v1341
  %v1567 = vadd.f32 %v1565, %v1566
  %v1568 = vmul.f32 %v1204, %v1564
  %v1569 = vmul.f32 %v1211, %v1344
  %v1570 = vadd.f32 %v1568, %v1569
  %v1571 = vmul.f32 %v1570, %v1204
  %1573 = vrot.lane.b32.xlu0 %v1571, 64
  %v1574 = vpop.permute.xlu0 %1573
  %1576 = vst.msk [vmem:[#allocation2 + $0x18] sm:$0xff] %vm587, %v1574
  %v1577 = vld [vmem:[#allocation3 + $0x28] sm:$0xff]
  %1579 = vrot.lane.b32.xlu0 %v1457, 32
  %v1580 = vpop.permute.xlu0 %1579
  %v1581 = vsel %vm346, %v1580, 0
  %1583 = vmatprep.subr.mxu0 0.0
  %1584 = vmatpush1.msra.mxu0 %v68
  %1585 = vmatprep.subr.mxu0 0.0
  %1586 = vmatpush1.msra.mxu0 %v69
  %1587 = vmatprep.subr.mxu0 0.0
  %1588 = vmatpush1.msra.mxu0 %v70
  %1589 = vmatprep.subr.mxu0 0.0
  %1590 = vmatpush1.msra.mxu0 %v71
  %1591 = vmatprep.subr.mxu0 0.0
  %1592 = vmatpush1.msra.mxu0 0.0
  %1593 = vmatprep.subr.mxu0 0.0
  %1594 = vmatpush1.msra.mxu0 0.0
  %1595 = vmatprep.subr.mxu0 0.0
  %1596 = vmatpush1.msra.mxu0 0.0
  %1597 = vmatprep.subr.mxu0 0.0
  %1598 = vmatpush1.msra.mxu0 0.0
  %1599 = vmatprep.subr.mxu0 0.0
  %1600 = vmatpush1.msra.mxu0 0.0
  %1601 = vmatprep.subr.mxu0 0.0
  %1602 = vmatpush1.msra.mxu0 0.0
  %1603 = vmatprep.subr.mxu0 0.0
  %1604 = vmatpush1.msra.mxu0 0.0
  %1605 = vmatprep.subr.mxu0 0.0
  %1606 = vmatpush1.msra.mxu0 0.0
  %1607 = vmatprep.subr.mxu0 0.0
  %1608 = vmatpush1.msra.mxu0 0.0
  %1609 = vmatprep.subr.mxu0 0.0
  %1610 = vmatpush1.msra.mxu0 0.0
  %1611 = vmatprep.subr.mxu0 0.0
  %1612 = vmatpush1.msra.mxu0 0.0
  %1613 = vmatprep.subr.mxu0 0.0
  %1614 = vmatpush1.msra.mxu0 0.0
  %1615 = vmatprep.subr.mxu0 0.0
  %1616 = vmatpush1.msra.mxu0 0.0
  %1617 = vmatprep.subr.mxu0 0.0
  %1618 = vmatpush1.msra.mxu0 0.0
  %1619 = vmatprep.subr.mxu0 0.0
  %1620 = vmatpush1.msra.mxu0 0.0
  %1621 = vmatprep.subr.mxu0 0.0
  %1622 = vmatpush1.msra.mxu0 0.0
  %1623 = vmatprep.subr.mxu0 0.0
  %1624 = vmatpush1.msra.mxu0 0.0
  %1625 = vmatprep.subr.mxu0 0.0
  %1626 = vmatpush1.msra.mxu0 0.0
  %1627 = vmatprep.subr.mxu0 0.0
  %1628 = vmatpush1.msra.mxu0 0.0
  %1629 = vmatprep.subr.mxu0 0.0
  %1630 = vmatpush1.msra.mxu0 0.0
  %1631 = vmatprep.subr.mxu0 0.0
  %1632 = vmatpush1.msra.mxu0 0.0
  %1633 = vmatprep.subr.mxu0 0.0
  %1634 = vmatpush1.msra.mxu0 0.0
  %1635 = vmatprep.subr.mxu0 0.0
  %1636 = vmatpush1.msra.mxu0 0.0
  %1637 = vmatprep.subr.mxu0 0.0
  %1638 = vmatpush1.msra.mxu0 0.0
  %1639 = vmatprep.subr.mxu0 0.0
  %1640 = vmatpush1.msra.mxu0 0.0
  %1641 = vmatprep.subr.mxu0 0.0
  %1642 = vmatpush1.msra.mxu0 0.0
  %1643 = vmatprep.subr.mxu0 0.0
  %1644 = vmatpush1.msra.mxu0 0.0
  %1645 = vmatprep.subr.mxu0 0.0
  %1646 = vmatpush1.msra.mxu0 0.0
  %1647 = vmatprep.mubr.f32.mxu0 0.0
  %1648 = vmatmul.mubr.f32.gmra.mrb[0].mxu0 %v1581
  %v1649 = vpop.f32.mrb[0].mxu0
  %v1650 = vadd.f32 0.0, %v1649
  %v1651 = vpop.f32.mrb[0].mxu0
  %1652 = vdwg.mxu0
  %v1653 = vadd.f32 %v1577, %v1650
  %v1654 = vxor.u32 %v1653, 2147483648
  %v1655 = vmul.f32 %v1654, 1.442695
  %v1656 = vpow.pop %v1655
  %v1657 = vadd.f32 %v1656, 1.0
  %v1658 = vrcp.pop %v1657
  %v1659 = vmul.f32 1.0, %v1658
  %v1660 = vtanh.pop %v1653
  %v1661 = vmul.f32 %v1659, %v1454
  %1663 = vrot.lane.b32.xlu0 %v1660, 64
  %v1664 = vpop.permute.xlu0 %1663
  %v1666 = vmul.f32 %v1659, %v1664
  %1668 = vrot.lane.b32.xlu0 %v1666, 32
  %v1669 = vpop.permute.xlu0 %1668
  %v1671 = vadd.f32 %v1661, %v1669
  %v1672 = vtanh.pop %v1671
  %1674 = vrot.lane.b32.xlu0 %v1672, 64
  %v1675 = vpop.permute.xlu0 %1674
  %v1677 = vmul.f32 %v1659, %v1675
  %v1678 = vmul.f32 %v1077, %v1671
  %v1679 = vmul.f32 %v1084, %v1454
  %v1680 = vadd.f32 %v1678, %v1679
  %v1681 = vmul.f32 %v1077, %v1677
  %v1682 = vmul.f32 %v1084, %v1457
  %v1683 = vadd.f32 %v1681, %v1682
  %v1684 = vmul.f32 %v1683, %v1077
  %1686 = vrot.lane.b32.xlu0 %v1684, 32
  %v1687 = vpop.permute.xlu0 %1686
  %1689 = vst.msk [vmem:[#allocation2 + $0x28] sm:$0xff] %vm346, %v1687
  %v1690 = vld [vmem:[#allocation4 + $0x10] sm:$0xff]
  %1692 = vrot.lane.b32.xlu0 %v1570, 32
  %v1693 = vpop.permute.xlu0 %1692
  %v1694 = vsel %vm346, %v1693, 0
  %1696 = vmatprep.subr.mxu0 0.0
  %1697 = vmatpush1.msra.mxu0 %v218
  %1698 = vmatprep.subr.mxu0 0.0
  %1699 = vmatpush1.msra.mxu0 %v219
  %1700 = vmatprep.subr.mxu0 0.0
  %1701 = vmatpush1.msra.mxu0 %v220
  %1702 = vmatprep.subr.mxu0 0.0
  %1703 = vmatpush1.msra.mxu0 %v221
  %1704 = vmatprep.subr.mxu0 0.0
  %1705 = vmatpush1.msra.mxu0 0.0
  %1706 = vmatprep.subr.mxu0 0.0
  %1707 = vmatpush1.msra.mxu0 0.0
  %1708 = vmatprep.subr.mxu0 0.0
  %1709 = vmatpush1.msra.mxu0 0.0
  %1710 = vmatprep.subr.mxu0 0.0
  %1711 = vmatpush1.msra.mxu0 0.0
  %1712 = vmatprep.subr.mxu0 0.0
  %1713 = vmatpush1.msra.mxu0 0.0
  %1714 = vmatprep.subr.mxu0 0.0
  %1715 = vmatpush1.msra.mxu0 0.0
  %1716 = vmatprep.subr.mxu0 0.0
  %1717 = vmatpush1.msra.mxu0 0.0
  %1718 = vmatprep.subr.mxu0 0.0
  %1719 = vmatpush1.msra.mxu0 0.0
  %1720 = vmatprep.subr.mxu0 0.0
  %1721 = vmatpush1.msra.mxu0 0.0
  %1722 = vmatprep.subr.mxu0 0.0
  %1723 = vmatpush1.msra.mxu0 0.0
  %1724 = vmatprep.subr.mxu0 0.0
  %1725 = vmatpush1.msra.mxu0 0.0
  %1726 = vmatprep.subr.mxu0 0.0
  %1727 = vmatpush1.msra.mxu0 0.0
  %1728 = vmatprep.subr.mxu0 0.0
  %1729 = vmatpush1.msra.mxu0 0.0
  %1730 = vmatprep.subr.mxu0 0.0
  %1731 = vmatpush1.msra.mxu0 0.0
  %1732 = vmatprep.subr.mxu0 0.0
  %1733 = vmatpush1.msra.mxu0 0.0
  %1734 = vmatprep.subr.mxu0 0.0
  %1735 = vmatpush1.msra.mxu0 0.0
  %1736 = vmatprep.subr.mxu0 0.0
  %1737 = vmatpush1.msra.mxu0 0.0
  %1738 = vmatprep.subr.mxu0 0.0
  %1739 = vmatpush1.msra.mxu0 0.0
  %1740 = vmatprep.subr.mxu0 0.0
  %1741 = vmatpush1.msra.mxu0 0.0
  %1742 = vmatprep.subr.mxu0 0.0
  %1743 = vmatpush1.msra.mxu0 0.0
  %1744 = vmatprep.subr.mxu0 0.0
  %1745 = vmatpush1.msra.mxu0 0.0
  %1746 = vmatprep.subr.mxu0 0.0
  %1747 = vmatpush1.msra.mxu0 0.0
  %1748 = vmatprep.subr.mxu0 0.0
  %1749 = vmatpush1.msra.mxu0 0.0
  %1750 = vmatprep.subr.mxu0 0.0
  %1751 = vmatpush1.msra.mxu0 0.0
  %1752 = vmatprep.subr.mxu0 0.0
  %1753 = vmatpush1.msra.mxu0 0.0
  %1754 = vmatprep.subr.mxu0 0.0
  %1755 = vmatpush1.msra.mxu0 0.0
  %1756 = vmatprep.subr.mxu0 0.0
  %1757 = vmatpush1.msra.mxu0 0.0
  %1758 = vmatprep.subr.mxu0 0.0
  %1759 = vmatpush1.msra.mxu0 0.0
  %1760 = vmatprep.mubr.f32.mxu0 0.0
  %1761 = vmatmul.mubr.f32.gmra.mrb[0].mxu0 %v1694
  %v1762 = vpop.f32.mrb[0].mxu0
  %v1763 = vadd.f32 0.0, %v1762
  %v1764 = vpop.f32.mrb[0].mxu0
  %1765 = vdwg.mxu0
  %v1766 = vadd.f32 %v1690, %v1763
  %v1767 = vxor.u32 %v1766, 2147483648
  %v1768 = vmul.f32 %v1767, 1.442695
  %v1769 = vpow.pop %v1768
  %v1770 = vadd.f32 %v1769, 1.0
  %v1771 = vrcp.pop %v1770
  %v1772 = vmul.f32 1.0, %v1771
  %v1773 = vtanh.pop %v1766
  %v1774 = vmul.f32 %v1772, %v1567
  %1776 = vrot.lane.b32.xlu0 %v1773, 64
  %v1777 = vpop.permute.xlu0 %1776
  %v1779 = vmul.f32 %v1772, %v1777
  %1781 = vrot.lane.b32.xlu0 %v1779, 32
  %v1782 = vpop.permute.xlu0 %1781
  %v1784 = vadd.f32 %v1774, %v1782
  %v1785 = vtanh.pop %v1784
  %1787 = vrot.lane.b32.xlu0 %v1785, 64
  %v1788 = vpop.permute.xlu0 %1787
  %v1790 = vmul.f32 %v1772, %v1788
  %v1791 = vmul.f32 %v950, %v1784
  %v1792 = vmul.f32 %v957, %v1567
  %v1793 = vadd.f32 %v1791, %v1792
  %v1794 = vmul.f32 %v950, %v1790
  %v1795 = vmul.f32 %v957, %v1570
  %v1796 = vadd.f32 %v1794, %v1795
  %v1797 = vmul.f32 %v1796, %v950
  %1799 = vrot.lane.b32.xlu0 %v1797, 64
  %v1800 = vpop.permute.xlu0 %1799
  %1802 = vst.msk [vmem:[#allocation2 + $0x10] sm:$0xff] %vm587, %v1800
  %v1803 = vld [vmem:[#allocation3 + $0x30] sm:$0xff]
  %1805 = vrot.lane.b32.xlu0 %v1683, 32
  %v1806 = vpop.permute.xlu0 %1805
  %v1807 = vsel %vm346, %v1806, 0
  %1809 = vmatprep.subr.mxu0 0.0
  %1810 = vmatpush1.msra.mxu0 %v68
  %1811 = vmatprep.subr.mxu0 0.0
  %1812 = vmatpush1.msra.mxu0 %v69
  %1813 = vmatprep.subr.mxu0 0.0
  %1814 = vmatpush1.msra.mxu0 %v70
  %1815 = vmatprep.subr.mxu0 0.0
  %1816 = vmatpush1.msra.mxu0 %v71
  %1817 = vmatprep.subr.mxu0 0.0
  %1818 = vmatpush1.msra.mxu0 0.0
  %1819 = vmatprep.subr.mxu0 0.0
  %1820 = vmatpush1.msra.mxu0 0.0
  %1821 = vmatprep.subr.mxu0 0.0
  %1822 = vmatpush1.msra.mxu0 0.0
  %1823 = vmatprep.subr.mxu0 0.0
  %1824 = vmatpush1.msra.mxu0 0.0
  %1825 = vmatprep.subr.mxu0 0.0
  %1826 = vmatpush1.msra.mxu0 0.0
  %1827 = vmatprep.subr.mxu0 0.0
  %1828 = vmatpush1.msra.mxu0 0.0
  %1829 = vmatprep.subr.mxu0 0.0
  %1830 = vmatpush1.msra.mxu0 0.0
  %1831 = vmatprep.subr.mxu0 0.0
  %1832 = vmatpush1.msra.mxu0 0.0
  %1833 = vmatprep.subr.mxu0 0.0
  %1834 = vmatpush1.msra.mxu0 0.0
  %1835 = vmatprep.subr.mxu0 0.0
  %1836 = vmatpush1.msra.mxu0 0.0
  %1837 = vmatprep.subr.mxu0 0.0
  %1838 = vmatpush1.msra.mxu0 0.0
  %1839 = vmatprep.subr.mxu0 0.0
  %1840 = vmatpush1.msra.mxu0 0.0
  %1841 = vmatprep.subr.mxu0 0.0
  %1842 = vmatpush1.msra.mxu0 0.0
  %1843 = vmatprep.subr.mxu0 0.0
  %1844 = vmatpush1.msra.mxu0 0.0
  %1845 = vmatprep.subr.mxu0 0.0
  %1846 = vmatpush1.msra.mxu0 0.0
  %1847 = vmatprep.subr.mxu0 0.0
  %1848 = vmatpush1.msra.mxu0 0.0
  %1849 = vmatprep.subr.mxu0 0.0
  %1850 = vmatpush1.msra.mxu0 0.0
  %1851 = vmatprep.subr.mxu0 0.0
  %1852 = vmatpush1.msra.mxu0 0.0
  %1853 = vmatprep.subr.mxu0 0.0
  %1854 = vmatpush1.msra.mxu0 0.0
  %1855 = vmatprep.subr.mxu0 0.0
  %1856 = vmatpush1.msra.mxu0 0.0
  %1857 = vmatprep.subr.mxu0 0.0
  %1858 = vmatpush1.msra.mxu0 0.0
  %1859 = vmatprep.subr.mxu0 0.0
  %1860 = vmatpush1.msra.mxu0 0.0
  %1861 = vmatprep.subr.mxu0 0.0
  %1862 = vmatpush1.msra.mxu0 0.0
  %1863 = vmatprep.subr.mxu0 0.0
  %1864 = vmatpush1.msra.mxu0 0.0
  %1865 = vmatprep.subr.mxu0 0.0
  %1866 = vmatpush1.msra.mxu0 0.0
  %1867 = vmatprep.subr.mxu0 0.0
  %1868 = vmatpush1.msra.mxu0 0.0
  %1869 = vmatprep.subr.mxu0 0.0
  %1870 = vmatpush1.msra.mxu0 0.0
  %1871 = vmatprep.subr.mxu0 0.0
  %1872 = vmatpush1.msra.mxu0 0.0
  %1873 = vmatprep.mubr.f32.mxu0 0.0
  %1874 = vmatmul.mubr.f32.gmra.mrb[0].mxu0 %v1807
  %v1875 = vpop.f32.mrb[0].mxu0
  %v1876 = vadd.f32 0.0, %v1875
  %v1877 = vpop.f32.mrb[0].mxu0
  %1878 = vdwg.mxu0
  %v1879 = vadd.f32 %v1803, %v1876
  %v1880 = vxor.u32 %v1879, 2147483648
  %v1881 = vmul.f32 %v1880, 1.442695
  %v1882 = vpow.pop %v1881
  %v1883 = vadd.f32 %v1882, 1.0
  %v1884 = vrcp.pop %v1883
  %v1885 = vmul.f32 1.0, %v1884
  %v1886 = vtanh.pop %v1879
  %v1887 = vmul.f32 %v1885, %v1680
  %1889 = vrot.lane.b32.xlu0 %v1886, 64
  %v1890 = vpop.permute.xlu0 %1889
  %v1892 = vmul.f32 %v1885, %v1890
  %1894 = vrot.lane.b32.xlu0 %v1892, 32
  %v1895 = vpop.permute.xlu0 %1894
  %v1897 = vadd.f32 %v1887, %v1895
  %v1898 = vtanh.pop %v1897
  %1900 = vrot.lane.b32.xlu0 %v1898, 64
  %v1901 = vpop.permute.xlu0 %1900
  %v1903 = vmul.f32 %v1885, %v1901
  %v1904 = vmul.f32 %v823, %v1897
  %v1905 = vmul.f32 %v830, %v1680
  %v1906 = vadd.f32 %v1904, %v1905
  %v1907 = vmul.f32 %v823, %v1903
  %v1908 = vmul.f32 %v830, %v1683
  %v1909 = vadd.f32 %v1907, %v1908
  %v1910 = vmul.f32 %v1909, %v823
  %1912 = vrot.lane.b32.xlu0 %v1910, 32
  %v1913 = vpop.permute.xlu0 %1912
  %1915 = vst.msk [vmem:[#allocation2 + $0x30] sm:$0xff] %vm346, %v1913
  %v1916 = vld [vmem:[#allocation4 + $0x8] sm:$0xff]
  %1918 = vrot.lane.b32.xlu0 %v1796, 32
  %v1919 = vpop.permute.xlu0 %1918
  %v1920 = vsel %vm346, %v1919, 0
  %1922 = vmatprep.subr.mxu0 0.0
  %1923 = vmatpush1.msra.mxu0 %v218
  %1924 = vmatprep.subr.mxu0 0.0
  %1925 = vmatpush1.msra.mxu0 %v219
  %1926 = vmatprep.subr.mxu0 0.0
  %1927 = vmatpush1.msra.mxu0 %v220
  %1928 = vmatprep.subr.mxu0 0.0
  %1929 = vmatpush1.msra.mxu0 %v221
  %1930 = vmatprep.subr.mxu0 0.0
  %1931 = vmatpush1.msra.mxu0 0.0
  %1932 = vmatprep.subr.mxu0 0.0
  %1933 = vmatpush1.msra.mxu0 0.0
  %1934 = vmatprep.subr.mxu0 0.0
  %1935 = vmatpush1.msra.mxu0 0.0
  %1936 = vmatprep.subr.mxu0 0.0
  %1937 = vmatpush1.msra.mxu0 0.0
  %1938 = vmatprep.subr.mxu0 0.0
  %1939 = vmatpush1.msra.mxu0 0.0
  %1940 = vmatprep.subr.mxu0 0.0
  %1941 = vmatpush1.msra.mxu0 0.0
  %1942 = vmatprep.subr.mxu0 0.0
  %1943 = vmatpush1.msra.mxu0 0.0
  %1944 = vmatprep.subr.mxu0 0.0
  %1945 = vmatpush1.msra.mxu0 0.0
  %1946 = vmatprep.subr.mxu0 0.0
  %1947 = vmatpush1.msra.mxu0 0.0
  %1948 = vmatprep.subr.mxu0 0.0
  %1949 = vmatpush1.msra.mxu0 0.0
  %1950 = vmatprep.subr.mxu0 0.0
  %1951 = vmatpush1.msra.mxu0 0.0
  %1952 = vmatprep.subr.mxu0 0.0
  %1953 = vmatpush1.msra.mxu0 0.0
  %1954 = vmatprep.subr.mxu0 0.0
  %1955 = vmatpush1.msra.mxu0 0.0
  %1956 = vmatprep.subr.mxu0 0.0
  %1957 = vmatpush1.msra.mxu0 0.0
  %1958 = vmatprep.subr.mxu0 0.0
  %1959 = vmatpush1.msra.mxu0 0.0
  %1960 = vmatprep.subr.mxu0 0.0
  %1961 = vmatpush1.msra.mxu0 0.0
  %1962 = vmatprep.subr.mxu0 0.0
  %1963 = vmatpush1.msra.mxu0 0.0
  %1964 = vmatprep.subr.mxu0 0.0
  %1965 = vmatpush1.msra.mxu0 0.0
  %1966 = vmatprep.subr.mxu0 0.0
  %1967 = vmatpush1.msra.mxu0 0.0
  %1968 = vmatprep.subr.mxu0 0.0
  %1969 = vmatpush1.msra.mxu0 0.0
  %1970 = vmatprep.subr.mxu0 0.0
  %1971 = vmatpush1.msra.mxu0 0.0
  %1972 = vmatprep.subr.mxu0 0.0
  %1973 = vmatpush1.msra.mxu0 0.0
  %1974 = vmatprep.subr.mxu0 0.0
  %1975 = vmatpush1.msra.mxu0 0.0
  %1976 = vmatprep.subr.mxu0 0.0
  %1977 = vmatpush1.msra.mxu0 0.0
  %1978 = vmatprep.subr.mxu0 0.0
  %1979 = vmatpush1.msra.mxu0 0.0
  %1980 = vmatprep.subr.mxu0 0.0
  %1981 = vmatpush1.msra.mxu0 0.0
  %1982 = vmatprep.subr.mxu0 0.0
  %1983 = vmatpush1.msra.mxu0 0.0
  %1984 = vmatprep.subr.mxu0 0.0
  %1985 = vmatpush1.msra.mxu0 0.0
  %1986 = vmatprep.mubr.f32.mxu0 0.0
  %1987 = vmatmul.mubr.f32.gmra.mrb[0].mxu0 %v1920
  %v1988 = vpop.f32.mrb[0].mxu0
  %v1989 = vadd.f32 0.0, %v1988
  %v1990 = vpop.f32.mrb[0].mxu0
  %1991 = vdwg.mxu0
  %v1992 = vadd.f32 %v1916, %v1989
  %v1993 = vxor.u32 %v1992, 2147483648
  %v1994 = vmul.f32 %v1993, 1.442695
  %v1995 = vpow.pop %v1994
  %v1996 = vadd.f32 %v1995, 1.0
  %v1997 = vrcp.pop %v1996
  %v1998 = vmul.f32 1.0, %v1997
  %v1999 = vtanh.pop %v1992
  %v2000 = vmul.f32 %v1998, %v1793
  %2002 = vrot.lane.b32.xlu0 %v1999, 64
  %v2003 = vpop.permute.xlu0 %2002
  %v2005 = vmul.f32 %v1998, %v2003
  %2007 = vrot.lane.b32.xlu0 %v2005, 32
  %v2008 = vpop.permute.xlu0 %2007
  %v2010 = vadd.f32 %v2000, %v2008
  %v2011 = vtanh.pop %v2010
  %2013 = vrot.lane.b32.xlu0 %v2011, 64
  %v2014 = vpop.permute.xlu0 %2013
  %v2016 = vmul.f32 %v1998, %v2014
  %v2017 = vmul.f32 %v696, %v2010
  %v2018 = vmul.f32 %v703, %v1793
  %v2019 = vadd.f32 %v2017, %v2018
  %v2020 = vmul.f32 %v696, %v2016
  %v2021 = vmul.f32 %v703, %v1796
  %v2022 = vadd.f32 %v2020, %v2021
  %v2023 = vmul.f32 %v2022, %v696
  %2025 = vrot.lane.b32.xlu0 %v2023, 64
  %v2026 = vpop.permute.xlu0 %2025
  %2028 = vst.msk [vmem:[#allocation2 + $0x8] sm:$0xff] %vm587, %v2026
  %v2029 = vld [vmem:[#allocation3 + $0x38] sm:$0xff]
  %2031 = vrot.lane.b32.xlu0 %v1909, 32
  %v2032 = vpop.permute.xlu0 %2031
  %v2033 = vsel %vm346, %v2032, 0
  %2035 = vmatprep.subr.mxu0 0.0
  %2036 = vmatpush1.msra.mxu0 %v68
  %2037 = vmatprep.subr.mxu0 0.0
  %2038 = vmatpush1.msra.mxu0 %v69
  %2039 = vmatprep.subr.mxu0 0.0
  %2040 = vmatpush1.msra.mxu0 %v70
  %2041 = vmatprep.subr.mxu0 0.0
  %2042 = vmatpush1.msra.mxu0 %v71
  %2043 = vmatprep.subr.mxu0 0.0
  %2044 = vmatpush1.msra.mxu0 0.0
  %2045 = vmatprep.subr.mxu0 0.0
  %2046 = vmatpush1.msra.mxu0 0.0
  %2047 = vmatprep.subr.mxu0 0.0
  %2048 = vmatpush1.msra.mxu0 0.0
  %2049 = vmatprep.subr.mxu0 0.0
  %2050 = vmatpush1.msra.mxu0 0.0
  %2051 = vmatprep.subr.mxu0 0.0
  %2052 = vmatpush1.msra.mxu0 0.0
  %2053 = vmatprep.subr.mxu0 0.0
  %2054 = vmatpush1.msra.mxu0 0.0
  %2055 = vmatprep.subr.mxu0 0.0
  %2056 = vmatpush1.msra.mxu0 0.0
  %2057 = vmatprep.subr.mxu0 0.0
  %2058 = vmatpush1.msra.mxu0 0.0
  %2059 = vmatprep.subr.mxu0 0.0
  %2060 = vmatpush1.msra.mxu0 0.0
  %2061 = vmatprep.subr.mxu0 0.0
  %2062 = vmatpush1.msra.mxu0 0.0
  %2063 = vmatprep.subr.mxu0 0.0
  %2064 = vmatpush1.msra.mxu0 0.0
  %2065 = vmatprep.subr.mxu0 0.0
  %2066 = vmatpush1.msra.mxu0 0.0
  %2067 = vmatprep.subr.mxu0 0.0
  %2068 = vmatpush1.msra.mxu0 0.0
  %2069 = vmatprep.subr.mxu0 0.0
  %2070 = vmatpush1.msra.mxu0 0.0
  %2071 = vmatprep.subr.mxu0 0.0
  %2072 = vmatpush1.msra.mxu0 0.0
  %2073 = vmatprep.subr.mxu0 0.0
  %2074 = vmatpush1.msra.mxu0 0.0
  %2075 = vmatprep.subr.mxu0 0.0
  %2076 = vmatpush1.msra.mxu0 0.0
  %2077 = vmatprep.subr.mxu0 0.0
  %2078 = vmatpush1.msra.mxu0 0.0
  %2079 = vmatprep.subr.mxu0 0.0
  %2080 = vmatpush1.msra.mxu0 0.0
  %2081 = vmatprep.subr.mxu0 0.0
  %2082 = vmatpush1.msra.mxu0 0.0
  %2083 = vmatprep.subr.mxu0 0.0
  %2084 = vmatpush1.msra.mxu0 0.0
  %2085 = vmatprep.subr.mxu0 0.0
  %2086 = vmatpush1.msra.mxu0 0.0
  %2087 = vmatprep.subr.mxu0 0.0
  %2088 = vmatpush1.msra.mxu0 0.0
  %2089 = vmatprep.subr.mxu0 0.0
  %2090 = vmatpush1.msra.mxu0 0.0
  %2091 = vmatprep.subr.mxu0 0.0
  %2092 = vmatpush1.msra.mxu0 0.0
  %2093 = vmatprep.subr.mxu0 0.0
  %2094 = vmatpush1.msra.mxu0 0.0
  %2095 = vmatprep.subr.mxu0 0.0
  %2096 = vmatpush1.msra.mxu0 0.0
  %2097 = vmatprep.subr.mxu0 0.0
  %2098 = vmatpush1.msra.mxu0 0.0
  %2099 = vmatprep.mubr.f32.mxu0 0.0
  %2100 = vmatmul.mubr.f32.gmra.mrb[0].mxu0 %v2033
  %v2101 = vpop.f32.mrb[0].mxu0
  %v2102 = vadd.f32 0.0, %v2101
  %v2103 = vpop.f32.mrb[0].mxu0
  %2104 = vdwg.mxu0
  %v2105 = vadd.f32 %v2029, %v2102
  %v2106 = vxor.u32 %v2105, 2147483648
  %v2107 = vmul.f32 %v2106, 1.442695
  %v2108 = vpow.pop %v2107
  %v2109 = vadd.f32 %v2108, 1.0
  %v2110 = vrcp.pop %v2109
  %v2111 = vmul.f32 1.0, %v2110
  %v2112 = vtanh.pop %v2105
  %v2113 = vmul.f32 %v2111, %v1906
  %2115 = vrot.lane.b32.xlu0 %v2112, 64
  %v2116 = vpop.permute.xlu0 %2115
  %v2118 = vmul.f32 %v2111, %v2116
  %2120 = vrot.lane.b32.xlu0 %v2118, 32
  %v2121 = vpop.permute.xlu0 %2120
  %v2123 = vadd.f32 %v2113, %v2121
  %v2124 = vtanh.pop %v2123
  %2126 = vrot.lane.b32.xlu0 %v2124, 64
  %v2127 = vpop.permute.xlu0 %2126
  %v2129 = vmul.f32 %v2111, %v2127
  %v2130 = vmul.f32 %v569, %v2129
  %v2131 = vmul.f32 %v576, %v1909
  %v2132 = vadd.f32 %v2130, %v2131
  %v2133 = vmul.f32 %v2132, %v569
  %2135 = vrot.lane.b32.xlu0 %v2133, 32
  %v2136 = vpop.permute.xlu0 %2135
  %2138 = vst.msk [vmem:[#allocation2 + $0x38] sm:$0xff] %vm346, %v2136
  %v2139 = vld [vmem:[#allocation4] sm:$0xff]
  %2141 = vrot.lane.b32.xlu0 %v2022, 32
  %v2142 = vpop.permute.xlu0 %2141
  %v2143 = vsel %vm346, %v2142, 0
  %2145 = vmatprep.subr.mxu0 0.0
  %2146 = vmatpush1.msra.mxu0 %v218
  %2147 = vmatprep.subr.mxu0 0.0
  %2148 = vmatpush1.msra.mxu0 %v219
  %2149 = vmatprep.subr.mxu0 0.0
  %2150 = vmatpush1.msra.mxu0 %v220
  %2151 = vmatprep.subr.mxu0 0.0
  %2152 = vmatpush1.msra.mxu0 %v221
  %2153 = vmatprep.subr.mxu0 0.0
  %2154 = vmatpush1.msra.mxu0 0.0
  %2155 = vmatprep.subr.mxu0 0.0
  %2156 = vmatpush1.msra.mxu0 0.0
  %2157 = vmatprep.subr.mxu0 0.0
  %2158 = vmatpush1.msra.mxu0 0.0
  %2159 = vmatprep.subr.mxu0 0.0
  %2160 = vmatpush1.msra.mxu0 0.0
  %2161 = vmatprep.subr.mxu0 0.0
  %2162 = vmatpush1.msra.mxu0 0.0
  %2163 = vmatprep.subr.mxu0 0.0
  %2164 = vmatpush1.msra.mxu0 0.0
  %2165 = vmatprep.subr.mxu0 0.0
  %2166 = vmatpush1.msra.mxu0 0.0
  %2167 = vmatprep.subr.mxu0 0.0
  %2168 = vmatpush1.msra.mxu0 0.0
  %2169 = vmatprep.subr.mxu0 0.0
  %2170 = vmatpush1.msra.mxu0 0.0
  %2171 = vmatprep.subr.mxu0 0.0
  %2172 = vmatpush1.msra.mxu0 0.0
  %2173 = vmatprep.subr.mxu0 0.0
  %2174 = vmatpush1.msra.mxu0 0.0
  %2175 = vmatprep.subr.mxu0 0.0
  %2176 = vmatpush1.msra.mxu0 0.0
  %2177 = vmatprep.subr.mxu0 0.0
  %2178 = vmatpush1.msra.mxu0 0.0
  %2179 = vmatprep.subr.mxu0 0.0
  %2180 = vmatpush1.msra.mxu0 0.0
  %2181 = vmatprep.subr.mxu0 0.0
  %2182 = vmatpush1.msra.mxu0 0.0
  %2183 = vmatprep.subr.mxu0 0.0
  %2184 = vmatpush1.msra.mxu0 0.0
  %2185 = vmatprep.subr.mxu0 0.0
  %2186 = vmatpush1.msra.mxu0 0.0
  %2187 = vmatprep.subr.mxu0 0.0
  %2188 = vmatpush1.msra.mxu0 0.0
  %2189 = vmatprep.subr.mxu0 0.0
  %2190 = vmatpush1.msra.mxu0 0.0
  %2191 = vmatprep.subr.mxu0 0.0
  %2192 = vmatpush1.msra.mxu0 0.0
  %2193 = vmatprep.subr.mxu0 0.0
  %2194 = vmatpush1.msra.mxu0 0.0
  %2195 = vmatprep.subr.mxu0 0.0
  %2196 = vmatpush1.msra.mxu0 0.0
  %2197 = vmatprep.subr.mxu0 0.0
  %2198 = vmatpush1.msra.mxu0 0.0
  %2199 = vmatprep.subr.mxu0 0.0
  %2200 = vmatpush1.msra.mxu0 0.0
  %2201 = vmatprep.subr.mxu0 0.0
  %2202 = vmatpush1.msra.mxu0 0.0
  %2203 = vmatprep.subr.mxu0 0.0
  %2204 = vmatpush1.msra.mxu0 0.0
  %2205 = vmatprep.subr.mxu0 0.0
  %2206 = vmatpush1.msra.mxu0 0.0
  %2207 = vmatprep.subr.mxu0 0.0
  %2208 = vmatpush1.msra.mxu0 0.0
  %2209 = vmatprep.mubr.f32.mxu0 0.0
  %2210 = vmatmul.mubr.f32.gmra.mrb[0].mxu0 %v2143
  %v2211 = vpop.f32.mrb[0].mxu0
  %v2212 = vadd.f32 0.0, %v2211
  %v2213 = vpop.f32.mrb[0].mxu0
  %2214 = vdwg.mxu0
  %v2215 = vadd.f32 %v2139, %v2212
  %v2216 = vxor.u32 %v2215, 2147483648
  %v2217 = vmul.f32 %v2216, 1.442695
  %v2218 = vpow.pop %v2217
  %v2219 = vadd.f32 %v2218, 1.0
  %v2220 = vrcp.pop %v2219
  %v2221 = vmul.f32 1.0, %v2220
  %v2222 = vtanh.pop %v2215
  %v2223 = vmul.f32 %v2221, %v2019
  %2225 = vrot.lane.b32.xlu0 %v2222, 64
  %v2226 = vpop.permute.xlu0 %2225
  %v2228 = vmul.f32 %v2221, %v2226
  %2230 = vrot.lane.b32.xlu0 %v2228, 32
  %v2231 = vpop.permute.xlu0 %2230
  %v2233 = vadd.f32 %v2223, %v2231
  %v2234 = vtanh.pop %v2233
  %2236 = vrot.lane.b32.xlu0 %v2234, 64
  %v2237 = vpop.permute.xlu0 %2236
  %v2239 = vmul.f32 %v2221, %v2237
  %v2240 = vmul.f32 %v448, %v2239
  %v2241 = vmul.f32 %v455, %v2022
  %v2242 = vadd.f32 %v2240, %v2241
  %v2243 = vmul.f32 %v2242, %v448
  %2245 = vrot.lane.b32.xlu0 %v2243, 64
  %v2246 = vpop.permute.xlu0 %2245
  %2248 = vst.msk [vmem:[#allocation2] sm:$0xff] %vm587, %v2246
  %v2249 = vld [vmem:[#allocation2] sm:$0xff]
  %v2250 = vld [vmem:[#allocation2 + $0x8] sm:$0xff]
  %v2251 = vld [vmem:[#allocation2 + $0x10] sm:$0xff]
  %v2252 = vld [vmem:[#allocation2 + $0x18] sm:$0xff]
  %v2253 = vld [vmem:[#allocation2 + $0x20] sm:$0xff]
  %v2254 = vld [vmem:[#allocation2 + $0x28] sm:$0xff]
  %v2255 = vld [vmem:[#allocation2 + $0x30] sm:$0xff]
  %v2256 = vld [vmem:[#allocation2 + $0x38] sm:$0xff]
  %v2257 = vld [vmem:[%s9] sm:$0xff]
  %v2258 = vld [vmem:[%s9 + $0x8] sm:$0xff]
  %v2259 = vld [vmem:[%s9 + $0x10] sm:$0xff]
  %v2260 = vld [vmem:[%s9 + $0x18] sm:$0xff]
  %v2261 = vld [vmem:[%s9 + $0x20] sm:$0xff]
  %v2262 = vld [vmem:[%s9 + $0x28] sm:$0xff]
  %v2263 = vld [vmem:[%s9 + $0x30] sm:$0xff]
  %v2264 = vld [vmem:[%s9 + $0x38] sm:$0xff]
  %v2265 = vld [vmem:[%s10] sm:$0xff]
  %v2266 = vld [vmem:[%s10 + $0x8] sm:$0xff]
  %v2267 = vld [vmem:[%s10 + $0x10] sm:$0xff]
  %v2268 = vld [vmem:[%s10 + $0x18] sm:$0xff]
  %v2269 = vld [vmem:[%s11] sm:$0x1]
  %v2271 = vlaneseq
  %v2272 = vshrl.u32 %v2271, 7
  %v2273 = vsub.s32 0, %v2272
  %v2274 = vrot.slane %v2269, %v2273
  %vm2276 = vcmask 523264
  %v2278 = vsel %vm2276, %v2249, 0
  %v2281 = vsel %vm2276, %v2250, 0
  %v2284 = vsel %vm2276, %v2251, 0
  %v2287 = vsel %vm2276, %v2252, 0
  %v2290 = vsel %vm2276, %v2253, 0
  %v2293 = vsel %vm2276, %v2254, 0
  %v2296 = vsel %vm2276, %v2255, 0
  %v2299 = vsel %vm2276, %v2256, 0
  %2301 = vmatprep.subr.mxu0 0.0
  %2302 = vmatpush1.msra.mxu0 %v2257
  %2303 = vmatprep.subr.mxu0 0.0
  %2304 = vmatpush1.msra.mxu0 %v2258
  %2305 = vmatprep.subr.mxu0 0.0
  %2306 = vmatpush1.msra.mxu0 %v2259
  %2307 = vmatprep.subr.mxu0 0.0
  %2308 = vmatpush1.msra.mxu0 %v2260
  %2309 = vmatprep.subr.mxu0 0.0
  %2310 = vmatpush1.msra.mxu0 %v2261
  %2311 = vmatprep.subr.mxu0 0.0
  %2312 = vmatpush1.msra.mxu0 %v2262
  %2313 = vmatprep.subr.mxu0 0.0
  %2314 = vmatpush1.msra.mxu0 %v2263
  %2315 = vmatprep.subr.mxu0 0.0
  %2316 = vmatpush1.msra.mxu0 %v2264
  %2317 = vmatprep.subr.mxu0 0.0
  %2318 = vmatpush1.msra.mxu0 0.0
  %2319 = vmatprep.subr.mxu0 0.0
  %2320 = vmatpush1.msra.mxu0 0.0
  %2321 = vmatprep.subr.mxu0 0.0
  %2322 = vmatpush1.msra.mxu0 0.0
  %2323 = vmatprep.subr.mxu0 0.0
  %2324 = vmatpush1.msra.mxu0 0.0
  %2325 = vmatprep.subr.mxu0 0.0
  %2326 = vmatpush1.msra.mxu0 0.0
  %2327 = vmatprep.subr.mxu0 0.0
  %2328 = vmatpush1.msra.mxu0 0.0
  %2329 = vmatprep.subr.mxu0 0.0
  %2330 = vmatpush1.msra.mxu0 0.0
  %2331 = vmatprep.subr.mxu0 0.0
  %2332 = vmatpush1.msra.mxu0 0.0
  %2333 = vmatprep.subr.mxu0 0.0
  %2334 = vmatpush1.msra.mxu0 0.0
  %2335 = vmatprep.subr.mxu0 0.0
  %2336 = vmatpush1.msra.mxu0 0.0
  %2337 = vmatprep.subr.mxu0 0.0
  %2338 = vmatpush1.msra.mxu0 0.0
  %2339 = vmatprep.subr.mxu0 0.0
  %2340 = vmatpush1.msra.mxu0 0.0
  %2341 = vmatprep.subr.mxu0 0.0
  %2342 = vmatpush1.msra.mxu0 0.0
  %2343 = vmatprep.subr.mxu0 0.0
  %2344 = vmatpush1.msra.mxu0 0.0
  %2345 = vmatprep.subr.mxu0 0.0
  %2346 = vmatpush1.msra.mxu0 0.0
  %2347 = vmatprep.subr.mxu0 0.0
  %2348 = vmatpush1.msra.mxu0 0.0
  %2349 = vmatprep.subr.mxu0 0.0
  %2350 = vmatpush1.msra.mxu0 0.0
  %2351 = vmatprep.subr.mxu0 0.0
  %2352 = vmatpush1.msra.mxu0 0.0
  %2353 = vmatprep.subr.mxu0 0.0
  %2354 = vmatpush1.msra.mxu0 0.0
  %2355 = vmatprep.subr.mxu0 0.0
  %2356 = vmatpush1.msra.mxu0 0.0
  %2357 = vmatprep.subr.mxu0 0.0
  %2358 = vmatpush1.msra.mxu0 0.0
  %2359 = vmatprep.subr.mxu0 0.0
  %2360 = vmatpush1.msra.mxu0 0.0
  %2361 = vmatprep.subr.mxu0 0.0
  %2362 = vmatpush1.msra.mxu0 0.0
  %2363 = vmatprep.subr.mxu0 0.0
  %2364 = vmatpush1.msra.mxu0 0.0
  %2365 = vmatprep.mubr.f32.mxu0 0.0
  %2366 = vmatmul.mubr.f32.gmra.mrb[0].mxu0 %v2278
  %v2367 = vpop.f32.mrb[0].mxu0
  %v2368 = vadd.f32 %v2274, %v2367
  %v2369 = vpop.f32.mrb[0].mxu0
  %2370 = vmatprep.mubr.f32.mxu0 0.0
  %2371 = vmatmul.mubr.f32.gmra.mrb[0].mxu0 %v2281
  %v2372 = vpop.f32.mrb[0].mxu0
  %v2373 = vadd.f32 %v2274, %v2372
  %v2374 = vpop.f32.mrb[0].mxu0
  %2375 = vmatprep.mubr.f32.mxu0 0.0
  %2376 = vmatmul.mubr.f32.gmra.mrb[0].mxu0 %v2284
  %v2377 = vpop.f32.mrb[0].mxu0
  %v2378 = vadd.f32 %v2274, %v2377
  %v2379 = vpop.f32.mrb[0].mxu0
  %2380 = vmatprep.mubr.f32.mxu0 0.0
  %2381 = vmatmul.mubr.f32.gmra.mrb[0].mxu0 %v2287
  %v2382 = vpop.f32.mrb[0].mxu0
  %v2383 = vadd.f32 %v2274, %v2382
  %v2384 = vpop.f32.mrb[0].mxu0
  %2385 = vmatprep.mubr.f32.mxu0 0.0
  %2386 = vmatmul.mubr.f32.gmra.mrb[0].mxu0 %v2290
  %v2387 = vpop.f32.mrb[0].mxu0
  %v2388 = vadd.f32 %v2274, %v2387
  %v2389 = vpop.f32.mrb[0].mxu0
  %2390 = vmatprep.mubr.f32.mxu0 0.0
  %2391 = vmatmul.mubr.f32.gmra.mrb[0].mxu0 %v2293
  %v2392 = vpop.f32.mrb[0].mxu0
  %v2393 = vadd.f32 %v2274, %v2392
  %v2394 = vpop.f32.mrb[0].mxu0
  %2395 = vmatprep.mubr.f32.mxu0 0.0
  %2396 = vmatmul.mubr.f32.gmra.mrb[0].mxu0 %v2296
  %v2397 = vpop.f32.mrb[0].mxu0
  %v2398 = vadd.f32 %v2274, %v2397
  %v2399 = vpop.f32.mrb[0].mxu0
  %2400 = vmatprep.mubr.f32.mxu0 0.0
  %2401 = vmatmul.mubr.f32.gmra.mrb[0].mxu0 %v2299
  %v2402 = vpop.f32.mrb[0].mxu0
  %v2403 = vadd.f32 %v2274, %v2402
  %v2404 = vpop.f32.mrb[0].mxu0
  %2405 = vdwg.mxu0
  %2406 = vst [vmem:[#allocation3] sm:$0xff] %v2368
  %2407 = vst [vmem:[#allocation3 + $0x8] sm:$0xff] %v2373
  %2408 = vst [vmem:[#allocation3 + $0x10] sm:$0xff] %v2378
  %2409 = vst [vmem:[#allocation3 + $0x18] sm:$0xff] %v2383
  %2410 = vst [vmem:[#allocation3 + $0x20] sm:$0xff] %v2388
  %2411 = vst [vmem:[#allocation3 + $0x28] sm:$0xff] %v2393
  %2412 = vst [vmem:[#allocation3 + $0x30] sm:$0xff] %v2398
  %2413 = vst [vmem:[#allocation3 + $0x38] sm:$0xff] %v2403
  %v2414 = vld [vmem:[%s12] sm:$0xff]
  %v2415 = vld [vmem:[%s12 + $0x8] sm:$0xff]
  %v2416 = vld [vmem:[%s12 + $0x10] sm:$0xff]
  %v2417 = vld [vmem:[%s12 + $0x18] sm:$0xff]
  %v2418 = vld [vmem:[%s12 + $0x20] sm:$0xff]
  %v2419 = vld [vmem:[%s12 + $0x28] sm:$0xff]
  %v2420 = vld [vmem:[%s12 + $0x30] sm:$0xff]
  %v2421 = vld [vmem:[%s12 + $0x38] sm:$0xff]
  %v2422 = vld [vmem:[%s13] sm:$0xff]
  %v2423 = vld [vmem:[%s13 + $0x8] sm:$0xff]
  %v2424 = vld [vmem:[%s13 + $0x10] sm:$0xff]
  %v2425 = vld [vmem:[%s13 + $0x18] sm:$0xff]
  %v2426 = vld [vmem:[%s14] sm:$0x1]
  %v2428 = vlaneseq
  %v2429 = vshrl.u32 %v2428, 7
  %v2430 = vsub.s32 0, %v2429
  %v2431 = vrot.slane %v2426, %v2430
  %2433 = vmatprep.subr.mxu0 0.0
  %2434 = vmatpush1.msra.mxu0 %v2414
  %2435 = vmatprep.subr.mxu0 0.0
  %2436 = vmatpush1.msra.mxu0 %v2415
  %2437 = vmatprep.subr.mxu0 0.0
  %2438 = vmatpush1.msra.mxu0 %v2416
  %2439 = vmatprep.subr.mxu0 0.0
  %2440 = vmatpush1.msra.mxu0 %v2417
  %2441 = vmatprep.subr.mxu0 0.0
  %2442 = vmatpush1.msra.mxu0 %v2418
  %2443 = vmatprep.subr.mxu0 0.0
  %2444 = vmatpush1.msra.mxu0 %v2419
  %2445 = vmatprep.subr.mxu0 0.0
  %2446 = vmatpush1.msra.mxu0 %v2420
  %2447 = vmatprep.subr.mxu0 0.0
  %2448 = vmatpush1.msra.mxu0 %v2421
  %2449 = vmatprep.subr.mxu0 0.0
  %2450 = vmatpush1.msra.mxu0 0.0
  %2451 = vmatprep.subr.mxu0 0.0
  %2452 = vmatpush1.msra.mxu0 0.0
  %2453 = vmatprep.subr.mxu0 0.0
  %2454 = vmatpush1.msra.mxu0 0.0
  %2455 = vmatprep.subr.mxu0 0.0
  %2456 = vmatpush1.msra.mxu0 0.0
  %2457 = vmatprep.subr.mxu0 0.0
  %2458 = vmatpush1.msra.mxu0 0.0
  %2459 = vmatprep.subr.mxu0 0.0
  %2460 = vmatpush1.msra.mxu0 0.0
  %2461 = vmatprep.subr.mxu0 0.0
  %2462 = vmatpush1.msra.mxu0 0.0
  %2463 = vmatprep.subr.mxu0 0.0
  %2464 = vmatpush1.msra.mxu0 0.0
  %2465 = vmatprep.subr.mxu0 0.0
  %2466 = vmatpush1.msra.mxu0 0.0
  %2467 = vmatprep.subr.mxu0 0.0
  %2468 = vmatpush1.msra.mxu0 0.0
  %2469 = vmatprep.subr.mxu0 0.0
  %2470 = vmatpush1.msra.mxu0 0.0
  %2471 = vmatprep.subr.mxu0 0.0
  %2472 = vmatpush1.msra.mxu0 0.0
  %2473 = vmatprep.subr.mxu0 0.0
  %2474 = vmatpush1.msra.mxu0 0.0
  %2475 = vmatprep.subr.mxu0 0.0
  %2476 = vmatpush1.msra.mxu0 0.0
  %2477 = vmatprep.subr.mxu0 0.0
  %2478 = vmatpush1.msra.mxu0 0.0
  %2479 = vmatprep.subr.mxu0 0.0
  %2480 = vmatpush1.msra.mxu0 0.0
  %2481 = vmatprep.subr.mxu0 0.0
  %2482 = vmatpush1.msra.mxu0 0.0
  %2483 = vmatprep.subr.mxu0 0.0
  %2484 = vmatpush1.msra.mxu0 0.0
  %2485 = vmatprep.subr.mxu0 0.0
  %2486 = vmatpush1.msra.mxu0 0.0
  %2487 = vmatprep.subr.mxu0 0.0
  %2488 = vmatpush1.msra.mxu0 0.0
  %2489 = vmatprep.subr.mxu0 0.0
  %2490 = vmatpush1.msra.mxu0 0.0
  %2491 = vmatprep.subr.mxu0 0.0
  %2492 = vmatpush1.msra.mxu0 0.0
  %2493 = vmatprep.subr.mxu0 0.0
  %2494 = vmatpush1.msra.mxu0 0.0
  %2495 = vmatprep.subr.mxu0 0.0
  %2496 = vmatpush1.msra.mxu0 0.0
  %2497 = vmatprep.mubr.f32.mxu0 0.0
  %2498 = vmatmul.mubr.f32.gmra.mrb[0].mxu0 %v2278
  %v2499 = vpop.f32.mrb[0].mxu0
  %v2500 = vadd.f32 %v2431, %v2499
  %v2501 = vpop.f32.mrb[0].mxu0
  %2502 = vmatprep.mubr.f32.mxu0 0.0
  %2503 = vmatmul.mubr.f32.gmra.mrb[0].mxu0 %v2281
  %v2504 = vpop.f32.mrb[0].mxu0
  %v2505 = vadd.f32 %v2431, %v2504
  %v2506 = vpop.f32.mrb[0].mxu0
  %2507 = vmatprep.mubr.f32.mxu0 0.0
  %2508 = vmatmul.mubr.f32.gmra.mrb[0].mxu0 %v2284
  %v2509 = vpop.f32.mrb[0].mxu0
  %v2510 = vadd.f32 %v2431, %v2509
  %v2511 = vpop.f32.mrb[0].mxu0
  %2512 = vmatprep.mubr.f32.mxu0 0.0
  %2513 = vmatmul.mubr.f32.gmra.mrb[0].mxu0 %v2287
  %v2514 = vpop.f32.mrb[0].mxu0
  %v2515 = vadd.f32 %v2431, %v2514
  %v2516 = vpop.f32.mrb[0].mxu0
  %2517 = vmatprep.mubr.f32.mxu0 0.0
  %2518 = vmatmul.mubr.f32.gmra.mrb[0].mxu0 %v2290
  %v2519 = vpop.f32.mrb[0].mxu0
  %v2520 = vadd.f32 %v2431, %v2519
  %v2521 = vpop.f32.mrb[0].mxu0
  %2522 = vmatprep.mubr.f32.mxu0 0.0
  %2523 = vmatmul.mubr.f32.gmra.mrb[0].mxu0 %v2293
  %v2524 = vpop.f32.mrb[0].mxu0
  %v2525 = vadd.f32 %v2431, %v2524
  %v2526 = vpop.f32.mrb[0].mxu0
  %2527 = vmatprep.mubr.f32.mxu0 0.0
  %2528 = vmatmul.mubr.f32.gmra.mrb[0].mxu0 %v2296
  %v2529 = vpop.f32.mrb[0].mxu0
  %v2530 = vadd.f32 %v2431, %v2529
  %v2531 = vpop.f32.mrb[0].mxu0
  %2532 = vmatprep.mubr.f32.mxu0 0.0
  %2533 = vmatmul.mubr.f32.gmra.mrb[0].mxu0 %v2299
  %v2534 = vpop.f32.mrb[0].mxu0
  %v2535 = vadd.f32 %v2431, %v2534
  %v2536 = vpop.f32.mrb[0].mxu0
  %2537 = vdwg.mxu0
  %2538 = vst [vmem:[#allocation4] sm:$0xff] %v2500
  %2539 = vst [vmem:[#allocation4 + $0x8] sm:$0xff] %v2505
  %2540 = vst [vmem:[#allocation4 + $0x10] sm:$0xff] %v2510
  %2541 = vst [vmem:[#allocation4 + $0x18] sm:$0xff] %v2515
  %2542 = vst [vmem:[#allocation4 + $0x20] sm:$0xff] %v2520
  %2543 = vst [vmem:[#allocation4 + $0x28] sm:$0xff] %v2525
  %2544 = vst [vmem:[#allocation4 + $0x30] sm:$0xff] %v2530
  %2545 = vst [vmem:[#allocation4 + $0x38] sm:$0xff] %v2535
  %v2546 = vld [vmem:[#allocation3] sm:$0xff]
  %2547 = vmatprep.subr.mxu0 0.0
  %2548 = vmatpush1.msra.mxu0 %v2265
  %2549 = vmatprep.subr.mxu0 0.0
  %2550 = vmatpush1.msra.mxu0 %v2266
  %2551 = vmatprep.subr.mxu0 0.0
  %2552 = vmatpush1.msra.mxu0 %v2267
  %2553 = vmatprep.subr.mxu0 0.0
  %2554 = vmatpush1.msra.mxu0 %v2268
  %2555 = vmatprep.subr.mxu0 0.0
  %2556 = vmatpush1.msra.mxu0 0.0
  %2557 = vmatprep.subr.mxu0 0.0
  %2558 = vmatpush1.msra.mxu0 0.0
  %2559 = vmatprep.subr.mxu0 0.0
  %2560 = vmatpush1.msra.mxu0 0.0
  %2561 = vmatprep.subr.mxu0 0.0
  %2562 = vmatpush1.msra.mxu0 0.0
  %2563 = vmatprep.subr.mxu0 0.0
  %2564 = vmatpush1.msra.mxu0 0.0
  %2565 = vmatprep.subr.mxu0 0.0
  %2566 = vmatpush1.msra.mxu0 0.0
  %2567 = vmatprep.subr.mxu0 0.0
  %2568 = vmatpush1.msra.mxu0 0.0
  %2569 = vmatprep.subr.mxu0 0.0
  %2570 = vmatpush1.msra.mxu0 0.0
  %2571 = vmatprep.subr.mxu0 0.0
  %2572 = vmatpush1.msra.mxu0 0.0
  %2573 = vmatprep.subr.mxu0 0.0
  %2574 = vmatpush1.msra.mxu0 0.0
  %2575 = vmatprep.subr.mxu0 0.0
  %2576 = vmatpush1.msra.mxu0 0.0
  %2577 = vmatprep.subr.mxu0 0.0
  %2578 = vmatpush1.msra.mxu0 0.0
  %2579 = vmatprep.subr.mxu0 0.0
  %2580 = vmatpush1.msra.mxu0 0.0
  %2581 = vmatprep.subr.mxu0 0.0
  %2582 = vmatpush1.msra.mxu0 0.0
  %2583 = vmatprep.subr.mxu0 0.0
  %2584 = vmatpush1.msra.mxu0 0.0
  %2585 = vmatprep.subr.mxu0 0.0
  %2586 = vmatpush1.msra.mxu0 0.0
  %2587 = vmatprep.subr.mxu0 0.0
  %2588 = vmatpush1.msra.mxu0 0.0
  %2589 = vmatprep.subr.mxu0 0.0
  %2590 = vmatpush1.msra.mxu0 0.0
  %2591 = vmatprep.subr.mxu0 0.0
  %2592 = vmatpush1.msra.mxu0 0.0
  %2593 = vmatprep.subr.mxu0 0.0
  %2594 = vmatpush1.msra.mxu0 0.0
  %2595 = vmatprep.subr.mxu0 0.0
  %2596 = vmatpush1.msra.mxu0 0.0
  %2597 = vmatprep.subr.mxu0 0.0
  %2598 = vmatpush1.msra.mxu0 0.0
  %2599 = vmatprep.subr.mxu0 0.0
  %2600 = vmatpush1.msra.mxu0 0.0
  %2601 = vmatprep.subr.mxu0 0.0
  %2602 = vmatpush1.msra.mxu0 0.0
  %2603 = vmatprep.subr.mxu0 0.0
  %2604 = vmatpush1.msra.mxu0 0.0
  %2605 = vmatprep.subr.mxu0 0.0
  %2606 = vmatpush1.msra.mxu0 0.0
  %2607 = vmatprep.subr.mxu0 0.0
  %2608 = vmatpush1.msra.mxu0 0.0
  %2609 = vmatprep.subr.mxu0 0.0
  %2610 = vmatpush1.msra.mxu0 0.0
  %2611 = vmatprep.mubr.f32.mxu0 0.0
  %2612 = vmatmul.mubr.f32.gmra.mrb[0].mxu0 %v348
  %v2613 = vpop.f32.mrb[0].mxu0
  %v2614 = vadd.f32 0.0, %v2613
  %v2615 = vpop.f32.mrb[0].mxu0
  %2616 = vdwg.mxu0
  %v2617 = vadd.f32 %v2546, %v2614
  %v2618 = vxor.u32 %v2617, 2147483648
  %v2619 = vmul.f32 %v2618, 1.442695
  %v2620 = vpow.pop %v2619
  %v2621 = vadd.f32 %v2620, 1.0
  %v2622 = vrcp.pop %v2621
  %v2623 = vmul.f32 1.0, %v2622
  %v2624 = vtanh.pop %v2617
  %v2625 = vmul.f32 %v2623, 0.0
  %2627 = vrot.lane.b32.xlu0 %v2624, 64
  %v2628 = vpop.permute.xlu0 %2627
  %v2630 = vmul.f32 %v2623, %v2628
  %2632 = vrot.lane.b32.xlu0 %v2630, 32
  %v2633 = vpop.permute.xlu0 %2632
  %v2635 = vadd.f32 %v2625, %v2633
  %v2636 = vtanh.pop %v2635
  %2638 = vrot.lane.b32.xlu0 %v2636, 64
  %v2639 = vpop.permute.xlu0 %2638
  %v2641 = vmul.f32 %v2623, %v2639
  %v2642 = vmul.f32 %v448, %v2635
  %v2643 = vadd.f32 %v2642, %v457
  %v2644 = vmul.f32 %v448, %v2641
  %v2645 = vadd.f32 %v2644, %v457
  %v2646 = vmul.f32 %v2645, %v448
  %2648 = vrot.lane.b32.xlu0 %v2646, 32
  %v2649 = vpop.permute.xlu0 %2648
  %2651 = vst.msk [vmem:[#allocation2] sm:$0xff] %vm346, %v2649
  %v2652 = vld [vmem:[#allocation4 + $0x38] sm:$0xff]
  %2653 = vmatprep.subr.mxu0 0.0
  %2654 = vmatpush1.msra.mxu0 %v2422
  %2655 = vmatprep.subr.mxu0 0.0
  %2656 = vmatpush1.msra.mxu0 %v2423
  %2657 = vmatprep.subr.mxu0 0.0
  %2658 = vmatpush1.msra.mxu0 %v2424
  %2659 = vmatprep.subr.mxu0 0.0
  %2660 = vmatpush1.msra.mxu0 %v2425
  %2661 = vmatprep.subr.mxu0 0.0
  %2662 = vmatpush1.msra.mxu0 0.0
  %2663 = vmatprep.subr.mxu0 0.0
  %2664 = vmatpush1.msra.mxu0 0.0
  %2665 = vmatprep.subr.mxu0 0.0
  %2666 = vmatpush1.msra.mxu0 0.0
  %2667 = vmatprep.subr.mxu0 0.0
  %2668 = vmatpush1.msra.mxu0 0.0
  %2669 = vmatprep.subr.mxu0 0.0
  %2670 = vmatpush1.msra.mxu0 0.0
  %2671 = vmatprep.subr.mxu0 0.0
  %2672 = vmatpush1.msra.mxu0 0.0
  %2673 = vmatprep.subr.mxu0 0.0
  %2674 = vmatpush1.msra.mxu0 0.0
  %2675 = vmatprep.subr.mxu0 0.0
  %2676 = vmatpush1.msra.mxu0 0.0
  %2677 = vmatprep.subr.mxu0 0.0
  %2678 = vmatpush1.msra.mxu0 0.0
  %2679 = vmatprep.subr.mxu0 0.0
  %2680 = vmatpush1.msra.mxu0 0.0
  %2681 = vmatprep.subr.mxu0 0.0
  %2682 = vmatpush1.msra.mxu0 0.0
  %2683 = vmatprep.subr.mxu0 0.0
  %2684 = vmatpush1.msra.mxu0 0.0
  %2685 = vmatprep.subr.mxu0 0.0
  %2686 = vmatpush1.msra.mxu0 0.0
  %2687 = vmatprep.subr.mxu0 0.0
  %2688 = vmatpush1.msra.mxu0 0.0
  %2689 = vmatprep.subr.mxu0 0.0
  %2690 = vmatpush1.msra.mxu0 0.0
  %2691 = vmatprep.subr.mxu0 0.0
  %2692 = vmatpush1.msra.mxu0 0.0
  %2693 = vmatprep.subr.mxu0 0.0
  %2694 = vmatpush1.msra.mxu0 0.0
  %2695 = vmatprep.subr.mxu0 0.0
  %2696 = vmatpush1.msra.mxu0 0.0
  %2697 = vmatprep.subr.mxu0 0.0
  %2698 = vmatpush1.msra.mxu0 0.0
  %2699 = vmatprep.subr.mxu0 0.0
  %2700 = vmatpush1.msra.mxu0 0.0
  %2701 = vmatprep.subr.mxu0 0.0
  %2702 = vmatpush1.msra.mxu0 0.0
  %2703 = vmatprep.subr.mxu0 0.0
  %2704 = vmatpush1.msra.mxu0 0.0
  %2705 = vmatprep.subr.mxu0 0.0
  %2706 = vmatpush1.msra.mxu0 0.0
  %2707 = vmatprep.subr.mxu0 0.0
  %2708 = vmatpush1.msra.mxu0 0.0
  %2709 = vmatprep.subr.mxu0 0.0
  %2710 = vmatpush1.msra.mxu0 0.0
  %2711 = vmatprep.subr.mxu0 0.0
  %2712 = vmatpush1.msra.mxu0 0.0
  %2713 = vmatprep.subr.mxu0 0.0
  %2714 = vmatpush1.msra.mxu0 0.0
  %2715 = vmatprep.subr.mxu0 0.0
  %2716 = vmatpush1.msra.mxu0 0.0
  %2717 = vmatprep.mubr.f32.mxu0 0.0
  %2718 = vmatmul.mubr.f32.gmra.mrb[0].mxu0 %v348
  %v2719 = vpop.f32.mrb[0].mxu0
  %v2720 = vadd.f32 0.0, %v2719
  %v2721 = vpop.f32.mrb[0].mxu0
  %2722 = vdwg.mxu0
  %v2723 = vadd.f32 %v2652, %v2720
  %v2724 = vxor.u32 %v2723, 2147483648
  %v2725 = vmul.f32 %v2724, 1.442695
  %v2726 = vpow.pop %v2725
  %v2727 = vadd.f32 %v2726, 1.0
  %v2728 = vrcp.pop %v2727
  %v2729 = vmul.f32 1.0, %v2728
  %v2730 = vtanh.pop %v2723
  %v2731 = vmul.f32 %v2729, 0.0
  %2733 = vrot.lane.b32.xlu0 %v2730, 64
  %v2734 = vpop.permute.xlu0 %2733
  %v2736 = vmul.f32 %v2729, %v2734
  %2738 = vrot.lane.b32.xlu0 %v2736, 32
  %v2739 = vpop.permute.xlu0 %2738
  %v2741 = vadd.f32 %v2731, %v2739
  %v2742 = vtanh.pop %v2741
  %2744 = vrot.lane.b32.xlu0 %v2742, 64
  %v2745 = vpop.permute.xlu0 %2744
  %v2747 = vmul.f32 %v2729, %v2745
  %v2748 = vmul.f32 %v569, %v2741
  %v2749 = vadd.f32 %v2748, %v578
  %v2750 = vmul.f32 %v569, %v2747
  %v2751 = vadd.f32 %v2750, %v578
  %v2752 = vmul.f32 %v2751, %v569
  %2754 = vrot.lane.b32.xlu0 %v2752, 64
  %v2755 = vpop.permute.xlu0 %2754
  %2757 = vst.msk [vmem:[#allocation2 + $0x38] sm:$0xff] %vm587, %v2755
  %v2758 = vld [vmem:[#allocation3 + $0x8] sm:$0xff]
  %2760 = vrot.lane.b32.xlu0 %v2645, 32
  %v2761 = vpop.permute.xlu0 %2760
  %v2762 = vsel %vm346, %v2761, 0
  %2764 = vmatprep.subr.mxu0 0.0
  %2765 = vmatpush1.msra.mxu0 %v2265
  %2766 = vmatprep.subr.mxu0 0.0
  %2767 = vmatpush1.msra.mxu0 %v2266
  %2768 = vmatprep.subr.mxu0 0.0
  %2769 = vmatpush1.msra.mxu0 %v2267
  %2770 = vmatprep.subr.mxu0 0.0
  %2771 = vmatpush1.msra.mxu0 %v2268
  %2772 = vmatprep.subr.mxu0 0.0
  %2773 = vmatpush1.msra.mxu0 0.0
  %2774 = vmatprep.subr.mxu0 0.0
  %2775 = vmatpush1.msra.mxu0 0.0
  %2776 = vmatprep.subr.mxu0 0.0
  %2777 = vmatpush1.msra.mxu0 0.0
  %2778 = vmatprep.subr.mxu0 0.0
  %2779 = vmatpush1.msra.mxu0 0.0
  %2780 = vmatprep.subr.mxu0 0.0
  %2781 = vmatpush1.msra.mxu0 0.0
  %2782 = vmatprep.subr.mxu0 0.0
  %2783 = vmatpush1.msra.mxu0 0.0
  %2784 = vmatprep.subr.mxu0 0.0
  %2785 = vmatpush1.msra.mxu0 0.0
  %2786 = vmatprep.subr.mxu0 0.0
  %2787 = vmatpush1.msra.mxu0 0.0
  %2788 = vmatprep.subr.mxu0 0.0
  %2789 = vmatpush1.msra.mxu0 0.0
  %2790 = vmatprep.subr.mxu0 0.0
  %2791 = vmatpush1.msra.mxu0 0.0
  %2792 = vmatprep.subr.mxu0 0.0
  %2793 = vmatpush1.msra.mxu0 0.0
  %2794 = vmatprep.subr.mxu0 0.0
  %2795 = vmatpush1.msra.mxu0 0.0
  %2796 = vmatprep.subr.mxu0 0.0
  %2797 = vmatpush1.msra.mxu0 0.0
  %2798 = vmatprep.subr.mxu0 0.0
  %2799 = vmatpush1.msra.mxu0 0.0
  %2800 = vmatprep.subr.mxu0 0.0
  %2801 = vmatpush1.msra.mxu0 0.0
  %2802 = vmatprep.subr.mxu0 0.0
  %2803 = vmatpush1.msra.mxu0 0.0
  %2804 = vmatprep.subr.mxu0 0.0
  %2805 = vmatpush1.msra.mxu0 0.0
  %2806 = vmatprep.subr.mxu0 0.0
  %2807 = vmatpush1.msra.mxu0 0.0
  %2808 = vmatprep.subr.mxu0 0.0
  %2809 = vmatpush1.msra.mxu0 0.0
  %2810 = vmatprep.subr.mxu0 0.0
  %2811 = vmatpush1.msra.mxu0 0.0
  %2812 = vmatprep.subr.mxu0 0.0
  %2813 = vmatpush1.msra.mxu0 0.0
  %2814 = vmatprep.subr.mxu0 0.0
  %2815 = vmatpush1.msra.mxu0 0.0
  %2816 = vmatprep.subr.mxu0 0.0
  %2817 = vmatpush1.msra.mxu0 0.0
  %2818 = vmatprep.subr.mxu0 0.0
  %2819 = vmatpush1.msra.mxu0 0.0
  %2820 = vmatprep.subr.mxu0 0.0
  %2821 = vmatpush1.msra.mxu0 0.0
  %2822 = vmatprep.subr.mxu0 0.0
  %2823 = vmatpush1.msra.mxu0 0.0
  %2824 = vmatprep.subr.mxu0 0.0
  %2825 = vmatpush1.msra.mxu0 0.0
  %2826 = vmatprep.subr.mxu0 0.0
  %2827 = vmatpush1.msra.mxu0 0.0
  %2828 = vmatprep.mubr.f32.mxu0 0.0
  %2829 = vmatmul.mubr.f32.gmra.mrb[0].mxu0 %v2762
  %v2830 = vpop.f32.mrb[0].mxu0
  %v2831 = vadd.f32 0.0, %v2830
  %v2832 = vpop.f32.mrb[0].mxu0
  %2833 = vdwg.mxu0
  %v2834 = vadd.f32 %v2758, %v2831
  %v2835 = vxor.u32 %v2834, 2147483648
  %v2836 = vmul.f32 %v2835, 1.442695
  %v2837 = vpow.pop %v2836
  %v2838 = vadd.f32 %v2837, 1.0
  %v2839 = vrcp.pop %v2838
  %v2840 = vmul.f32 1.0, %v2839
  %v2841 = vtanh.pop %v2834
  %v2842 = vmul.f32 %v2840, %v2643
  %2844 = vrot.lane.b32.xlu0 %v2841, 64
  %v2845 = vpop.permute.xlu0 %2844
  %v2847 = vmul.f32 %v2840, %v2845
  %2849 = vrot.lane.b32.xlu0 %v2847, 32
  %v2850 = vpop.permute.xlu0 %2849
  %v2852 = vadd.f32 %v2842, %v2850
  %v2853 = vtanh.pop %v2852
  %2855 = vrot.lane.b32.xlu0 %v2853, 64
  %v2856 = vpop.permute.xlu0 %2855
  %v2858 = vmul.f32 %v2840, %v2856
  %v2859 = vmul.f32 %v696, %v2852
  %v2860 = vmul.f32 %v703, %v2643
  %v2861 = vadd.f32 %v2859, %v2860
  %v2862 = vmul.f32 %v696, %v2858
  %v2863 = vmul.f32 %v703, %v2645
  %v2864 = vadd.f32 %v2862, %v2863
  %v2865 = vmul.f32 %v2864, %v696
  %2867 = vrot.lane.b32.xlu0 %v2865, 32
  %v2868 = vpop.permute.xlu0 %2867
  %2870 = vst.msk [vmem:[#allocation2 + $0x8] sm:$0xff] %vm346, %v2868
  %v2871 = vld [vmem:[#allocation4 + $0x30] sm:$0xff]
  %2873 = vrot.lane.b32.xlu0 %v2751, 32
  %v2874 = vpop.permute.xlu0 %2873
  %v2875 = vsel %vm346, %v2874, 0
  %2877 = vmatprep.subr.mxu0 0.0
  %2878 = vmatpush1.msra.mxu0 %v2422
  %2879 = vmatprep.subr.mxu0 0.0
  %2880 = vmatpush1.msra.mxu0 %v2423
  %2881 = vmatprep.subr.mxu0 0.0
  %2882 = vmatpush1.msra.mxu0 %v2424
  %2883 = vmatprep.subr.mxu0 0.0
  %2884 = vmatpush1.msra.mxu0 %v2425
  %2885 = vmatprep.subr.mxu0 0.0
  %2886 = vmatpush1.msra.mxu0 0.0
  %2887 = vmatprep.subr.mxu0 0.0
  %2888 = vmatpush1.msra.mxu0 0.0
  %2889 = vmatprep.subr.mxu0 0.0
  %2890 = vmatpush1.msra.mxu0 0.0
  %2891 = vmatprep.subr.mxu0 0.0
  %2892 = vmatpush1.msra.mxu0 0.0
  %2893 = vmatprep.subr.mxu0 0.0
  %2894 = vmatpush1.msra.mxu0 0.0
  %2895 = vmatprep.subr.mxu0 0.0
  %2896 = vmatpush1.msra.mxu0 0.0
  %2897 = vmatprep.subr.mxu0 0.0
  %2898 = vmatpush1.msra.mxu0 0.0
  %2899 = vmatprep.subr.mxu0 0.0
  %2900 = vmatpush1.msra.mxu0 0.0
  %2901 = vmatprep.subr.mxu0 0.0
  %2902 = vmatpush1.msra.mxu0 0.0
  %2903 = vmatprep.subr.mxu0 0.0
  %2904 = vmatpush1.msra.mxu0 0.0
  %2905 = vmatprep.subr.mxu0 0.0
  %2906 = vmatpush1.msra.mxu0 0.0
  %2907 = vmatprep.subr.mxu0 0.0
  %2908 = vmatpush1.msra.mxu0 0.0
  %2909 = vmatprep.subr.mxu0 0.0
  %2910 = vmatpush1.msra.mxu0 0.0
  %2911 = vmatprep.subr.mxu0 0.0
  %2912 = vmatpush1.msra.mxu0 0.0
  %2913 = vmatprep.subr.mxu0 0.0
  %2914 = vmatpush1.msra.mxu0 0.0
  %2915 = vmatprep.subr.mxu0 0.0
  %2916 = vmatpush1.msra.mxu0 0.0
  %2917 = vmatprep.subr.mxu0 0.0
  %2918 = vmatpush1.msra.mxu0 0.0
  %2919 = vmatprep.subr.mxu0 0.0
  %2920 = vmatpush1.msra.mxu0 0.0
  %2921 = vmatprep.subr.mxu0 0.0
  %2922 = vmatpush1.msra.mxu0 0.0
  %2923 = vmatprep.subr.mxu0 0.0
  %2924 = vmatpush1.msra.mxu0 0.0
  %2925 = vmatprep.subr.mxu0 0.0
  %2926 = vmatpush1.msra.mxu0 0.0
  %2927 = vmatprep.subr.mxu0 0.0
  %2928 = vmatpush1.msra.mxu0 0.0
  %2929 = vmatprep.subr.mxu0 0.0
  %2930 = vmatpush1.msra.mxu0 0.0
  %2931 = vmatprep.subr.mxu0 0.0
  %2932 = vmatpush1.msra.mxu0 0.0
  %2933 = vmatprep.subr.mxu0 0.0
  %2934 = vmatpush1.msra.mxu0 0.0
  %2935 = vmatprep.subr.mxu0 0.0
  %2936 = vmatpush1.msra.mxu0 0.0
  %2937 = vmatprep.subr.mxu0 0.0
  %2938 = vmatpush1.msra.mxu0 0.0
  %2939 = vmatprep.subr.mxu0 0.0
  %2940 = vmatpush1.msra.mxu0 0.0
  %2941 = vmatprep.mubr.f32.mxu0 0.0
  %2942 = vmatmul.mubr.f32.gmra.mrb[0].mxu0 %v2875
  %v2943 = vpop.f32.mrb[0].mxu0
  %v2944 = vadd.f32 0.0, %v2943
  %v2945 = vpop.f32.mrb[0].mxu0
  %2946 = vdwg.mxu0
  %v2947 = vadd.f32 %v2871, %v2944
  %v2948 = vxor.u32 %v2947, 2147483648
  %v2949 = vmul.f32 %v2948, 1.442695
  %v2950 = vpow.pop %v2949
  %v2951 = vadd.f32 %v2950, 1.0
  %v2952 = vrcp.pop %v2951
  %v2953 = vmul.f32 1.0, %v2952
  %v2954 = vtanh.pop %v2947
  %v2955 = vmul.f32 %v2953, %v2749
  %2957 = vrot.lane.b32.xlu0 %v2954, 64
  %v2958 = vpop.permute.xlu0 %2957
  %v2960 = vmul.f32 %v2953, %v2958
  %2962 = vrot.lane.b32.xlu0 %v2960, 32
  %v2963 = vpop.permute.xlu0 %2962
  %v2965 = vadd.f32 %v2955, %v2963
  %v2966 = vtanh.pop %v2965
  %2968 = vrot.lane.b32.xlu0 %v2966, 64
  %v2969 = vpop.permute.xlu0 %2968
  %v2971 = vmul.f32 %v2953, %v2969
  %v2972 = vmul.f32 %v823, %v2965
  %v2973 = vmul.f32 %v830, %v2749
  %v2974 = vadd.f32 %v2972, %v2973
  %v2975 = vmul.f32 %v823, %v2971
  %v2976 = vmul.f32 %v830, %v2751
  %v2977 = vadd.f32 %v2975, %v2976
  %v2978 = vmul.f32 %v2977, %v823
  %2980 = vrot.lane.b32.xlu0 %v2978, 64
  %v2981 = vpop.permute.xlu0 %2980
  %2983 = vst.msk [vmem:[#allocation2 + $0x30] sm:$0xff] %vm587, %v2981
  %v2984 = vld [vmem:[#allocation3 + $0x10] sm:$0xff]
  %2986 = vrot.lane.b32.xlu0 %v2864, 32
  %v2987 = vpop.permute.xlu0 %2986
  %v2988 = vsel %vm346, %v2987, 0
  %2990 = vmatprep.subr.mxu0 0.0
  %2991 = vmatpush1.msra.mxu0 %v2265
  %2992 = vmatprep.subr.mxu0 0.0
  %2993 = vmatpush1.msra.mxu0 %v2266
  %2994 = vmatprep.subr.mxu0 0.0
  %2995 = vmatpush1.msra.mxu0 %v2267
  %2996 = vmatprep.subr.mxu0 0.0
  %2997 = vmatpush1.msra.mxu0 %v2268
  %2998 = vmatprep.subr.mxu0 0.0
  %2999 = vmatpush1.msra.mxu0 0.0
  %3000 = vmatprep.subr.mxu0 0.0
  %3001 = vmatpush1.msra.mxu0 0.0
  %3002 = vmatprep.subr.mxu0 0.0
  %3003 = vmatpush1.msra.mxu0 0.0
  %3004 = vmatprep.subr.mxu0 0.0
  %3005 = vmatpush1.msra.mxu0 0.0
  %3006 = vmatprep.subr.mxu0 0.0
  %3007 = vmatpush1.msra.mxu0 0.0
  %3008 = vmatprep.subr.mxu0 0.0
  %3009 = vmatpush1.msra.mxu0 0.0
  %3010 = vmatprep.subr.mxu0 0.0
  %3011 = vmatpush1.msra.mxu0 0.0
  %3012 = vmatprep.subr.mxu0 0.0
  %3013 = vmatpush1.msra.mxu0 0.0
  %3014 = vmatprep.subr.mxu0 0.0
  %3015 = vmatpush1.msra.mxu0 0.0
  %3016 = vmatprep.subr.mxu0 0.0
  %3017 = vmatpush1.msra.mxu0 0.0
  %3018 = vmatprep.subr.mxu0 0.0
  %3019 = vmatpush1.msra.mxu0 0.0
  %3020 = vmatprep.subr.mxu0 0.0
  %3021 = vmatpush1.msra.mxu0 0.0
  %3022 = vmatprep.subr.mxu0 0.0
  %3023 = vmatpush1.msra.mxu0 0.0
  %3024 = vmatprep.subr.mxu0 0.0
  %3025 = vmatpush1.msra.mxu0 0.0
  %3026 = vmatprep.subr.mxu0 0.0
  %3027 = vmatpush1.msra.mxu0 0.0
  %3028 = vmatprep.subr.mxu0 0.0
  %3029 = vmatpush1.msra.mxu0 0.0
  %3030 = vmatprep.subr.mxu0 0.0
  %3031 = vmatpush1.msra.mxu0 0.0
  %3032 = vmatprep.subr.mxu0 0.0
  %3033 = vmatpush1.msra.mxu0 0.0
  %3034 = vmatprep.subr.mxu0 0.0
  %3035 = vmatpush1.msra.mxu0 0.0
  %3036 = vmatprep.subr.mxu0 0.0
  %3037 = vmatpush1.msra.mxu0 0.0
  %3038 = vmatprep.subr.mxu0 0.0
  %3039 = vmatpush1.msra.mxu0 0.0
  %3040 = vmatprep.subr.mxu0 0.0
  %3041 = vmatpush1.msra.mxu0 0.0
  %3042 = vmatprep.subr.mxu0 0.0
  %3043 = vmatpush1.msra.mxu0 0.0
  %3044 = vmatprep.subr.mxu0 0.0
  %3045 = vmatpush1.msra.mxu0 0.0
  %3046 = vmatprep.subr.mxu0 0.0
  %3047 = vmatpush1.msra.mxu0 0.0
  %3048 = vmatprep.subr.mxu0 0.0
  %3049 = vmatpush1.msra.mxu0 0.0
  %3050 = vmatprep.subr.mxu0 0.0
  %3051 = vmatpush1.msra.mxu0 0.0
  %3052 = vmatprep.subr.mxu0 0.0
  %3053 = vmatpush1.msra.mxu0 0.0
  %3054 = vmatprep.mubr.f32.mxu0 0.0
  %3055 = vmatmul.mubr.f32.gmra.mrb[0].mxu0 %v2988
  %v3056 = vpop.f32.mrb[0].mxu0
  %v3057 = vadd.f32 0.0, %v3056
  %v3058 = vpop.f32.mrb[0].mxu0
  %3059 = vdwg.mxu0
  %v3060 = vadd.f32 %v2984, %v3057
  %v3061 = vxor.u32 %v3060, 2147483648
  %v3062 = vmul.f32 %v3061, 1.442695
  %v3063 = vpow.pop %v3062
  %v3064 = vadd.f32 %v3063, 1.0
  %v3065 = vrcp.pop %v3064
  %v3066 = vmul.f32 1.0, %v3065
  %v3067 = vtanh.pop %v3060
  %v3068 = vmul.f32 %v3066, %v2861
  %3070 = vrot.lane.b32.xlu0 %v3067, 64
  %v3071 = vpop.permute.xlu0 %3070
  %v3073 = vmul.f32 %v3066, %v3071
  %3075 = vrot.lane.b32.xlu0 %v3073, 32
  %v3076 = vpop.permute.xlu0 %3075
  %v3078 = vadd.f32 %v3068, %v3076
  %v3079 = vtanh.pop %v3078
  %3081 = vrot.lane.b32.xlu0 %v3079, 64
  %v3082 = vpop.permute.xlu0 %3081
  %v3084 = vmul.f32 %v3066, %v3082
  %v3085 = vmul.f32 %v950, %v3078
  %v3086 = vmul.f32 %v957, %v2861
  %v3087 = vadd.f32 %v3085, %v3086
  %v3088 = vmul.f32 %v950, %v3084
  %v3089 = vmul.f32 %v957, %v2864
  %v3090 = vadd.f32 %v3088, %v3089
  %v3091 = vmul.f32 %v3090, %v950
  %3093 = vrot.lane.b32.xlu0 %v3091, 32
  %v3094 = vpop.permute.xlu0 %3093
  %3096 = vst.msk [vmem:[#allocation2 + $0x10] sm:$0xff] %vm346, %v3094
  %v3097 = vld [vmem:[#allocation4 + $0x28] sm:$0xff]
  %3099 = vrot.lane.b32.xlu0 %v2977, 32
  %v3100 = vpop.permute.xlu0 %3099
  %v3101 = vsel %vm346, %v3100, 0
  %3103 = vmatprep.subr.mxu0 0.0
  %3104 = vmatpush1.msra.mxu0 %v2422
  %3105 = vmatprep.subr.mxu0 0.0
  %3106 = vmatpush1.msra.mxu0 %v2423
  %3107 = vmatprep.subr.mxu0 0.0
  %3108 = vmatpush1.msra.mxu0 %v2424
  %3109 = vmatprep.subr.mxu0 0.0
  %3110 = vmatpush1.msra.mxu0 %v2425
  %3111 = vmatprep.subr.mxu0 0.0
  %3112 = vmatpush1.msra.mxu0 0.0
  %3113 = vmatprep.subr.mxu0 0.0
  %3114 = vmatpush1.msra.mxu0 0.0
  %3115 = vmatprep.subr.mxu0 0.0
  %3116 = vmatpush1.msra.mxu0 0.0
  %3117 = vmatprep.subr.mxu0 0.0
  %3118 = vmatpush1.msra.mxu0 0.0
  %3119 = vmatprep.subr.mxu0 0.0
  %3120 = vmatpush1.msra.mxu0 0.0
  %3121 = vmatprep.subr.mxu0 0.0
  %3122 = vmatpush1.msra.mxu0 0.0
  %3123 = vmatprep.subr.mxu0 0.0
  %3124 = vmatpush1.msra.mxu0 0.0
  %3125 = vmatprep.subr.mxu0 0.0
  %3126 = vmatpush1.msra.mxu0 0.0
  %3127 = vmatprep.subr.mxu0 0.0
  %3128 = vmatpush1.msra.mxu0 0.0
  %3129 = vmatprep.subr.mxu0 0.0
  %3130 = vmatpush1.msra.mxu0 0.0
  %3131 = vmatprep.subr.mxu0 0.0
  %3132 = vmatpush1.msra.mxu0 0.0
  %3133 = vmatprep.subr.mxu0 0.0
  %3134 = vmatpush1.msra.mxu0 0.0
  %3135 = vmatprep.subr.mxu0 0.0
  %3136 = vmatpush1.msra.mxu0 0.0
  %3137 = vmatprep.subr.mxu0 0.0
  %3138 = vmatpush1.msra.mxu0 0.0
  %3139 = vmatprep.subr.mxu0 0.0
  %3140 = vmatpush1.msra.mxu0 0.0
  %3141 = vmatprep.subr.mxu0 0.0
  %3142 = vmatpush1.msra.mxu0 0.0
  %3143 = vmatprep.subr.mxu0 0.0
  %3144 = vmatpush1.msra.mxu0 0.0
  %3145 = vmatprep.subr.mxu0 0.0
  %3146 = vmatpush1.msra.mxu0 0.0
  %3147 = vmatprep.subr.mxu0 0.0
  %3148 = vmatpush1.msra.mxu0 0.0
  %3149 = vmatprep.subr.mxu0 0.0
  %3150 = vmatpush1.msra.mxu0 0.0
  %3151 = vmatprep.subr.mxu0 0.0
  %3152 = vmatpush1.msra.mxu0 0.0
  %3153 = vmatprep.subr.mxu0 0.0
  %3154 = vmatpush1.msra.mxu0 0.0
  %3155 = vmatprep.subr.mxu0 0.0
  %3156 = vmatpush1.msra.mxu0 0.0
  %3157 = vmatprep.subr.mxu0 0.0
  %3158 = vmatpush1.msra.mxu0 0.0
  %3159 = vmatprep.subr.mxu0 0.0
  %3160 = vmatpush1.msra.mxu0 0.0
  %3161 = vmatprep.subr.mxu0 0.0
  %3162 = vmatpush1.msra.mxu0 0.0
  %3163 = vmatprep.subr.mxu0 0.0
  %3164 = vmatpush1.msra.mxu0 0.0
  %3165 = vmatprep.subr.mxu0 0.0
  %3166 = vmatpush1.msra.mxu0 0.0
  %3167 = vmatprep.mubr.f32.mxu0 0.0
  %3168 = vmatmul.mubr.f32.gmra.mrb[0].mxu0 %v3101
  %v3169 = vpop.f32.mrb[0].mxu0
  %v3170 = vadd.f32 0.0, %v3169
  %v3171 = vpop.f32.mrb[0].mxu0
  %3172 = vdwg.mxu0
  %v3173 = vadd.f32 %v3097, %v3170
  %v3174 = vxor.u32 %v3173, 2147483648
  %v3175 = vmul.f32 %v3174, 1.442695
  %v3176 = vpow.pop %v3175
  %v3177 = vadd.f32 %v3176, 1.0
  %v3178 = vrcp.pop %v3177
  %v3179 = vmul.f32 1.0, %v3178
  %v3180 = vtanh.pop %v3173
  %v3181 = vmul.f32 %v3179, %v2974
  %3183 = vrot.lane.b32.xlu0 %v3180, 64
  %v3184 = vpop.permute.xlu0 %3183
  %v3186 = vmul.f32 %v3179, %v3184
  %3188 = vrot.lane.b32.xlu0 %v3186, 32
  %v3189 = vpop.permute.xlu0 %3188
  %v3191 = vadd.f32 %v3181, %v3189
  %v3192 = vtanh.pop %v3191
  %3194 = vrot.lane.b32.xlu0 %v3192, 64
  %v3195 = vpop.permute.xlu0 %3194
  %v3197 = vmul.f32 %v3179, %v3195
  %v3198 = vmul.f32 %v1077, %v3191
  %v3199 = vmul.f32 %v1084, %v2974
  %v3200 = vadd.f32 %v3198, %v3199
  %v3201 = vmul.f32 %v1077, %v3197
  %v3202 = vmul.f32 %v1084, %v2977
  %v3203 = vadd.f32 %v3201, %v3202
  %v3204 = vmul.f32 %v3203, %v1077
  %3206 = vrot.lane.b32.xlu0 %v3204, 64
  %v3207 = vpop.permute.xlu0 %3206
  %3209 = vst.msk [vmem:[#allocation2 + $0x28] sm:$0xff] %vm587, %v3207
  %v3210 = vld [vmem:[#allocation3 + $0x18] sm:$0xff]
  %3212 = vrot.lane.b32.xlu0 %v3090, 32
  %v3213 = vpop.permute.xlu0 %3212
  %v3214 = vsel %vm346, %v3213, 0
  %3216 = vmatprep.subr.mxu0 0.0
  %3217 = vmatpush1.msra.mxu0 %v2265
  %3218 = vmatprep.subr.mxu0 0.0
  %3219 = vmatpush1.msra.mxu0 %v2266
  %3220 = vmatprep.subr.mxu0 0.0
  %3221 = vmatpush1.msra.mxu0 %v2267
  %3222 = vmatprep.subr.mxu0 0.0
  %3223 = vmatpush1.msra.mxu0 %v2268
  %3224 = vmatprep.subr.mxu0 0.0
  %3225 = vmatpush1.msra.mxu0 0.0
  %3226 = vmatprep.subr.mxu0 0.0
  %3227 = vmatpush1.msra.mxu0 0.0
  %3228 = vmatprep.subr.mxu0 0.0
  %3229 = vmatpush1.msra.mxu0 0.0
  %3230 = vmatprep.subr.mxu0 0.0
  %3231 = vmatpush1.msra.mxu0 0.0
  %3232 = vmatprep.subr.mxu0 0.0
  %3233 = vmatpush1.msra.mxu0 0.0
  %3234 = vmatprep.subr.mxu0 0.0
  %3235 = vmatpush1.msra.mxu0 0.0
  %3236 = vmatprep.subr.mxu0 0.0
  %3237 = vmatpush1.msra.mxu0 0.0
  %3238 = vmatprep.subr.mxu0 0.0
  %3239 = vmatpush1.msra.mxu0 0.0
  %3240 = vmatprep.subr.mxu0 0.0
  %3241 = vmatpush1.msra.mxu0 0.0
  %3242 = vmatprep.subr.mxu0 0.0
  %3243 = vmatpush1.msra.mxu0 0.0
  %3244 = vmatprep.subr.mxu0 0.0
  %3245 = vmatpush1.msra.mxu0 0.0
  %3246 = vmatprep.subr.mxu0 0.0
  %3247 = vmatpush1.msra.mxu0 0.0
  %3248 = vmatprep.subr.mxu0 0.0
  %3249 = vmatpush1.msra.mxu0 0.0
  %3250 = vmatprep.subr.mxu0 0.0
  %3251 = vmatpush1.msra.mxu0 0.0
  %3252 = vmatprep.subr.mxu0 0.0
  %3253 = vmatpush1.msra.mxu0 0.0
  %3254 = vmatprep.subr.mxu0 0.0
  %3255 = vmatpush1.msra.mxu0 0.0
  %3256 = vmatprep.subr.mxu0 0.0
  %3257 = vmatpush1.msra.mxu0 0.0
  %3258 = vmatprep.subr.mxu0 0.0
  %3259 = vmatpush1.msra.mxu0 0.0
  %3260 = vmatprep.subr.mxu0 0.0
  %3261 = vmatpush1.msra.mxu0 0.0
  %3262 = vmatprep.subr.mxu0 0.0
  %3263 = vmatpush1.msra.mxu0 0.0
  %3264 = vmatprep.subr.mxu0 0.0
  %3265 = vmatpush1.msra.mxu0 0.0
  %3266 = vmatprep.subr.mxu0 0.0
  %3267 = vmatpush1.msra.mxu0 0.0
  %3268 = vmatprep.subr.mxu0 0.0
  %3269 = vmatpush1.msra.mxu0 0.0
  %3270 = vmatprep.subr.mxu0 0.0
  %3271 = vmatpush1.msra.mxu0 0.0
  %3272 = vmatprep.subr.mxu0 0.0
  %3273 = vmatpush1.msra.mxu0 0.0
  %3274 = vmatprep.subr.mxu0 0.0
  %3275 = vmatpush1.msra.mxu0 0.0
  %3276 = vmatprep.subr.mxu0 0.0
  %3277 = vmatpush1.msra.mxu0 0.0
  %3278 = vmatprep.subr.mxu0 0.0
  %3279 = vmatpush1.msra.mxu0 0.0
  %3280 = vmatprep.mubr.f32.mxu0 0.0
  %3281 = vmatmul.mubr.f32.gmra.mrb[0].mxu0 %v3214
  %v3282 = vpop.f32.mrb[0].mxu0
  %v3283 = vadd.f32 0.0, %v3282
  %v3284 = vpop.f32.mrb[0].mxu0
  %3285 = vdwg.mxu0
  %v3286 = vadd.f32 %v3210, %v3283
  %v3287 = vxor.u32 %v3286, 2147483648
  %v3288 = vmul.f32 %v3287, 1.442695
  %v3289 = vpow.pop %v3288
  %v3290 = vadd.f32 %v3289, 1.0
  %v3291 = vrcp.pop %v3290
  %v3292 = vmul.f32 1.0, %v3291
  %v3293 = vtanh.pop %v3286
  %v3294 = vmul.f32 %v3292, %v3087
  %3296 = vrot.lane.b32.xlu0 %v3293, 64
  %v3297 = vpop.permute.xlu0 %3296
  %v3299 = vmul.f32 %v3292, %v3297
  %3301 = vrot.lane.b32.xlu0 %v3299, 32
  %v3302 = vpop.permute.xlu0 %3301
  %v3304 = vadd.f32 %v3294, %v3302
  %v3305 = vtanh.pop %v3304
  %3307 = vrot.lane.b32.xlu0 %v3305, 64
  %v3308 = vpop.permute.xlu0 %3307
  %v3310 = vmul.f32 %v3292, %v3308
  %v3311 = vmul.f32 %v1204, %v3304
  %v3312 = vmul.f32 %v1211, %v3087
  %v3313 = vadd.f32 %v3311, %v3312
  %v3314 = vmul.f32 %v1204, %v3310
  %v3315 = vmul.f32 %v1211, %v3090
  %v3316 = vadd.f32 %v3314, %v3315
  %v3317 = vmul.f32 %v3316, %v1204
  %3319 = vrot.lane.b32.xlu0 %v3317, 32
  %v3320 = vpop.permute.xlu0 %3319
  %3322 = vst.msk [vmem:[#allocation2 + $0x18] sm:$0xff] %vm346, %v3320
  %v3323 = vld [vmem:[#allocation4 + $0x20] sm:$0xff]
  %3325 = vrot.lane.b32.xlu0 %v3203, 32
  %v3326 = vpop.permute.xlu0 %3325
  %v3327 = vsel %vm346, %v3326, 0
  %3329 = vmatprep.subr.mxu0 0.0
  %3330 = vmatpush1.msra.mxu0 %v2422
  %3331 = vmatprep.subr.mxu0 0.0
  %3332 = vmatpush1.msra.mxu0 %v2423
  %3333 = vmatprep.subr.mxu0 0.0
  %3334 = vmatpush1.msra.mxu0 %v2424
  %3335 = vmatprep.subr.mxu0 0.0
  %3336 = vmatpush1.msra.mxu0 %v2425
  %3337 = vmatprep.subr.mxu0 0.0
  %3338 = vmatpush1.msra.mxu0 0.0
  %3339 = vmatprep.subr.mxu0 0.0
  %3340 = vmatpush1.msra.mxu0 0.0
  %3341 = vmatprep.subr.mxu0 0.0
  %3342 = vmatpush1.msra.mxu0 0.0
  %3343 = vmatprep.subr.mxu0 0.0
  %3344 = vmatpush1.msra.mxu0 0.0
  %3345 = vmatprep.subr.mxu0 0.0
  %3346 = vmatpush1.msra.mxu0 0.0
  %3347 = vmatprep.subr.mxu0 0.0
  %3348 = vmatpush1.msra.mxu0 0.0
  %3349 = vmatprep.subr.mxu0 0.0
  %3350 = vmatpush1.msra.mxu0 0.0
  %3351 = vmatprep.subr.mxu0 0.0
  %3352 = vmatpush1.msra.mxu0 0.0
  %3353 = vmatprep.subr.mxu0 0.0
  %3354 = vmatpush1.msra.mxu0 0.0
  %3355 = vmatprep.subr.mxu0 0.0
  %3356 = vmatpush1.msra.mxu0 0.0
  %3357 = vmatprep.subr.mxu0 0.0
  %3358 = vmatpush1.msra.mxu0 0.0
  %3359 = vmatprep.subr.mxu0 0.0
  %3360 = vmatpush1.msra.mxu0 0.0
  %3361 = vmatprep.subr.mxu0 0.0
  %3362 = vmatpush1.msra.mxu0 0.0
  %3363 = vmatprep.subr.mxu0 0.0
  %3364 = vmatpush1.msra.mxu0 0.0
  %3365 = vmatprep.subr.mxu0 0.0
  %3366 = vmatpush1.msra.mxu0 0.0
  %3367 = vmatprep.subr.mxu0 0.0
  %3368 = vmatpush1.msra.mxu0 0.0
  %3369 = vmatprep.subr.mxu0 0.0
  %3370 = vmatpush1.msra.mxu0 0.0
  %3371 = vmatprep.subr.mxu0 0.0
  %3372 = vmatpush1.msra.mxu0 0.0
  %3373 = vmatprep.subr.mxu0 0.0
  %3374 = vmatpush1.msra.mxu0 0.0
  %3375 = vmatprep.subr.mxu0 0.0
  %3376 = vmatpush1.msra.mxu0 0.0
  %3377 = vmatprep.subr.mxu0 0.0
  %3378 = vmatpush1.msra.mxu0 0.0
  %3379 = vmatprep.subr.mxu0 0.0
  %3380 = vmatpush1.msra.mxu0 0.0
  %3381 = vmatprep.subr.mxu0 0.0
  %3382 = vmatpush1.msra.mxu0 0.0
  %3383 = vmatprep.subr.mxu0 0.0
  %3384 = vmatpush1.msra.mxu0 0.0
  %3385 = vmatprep.subr.mxu0 0.0
  %3386 = vmatpush1.msra.mxu0 0.0
  %3387 = vmatprep.subr.mxu0 0.0
  %3388 = vmatpush1.msra.mxu0 0.0
  %3389 = vmatprep.subr.mxu0 0.0
  %3390 = vmatpush1.msra.mxu0 0.0
  %3391 = vmatprep.subr.mxu0 0.0
  %3392 = vmatpush1.msra.mxu0 0.0
  %3393 = vmatprep.mubr.f32.mxu0 0.0
  %3394 = vmatmul.mubr.f32.gmra.mrb[0].mxu0 %v3327
  %v3395 = vpop.f32.mrb[0].mxu0
  %v3396 = vadd.f32 0.0, %v3395
  %v3397 = vpop.f32.mrb[0].mxu0
  %3398 = vdwg.mxu0
  %v3399 = vadd.f32 %v3323, %v3396
  %v3400 = vxor.u32 %v3399, 2147483648
  %v3401 = vmul.f32 %v3400, 1.442695
  %v3402 = vpow.pop %v3401
  %v3403 = vadd.f32 %v3402, 1.0
  %v3404 = vrcp.pop %v3403
  %v3405 = vmul.f32 1.0, %v3404
  %v3406 = vtanh.pop %v3399
  %v3407 = vmul.f32 %v3405, %v3200
  %3409 = vrot.lane.b32.xlu0 %v3406, 64
  %v3410 = vpop.permute.xlu0 %3409
  %v3412 = vmul.f32 %v3405, %v3410
  %3414 = vrot.lane.b32.xlu0 %v3412, 32
  %v3415 = vpop.permute.xlu0 %3414
  %v3417 = vadd.f32 %v3407, %v3415
  %v3418 = vtanh.pop %v3417
  %3420 = vrot.lane.b32.xlu0 %v3418, 64
  %v3421 = vpop.permute.xlu0 %3420
  %v3423 = vmul.f32 %v3405, %v3421
  %v3424 = vmul.f32 %v1331, %v3417
  %v3425 = vmul.f32 %v1338, %v3200
  %v3426 = vadd.f32 %v3424, %v3425
  %v3427 = vmul.f32 %v1331, %v3423
  %v3428 = vmul.f32 %v1338, %v3203
  %v3429 = vadd.f32 %v3427, %v3428
  %v3430 = vmul.f32 %v3429, %v1331
  %3432 = vrot.lane.b32.xlu0 %v3430, 64
  %v3433 = vpop.permute.xlu0 %3432
  %3435 = vst.msk [vmem:[#allocation2 + $0x20] sm:$0xff] %vm587, %v3433
  %v3436 = vld [vmem:[#allocation3 + $0x20] sm:$0xff]
  %3438 = vrot.lane.b32.xlu0 %v3316, 32
  %v3439 = vpop.permute.xlu0 %3438
  %v3440 = vsel %vm346, %v3439, 0
  %3442 = vmatprep.subr.mxu0 0.0
  %3443 = vmatpush1.msra.mxu0 %v2265
  %3444 = vmatprep.subr.mxu0 0.0
  %3445 = vmatpush1.msra.mxu0 %v2266
  %3446 = vmatprep.subr.mxu0 0.0
  %3447 = vmatpush1.msra.mxu0 %v2267
  %3448 = vmatprep.subr.mxu0 0.0
  %3449 = vmatpush1.msra.mxu0 %v2268
  %3450 = vmatprep.subr.mxu0 0.0
  %3451 = vmatpush1.msra.mxu0 0.0
  %3452 = vmatprep.subr.mxu0 0.0
  %3453 = vmatpush1.msra.mxu0 0.0
  %3454 = vmatprep.subr.mxu0 0.0
  %3455 = vmatpush1.msra.mxu0 0.0
  %3456 = vmatprep.subr.mxu0 0.0
  %3457 = vmatpush1.msra.mxu0 0.0
  %3458 = vmatprep.subr.mxu0 0.0
  %3459 = vmatpush1.msra.mxu0 0.0
  %3460 = vmatprep.subr.mxu0 0.0
  %3461 = vmatpush1.msra.mxu0 0.0
  %3462 = vmatprep.subr.mxu0 0.0
  %3463 = vmatpush1.msra.mxu0 0.0
  %3464 = vmatprep.subr.mxu0 0.0
  %3465 = vmatpush1.msra.mxu0 0.0
  %3466 = vmatprep.subr.mxu0 0.0
  %3467 = vmatpush1.msra.mxu0 0.0
  %3468 = vmatprep.subr.mxu0 0.0
  %3469 = vmatpush1.msra.mxu0 0.0
  %3470 = vmatprep.subr.mxu0 0.0
  %3471 = vmatpush1.msra.mxu0 0.0
  %3472 = vmatprep.subr.mxu0 0.0
  %3473 = vmatpush1.msra.mxu0 0.0
  %3474 = vmatprep.subr.mxu0 0.0
  %3475 = vmatpush1.msra.mxu0 0.0
  %3476 = vmatprep.subr.mxu0 0.0
  %3477 = vmatpush1.msra.mxu0 0.0
  %3478 = vmatprep.subr.mxu0 0.0
  %3479 = vmatpush1.msra.mxu0 0.0
  %3480 = vmatprep.subr.mxu0 0.0
  %3481 = vmatpush1.msra.mxu0 0.0
  %3482 = vmatprep.subr.mxu0 0.0
  %3483 = vmatpush1.msra.mxu0 0.0
  %3484 = vmatprep.subr.mxu0 0.0
  %3485 = vmatpush1.msra.mxu0 0.0
  %3486 = vmatprep.subr.mxu0 0.0
  %3487 = vmatpush1.msra.mxu0 0.0
  %3488 = vmatprep.subr.mxu0 0.0
  %3489 = vmatpush1.msra.mxu0 0.0
  %3490 = vmatprep.subr.mxu0 0.0
  %3491 = vmatpush1.msra.mxu0 0.0
  %3492 = vmatprep.subr.mxu0 0.0
  %3493 = vmatpush1.msra.mxu0 0.0
  %3494 = vmatprep.subr.mxu0 0.0
  %3495 = vmatpush1.msra.mxu0 0.0
  %3496 = vmatprep.subr.mxu0 0.0
  %3497 = vmatpush1.msra.mxu0 0.0
  %3498 = vmatprep.subr.mxu0 0.0
  %3499 = vmatpush1.msra.mxu0 0.0
  %3500 = vmatprep.subr.mxu0 0.0
  %3501 = vmatpush1.msra.mxu0 0.0
  %3502 = vmatprep.subr.mxu0 0.0
  %3503 = vmatpush1.msra.mxu0 0.0
  %3504 = vmatprep.subr.mxu0 0.0
  %3505 = vmatpush1.msra.mxu0 0.0
  %3506 = vmatprep.mubr.f32.mxu0 0.0
  %3507 = vmatmul.mubr.f32.gmra.mrb[0].mxu0 %v3440
  %v3508 = vpop.f32.mrb[0].mxu0
  %v3509 = vadd.f32 0.0, %v3508
  %v3510 = vpop.f32.mrb[0].mxu0
  %3511 = vdwg.mxu0
  %v3512 = vadd.f32 %v3436, %v3509
  %v3513 = vxor.u32 %v3512, 2147483648
  %v3514 = vmul.f32 %v3513, 1.442695
  %v3515 = vpow.pop %v3514
  %v3516 = vadd.f32 %v3515, 1.0
  %v3517 = vrcp.pop %v3516
  %v3518 = vmul.f32 1.0, %v3517
  %v3519 = vtanh.pop %v3512
  %v3520 = vmul.f32 %v3518, %v3313
  %3522 = vrot.lane.b32.xlu0 %v3519, 64
  %v3523 = vpop.permute.xlu0 %3522
  %v3525 = vmul.f32 %v3518, %v3523
  %3527 = vrot.lane.b32.xlu0 %v3525, 32
  %v3528 = vpop.permute.xlu0 %3527
  %v3530 = vadd.f32 %v3520, %v3528
  %v3531 = vtanh.pop %v3530
  %3533 = vrot.lane.b32.xlu0 %v3531, 64
  %v3534 = vpop.permute.xlu0 %3533
  %v3536 = vmul.f32 %v3518, %v3534
  %v3537 = vmul.f32 %v1331, %v3530
  %v3538 = vmul.f32 %v1338, %v3313
  %v3539 = vadd.f32 %v3537, %v3538
  %v3540 = vmul.f32 %v1331, %v3536
  %v3541 = vmul.f32 %v1338, %v3316
  %v3542 = vadd.f32 %v3540, %v3541
  %v3543 = vmul.f32 %v3542, %v1331
  %3545 = vrot.lane.b32.xlu0 %v3543, 32
  %v3546 = vpop.permute.xlu0 %3545
  %3548 = vst.msk [vmem:[#allocation2 + $0x20] sm:$0xff] %vm346, %v3546
  %v3549 = vld [vmem:[#allocation4 + $0x18] sm:$0xff]
  %3551 = vrot.lane.b32.xlu0 %v3429, 32
  %v3552 = vpop.permute.xlu0 %3551
  %v3553 = vsel %vm346, %v3552, 0
  %3555 = vmatprep.subr.mxu0 0.0
  %3556 = vmatpush1.msra.mxu0 %v2422
  %3557 = vmatprep.subr.mxu0 0.0
  %3558 = vmatpush1.msra.mxu0 %v2423
  %3559 = vmatprep.subr.mxu0 0.0
  %3560 = vmatpush1.msra.mxu0 %v2424
  %3561 = vmatprep.subr.mxu0 0.0
  %3562 = vmatpush1.msra.mxu0 %v2425
  %3563 = vmatprep.subr.mxu0 0.0
  %3564 = vmatpush1.msra.mxu0 0.0
  %3565 = vmatprep.subr.mxu0 0.0
  %3566 = vmatpush1.msra.mxu0 0.0
  %3567 = vmatprep.subr.mxu0 0.0
  %3568 = vmatpush1.msra.mxu0 0.0
  %3569 = vmatprep.subr.mxu0 0.0
  %3570 = vmatpush1.msra.mxu0 0.0
  %3571 = vmatprep.subr.mxu0 0.0
  %3572 = vmatpush1.msra.mxu0 0.0
  %3573 = vmatprep.subr.mxu0 0.0
  %3574 = vmatpush1.msra.mxu0 0.0
  %3575 = vmatprep.subr.mxu0 0.0
  %3576 = vmatpush1.msra.mxu0 0.0
  %3577 = vmatprep.subr.mxu0 0.0
  %3578 = vmatpush1.msra.mxu0 0.0
  %3579 = vmatprep.subr.mxu0 0.0
  %3580 = vmatpush1.msra.mxu0 0.0
  %3581 = vmatprep.subr.mxu0 0.0
  %3582 = vmatpush1.msra.mxu0 0.0
  %3583 = vmatprep.subr.mxu0 0.0
  %3584 = vmatpush1.msra.mxu0 0.0
  %3585 = vmatprep.subr.mxu0 0.0
  %3586 = vmatpush1.msra.mxu0 0.0
  %3587 = vmatprep.subr.mxu0 0.0
  %3588 = vmatpush1.msra.mxu0 0.0
  %3589 = vmatprep.subr.mxu0 0.0
  %3590 = vmatpush1.msra.mxu0 0.0
  %3591 = vmatprep.subr.mxu0 0.0
  %3592 = vmatpush1.msra.mxu0 0.0
  %3593 = vmatprep.subr.mxu0 0.0
  %3594 = vmatpush1.msra.mxu0 0.0
  %3595 = vmatprep.subr.mxu0 0.0
  %3596 = vmatpush1.msra.mxu0 0.0
  %3597 = vmatprep.subr.mxu0 0.0
  %3598 = vmatpush1.msra.mxu0 0.0
  %3599 = vmatprep.subr.mxu0 0.0
  %3600 = vmatpush1.msra.mxu0 0.0
  %3601 = vmatprep.subr.mxu0 0.0
  %3602 = vmatpush1.msra.mxu0 0.0
  %3603 = vmatprep.subr.mxu0 0.0
  %3604 = vmatpush1.msra.mxu0 0.0
  %3605 = vmatprep.subr.mxu0 0.0
  %3606 = vmatpush1.msra.mxu0 0.0
  %3607 = vmatprep.subr.mxu0 0.0
  %3608 = vmatpush1.msra.mxu0 0.0
  %3609 = vmatprep.subr.mxu0 0.0
  %3610 = vmatpush1.msra.mxu0 0.0
  %3611 = vmatprep.subr.mxu0 0.0
  %3612 = vmatpush1.msra.mxu0 0.0
  %3613 = vmatprep.subr.mxu0 0.0
  %3614 = vmatpush1.msra.mxu0 0.0
  %3615 = vmatprep.subr.mxu0 0.0
  %3616 = vmatpush1.msra.mxu0 0.0
  %3617 = vmatprep.subr.mxu0 0.0
  %3618 = vmatpush1.msra.mxu0 0.0
  %3619 = vmatprep.mubr.f32.mxu0 0.0
  %3620 = vmatmul.mubr.f32.gmra.mrb[0].mxu0 %v3553
  %v3621 = vpop.f32.mrb[0].mxu0
  %v3622 = vadd.f32 0.0, %v3621
  %v3623 = vpop.f32.mrb[0].mxu0
  %3624 = vdwg.mxu0
  %v3625 = vadd.f32 %v3549, %v3622
  %v3626 = vxor.u32 %v3625, 2147483648
  %v3627 = vmul.f32 %v3626, 1.442695
  %v3628 = vpow.pop %v3627
  %v3629 = vadd.f32 %v3628, 1.0
  %v3630 = vrcp.pop %v3629
  %v3631 = vmul.f32 1.0, %v3630
  %v3632 = vtanh.pop %v3625
  %v3633 = vmul.f32 %v3631, %v3426
  %3635 = vrot.lane.b32.xlu0 %v3632, 64
  %v3636 = vpop.permute.xlu0 %3635
  %v3638 = vmul.f32 %v3631, %v3636
  %3640 = vrot.lane.b32.xlu0 %v3638, 32
  %v3641 = vpop.permute.xlu0 %3640
  %v3643 = vadd.f32 %v3633, %v3641
  %v3644 = vtanh.pop %v3643
  %3646 = vrot.lane.b32.xlu0 %v3644, 64
  %v3647 = vpop.permute.xlu0 %3646
  %v3649 = vmul.f32 %v3631, %v3647
  %v3650 = vmul.f32 %v1204, %v3643
  %v3651 = vmul.f32 %v1211, %v3426
  %v3652 = vadd.f32 %v3650, %v3651
  %v3653 = vmul.f32 %v1204, %v3649
  %v3654 = vmul.f32 %v1211, %v3429
  %v3655 = vadd.f32 %v3653, %v3654
  %v3656 = vmul.f32 %v3655, %v1204
  %3658 = vrot.lane.b32.xlu0 %v3656, 64
  %v3659 = vpop.permute.xlu0 %3658
  %3661 = vst.msk [vmem:[#allocation2 + $0x18] sm:$0xff] %vm587, %v3659
  %v3662 = vld [vmem:[#allocation3 + $0x28] sm:$0xff]
  %3664 = vrot.lane.b32.xlu0 %v3542, 32
  %v3665 = vpop.permute.xlu0 %3664
  %v3666 = vsel %vm346, %v3665, 0
  %3668 = vmatprep.subr.mxu0 0.0
  %3669 = vmatpush1.msra.mxu0 %v2265
  %3670 = vmatprep.subr.mxu0 0.0
  %3671 = vmatpush1.msra.mxu0 %v2266
  %3672 = vmatprep.subr.mxu0 0.0
  %3673 = vmatpush1.msra.mxu0 %v2267
  %3674 = vmatprep.subr.mxu0 0.0
  %3675 = vmatpush1.msra.mxu0 %v2268
  %3676 = vmatprep.subr.mxu0 0.0
  %3677 = vmatpush1.msra.mxu0 0.0
  %3678 = vmatprep.subr.mxu0 0.0
  %3679 = vmatpush1.msra.mxu0 0.0
  %3680 = vmatprep.subr.mxu0 0.0
  %3681 = vmatpush1.msra.mxu0 0.0
  %3682 = vmatprep.subr.mxu0 0.0
  %3683 = vmatpush1.msra.mxu0 0.0
  %3684 = vmatprep.subr.mxu0 0.0
  %3685 = vmatpush1.msra.mxu0 0.0
  %3686 = vmatprep.subr.mxu0 0.0
  %3687 = vmatpush1.msra.mxu0 0.0
  %3688 = vmatprep.subr.mxu0 0.0
  %3689 = vmatpush1.msra.mxu0 0.0
  %3690 = vmatprep.subr.mxu0 0.0
  %3691 = vmatpush1.msra.mxu0 0.0
  %3692 = vmatprep.subr.mxu0 0.0
  %3693 = vmatpush1.msra.mxu0 0.0
  %3694 = vmatprep.subr.mxu0 0.0
  %3695 = vmatpush1.msra.mxu0 0.0
  %3696 = vmatprep.subr.mxu0 0.0
  %3697 = vmatpush1.msra.mxu0 0.0
  %3698 = vmatprep.subr.mxu0 0.0
  %3699 = vmatpush1.msra.mxu0 0.0
  %3700 = vmatprep.subr.mxu0 0.0
  %3701 = vmatpush1.msra.mxu0 0.0
  %3702 = vmatprep.subr.mxu0 0.0
  %3703 = vmatpush1.msra.mxu0 0.0
  %3704 = vmatprep.subr.mxu0 0.0
  %3705 = vmatpush1.msra.mxu0 0.0
  %3706 = vmatprep.subr.mxu0 0.0
  %3707 = vmatpush1.msra.mxu0 0.0
  %3708 = vmatprep.subr.mxu0 0.0
  %3709 = vmatpush1.msra.mxu0 0.0
  %3710 = vmatprep.subr.mxu0 0.0
  %3711 = vmatpush1.msra.mxu0 0.0
  %3712 = vmatprep.subr.mxu0 0.0
  %3713 = vmatpush1.msra.mxu0 0.0
  %3714 = vmatprep.subr.mxu0 0.0
  %3715 = vmatpush1.msra.mxu0 0.0
  %3716 = vmatprep.subr.mxu0 0.0
  %3717 = vmatpush1.msra.mxu0 0.0
  %3718 = vmatprep.subr.mxu0 0.0
  %3719 = vmatpush1.msra.mxu0 0.0
  %3720 = vmatprep.subr.mxu0 0.0
  %3721 = vmatpush1.msra.mxu0 0.0
  %3722 = vmatprep.subr.mxu0 0.0
  %3723 = vmatpush1.msra.mxu0 0.0
  %3724 = vmatprep.subr.mxu0 0.0
  %3725 = vmatpush1.msra.mxu0 0.0
  %3726 = vmatprep.subr.mxu0 0.0
  %3727 = vmatpush1.msra.mxu0 0.0
  %3728 = vmatprep.subr.mxu0 0.0
  %3729 = vmatpush1.msra.mxu0 0.0
  %3730 = vmatprep.subr.mxu0 0.0
  %3731 = vmatpush1.msra.mxu0 0.0
  %3732 = vmatprep.mubr.f32.mxu0 0.0
  %3733 = vmatmul.mubr.f32.gmra.mrb[0].mxu0 %v3666
  %v3734 = vpop.f32.mrb[0].mxu0
  %v3735 = vadd.f32 0.0, %v3734
  %v3736 = vpop.f32.mrb[0].mxu0
  %3737 = vdwg.mxu0
  %v3738 = vadd.f32 %v3662, %v3735
  %v3739 = vxor.u32 %v3738, 2147483648
  %v3740 = vmul.f32 %v3739, 1.442695
  %v3741 = vpow.pop %v3740
  %v3742 = vadd.f32 %v3741, 1.0
  %v3743 = vrcp.pop %v3742
  %v3744 = vmul.f32 1.0, %v3743
  %v3745 = vtanh.pop %v3738
  %v3746 = vmul.f32 %v3744, %v3539
  %3748 = vrot.lane.b32.xlu0 %v3745, 64
  %v3749 = vpop.permute.xlu0 %3748
  %v3751 = vmul.f32 %v3744, %v3749
  %3753 = vrot.lane.b32.xlu0 %v3751, 32
  %v3754 = vpop.permute.xlu0 %3753
  %v3756 = vadd.f32 %v3746, %v3754
  %v3757 = vtanh.pop %v3756
  %3759 = vrot.lane.b32.xlu0 %v3757, 64
  %v3760 = vpop.permute.xlu0 %3759
  %v3762 = vmul.f32 %v3744, %v3760
  %v3763 = vmul.f32 %v1077, %v3756
  %v3764 = vmul.f32 %v1084, %v3539
  %v3765 = vadd.f32 %v3763, %v3764
  %v3766 = vmul.f32 %v1077, %v3762
  %v3767 = vmul.f32 %v1084, %v3542
  %v3768 = vadd.f32 %v3766, %v3767
  %v3769 = vmul.f32 %v3768, %v1077
  %3771 = vrot.lane.b32.xlu0 %v3769, 32
  %v3772 = vpop.permute.xlu0 %3771
  %3774 = vst.msk [vmem:[#allocation2 + $0x28] sm:$0xff] %vm346, %v3772
  %v3775 = vld [vmem:[#allocation4 + $0x10] sm:$0xff]
  %3777 = vrot.lane.b32.xlu0 %v3655, 32
  %v3778 = vpop.permute.xlu0 %3777
  %v3779 = vsel %vm346, %v3778, 0
  %3781 = vmatprep.subr.mxu0 0.0
  %3782 = vmatpush1.msra.mxu0 %v2422
  %3783 = vmatprep.subr.mxu0 0.0
  %3784 = vmatpush1.msra.mxu0 %v2423
  %3785 = vmatprep.subr.mxu0 0.0
  %3786 = vmatpush1.msra.mxu0 %v2424
  %3787 = vmatprep.subr.mxu0 0.0
  %3788 = vmatpush1.msra.mxu0 %v2425
  %3789 = vmatprep.subr.mxu0 0.0
  %3790 = vmatpush1.msra.mxu0 0.0
  %3791 = vmatprep.subr.mxu0 0.0
  %3792 = vmatpush1.msra.mxu0 0.0
  %3793 = vmatprep.subr.mxu0 0.0
  %3794 = vmatpush1.msra.mxu0 0.0
  %3795 = vmatprep.subr.mxu0 0.0
  %3796 = vmatpush1.msra.mxu0 0.0
  %3797 = vmatprep.subr.mxu0 0.0
  %3798 = vmatpush1.msra.mxu0 0.0
  %3799 = vmatprep.subr.mxu0 0.0
  %3800 = vmatpush1.msra.mxu0 0.0
  %3801 = vmatprep.subr.mxu0 0.0
  %3802 = vmatpush1.msra.mxu0 0.0
  %3803 = vmatprep.subr.mxu0 0.0
  %3804 = vmatpush1.msra.mxu0 0.0
  %3805 = vmatprep.subr.mxu0 0.0
  %3806 = vmatpush1.msra.mxu0 0.0
  %3807 = vmatprep.subr.mxu0 0.0
  %3808 = vmatpush1.msra.mxu0 0.0
  %3809 = vmatprep.subr.mxu0 0.0
  %3810 = vmatpush1.msra.mxu0 0.0
  %3811 = vmatprep.subr.mxu0 0.0
  %3812 = vmatpush1.msra.mxu0 0.0
  %3813 = vmatprep.subr.mxu0 0.0
  %3814 = vmatpush1.msra.mxu0 0.0
  %3815 = vmatprep.subr.mxu0 0.0
  %3816 = vmatpush1.msra.mxu0 0.0
  %3817 = vmatprep.subr.mxu0 0.0
  %3818 = vmatpush1.msra.mxu0 0.0
  %3819 = vmatprep.subr.mxu0 0.0
  %3820 = vmatpush1.msra.mxu0 0.0
  %3821 = vmatprep.subr.mxu0 0.0
  %3822 = vmatpush1.msra.mxu0 0.0
  %3823 = vmatprep.subr.mxu0 0.0
  %3824 = vmatpush1.msra.mxu0 0.0
  %3825 = vmatprep.subr.mxu0 0.0
  %3826 = vmatpush1.msra.mxu0 0.0
  %3827 = vmatprep.subr.mxu0 0.0
  %3828 = vmatpush1.msra.mxu0 0.0
  %3829 = vmatprep.subr.mxu0 0.0
  %3830 = vmatpush1.msra.mxu0 0.0
  %3831 = vmatprep.subr.mxu0 0.0
  %3832 = vmatpush1.msra.mxu0 0.0
  %3833 = vmatprep.subr.mxu0 0.0
  %3834 = vmatpush1.msra.mxu0 0.0
  %3835 = vmatprep.subr.mxu0 0.0
  %3836 = vmatpush1.msra.mxu0 0.0
  %3837 = vmatprep.subr.mxu0 0.0
  %3838 = vmatpush1.msra.mxu0 0.0
  %3839 = vmatprep.subr.mxu0 0.0
  %3840 = vmatpush1.msra.mxu0 0.0
  %3841 = vmatprep.subr.mxu0 0.0
  %3842 = vmatpush1.msra.mxu0 0.0
  %3843 = vmatprep.subr.mxu0 0.0
  %3844 = vmatpush1.msra.mxu0 0.0
  %3845 = vmatprep.mubr.f32.mxu0 0.0
  %3846 = vmatmul.mubr.f32.gmra.mrb[0].mxu0 %v3779
  %v3847 = vpop.f32.mrb[0].mxu0
  %v3848 = vadd.f32 0.0, %v3847
  %v3849 = vpop.f32.mrb[0].mxu0
  %3850 = vdwg.mxu0
  %v3851 = vadd.f32 %v3775, %v3848
  %v3852 = vxor.u32 %v3851, 2147483648
  %v3853 = vmul.f32 %v3852, 1.442695
  %v3854 = vpow.pop %v3853
  %v3855 = vadd.f32 %v3854, 1.0
  %v3856 = vrcp.pop %v3855
  %v3857 = vmul.f32 1.0, %v3856
  %v3858 = vtanh.pop %v3851
  %v3859 = vmul.f32 %v3857, %v3652
  %3861 = vrot.lane.b32.xlu0 %v3858, 64
  %v3862 = vpop.permute.xlu0 %3861
  %v3864 = vmul.f32 %v3857, %v3862
  %3866 = vrot.lane.b32.xlu0 %v3864, 32
  %v3867 = vpop.permute.xlu0 %3866
  %v3869 = vadd.f32 %v3859, %v3867
  %v3870 = vtanh.pop %v3869
  %3872 = vrot.lane.b32.xlu0 %v3870, 64
  %v3873 = vpop.permute.xlu0 %3872
  %v3875 = vmul.f32 %v3857, %v3873
  %v3876 = vmul.f32 %v950, %v3869
  %v3877 = vmul.f32 %v957, %v3652
  %v3878 = vadd.f32 %v3876, %v3877
  %v3879 = vmul.f32 %v950, %v3875
  %v3880 = vmul.f32 %v957, %v3655
  %v3881 = vadd.f32 %v3879, %v3880
  %v3882 = vmul.f32 %v3881, %v950
  %3884 = vrot.lane.b32.xlu0 %v3882, 64
  %v3885 = vpop.permute.xlu0 %3884
  %3887 = vst.msk [vmem:[#allocation2 + $0x10] sm:$0xff] %vm587, %v3885
  %v3888 = vld [vmem:[#allocation3 + $0x30] sm:$0xff]
  %3890 = vrot.lane.b32.xlu0 %v3768, 32
  %v3891 = vpop.permute.xlu0 %3890
  %v3892 = vsel %vm346, %v3891, 0
  %3894 = vmatprep.subr.mxu0 0.0
  %3895 = vmatpush1.msra.mxu0 %v2265
  %3896 = vmatprep.subr.mxu0 0.0
  %3897 = vmatpush1.msra.mxu0 %v2266
  %3898 = vmatprep.subr.mxu0 0.0
  %3899 = vmatpush1.msra.mxu0 %v2267
  %3900 = vmatprep.subr.mxu0 0.0
  %3901 = vmatpush1.msra.mxu0 %v2268
  %3902 = vmatprep.subr.mxu0 0.0
  %3903 = vmatpush1.msra.mxu0 0.0
  %3904 = vmatprep.subr.mxu0 0.0
  %3905 = vmatpush1.msra.mxu0 0.0
  %3906 = vmatprep.subr.mxu0 0.0
  %3907 = vmatpush1.msra.mxu0 0.0
  %3908 = vmatprep.subr.mxu0 0.0
  %3909 = vmatpush1.msra.mxu0 0.0
  %3910 = vmatprep.subr.mxu0 0.0
  %3911 = vmatpush1.msra.mxu0 0.0
  %3912 = vmatprep.subr.mxu0 0.0
  %3913 = vmatpush1.msra.mxu0 0.0
  %3914 = vmatprep.subr.mxu0 0.0
  %3915 = vmatpush1.msra.mxu0 0.0
  %3916 = vmatprep.subr.mxu0 0.0
  %3917 = vmatpush1.msra.mxu0 0.0
  %3918 = vmatprep.subr.mxu0 0.0
  %3919 = vmatpush1.msra.mxu0 0.0
  %3920 = vmatprep.subr.mxu0 0.0
  %3921 = vmatpush1.msra.mxu0 0.0
  %3922 = vmatprep.subr.mxu0 0.0
  %3923 = vmatpush1.msra.mxu0 0.0
  %3924 = vmatprep.subr.mxu0 0.0
  %3925 = vmatpush1.msra.mxu0 0.0
  %3926 = vmatprep.subr.mxu0 0.0
  %3927 = vmatpush1.msra.mxu0 0.0
  %3928 = vmatprep.subr.mxu0 0.0
  %3929 = vmatpush1.msra.mxu0 0.0
  %3930 = vmatprep.subr.mxu0 0.0
  %3931 = vmatpush1.msra.mxu0 0.0
  %3932 = vmatprep.subr.mxu0 0.0
  %3933 = vmatpush1.msra.mxu0 0.0
  %3934 = vmatprep.subr.mxu0 0.0
  %3935 = vmatpush1.msra.mxu0 0.0
  %3936 = vmatprep.subr.mxu0 0.0
  %3937 = vmatpush1.msra.mxu0 0.0
  %3938 = vmatprep.subr.mxu0 0.0
  %3939 = vmatpush1.msra.mxu0 0.0
  %3940 = vmatprep.subr.mxu0 0.0
  %3941 = vmatpush1.msra.mxu0 0.0
  %3942 = vmatprep.subr.mxu0 0.0
  %3943 = vmatpush1.msra.mxu0 0.0
  %3944 = vmatprep.subr.mxu0 0.0
  %3945 = vmatpush1.msra.mxu0 0.0
  %3946 = vmatprep.subr.mxu0 0.0
  %3947 = vmatpush1.msra.mxu0 0.0
  %3948 = vmatprep.subr.mxu0 0.0
  %3949 = vmatpush1.msra.mxu0 0.0
  %3950 = vmatprep.subr.mxu0 0.0
  %3951 = vmatpush1.msra.mxu0 0.0
  %3952 = vmatprep.subr.mxu0 0.0
  %3953 = vmatpush1.msra.mxu0 0.0
  %3954 = vmatprep.subr.mxu0 0.0
  %3955 = vmatpush1.msra.mxu0 0.0
  %3956 = vmatprep.subr.mxu0 0.0
  %3957 = vmatpush1.msra.mxu0 0.0
  %3958 = vmatprep.mubr.f32.mxu0 0.0
  %3959 = vmatmul.mubr.f32.gmra.mrb[0].mxu0 %v3892
  %v3960 = vpop.f32.mrb[0].mxu0
  %v3961 = vadd.f32 0.0, %v3960
  %v3962 = vpop.f32.mrb[0].mxu0
  %3963 = vdwg.mxu0
  %v3964 = vadd.f32 %v3888, %v3961
  %v3965 = vxor.u32 %v3964, 2147483648
  %v3966 = vmul.f32 %v3965, 1.442695
  %v3967 = vpow.pop %v3966
  %v3968 = vadd.f32 %v3967, 1.0
  %v3969 = vrcp.pop %v3968
  %v3970 = vmul.f32 1.0, %v3969
  %v3971 = vtanh.pop %v3964
  %v3972 = vmul.f32 %v3970, %v3765
  %3974 = vrot.lane.b32.xlu0 %v3971, 64
  %v3975 = vpop.permute.xlu0 %3974
  %v3977 = vmul.f32 %v3970, %v3975
  %3979 = vrot.lane.b32.xlu0 %v3977, 32
  %v3980 = vpop.permute.xlu0 %3979
  %v3982 = vadd.f32 %v3972, %v3980
  %v3983 = vtanh.pop %v3982
  %3985 = vrot.lane.b32.xlu0 %v3983, 64
  %v3986 = vpop.permute.xlu0 %3985
  %v3988 = vmul.f32 %v3970, %v3986
  %v3989 = vmul.f32 %v823, %v3982
  %v3990 = vmul.f32 %v830, %v3765
  %v3991 = vadd.f32 %v3989, %v3990
  %v3992 = vmul.f32 %v823, %v3988
  %v3993 = vmul.f32 %v830, %v3768
  %v3994 = vadd.f32 %v3992, %v3993
  %v3995 = vmul.f32 %v3994, %v823
  %3997 = vrot.lane.b32.xlu0 %v3995, 32
  %v3998 = vpop.permute.xlu0 %3997
  %4000 = vst.msk [vmem:[#allocation2 + $0x30] sm:$0xff] %vm346, %v3998
  %v4001 = vld [vmem:[#allocation4 + $0x8] sm:$0xff]
  %4003 = vrot.lane.b32.xlu0 %v3881, 32
  %v4004 = vpop.permute.xlu0 %4003
  %v4005 = vsel %vm346, %v4004, 0
  %4007 = vmatprep.subr.mxu0 0.0
  %4008 = vmatpush1.msra.mxu0 %v2422
  %4009 = vmatprep.subr.mxu0 0.0
  %4010 = vmatpush1.msra.mxu0 %v2423
  %4011 = vmatprep.subr.mxu0 0.0
  %4012 = vmatpush1.msra.mxu0 %v2424
  %4013 = vmatprep.subr.mxu0 0.0
  %4014 = vmatpush1.msra.mxu0 %v2425
  %4015 = vmatprep.subr.mxu0 0.0
  %4016 = vmatpush1.msra.mxu0 0.0
  %4017 = vmatprep.subr.mxu0 0.0
  %4018 = vmatpush1.msra.mxu0 0.0
  %4019 = vmatprep.subr.mxu0 0.0
  %4020 = vmatpush1.msra.mxu0 0.0
  %4021 = vmatprep.subr.mxu0 0.0
  %4022 = vmatpush1.msra.mxu0 0.0
  %4023 = vmatprep.subr.mxu0 0.0
  %4024 = vmatpush1.msra.mxu0 0.0
  %4025 = vmatprep.subr.mxu0 0.0
  %4026 = vmatpush1.msra.mxu0 0.0
  %4027 = vmatprep.subr.mxu0 0.0
  %4028 = vmatpush1.msra.mxu0 0.0
  %4029 = vmatprep.subr.mxu0 0.0
  %4030 = vmatpush1.msra.mxu0 0.0
  %4031 = vmatprep.subr.mxu0 0.0
  %4032 = vmatpush1.msra.mxu0 0.0
  %4033 = vmatprep.subr.mxu0 0.0
  %4034 = vmatpush1.msra.mxu0 0.0
  %4035 = vmatprep.subr.mxu0 0.0
  %4036 = vmatpush1.msra.mxu0 0.0
  %4037 = vmatprep.subr.mxu0 0.0
  %4038 = vmatpush1.msra.mxu0 0.0
  %4039 = vmatprep.subr.mxu0 0.0
  %4040 = vmatpush1.msra.mxu0 0.0
  %4041 = vmatprep.subr.mxu0 0.0
  %4042 = vmatpush1.msra.mxu0 0.0
  %4043 = vmatprep.subr.mxu0 0.0
  %4044 = vmatpush1.msra.mxu0 0.0
  %4045 = vmatprep.subr.mxu0 0.0
  %4046 = vmatpush1.msra.mxu0 0.0
  %4047 = vmatprep.subr.mxu0 0.0
  %4048 = vmatpush1.msra.mxu0 0.0
  %4049 = vmatprep.subr.mxu0 0.0
  %4050 = vmatpush1.msra.mxu0 0.0
  %4051 = vmatprep.subr.mxu0 0.0
  %4052 = vmatpush1.msra.mxu0 0.0
  %4053 = vmatprep.subr.mxu0 0.0
  %4054 = vmatpush1.msra.mxu0 0.0
  %4055 = vmatprep.subr.mxu0 0.0
  %4056 = vmatpush1.msra.mxu0 0.0
  %4057 = vmatprep.subr.mxu0 0.0
  %4058 = vmatpush1.msra.mxu0 0.0
  %4059 = vmatprep.subr.mxu0 0.0
  %4060 = vmatpush1.msra.mxu0 0.0
  %4061 = vmatprep.subr.mxu0 0.0
  %4062 = vmatpush1.msra.mxu0 0.0
  %4063 = vmatprep.subr.mxu0 0.0
  %4064 = vmatpush1.msra.mxu0 0.0
  %4065 = vmatprep.subr.mxu0 0.0
  %4066 = vmatpush1.msra.mxu0 0.0
  %4067 = vmatprep.subr.mxu0 0.0
  %4068 = vmatpush1.msra.mxu0 0.0
  %4069 = vmatprep.subr.mxu0 0.0
  %4070 = vmatpush1.msra.mxu0 0.0
  %4071 = vmatprep.mubr.f32.mxu0 0.0
  %4072 = vmatmul.mubr.f32.gmra.mrb[0].mxu0 %v4005
  %v4073 = vpop.f32.mrb[0].mxu0
  %v4074 = vadd.f32 0.0, %v4073
  %v4075 = vpop.f32.mrb[0].mxu0
  %4076 = vdwg.mxu0
  %v4077 = vadd.f32 %v4001, %v4074
  %v4078 = vxor.u32 %v4077, 2147483648
  %v4079 = vmul.f32 %v4078, 1.442695
  %v4080 = vpow.pop %v4079
  %v4081 = vadd.f32 %v4080, 1.0
  %v4082 = vrcp.pop %v4081
  %v4083 = vmul.f32 1.0, %v4082
  %v4084 = vtanh.pop %v4077
  %v4085 = vmul.f32 %v4083, %v3878
  %4087 = vrot.lane.b32.xlu0 %v4084, 64
  %v4088 = vpop.permute.xlu0 %4087
  %v4090 = vmul.f32 %v4083, %v4088
  %4092 = vrot.lane.b32.xlu0 %v4090, 32
  %v4093 = vpop.permute.xlu0 %4092
  %v4095 = vadd.f32 %v4085, %v4093
  %v4096 = vtanh.pop %v4095
  %4098 = vrot.lane.b32.xlu0 %v4096, 64
  %v4099 = vpop.permute.xlu0 %4098
  %v4101 = vmul.f32 %v4083, %v4099
  %v4102 = vmul.f32 %v696, %v4095
  %v4103 = vmul.f32 %v703, %v3878
  %v4104 = vadd.f32 %v4102, %v4103
  %v4105 = vmul.f32 %v696, %v4101
  %v4106 = vmul.f32 %v703, %v3881
  %v4107 = vadd.f32 %v4105, %v4106
  %v4108 = vmul.f32 %v4107, %v696
  %4110 = vrot.lane.b32.xlu0 %v4108, 64
  %v4111 = vpop.permute.xlu0 %4110
  %4113 = vst.msk [vmem:[#allocation2 + $0x8] sm:$0xff] %vm587, %v4111
  %v4114 = vld [vmem:[#allocation3 + $0x38] sm:$0xff]
  %4116 = vrot.lane.b32.xlu0 %v3994, 32
  %v4117 = vpop.permute.xlu0 %4116
  %v4118 = vsel %vm346, %v4117, 0
  %4120 = vmatprep.subr.mxu0 0.0
  %4121 = vmatpush1.msra.mxu0 %v2265
  %4122 = vmatprep.subr.mxu0 0.0
  %4123 = vmatpush1.msra.mxu0 %v2266
  %4124 = vmatprep.subr.mxu0 0.0
  %4125 = vmatpush1.msra.mxu0 %v2267
  %4126 = vmatprep.subr.mxu0 0.0
  %4127 = vmatpush1.msra.mxu0 %v2268
  %4128 = vmatprep.subr.mxu0 0.0
  %4129 = vmatpush1.msra.mxu0 0.0
  %4130 = vmatprep.subr.mxu0 0.0
  %4131 = vmatpush1.msra.mxu0 0.0
  %4132 = vmatprep.subr.mxu0 0.0
  %4133 = vmatpush1.msra.mxu0 0.0
  %4134 = vmatprep.subr.mxu0 0.0
  %4135 = vmatpush1.msra.mxu0 0.0
  %4136 = vmatprep.subr.mxu0 0.0
  %4137 = vmatpush1.msra.mxu0 0.0
  %4138 = vmatprep.subr.mxu0 0.0
  %4139 = vmatpush1.msra.mxu0 0.0
  %4140 = vmatprep.subr.mxu0 0.0
  %4141 = vmatpush1.msra.mxu0 0.0
  %4142 = vmatprep.subr.mxu0 0.0
  %4143 = vmatpush1.msra.mxu0 0.0
  %4144 = vmatprep.subr.mxu0 0.0
  %4145 = vmatpush1.msra.mxu0 0.0
  %4146 = vmatprep.subr.mxu0 0.0
  %4147 = vmatpush1.msra.mxu0 0.0
  %4148 = vmatprep.subr.mxu0 0.0
  %4149 = vmatpush1.msra.mxu0 0.0
  %4150 = vmatprep.subr.mxu0 0.0
  %4151 = vmatpush1.msra.mxu0 0.0
  %4152 = vmatprep.subr.mxu0 0.0
  %4153 = vmatpush1.msra.mxu0 0.0
  %4154 = vmatprep.subr.mxu0 0.0
  %4155 = vmatpush1.msra.mxu0 0.0
  %4156 = vmatprep.subr.mxu0 0.0
  %4157 = vmatpush1.msra.mxu0 0.0
  %4158 = vmatprep.subr.mxu0 0.0
  %4159 = vmatpush1.msra.mxu0 0.0
  %4160 = vmatprep.subr.mxu0 0.0
  %4161 = vmatpush1.msra.mxu0 0.0
  %4162 = vmatprep.subr.mxu0 0.0
  %4163 = vmatpush1.msra.mxu0 0.0
  %4164 = vmatprep.subr.mxu0 0.0
  %4165 = vmatpush1.msra.mxu0 0.0
  %4166 = vmatprep.subr.mxu0 0.0
  %4167 = vmatpush1.msra.mxu0 0.0
  %4168 = vmatprep.subr.mxu0 0.0
  %4169 = vmatpush1.msra.mxu0 0.0
  %4170 = vmatprep.subr.mxu0 0.0
  %4171 = vmatpush1.msra.mxu0 0.0
  %4172 = vmatprep.subr.mxu0 0.0
  %4173 = vmatpush1.msra.mxu0 0.0
  %4174 = vmatprep.subr.mxu0 0.0
  %4175 = vmatpush1.msra.mxu0 0.0
  %4176 = vmatprep.subr.mxu0 0.0
  %4177 = vmatpush1.msra.mxu0 0.0
  %4178 = vmatprep.subr.mxu0 0.0
  %4179 = vmatpush1.msra.mxu0 0.0
  %4180 = vmatprep.subr.mxu0 0.0
  %4181 = vmatpush1.msra.mxu0 0.0
  %4182 = vmatprep.subr.mxu0 0.0
  %4183 = vmatpush1.msra.mxu0 0.0
  %4184 = vmatprep.mubr.f32.mxu0 0.0
  %4185 = vmatmul.mubr.f32.gmra.mrb[0].mxu0 %v4118
  %v4186 = vpop.f32.mrb[0].mxu0
  %v4187 = vadd.f32 0.0, %v4186
  %v4188 = vpop.f32.mrb[0].mxu0
  %4189 = vdwg.mxu0
  %v4190 = vadd.f32 %v4114, %v4187
  %v4191 = vxor.u32 %v4190, 2147483648
  %v4192 = vmul.f32 %v4191, 1.442695
  %v4193 = vpow.pop %v4192
  %v4194 = vadd.f32 %v4193, 1.0
  %v4195 = vrcp.pop %v4194
  %v4196 = vmul.f32 1.0, %v4195
  %v4197 = vtanh.pop %v4190
  %v4198 = vmul.f32 %v4196, %v3991
  %4200 = vrot.lane.b32.xlu0 %v4197, 64
  %v4201 = vpop.permute.xlu0 %4200
  %v4203 = vmul.f32 %v4196, %v4201
  %4205 = vrot.lane.b32.xlu0 %v4203, 32
  %v4206 = vpop.permute.xlu0 %4205
  %v4208 = vadd.f32 %v4198, %v4206
  %v4209 = vtanh.pop %v4208
  %4211 = vrot.lane.b32.xlu0 %v4209, 64
  %v4212 = vpop.permute.xlu0 %4211
  %v4214 = vmul.f32 %v4196, %v4212
  %v4215 = vmul.f32 %v569, %v4214
  %v4216 = vmul.f32 %v576, %v3994
  %v4217 = vadd.f32 %v4215, %v4216
  %v4218 = vmul.f32 %v4217, %v569
  %4220 = vrot.lane.b32.xlu0 %v4218, 32
  %v4221 = vpop.permute.xlu0 %4220
  %4223 = vst.msk [vmem:[#allocation2 + $0x38] sm:$0xff] %vm346, %v4221
  %v4224 = vld [vmem:[#allocation4] sm:$0xff]
  %4226 = vrot.lane.b32.xlu0 %v4107, 32
  %v4227 = vpop.permute.xlu0 %4226
  %v4228 = vsel %vm346, %v4227, 0
  %4230 = vmatprep.subr.mxu0 0.0
  %4231 = vmatpush1.msra.mxu0 %v2422
  %4232 = vmatprep.subr.mxu0 0.0
  %4233 = vmatpush1.msra.mxu0 %v2423
  %4234 = vmatprep.subr.mxu0 0.0
  %4235 = vmatpush1.msra.mxu0 %v2424
  %4236 = vmatprep.subr.mxu0 0.0
  %4237 = vmatpush1.msra.mxu0 %v2425
  %4238 = vmatprep.subr.mxu0 0.0
  %4239 = vmatpush1.msra.mxu0 0.0
  %4240 = vmatprep.subr.mxu0 0.0
  %4241 = vmatpush1.msra.mxu0 0.0
  %4242 = vmatprep.subr.mxu0 0.0
  %4243 = vmatpush1.msra.mxu0 0.0
  %4244 = vmatprep.subr.mxu0 0.0
  %4245 = vmatpush1.msra.mxu0 0.0
  %4246 = vmatprep.subr.mxu0 0.0
  %4247 = vmatpush1.msra.mxu0 0.0
  %4248 = vmatprep.subr.mxu0 0.0
  %4249 = vmatpush1.msra.mxu0 0.0
  %4250 = vmatprep.subr.mxu0 0.0
  %4251 = vmatpush1.msra.mxu0 0.0
  %4252 = vmatprep.subr.mxu0 0.0
  %4253 = vmatpush1.msra.mxu0 0.0
  %4254 = vmatprep.subr.mxu0 0.0
  %4255 = vmatpush1.msra.mxu0 0.0
  %4256 = vmatprep.subr.mxu0 0.0
  %4257 = vmatpush1.msra.mxu0 0.0
  %4258 = vmatprep.subr.mxu0 0.0
  %4259 = vmatpush1.msra.mxu0 0.0
  %4260 = vmatprep.subr.mxu0 0.0
  %4261 = vmatpush1.msra.mxu0 0.0
  %4262 = vmatprep.subr.mxu0 0.0
  %4263 = vmatpush1.msra.mxu0 0.0
  %4264 = vmatprep.subr.mxu0 0.0
  %4265 = vmatpush1.msra.mxu0 0.0
  %4266 = vmatprep.subr.mxu0 0.0
  %4267 = vmatpush1.msra.mxu0 0.0
  %4268 = vmatprep.subr.mxu0 0.0
  %4269 = vmatpush1.msra.mxu0 0.0
  %4270 = vmatprep.subr.mxu0 0.0
  %4271 = vmatpush1.msra.mxu0 0.0
  %4272 = vmatprep.subr.mxu0 0.0
  %4273 = vmatpush1.msra.mxu0 0.0
  %4274 = vmatprep.subr.mxu0 0.0
  %4275 = vmatpush1.msra.mxu0 0.0
  %4276 = vmatprep.subr.mxu0 0.0
  %4277 = vmatpush1.msra.mxu0 0.0
  %4278 = vmatprep.subr.mxu0 0.0
  %4279 = vmatpush1.msra.mxu0 0.0
  %4280 = vmatprep.subr.mxu0 0.0
  %4281 = vmatpush1.msra.mxu0 0.0
  %4282 = vmatprep.subr.mxu0 0.0
  %4283 = vmatpush1.msra.mxu0 0.0
  %4284 = vmatprep.subr.mxu0 0.0
  %4285 = vmatpush1.msra.mxu0 0.0
  %4286 = vmatprep.subr.mxu0 0.0
  %4287 = vmatpush1.msra.mxu0 0.0
  %4288 = vmatprep.subr.mxu0 0.0
  %4289 = vmatpush1.msra.mxu0 0.0
  %4290 = vmatprep.subr.mxu0 0.0
  %4291 = vmatpush1.msra.mxu0 0.0
  %4292 = vmatprep.subr.mxu0 0.0
  %4293 = vmatpush1.msra.mxu0 0.0
  %4294 = vmatprep.mubr.f32.mxu0 0.0
  %4295 = vmatmul.mubr.f32.gmra.mrb[0].mxu0 %v4228
  %v4296 = vpop.f32.mrb[0].mxu0
  %v4297 = vadd.f32 0.0, %v4296
  %v4298 = vpop.f32.mrb[0].mxu0
  %4299 = vdwg.mxu0
  %v4300 = vadd.f32 %v4224, %v4297
  %v4301 = vxor.u32 %v4300, 2147483648
  %v4302 = vmul.f32 %v4301, 1.442695
  %v4303 = vpow.pop %v4302
  %v4304 = vadd.f32 %v4303, 1.0
  %v4305 = vrcp.pop %v4304
  %v4306 = vmul.f32 1.0, %v4305
  %v4307 = vtanh.pop %v4300
  %v4308 = vmul.f32 %v4306, %v4104
  %4310 = vrot.lane.b32.xlu0 %v4307, 64
  %v4311 = vpop.permute.xlu0 %4310
  %v4313 = vmul.f32 %v4306, %v4311
  %4315 = vrot.lane.b32.xlu0 %v4313, 32
  %v4316 = vpop.permute.xlu0 %4315
  %v4318 = vadd.f32 %v4308, %v4316
  %v4319 = vtanh.pop %v4318
  %4321 = vrot.lane.b32.xlu0 %v4319, 64
  %v4322 = vpop.permute.xlu0 %4321
  %v4324 = vmul.f32 %v4306, %v4322
  %v4325 = vmul.f32 %v448, %v4324
  %v4326 = vmul.f32 %v455, %v4107
  %v4327 = vadd.f32 %v4325, %v4326
  %v4328 = vmul.f32 %v4327, %v448
  %4330 = vrot.lane.b32.xlu0 %v4328, 64
  %v4331 = vpop.permute.xlu0 %4330
  %4333 = vst.msk [vmem:[#allocation2] sm:$0xff] %vm587, %v4331
  %v4334 = vld [vmem:[#allocation2] sm:$0xff]
  %v4335 = vadd.f32 %v4334, 0.0
  %v4336 = vld [vmem:[#allocation2 + $0x8] sm:$0xff]
  %v4337 = vadd.f32 %v4335, %v4336
  %v4338 = vld [vmem:[#allocation2 + $0x10] sm:$0xff]
  %v4339 = vadd.f32 %v4337, %v4338
  %v4340 = vld [vmem:[#allocation2 + $0x18] sm:$0xff]
  %v4341 = vadd.f32 %v4339, %v4340
  %v4342 = vld [vmem:[#allocation2 + $0x20] sm:$0xff]
  %v4343 = vadd.f32 %v4341, %v4342
  %v4344 = vld [vmem:[#allocation2 + $0x28] sm:$0xff]
  %v4345 = vadd.f32 %v4343, %v4344
  %v4346 = vld [vmem:[#allocation2 + $0x30] sm:$0xff]
  %v4347 = vadd.f32 %v4345, %v4346
  %v4348 = vld [vmem:[#allocation2 + $0x38] sm:$0xff]
  %v4349 = vadd.f32 %v4347, %v4348
  %v4350 = vld [vmem:[#allocation5] sm:$0x1]
  %v4352 = vlaneseq
  %v4353 = vshrl.u32 %v4352, 7
  %v4354 = vsub.s32 0, %v4353
  %v4355 = vrot.slane %v4350, %v4354
  %4356 = vset.pattern.permute.xlu0 0
  %4357 = vperm.xlu0 %4356, %v4355
  %v4358 = vpop.permute.xlu0 %4357
  %v4360 = vmul.f32 %v4349, %v4358
  %v4361 = vld [vmem:[%s15] sm:$0xff]
  %v4362 = vld [vmem:[%s15 + $0x8] sm:$0xff]
  %v4363 = vld [vmem:[%s15 + $0x10] sm:$0xff]
  %v4364 = vld [vmem:[%s15 + $0x18] sm:$0xff]
  %v4365 = vld [vmem:[%s15 + $0x20] sm:$0xff]
  %v4366 = vld [vmem:[%s15 + $0x28] sm:$0xff]
  %v4367 = vld [vmem:[%s15 + $0x30] sm:$0xff]
  %v4368 = vld [vmem:[%s15 + $0x38] sm:$0xff]
  %v4369 = vld [vmem:[%s16] sm:$0x1]
  %v4371 = vlaneseq
  %v4372 = vshrl.u32 %v4371, 7
  %v4373 = vsub.s32 0, %v4372
  %v4374 = vrot.slane %v4369, %v4373
  %v4377 = vsel %vm2276, %v4360, 0
  %4379 = vmatprep.subr.mxu0 0.0
  %4380 = vmatpush1.msra.mxu0 %v4361
  %4381 = vmatprep.subr.mxu0 0.0
  %4382 = vmatpush1.msra.mxu0 %v4362
  %4383 = vmatprep.subr.mxu0 0.0
  %4384 = vmatpush1.msra.mxu0 %v4363
  %4385 = vmatprep.subr.mxu0 0.0
  %4386 = vmatpush1.msra.mxu0 %v4364
  %4387 = vmatprep.subr.mxu0 0.0
  %4388 = vmatpush1.msra.mxu0 %v4365
  %4389 = vmatprep.subr.mxu0 0.0
  %4390 = vmatpush1.msra.mxu0 %v4366
  %4391 = vmatprep.subr.mxu0 0.0
  %4392 = vmatpush1.msra.mxu0 %v4367
  %4393 = vmatprep.subr.mxu0 0.0
  %4394 = vmatpush1.msra.mxu0 %v4368
  %4395 = vmatprep.subr.mxu0 0.0
  %4396 = vmatpush1.msra.mxu0 0.0
  %4397 = vmatprep.subr.mxu0 0.0
  %4398 = vmatpush1.msra.mxu0 0.0
  %4399 = vmatprep.subr.mxu0 0.0
  %4400 = vmatpush1.msra.mxu0 0.0
  %4401 = vmatprep.subr.mxu0 0.0
  %4402 = vmatpush1.msra.mxu0 0.0
  %4403 = vmatprep.subr.mxu0 0.0
  %4404 = vmatpush1.msra.mxu0 0.0
  %4405 = vmatprep.subr.mxu0 0.0
  %4406 = vmatpush1.msra.mxu0 0.0
  %4407 = vmatprep.subr.mxu0 0.0
  %4408 = vmatpush1.msra.mxu0 0.0
  %4409 = vmatprep.subr.mxu0 0.0
  %4410 = vmatpush1.msra.mxu0 0.0
  %4411 = vmatprep.subr.mxu0 0.0
  %4412 = vmatpush1.msra.mxu0 0.0
  %4413 = vmatprep.subr.mxu0 0.0
  %4414 = vmatpush1.msra.mxu0 0.0
  %4415 = vmatprep.subr.mxu0 0.0
  %4416 = vmatpush1.msra.mxu0 0.0
  %4417 = vmatprep.subr.mxu0 0.0
  %4418 = vmatpush1.msra.mxu0 0.0
  %4419 = vmatprep.subr.mxu0 0.0
  %4420 = vmatpush1.msra.mxu0 0.0
  %4421 = vmatprep.subr.mxu0 0.0
  %4422 = vmatpush1.msra.mxu0 0.0
  %4423 = vmatprep.subr.mxu0 0.0
  %4424 = vmatpush1.msra.mxu0 0.0
  %4425 = vmatprep.subr.mxu0 0.0
  %4426 = vmatpush1.msra.mxu0 0.0
  %4427 = vmatprep.subr.mxu0 0.0
  %4428 = vmatpush1.msra.mxu0 0.0
  %4429 = vmatprep.subr.mxu0 0.0
  %4430 = vmatpush1.msra.mxu0 0.0
  %4431 = vmatprep.subr.mxu0 0.0
  %4432 = vmatpush1.msra.mxu0 0.0
  %4433 = vmatprep.subr.mxu0 0.0
  %4434 = vmatpush1.msra.mxu0 0.0
  %4435 = vmatprep.subr.mxu0 0.0
  %4436 = vmatpush1.msra.mxu0 0.0
  %4437 = vmatprep.subr.mxu0 0.0
  %4438 = vmatpush1.msra.mxu0 0.0
  %4439 = vmatprep.subr.mxu0 0.0
  %4440 = vmatpush1.msra.mxu0 0.0
  %4441 = vmatprep.subr.mxu0 0.0
  %4442 = vmatpush1.msra.mxu0 0.0
  %4443 = vmatprep.mubr.f32.mxu0 0.0
  %4444 = vmatmul.mubr.f32.gmra.mrb[0].mxu0 %v4377
  %v4445 = vpop.f32.mrb[0].mxu0
  %v4446 = vadd.f32 %v4374, %v4445
  %v4447 = vpop.f32.mrb[0].mxu0
  %4448 = vdwg.mxu0
  %v4449 = vxor.u32 %v4446, 2147483648
  %v4450 = vmul.f32 %v4449, 1.442695
  %v4451 = vpow.pop %v4450
  %v4452 = vadd.f32 %v4451, 1.0
  %v4453 = vrcp.pop %v4452
  %v4454 = vmul.f32 1.0, %v4453
  %vm4455 = vcmask 31744
  %4456 = vst.msk [vmem:[%s17] sm:$0xff] %vm4455, %v4454
  // Predicated region
  $region70: #{rnanet_forward_pallas.1} parent=0 // pred_check
    _
  $region71: #{rnanet_forward_pallas.1} parent=0 // pred_check_branch
    %4458 = sbr.rel (0) target = $region73
  $region72: #{rnanet_forward_pallas.1} parent=0 // pred_region
    _
  $region73: #{rnanet_forward_pallas.1} parent=0 // pred_fallthru
    _
  // Predicated region
  $region74: #{rnanet_forward_pallas.1} parent=0 // pred_check
    _
  $region75: #{rnanet_forward_pallas.1} parent=0 // pred_check_branch
    %4460 = sbr.rel (0) target = $region77
  $region76: #{rnanet_forward_pallas.1} parent=0 // pred_region
    _
  $region77: #{rnanet_forward_pallas.1} parent=0 // pred_fallthru
    _

</llo_original>
